<compile_context>
chip_gen: v7x
topology: tpu7x:2x2x1
jax: 0.10.0
libtpu: 0.0.40
codegen_flags: <defaults>
</compile_context>

<pallas_src>
import functools

import jax
import jax.numpy as jnp
from jax.experimental import pallas as pl
from jax.experimental.pallas import tpu as pltpu

IN_CHANNEL = 1
PN_FILTERS = [8, 8, 8, 16, 32]       # stands in for [64, 64, 64, 128, 512]
POOL_OUT = (4, 4, 4)                 # stands in for (64, 64, 64)
LINEAR_LAYERS = [256, 256, 128]      # stands in for [4096, 8192, 10000]
NUM_POINTS = 8                       # stands in for 5000
BN_EPS = 1e-5

CONV_VMEM_LIMIT = 48 * 1024 * 1024   # safe on v5e/v6e (128 MiB) and v7x (64 MiB)
LINEAR_VMEM_LIMIT = 32 * 1024 * 1024 # >= 2x (2 MB..4 MB bf16 weight tile) + slack


def _round_up(x, m):
    return (x + m - 1) // m * m


def _largest_divisor_tile(dim, candidates):
    for c in candidates:
        if dim % c == 0:
            return c
    return 128  # dim is always a multiple of 128 here


# ----------------------------------------------------------------------------
# conv2d (3x3, 'same', replicate pad) + BatchNorm(eval, folded) + ELU
#   - replicate padding done in VMEM (no HBM pad round trip)
#   - 3 MXU dots of K=3*Cin (grouped by dy), bf16 operands, f32 accumulate
#   - BN scale pre-folded into the weights; only the bias is added here
# ----------------------------------------------------------------------------
def _conv_bn_elu_compute(x_ref, w_ref, b_ref, *, H, W):
    cin = x_ref.shape[-1]
    cout = w_ref.shape[-1]
    x = x_ref[0].astype(jnp.bfloat16)                             # (H, W, Cin)

    # replicate padding in VMEM (major axis + sublane axis concats)
    x = jnp.concatenate([x[:1], x, x[H - 1:H]], axis=0)           # (H+2, W, Cin)
    x = jnp.concatenate([x[:, :1], x, x[:, W - 1:W]], axis=1)     # (H+2, W+2, Cin)

    # 3 dots grouped by dy (dy shift lives on the layout-free major axis);
    # each patch only concatenates the 3 dx taps -> 3x (not 9x) intermediate.
    acc = jnp.zeros((H * W, cout), jnp.float32)
    for dy in range(3):
        patch = jnp.concatenate(
            [x[dy:dy + H, dx:dx + W, :] for dx in range(3)], axis=-1)
        patch = patch.reshape(H * W, 3 * cin)                     # bf16
        acc = acc + jnp.dot(patch, w_ref[dy],
                            preferred_element_type=jnp.float32)

    # bias (BN already folded into weights) + ELU(alpha=1), all in f32.
    y = acc + b_ref[...]
    y = jnp.where(y > 0, y, jnp.exp(jnp.minimum(y, 0.0)) - 1.0)
    return y                                                      # (H*W, Cout) f32


def _conv3x3_bn_elu_kernel(x_ref, w_ref, b_ref, o_ref, *, H, W):
    y = _conv_bn_elu_compute(x_ref, w_ref, b_ref, H=H, W=W)
    o_ref[...] = y.reshape(1, H, W, o_ref.shape[-1])


def conv3x3_bn_elu(x_nhwc, w, bias):
    N, H, W, Cin = x_nhwc.shape
    Cout = w.shape[-1]
    kernel = functools.partial(_conv3x3_bn_elu_kernel, H=H, W=W)
    # TODO(synk): at real sizes (Cout=512, H=W large) add an H-row-tile grid axis
    # with a 1-row replicate halo (pre-pad H in HBM + pl.Element offsets) so the
    # per-step block fits v7x's 64 MiB VMEM and the pipeline is deeper than N.
    return pl.pallas_call(
        kernel,
        out_shape=jax.ShapeDtypeStruct((N, H, W, Cout), jnp.float32),
        grid=(N,),
        in_specs=[
            pl.BlockSpec((1, H, W, Cin), lambda n: (n, 0, 0, 0)),
            pl.BlockSpec((3, 3 * Cin, Cout), lambda n: (0, 0, 0)),
            pl.BlockSpec((1, Cout), lambda n: (0, 0)),
        ],
        out_specs=pl.BlockSpec((1, H, W, Cout), lambda n: (n, 0, 0, 0)),
        compiler_params=pltpu.CompilerParams(
            dimension_semantics=("parallel",),
            vmem_limit_bytes=CONV_VMEM_LIMIT),
    )(x_nhwc, w, bias.reshape(1, Cout))


# ----------------------------------------------------------------------------
# last conv + fused AdaptiveMaxPool3d
# PyTorch's AdaptiveMaxPool3d on the 4-D (N, C, H, W) conv output pools over
# (D=C, H, W) per n-slice; with the conv computed per image in one kernel body
# we fold the pool in directly, so the full activation never touches HBM.
# Output is lane-dense (N, sd, sh*sw)  (sh*sw = 4096 at real sizes).
# ----------------------------------------------------------------------------
def _conv3x3_bn_elu_pool_kernel(x_ref, w_ref, b_ref, o_ref, *, H, W, sd, sh, sw):
    cout = w_ref.shape[-1]
    kh, kw, kd = H // sh, W // sw, cout // sd

    y = _conv_bn_elu_compute(x_ref, w_ref, b_ref, H=H, W=W)       # (H*W, C) f32
    y = y.reshape(H, W, cout)

    # H-window max (splits only the major axis: layout-free).
    y = y.reshape(sh, kh, W, cout)
    m = y[:, 0]
    for t in range(1, kh):
        m = jnp.maximum(m, y[:, t])                               # (sh, W, C)

    # W-window max.
    m = m.reshape(sh, sw, kw, cout)
    r = m[:, :, 0]
    for t in range(1, kw):
        r = jnp.maximum(r, m[:, :, t])                            # (sh, sw, C)

    # channel(D)-window max on the already spatially-reduced tensor.
    r = r.reshape(sh * sw, sd, kd)
    out = jnp.max(r, axis=-1)                                     # (sh*sw, sd)

    # lane-dense store: (sd, sh*sw); tiny XLU transpose, single store per image.
    o_ref[...] = jnp.transpose(out, (1, 0))[None]


def conv3x3_bn_elu_maxpool(x_nhwc, w, bias, pool_out):
    N, H, W, Cin = x_nhwc.shape
    Cout = w.shape[-1]
    sd, sh, sw = pool_out
    # TODO(synk): only the uniform-window (divisible) case of AdaptiveMaxPool3d
    # is implemented; PyTorch differs for non-divisible sizes.
    assert Cout % sd == 0 and H % sh == 0 and W % sw == 0
    kernel = functools.partial(_conv3x3_bn_elu_pool_kernel,
                               H=H, W=W, sd=sd, sh=sh, sw=sw)
    return pl.pallas_call(
        kernel,
        out_shape=jax.ShapeDtypeStruct((N, sd, sh * sw), jnp.float32),
        grid=(N,),
        in_specs=[
            pl.BlockSpec((1, H, W, Cin), lambda n: (n, 0, 0, 0)),
            pl.BlockSpec((3, 3 * Cin, Cout), lambda n: (0, 0, 0)),
            pl.BlockSpec((1, Cout), lambda n: (0, 0)),
        ],
        out_specs=pl.BlockSpec((1, sd, sh * sw), lambda n: (n, 0, 0)),
        compiler_params=pltpu.CompilerParams(
            dimension_semantics=("parallel",),
            vmem_limit_bytes=CONV_VMEM_LIMIT),
    )(x_nhwc, w, bias.reshape(1, Cout))


# ----------------------------------------------------------------------------
# Linear (+ optional ReLU): tiled GEMV, bf16 streamed weights, f32 accumulation
# directly in the resident output block (init / bias+ReLU finalize via pl.when).
# K and O are pre-padded to multiples of 128 at init (no giant-block fallback).
# ----------------------------------------------------------------------------
def _linear_kernel(x_ref, w_ref, b_ref, o_ref, *, relu):
    k = pl.program_id(1)

    @pl.when(k == 0)
    def _():
        o_ref[...] = jnp.zeros_like(o_ref)

    o_ref[...] += jnp.dot(x_ref[...].astype(jnp.bfloat16), w_ref[...],
                          preferred_element_type=jnp.float32)

    @pl.when(k == pl.num_programs(1) - 1)
    def _():
        y = o_ref[...] + b_ref[...]
        if relu:
            y = jnp.maximum(y, 0.0)
        o_ref[...] = y


def linear(x, w_pad, b_pad, out_features, relu):
    B, K = x.shape
    Kp, Op = w_pad.shape                       # 128-multiples (padded at init)
    if K < Kp:
        x = jnp.pad(x, ((0, 0), (0, Kp - K)))  # zero rows of w make this exact
    tn = _largest_divisor_tile(Op, (1024, 512, 384, 256, 128))
    tk = _largest_divisor_tile(Kp, (2048, 1024, 512, 384, 256, 128))
    y = pl.pallas_call(
        functools.partial(_linear_kernel, relu=relu),
        out_shape=jax.ShapeDtypeStruct((B, Op), jnp.float32),
        grid=(Op // tn, Kp // tk),             # reduction axis last
        in_specs=[
            pl.BlockSpec((B, tk), lambda j, k: (0, k)),
            pl.BlockSpec((tk, tn), lambda j, k: (k, j)),
            pl.BlockSpec((1, tn), lambda j, k: (0, j)),
        ],
        out_specs=pl.BlockSpec((B, tn), lambda j, k: (0, j)),
        compiler_params=pltpu.CompilerParams(
            dimension_semantics=("parallel", "arbitrary"),
            vmem_limit_bytes=LINEAR_VMEM_LIMIT),
    )(x, w_pad, b_pad)
    return y[:, :out_features]


# ----------------------------------------------------------------------------
# parameters + forward
# ----------------------------------------------------------------------------
def init_params(key, batch):
    params = {"conv": [], "linear": []}
    chans = [IN_CHANNEL] + PN_FILTERS
    for i in range(len(PN_FILTERS)):
        key, k = jax.random.split(key)
        cin, cout = chans[i], chans[i + 1]
        w = jax.random.normal(k, (3, 3, cin, cout), jnp.float32) * 0.1
        # PyTorch-default BatchNorm params / running stats, eval-mode fold.
        gamma = jnp.ones((cout,), jnp.float32)
        beta = jnp.zeros((cout,), jnp.float32)
        mean = jnp.zeros((cout,), jnp.float32)
        var = jnp.ones((cout,), jnp.float32)
        scale = gamma / jnp.sqrt(var + BN_EPS)
        bias = beta - mean * scale
        # BN scale folded into the conv weights; layout (dy, dx*cin, cout); bf16.
        w_folded = (w * scale[None, None, None, :]).reshape(3, 3 * cin, cout)
        params["conv"].append((w_folded.astype(jnp.bfloat16), bias))

    # Linear-decoder input dim: batch * prod(POOL_OUT) because ResNet3D/ResNet3DMM
    # are identity stubs here.
    # TODO(synk): the original module hard-codes a 3500-feature decoder input
    # produced by ResNet3DMM (not defined in the source); with the identity stub
    # the input dim follows the flattened pooled activation (batch-dependent).
    lin_in = batch * POOL_OUT[0] * POOL_OUT[1] * POOL_OUT[2]
    dims = [lin_in] + LINEAR_LAYERS + [NUM_POINTS * 3]
    for i in range(len(dims) - 1):
        key, k = jax.random.split(key)
        k_true, o_true = dims[i], dims[i + 1]
        w = jax.random.normal(k, (k_true, o_true), jnp.float32) / jnp.sqrt(
            jnp.float32(k_true))
        b = jnp.zeros((o_true,), jnp.float32)
        kp, op = _round_up(k_true, 128), _round_up(o_true, 128)
        w_pad = (jnp.zeros((kp, op), jnp.float32)
                 .at[:k_true, :o_true].set(w).astype(jnp.bfloat16))
        b_pad = jnp.zeros((1, op), jnp.float32).at[0, :o_true].set(b)
        params["linear"].append((w_pad, b_pad, o_true))
    return params


def ptcpp_forward(params, x_nchw):
    # -------- encoding --------
    x = jnp.transpose(x_nchw, (0, 2, 3, 1))              # NCHW -> NHWC (Cin=1, cheap)
    n_conv = len(params["conv"])
    for i, (w, b) in enumerate(params["conv"]):
        if i < n_conv - 1:
            x = conv3x3_bn_elu(x, w, b)
        else:
            # last conv with the adaptive max pool fused in (lane-dense output)
            x = conv3x3_bn_elu_maxpool(x, w, b, POOL_OUT)  # (N, sd, sh*sw)
    N = x.shape[0]
    sd, sh, sw = POOL_OUT
    x = x.reshape(N, sd, sh, sw)                          # pure reshape to PyTorch order
    x = x[None]                                           # torch.unsqueeze(x, 0)
    # TODO(synk): ResNet3D definition is not provided in the source module;
    # identity passthrough.
    x = x.reshape(x.shape[0], -1)                         # flatten(start_dim=1)

    # -------- decoding --------
    x = x[:, :, None, None, None]
    # TODO(synk): ResNet3DMM definition is not provided in the source module
    # (original produces 3500 features); identity passthrough.
    x = x.reshape(x.shape[0], -1)
    n_lin = len(params["linear"])
    for i, (w, b, o_true) in enumerate(params["linear"]):
        x = linear(x, w, b, o_true, relu=(i < n_lin - 1))  # Linear(+ReLU) x3, Linear
    x = x[:, None, :, None]                               # (B, 1, P*3, 1)
    x = x.reshape(x.shape[0], x.shape[1], -1, 3)          # view(B, 1, -1, 3)
    return x


if __name__ == "__main__":
    key = jax.random.PRNGKey(0)
    kx, kp = jax.random.split(key)
    batch = 2
    x = jax.random.normal(kx, (batch, IN_CHANNEL, 16, 16), jnp.float32)  # NCHW
    params = init_params(kp, batch)

    fwd = jax.jit(lambda xx: ptcpp_forward(params, xx))
    out = fwd(x)
    jax.block_until_ready(out)
    assert out.shape == (1, 1, NUM_POINTS, 3), out.shape
    assert bool(jnp.all(jnp.isfinite(out)))
    print("KERNEL_OK")
</pallas_src>

<mosaic_0001>
module attributes {stable_mosaic.version = 11 : i64} {
  func.func @_conv3x3_bn_elu_kernel(%arg0: i32, %arg1: memref<1x16x16x8xf32, #tpu.memory_space<vmem>>, %arg2: memref<3x24x8xbf16, #tpu.memory_space<vmem>>, %arg3: memref<1x8xf32, #tpu.memory_space<vmem>>, %arg4: memref<1x16x16x8xf32, #tpu.memory_space<vmem>>) attributes {dimension_semantics = [#tpu.dimension_semantics<parallel>], iteration_bounds = array<i64: 2>, scalar_prefetch = 0 : i64, scratch_operands = 0 : i64, tpu.core_type = #tpu.core_type<tc>, window_params = [{transform_indices = @transform_0, window_bounds = array<i64: 1, 16, 16, 8>}, {pipeline_mode = #tpu.pipeline_mode<synchronous>, transform_indices = @transform_1, window_bounds = array<i64: 3, 24, 8>}, {pipeline_mode = #tpu.pipeline_mode<synchronous>, transform_indices = @transform_2, window_bounds = array<i64: 1, 8>}, {transform_indices = @transform_3, window_bounds = array<i64: 1, 16, 16, 8>}]} {
    %c0 = arith.constant 0 : index
    %c0_0 = arith.constant 0 : index
    %c0_1 = arith.constant 0 : index
    %c0_2 = arith.constant 0 : index
    %0 = vector.load %arg1[%c0, %c0_0, %c0_1, %c0_2] : memref<1x16x16x8xf32, #tpu.memory_space<vmem>>, vector<1x16x16x8xf32>
    %1 = vector.shape_cast %0 : vector<1x16x16x8xf32> to vector<16x16x8xf32>
    %2 = arith.truncf %1 : vector<16x16x8xf32> to vector<16x16x8xbf16>
    %3 = vector.extract_strided_slice %2 {offsets = [0, 0, 0], sizes = [1, 16, 8], strides = [1, 1, 1]} : vector<16x16x8xbf16> to vector<1x16x8xbf16>
    %4 = vector.extract_strided_slice %2 {offsets = [15, 0, 0], sizes = [1, 16, 8], strides = [1, 1, 1]} : vector<16x16x8xbf16> to vector<1x16x8xbf16>
    %5 = tpu.concatenate %3, %2, %4 in 0 : vector<1x16x8xbf16>, vector<16x16x8xbf16>, vector<1x16x8xbf16> -> vector<18x16x8xbf16>
    %6 = vector.extract_strided_slice %5 {offsets = [0, 0, 0], sizes = [18, 1, 8], strides = [1, 1, 1]} : vector<18x16x8xbf16> to vector<18x1x8xbf16>
    %7 = vector.extract_strided_slice %5 {offsets = [0, 15, 0], sizes = [18, 1, 8], strides = [1, 1, 1]} : vector<18x16x8xbf16> to vector<18x1x8xbf16>
    %8 = tpu.concatenate %6, %5, %7 in 1 : vector<18x1x8xbf16>, vector<18x16x8xbf16>, vector<18x1x8xbf16> -> vector<18x18x8xbf16>
    %cst = arith.constant 0.000000e+00 : f32
    %9 = vector.broadcast %cst : f32 to vector<256x8xf32>
    %10 = vector.extract_strided_slice %8 {offsets = [0, 0, 0], sizes = [16, 16, 8], strides = [1, 1, 1]} : vector<18x18x8xbf16> to vector<16x16x8xbf16>
    %11 = vector.extract_strided_slice %8 {offsets = [0, 1, 0], sizes = [16, 16, 8], strides = [1, 1, 1]} : vector<18x18x8xbf16> to vector<16x16x8xbf16>
    %12 = vector.extract_strided_slice %8 {offsets = [0, 2, 0], sizes = [16, 16, 8], strides = [1, 1, 1]} : vector<18x18x8xbf16> to vector<16x16x8xbf16>
    %13 = tpu.concatenate %10, %11, %12 in 2 : vector<16x16x8xbf16>, vector<16x16x8xbf16>, vector<16x16x8xbf16> -> vector<16x16x24xbf16>
    %14 = vector.shape_cast %13 : vector<16x16x24xbf16> to vector<256x24xbf16>
    %c0_3 = arith.constant 0 : index
    %c0_4 = arith.constant 0 : index
    %c0_5 = arith.constant 0 : index
    %15 = vector.load %arg2[%c0_3, %c0_4, %c0_5] : memref<3x24x8xbf16, #tpu.memory_space<vmem>>, vector<1x24x8xbf16>
    %16 = vector.shape_cast %15 : vector<1x24x8xbf16> to vector<24x8xbf16>
    %cst_6 = arith.constant dense<0.000000e+00> : vector<256x8xf32>
    %17 = tpu.matmul %14, %16, %cst_6 {dimension_numbers = #tpu.dot_dimension_numbers<[1], [0], [0], [1], [0, 0, 1, 1], [], []>} : vector<256x24xbf16>, vector<24x8xbf16>, vector<256x8xf32> -> vector<256x8xf32>
    %18 = arith.addf %9, %17 : vector<256x8xf32>
    %19 = vector.extract_strided_slice %8 {offsets = [1, 0, 0], sizes = [16, 16, 8], strides = [1, 1, 1]} : vector<18x18x8xbf16> to vector<16x16x8xbf16>
    %20 = vector.extract_strided_slice %8 {offsets = [1, 1, 0], sizes = [16, 16, 8], strides = [1, 1, 1]} : vector<18x18x8xbf16> to vector<16x16x8xbf16>
    %21 = vector.extract_strided_slice %8 {offsets = [1, 2, 0], sizes = [16, 16, 8], strides = [1, 1, 1]} : vector<18x18x8xbf16> to vector<16x16x8xbf16>
    %22 = tpu.concatenate %19, %20, %21 in 2 : vector<16x16x8xbf16>, vector<16x16x8xbf16>, vector<16x16x8xbf16> -> vector<16x16x24xbf16>
    %23 = vector.shape_cast %22 : vector<16x16x24xbf16> to vector<256x24xbf16>
    %c1 = arith.constant 1 : index
    %c0_7 = arith.constant 0 : index
    %c0_8 = arith.constant 0 : index
    %24 = vector.load %arg2[%c1, %c0_7, %c0_8] : memref<3x24x8xbf16, #tpu.memory_space<vmem>>, vector<1x24x8xbf16>
    %25 = vector.shape_cast %24 : vector<1x24x8xbf16> to vector<24x8xbf16>
    %cst_9 = arith.constant dense<0.000000e+00> : vector<256x8xf32>
    %26 = tpu.matmul %23, %25, %cst_9 {dimension_numbers = #tpu.dot_dimension_numbers<[1], [0], [0], [1], [0, 0, 1, 1], [], []>} : vector<256x24xbf16>, vector<24x8xbf16>, vector<256x8xf32> -> vector<256x8xf32>
    %27 = arith.addf %18, %26 : vector<256x8xf32>
    %28 = vector.extract_strided_slice %8 {offsets = [2, 0, 0], sizes = [16, 16, 8], strides = [1, 1, 1]} : vector<18x18x8xbf16> to vector<16x16x8xbf16>
    %29 = vector.extract_strided_slice %8 {offsets = [2, 1, 0], sizes = [16, 16, 8], strides = [1, 1, 1]} : vector<18x18x8xbf16> to vector<16x16x8xbf16>
    %30 = vector.extract_strided_slice %8 {offsets = [2, 2, 0], sizes = [16, 16, 8], strides = [1, 1, 1]} : vector<18x18x8xbf16> to vector<16x16x8xbf16>
    %31 = tpu.concatenate %28, %29, %30 in 2 : vector<16x16x8xbf16>, vector<16x16x8xbf16>, vector<16x16x8xbf16> -> vector<16x16x24xbf16>
    %32 = vector.shape_cast %31 : vector<16x16x24xbf16> to vector<256x24xbf16>
    %c2 = arith.constant 2 : index
    %c0_10 = arith.constant 0 : index
    %c0_11 = arith.constant 0 : index
    %33 = vector.load %arg2[%c2, %c0_10, %c0_11] : memref<3x24x8xbf16, #tpu.memory_space<vmem>>, vector<1x24x8xbf16>
    %34 = vector.shape_cast %33 : vector<1x24x8xbf16> to vector<24x8xbf16>
    %cst_12 = arith.constant dense<0.000000e+00> : vector<256x8xf32>
    %35 = tpu.matmul %32, %34, %cst_12 {dimension_numbers = #tpu.dot_dimension_numbers<[1], [0], [0], [1], [0, 0, 1, 1], [], []>} : vector<256x24xbf16>, vector<24x8xbf16>, vector<256x8xf32> -> vector<256x8xf32>
    %36 = arith.addf %27, %35 : vector<256x8xf32>
    %c0_13 = arith.constant 0 : index
    %c0_14 = arith.constant 0 : index
    %37 = vector.load %arg3[%c0_13, %c0_14] : memref<1x8xf32, #tpu.memory_space<vmem>>, vector<1x8xf32>
    %38 = vector.broadcast %37 : vector<1x8xf32> to vector<256x8xf32>
    %39 = arith.addf %36, %38 : vector<256x8xf32>
    %cst_15 = arith.constant 0.000000e+00 : f32
    %40 = vector.broadcast %cst_15 : f32 to vector<256x8xf32>
    %41 = arith.cmpf ogt, %39, %40 : vector<256x8xf32>
    %cst_16 = arith.constant 0.000000e+00 : f32
    %42 = vector.broadcast %cst_16 : f32 to vector<256x8xf32>
    %43 = arith.minimumf %39, %42 : vector<256x8xf32>
    %44 = math.exp %43 : vector<256x8xf32>
    %cst_17 = arith.constant 1.000000e+00 : f32
    %45 = vector.broadcast %cst_17 : f32 to vector<256x8xf32>
    %46 = arith.subf %44, %45 : vector<256x8xf32>
    %47 = arith.select %41, %39, %46 : vector<256x8xi1>, vector<256x8xf32>
    %48 = vector.shape_cast %47 : vector<256x8xf32> to vector<1x16x16x8xf32>
    %c0_18 = arith.constant 0 : index
    %c0_19 = arith.constant 0 : index
    %c0_20 = arith.constant 0 : index
    %c0_21 = arith.constant 0 : index
    %49 = vector.load %arg4[%c0_18, %c0_19, %c0_20, %c0_21] : memref<1x16x16x8xf32, #tpu.memory_space<vmem>>, vector<1x16x16x8xf32>
    tpu.vector_store %arg4[%c0_18, %c0_19, %c0_20, %c0_21], %48 {strides = array<i32>} : memref<1x16x16x8xf32, #tpu.memory_space<vmem>>, vector<1x16x16x8xf32>,
    return
  }
  func.func @transform_0(%arg0: i32) -> (i32, i32, i32, i32) {
    %c0_i32 = arith.constant 0 : i32
    %c0_i32_0 = arith.constant 0 : i32
    %c0_i32_1 = arith.constant 0 : i32
    %c0_i32_2 = arith.constant 0 : i32
    return %arg0, %c0_i32, %c0_i32_0, %c0_i32_1 : i32, i32, i32, i32
  }
  func.func @transform_1(%arg0: i32) -> (i32, i32, i32) {
    %c0_i32 = arith.constant 0 : i32
    %c0_i32_0 = arith.constant 0 : i32
    %c0_i32_1 = arith.constant 0 : i32
    %c0_i32_2 = arith.constant 0 : i32
    return %c0_i32, %c0_i32_0, %c0_i32_1 : i32, i32, i32
  }
  func.func @transform_2(%arg0: i32) -> (i32, i32) {
    %c0_i32 = arith.constant 0 : i32
    %c0_i32_0 = arith.constant 0 : i32
    %c0_i32_1 = arith.constant 0 : i32
    return %c0_i32, %c0_i32_0 : i32, i32
  }
  func.func @transform_3(%arg0: i32) -> (i32, i32, i32, i32) {
    %c0_i32 = arith.constant 0 : i32
    %c0_i32_0 = arith.constant 0 : i32
    %c0_i32_1 = arith.constant 0 : i32
    %c0_i32_2 = arith.constant 0 : i32
    return %arg0, %c0_i32, %c0_i32_0, %c0_i32_1 : i32, i32, i32, i32
  }
}

module attributes {stable_mosaic.version = 11 : i64} {
  func.func @_conv3x3_bn_elu_kernel(%arg0: i32, %arg1: memref<1x16x16x1xf32, #tpu.memory_space<vmem>>, %arg2: memref<3x3x8xbf16, #tpu.memory_space<vmem>>, %arg3: memref<1x8xf32, #tpu.memory_space<vmem>>, %arg4: memref<1x16x16x8xf32, #tpu.memory_space<vmem>>) attributes {dimension_semantics = [#tpu.dimension_semantics<parallel>], iteration_bounds = array<i64: 2>, scalar_prefetch = 0 : i64, scratch_operands = 0 : i64, tpu.core_type = #tpu.core_type<tc>, window_params = [{transform_indices = @transform_0, window_bounds = array<i64: 1, 16, 16, 1>}, {pipeline_mode = #tpu.pipeline_mode<synchronous>, transform_indices = @transform_1, window_bounds = array<i64: 3, 3, 8>}, {pipeline_mode = #tpu.pipeline_mode<synchronous>, transform_indices = @transform_2, window_bounds = array<i64: 1, 8>}, {transform_indices = @transform_3, window_bounds = array<i64: 1, 16, 16, 8>}]} {
    %c0 = arith.constant 0 : index
    %c0_0 = arith.constant 0 : index
    %c0_1 = arith.constant 0 : index
    %c0_2 = arith.constant 0 : index
    %0 = vector.load %arg1[%c0, %c0_0, %c0_1, %c0_2] : memref<1x16x16x1xf32, #tpu.memory_space<vmem>>, vector<1x16x16x1xf32>
    %1 = vector.shape_cast %0 : vector<1x16x16x1xf32> to vector<16x16x1xf32>
    %2 = arith.truncf %1 : vector<16x16x1xf32> to vector<16x16x1xbf16>
    %3 = vector.extract_strided_slice %2 {offsets = [0, 0, 0], sizes = [1, 16, 1], strides = [1, 1, 1]} : vector<16x16x1xbf16> to vector<1x16x1xbf16>
    %4 = vector.extract_strided_slice %2 {offsets = [15, 0, 0], sizes = [1, 16, 1], strides = [1, 1, 1]} : vector<16x16x1xbf16> to vector<1x16x1xbf16>
    %5 = tpu.concatenate %3, %2, %4 in 0 : vector<1x16x1xbf16>, vector<16x16x1xbf16>, vector<1x16x1xbf16> -> vector<18x16x1xbf16>
    %6 = vector.extract_strided_slice %5 {offsets = [0, 0, 0], sizes = [18, 1, 1], strides = [1, 1, 1]} : vector<18x16x1xbf16> to vector<18x1x1xbf16>
    %7 = vector.extract_strided_slice %5 {offsets = [0, 15, 0], sizes = [18, 1, 1], strides = [1, 1, 1]} : vector<18x16x1xbf16> to vector<18x1x1xbf16>
    %8 = tpu.concatenate %6, %5, %7 in 1 : vector<18x1x1xbf16>, vector<18x16x1xbf16>, vector<18x1x1xbf16> -> vector<18x18x1xbf16>
    %cst = arith.constant 0.000000e+00 : f32
    %9 = vector.broadcast %cst : f32 to vector<256x8xf32>
    %10 = vector.extract_strided_slice %8 {offsets = [0, 0, 0], sizes = [16, 16, 1], strides = [1, 1, 1]} : vector<18x18x1xbf16> to vector<16x16x1xbf16>
    %11 = vector.extract_strided_slice %8 {offsets = [0, 1, 0], sizes = [16, 16, 1], strides = [1, 1, 1]} : vector<18x18x1xbf16> to vector<16x16x1xbf16>
    %12 = vector.extract_strided_slice %8 {offsets = [0, 2, 0], sizes = [16, 16, 1], strides = [1, 1, 1]} : vector<18x18x1xbf16> to vector<16x16x1xbf16>
    %13 = tpu.concatenate %10, %11, %12 in 2 : vector<16x16x1xbf16>, vector<16x16x1xbf16>, vector<16x16x1xbf16> -> vector<16x16x3xbf16>
    %14 = vector.shape_cast %13 : vector<16x16x3xbf16> to vector<256x3xbf16>
    %c0_3 = arith.constant 0 : index
    %c0_4 = arith.constant 0 : index
    %c0_5 = arith.constant 0 : index
    %15 = vector.load %arg2[%c0_3, %c0_4, %c0_5] : memref<3x3x8xbf16, #tpu.memory_space<vmem>>, vector<1x3x8xbf16>
    %16 = vector.shape_cast %15 : vector<1x3x8xbf16> to vector<3x8xbf16>
    %cst_6 = arith.constant dense<0.000000e+00> : vector<256x8xf32>
    %17 = tpu.matmul %14, %16, %cst_6 {dimension_numbers = #tpu.dot_dimension_numbers<[1], [0], [0], [1], [0, 0, 1, 1], [], []>} : vector<256x3xbf16>, vector<3x8xbf16>, vector<256x8xf32> -> vector<256x8xf32>
    %18 = arith.addf %9, %17 : vector<256x8xf32>
    %19 = vector.extract_strided_slice %8 {offsets = [1, 0, 0], sizes = [16, 16, 1], strides = [1, 1, 1]} : vector<18x18x1xbf16> to vector<16x16x1xbf16>
    %20 = vector.extract_strided_slice %8 {offsets = [1, 1, 0], sizes = [16, 16, 1], strides = [1, 1, 1]} : vector<18x18x1xbf16> to vector<16x16x1xbf16>
    %21 = vector.extract_strided_slice %8 {offsets = [1, 2, 0], sizes = [16, 16, 1], strides = [1, 1, 1]} : vector<18x18x1xbf16> to vector<16x16x1xbf16>
    %22 = tpu.concatenate %19, %20, %21 in 2 : vector<16x16x1xbf16>, vector<16x16x1xbf16>, vector<16x16x1xbf16> -> vector<16x16x3xbf16>
    %23 = vector.shape_cast %22 : vector<16x16x3xbf16> to vector<256x3xbf16>
    %c1 = arith.constant 1 : index
    %c0_7 = arith.constant 0 : index
    %c0_8 = arith.constant 0 : index
    %24 = vector.load %arg2[%c1, %c0_7, %c0_8] : memref<3x3x8xbf16, #tpu.memory_space<vmem>>, vector<1x3x8xbf16>
    %25 = vector.shape_cast %24 : vector<1x3x8xbf16> to vector<3x8xbf16>
    %cst_9 = arith.constant dense<0.000000e+00> : vector<256x8xf32>
    %26 = tpu.matmul %23, %25, %cst_9 {dimension_numbers = #tpu.dot_dimension_numbers<[1], [0], [0], [1], [0, 0, 1, 1], [], []>} : vector<256x3xbf16>, vector<3x8xbf16>, vector<256x8xf32> -> vector<256x8xf32>
    %27 = arith.addf %18, %26 : vector<256x8xf32>
    %28 = vector.extract_strided_slice %8 {offsets = [2, 0, 0], sizes = [16, 16, 1], strides = [1, 1, 1]} : vector<18x18x1xbf16> to vector<16x16x1xbf16>
    %29 = vector.extract_strided_slice %8 {offsets = [2, 1, 0], sizes = [16, 16, 1], strides = [1, 1, 1]} : vector<18x18x1xbf16> to vector<16x16x1xbf16>
    %30 = vector.extract_strided_slice %8 {offsets = [2, 2, 0], sizes = [16, 16, 1], strides = [1, 1, 1]} : vector<18x18x1xbf16> to vector<16x16x1xbf16>
    %31 = tpu.concatenate %28, %29, %30 in 2 : vector<16x16x1xbf16>, vector<16x16x1xbf16>, vector<16x16x1xbf16> -> vector<16x16x3xbf16>
    %32 = vector.shape_cast %31 : vector<16x16x3xbf16> to vector<256x3xbf16>
    %c2 = arith.constant 2 : index
    %c0_10 = arith.constant 0 : index
    %c0_11 = arith.constant 0 : index
    %33 = vector.load %arg2[%c2, %c0_10, %c0_11] : memref<3x3x8xbf16, #tpu.memory_space<vmem>>, vector<1x3x8xbf16>
    %34 = vector.shape_cast %33 : vector<1x3x8xbf16> to vector<3x8xbf16>
    %cst_12 = arith.constant dense<0.000000e+00> : vector<256x8xf32>
    %35 = tpu.matmul %32, %34, %cst_12 {dimension_numbers = #tpu.dot_dimension_numbers<[1], [0], [0], [1], [0, 0, 1, 1], [], []>} : vector<256x3xbf16>, vector<3x8xbf16>, vector<256x8xf32> -> vector<256x8xf32>
    %36 = arith.addf %27, %35 : vector<256x8xf32>
    %c0_13 = arith.constant 0 : index
    %c0_14 = arith.constant 0 : index
    %37 = vector.load %arg3[%c0_13, %c0_14] : memref<1x8xf32, #tpu.memory_space<vmem>>, vector<1x8xf32>
    %38 = vector.broadcast %37 : vector<1x8xf32> to vector<256x8xf32>
    %39 = arith.addf %36, %38 : vector<256x8xf32>
    %cst_15 = arith.constant 0.000000e+00 : f32
    %40 = vector.broadcast %cst_15 : f32 to vector<256x8xf32>
    %41 = arith.cmpf ogt, %39, %40 : vector<256x8xf32>
    %cst_16 = arith.constant 0.000000e+00 : f32
    %42 = vector.broadcast %cst_16 : f32 to vector<256x8xf32>
    %43 = arith.minimumf %39, %42 : vector<256x8xf32>
    %44 = math.exp %43 : vector<256x8xf32>
    %cst_17 = arith.constant 1.000000e+00 : f32
    %45 = vector.broadcast %cst_17 : f32 to vector<256x8xf32>
    %46 = arith.subf %44, %45 : vector<256x8xf32>
    %47 = arith.select %41, %39, %46 : vector<256x8xi1>, vector<256x8xf32>
    %48 = vector.shape_cast %47 : vector<256x8xf32> to vector<1x16x16x8xf32>
    %c0_18 = arith.constant 0 : index
    %c0_19 = arith.constant 0 : index
    %c0_20 = arith.constant 0 : index
    %c0_21 = arith.constant 0 : index
    %49 = vector.load %arg4[%c0_18, %c0_19, %c0_20, %c0_21] : memref<1x16x16x8xf32, #tpu.memory_space<vmem>>, vector<1x16x16x8xf32>
    tpu.vector_store %arg4[%c0_18, %c0_19, %c0_20, %c0_21], %48 {strides = array<i32>} : memref<1x16x16x8xf32, #tpu.memory_space<vmem>>, vector<1x16x16x8xf32>,
    return
  }
  func.func @transform_0(%arg0: i32) -> (i32, i32, i32, i32) {
    %c0_i32 = arith.constant 0 : i32
    %c0_i32_0 = arith.constant 0 : i32
    %c0_i32_1 = arith.constant 0 : i32
    %c0_i32_2 = arith.constant 0 : i32
    return %arg0, %c0_i32, %c0_i32_0, %c0_i32_1 : i32, i32, i32, i32
  }
  func.func @transform_1(%arg0: i32) -> (i32, i32, i32) {
    %c0_i32 = arith.constant 0 : i32
    %c0_i32_0 = arith.constant 0 : i32
    %c0_i32_1 = arith.constant 0 : i32
    %c0_i32_2 = arith.constant 0 : i32
    return %c0_i32, %c0_i32_0, %c0_i32_1 : i32, i32, i32
  }
  func.func @transform_2(%arg0: i32) -> (i32, i32) {
    %c0_i32 = arith.constant 0 : i32
    %c0_i32_0 = arith.constant 0 : i32
    %c0_i32_1 = arith.constant 0 : i32
    return %c0_i32, %c0_i32_0 : i32, i32
  }
  func.func @transform_3(%arg0: i32) -> (i32, i32, i32, i32) {
    %c0_i32 = arith.constant 0 : i32
    %c0_i32_0 = arith.constant 0 : i32
    %c0_i32_1 = arith.constant 0 : i32
    %c0_i32_2 = arith.constant 0 : i32
    return %arg0, %c0_i32, %c0_i32_0, %c0_i32_1 : i32, i32, i32, i32
  }
}

module attributes {stable_mosaic.version = 11 : i64} {
  func.func @_conv3x3_bn_elu_kernel(%arg0: i32, %arg1: memref<1x16x16x8xf32, #tpu.memory_space<vmem>>, %arg2: memref<3x24x16xbf16, #tpu.memory_space<vmem>>, %arg3: memref<1x16xf32, #tpu.memory_space<vmem>>, %arg4: memref<1x16x16x16xf32, #tpu.memory_space<vmem>>) attributes {dimension_semantics = [#tpu.dimension_semantics<parallel>], iteration_bounds = array<i64: 2>, scalar_prefetch = 0 : i64, scratch_operands = 0 : i64, tpu.core_type = #tpu.core_type<tc>, window_params = [{transform_indices = @transform_0, window_bounds = array<i64: 1, 16, 16, 8>}, {pipeline_mode = #tpu.pipeline_mode<synchronous>, transform_indices = @transform_1, window_bounds = array<i64: 3, 24, 16>}, {pipeline_mode = #tpu.pipeline_mode<synchronous>, transform_indices = @transform_2, window_bounds = array<i64: 1, 16>}, {transform_indices = @transform_3, window_bounds = array<i64: 1, 16, 16, 16>}]} {
    %c0 = arith.constant 0 : index
    %c0_0 = arith.constant 0 : index
    %c0_1 = arith.constant 0 : index
    %c0_2 = arith.constant 0 : index
    %0 = vector.load %arg1[%c0, %c0_0, %c0_1, %c0_2] : memref<1x16x16x8xf32, #tpu.memory_space<vmem>>, vector<1x16x16x8xf32>
    %1 = vector.shape_cast %0 : vector<1x16x16x8xf32> to vector<16x16x8xf32>
    %2 = arith.truncf %1 : vector<16x16x8xf32> to vector<16x16x8xbf16>
    %3 = vector.extract_strided_slice %2 {offsets = [0, 0, 0], sizes = [1, 16, 8], strides = [1, 1, 1]} : vector<16x16x8xbf16> to vector<1x16x8xbf16>
    %4 = vector.extract_strided_slice %2 {offsets = [15, 0, 0], sizes = [1, 16, 8], strides = [1, 1, 1]} : vector<16x16x8xbf16> to vector<1x16x8xbf16>
    %5 = tpu.concatenate %3, %2, %4 in 0 : vector<1x16x8xbf16>, vector<16x16x8xbf16>, vector<1x16x8xbf16> -> vector<18x16x8xbf16>
    %6 = vector.extract_strided_slice %5 {offsets = [0, 0, 0], sizes = [18, 1, 8], strides = [1, 1, 1]} : vector<18x16x8xbf16> to vector<18x1x8xbf16>
    %7 = vector.extract_strided_slice %5 {offsets = [0, 15, 0], sizes = [18, 1, 8], strides = [1, 1, 1]} : vector<18x16x8xbf16> to vector<18x1x8xbf16>
    %8 = tpu.concatenate %6, %5, %7 in 1 : vector<18x1x8xbf16>, vector<18x16x8xbf16>, vector<18x1x8xbf16> -> vector<18x18x8xbf16>
    %cst = arith.constant 0.000000e+00 : f32
    %9 = vector.broadcast %cst : f32 to vector<256x16xf32>
    %10 = vector.extract_strided_slice %8 {offsets = [0, 0, 0], sizes = [16, 16, 8], strides = [1, 1, 1]} : vector<18x18x8xbf16> to vector<16x16x8xbf16>
    %11 = vector.extract_strided_slice %8 {offsets = [0, 1, 0], sizes = [16, 16, 8], strides = [1, 1, 1]} : vector<18x18x8xbf16> to vector<16x16x8xbf16>
    %12 = vector.extract_strided_slice %8 {offsets = [0, 2, 0], sizes = [16, 16, 8], strides = [1, 1, 1]} : vector<18x18x8xbf16> to vector<16x16x8xbf16>
    %13 = tpu.concatenate %10, %11, %12 in 2 : vector<16x16x8xbf16>, vector<16x16x8xbf16>, vector<16x16x8xbf16> -> vector<16x16x24xbf16>
    %14 = vector.shape_cast %13 : vector<16x16x24xbf16> to vector<256x24xbf16>
    %c0_3 = arith.constant 0 : index
    %c0_4 = arith.constant 0 : index
    %c0_5 = arith.constant 0 : index
    %15 = vector.load %arg2[%c0_3, %c0_4, %c0_5] : memref<3x24x16xbf16, #tpu.memory_space<vmem>>, vector<1x24x16xbf16>
    %16 = vector.shape_cast %15 : vector<1x24x16xbf16> to vector<24x16xbf16>
    %cst_6 = arith.constant dense<0.000000e+00> : vector<256x16xf32>
    %17 = tpu.matmul %14, %16, %cst_6 {dimension_numbers = #tpu.dot_dimension_numbers<[1], [0], [0], [1], [0, 0, 1, 1], [], []>} : vector<256x24xbf16>, vector<24x16xbf16>, vector<256x16xf32> -> vector<256x16xf32>
    %18 = arith.addf %9, %17 : vector<256x16xf32>
    %19 = vector.extract_strided_slice %8 {offsets = [1, 0, 0], sizes = [16, 16, 8], strides = [1, 1, 1]} : vector<18x18x8xbf16> to vector<16x16x8xbf16>
    %20 = vector.extract_strided_slice %8 {offsets = [1, 1, 0], sizes = [16, 16, 8], strides = [1, 1, 1]} : vector<18x18x8xbf16> to vector<16x16x8xbf16>
    %21 = vector.extract_strided_slice %8 {offsets = [1, 2, 0], sizes = [16, 16, 8], strides = [1, 1, 1]} : vector<18x18x8xbf16> to vector<16x16x8xbf16>
    %22 = tpu.concatenate %19, %20, %21 in 2 : vector<16x16x8xbf16>, vector<16x16x8xbf16>, vector<16x16x8xbf16> -> vector<16x16x24xbf16>
    %23 = vector.shape_cast %22 : vector<16x16x24xbf16> to vector<256x24xbf16>
    %c1 = arith.constant 1 : index
    %c0_7 = arith.constant 0 : index
    %c0_8 = arith.constant 0 : index
    %24 = vector.load %arg2[%c1, %c0_7, %c0_8] : memref<3x24x16xbf16, #tpu.memory_space<vmem>>, vector<1x24x16xbf16>
    %25 = vector.shape_cast %24 : vector<1x24x16xbf16> to vector<24x16xbf16>
    %cst_9 = arith.constant dense<0.000000e+00> : vector<256x16xf32>
    %26 = tpu.matmul %23, %25, %cst_9 {dimension_numbers = #tpu.dot_dimension_numbers<[1], [0], [0], [1], [0, 0, 1, 1], [], []>} : vector<256x24xbf16>, vector<24x16xbf16>, vector<256x16xf32> -> vector<256x16xf32>
    %27 = arith.addf %18, %26 : vector<256x16xf32>
    %28 = vector.extract_strided_slice %8 {offsets = [2, 0, 0], sizes = [16, 16, 8], strides = [1, 1, 1]} : vector<18x18x8xbf16> to vector<16x16x8xbf16>
    %29 = vector.extract_strided_slice %8 {offsets = [2, 1, 0], sizes = [16, 16, 8], strides = [1, 1, 1]} : vector<18x18x8xbf16> to vector<16x16x8xbf16>
    %30 = vector.extract_strided_slice %8 {offsets = [2, 2, 0], sizes = [16, 16, 8], strides = [1, 1, 1]} : vector<18x18x8xbf16> to vector<16x16x8xbf16>
    %31 = tpu.concatenate %28, %29, %30 in 2 : vector<16x16x8xbf16>, vector<16x16x8xbf16>, vector<16x16x8xbf16> -> vector<16x16x24xbf16>
    %32 = vector.shape_cast %31 : vector<16x16x24xbf16> to vector<256x24xbf16>
    %c2 = arith.constant 2 : index
    %c0_10 = arith.constant 0 : index
    %c0_11 = arith.constant 0 : index
    %33 = vector.load %arg2[%c2, %c0_10, %c0_11] : memref<3x24x16xbf16, #tpu.memory_space<vmem>>, vector<1x24x16xbf16>
    %34 = vector.shape_cast %33 : vector<1x24x16xbf16> to vector<24x16xbf16>
    %cst_12 = arith.constant dense<0.000000e+00> : vector<256x16xf32>
    %35 = tpu.matmul %32, %34, %cst_12 {dimension_numbers = #tpu.dot_dimension_numbers<[1], [0], [0], [1], [0, 0, 1, 1], [], []>} : vector<256x24xbf16>, vector<24x16xbf16>, vector<256x16xf32> -> vector<256x16xf32>
    %36 = arith.addf %27, %35 : vector<256x16xf32>
    %c0_13 = arith.constant 0 : index
    %c0_14 = arith.constant 0 : index
    %37 = vector.load %arg3[%c0_13, %c0_14] : memref<1x16xf32, #tpu.memory_space<vmem>>, vector<1x16xf32>
    %38 = vector.broadcast %37 : vector<1x16xf32> to vector<256x16xf32>
    %39 = arith.addf %36, %38 : vector<256x16xf32>
    %cst_15 = arith.constant 0.000000e+00 : f32
    %40 = vector.broadcast %cst_15 : f32 to vector<256x16xf32>
    %41 = arith.cmpf ogt, %39, %40 : vector<256x16xf32>
    %cst_16 = arith.constant 0.000000e+00 : f32
    %42 = vector.broadcast %cst_16 : f32 to vector<256x16xf32>
    %43 = arith.minimumf %39, %42 : vector<256x16xf32>
    %44 = math.exp %43 : vector<256x16xf32>
    %cst_17 = arith.constant 1.000000e+00 : f32
    %45 = vector.broadcast %cst_17 : f32 to vector<256x16xf32>
    %46 = arith.subf %44, %45 : vector<256x16xf32>
    %47 = arith.select %41, %39, %46 : vector<256x16xi1>, vector<256x16xf32>
    %48 = vector.shape_cast %47 : vector<256x16xf32> to vector<1x16x16x16xf32>
    %c0_18 = arith.constant 0 : index
    %c0_19 = arith.constant 0 : index
    %c0_20 = arith.constant 0 : index
    %c0_21 = arith.constant 0 : index
    %49 = vector.load %arg4[%c0_18, %c0_19, %c0_20, %c0_21] : memref<1x16x16x16xf32, #tpu.memory_space<vmem>>, vector<1x16x16x16xf32>
    tpu.vector_store %arg4[%c0_18, %c0_19, %c0_20, %c0_21], %48 {strides = array<i32>} : memref<1x16x16x16xf32, #tpu.memory_space<vmem>>, vector<1x16x16x16xf32>,
    return
  }
  func.func @transform_0(%arg0: i32) -> (i32, i32, i32, i32) {
    %c0_i32 = arith.constant 0 : i32
    %c0_i32_0 = arith.constant 0 : i32
    %c0_i32_1 = arith.constant 0 : i32
    %c0_i32_2 = arith.constant 0 : i32
    return %arg0, %c0_i32, %c0_i32_0, %c0_i32_1 : i32, i32, i32, i32
  }
  func.func @transform_1(%arg0: i32) -> (i32, i32, i32) {
    %c0_i32 = arith.constant 0 : i32
    %c0_i32_0 = arith.constant 0 : i32
    %c0_i32_1 = arith.constant 0 : i32
    %c0_i32_2 = arith.constant 0 : i32
    return %c0_i32, %c0_i32_0, %c0_i32_1 : i32, i32, i32
  }
  func.func @transform_2(%arg0: i32) -> (i32, i32) {
    %c0_i32 = arith.constant 0 : i32
    %c0_i32_0 = arith.constant 0 : i32
    %c0_i32_1 = arith.constant 0 : i32
    return %c0_i32, %c0_i32_0 : i32, i32
  }
  func.func @transform_3(%arg0: i32) -> (i32, i32, i32, i32) {
    %c0_i32 = arith.constant 0 : i32
    %c0_i32_0 = arith.constant 0 : i32
    %c0_i32_1 = arith.constant 0 : i32
    %c0_i32_2 = arith.constant 0 : i32
    return %arg0, %c0_i32, %c0_i32_0, %c0_i32_1 : i32, i32, i32, i32
  }
}

module attributes {stable_mosaic.version = 11 : i64} {
  func.func @_conv3x3_bn_elu_pool_kernel(%arg0: i32, %arg1: memref<1x16x16x16xf32, #tpu.memory_space<vmem>>, %arg2: memref<3x48x32xbf16, #tpu.memory_space<vmem>>, %arg3: memref<1x32xf32, #tpu.memory_space<vmem>>, %arg4: memref<1x4x16xf32, #tpu.memory_space<vmem>>) attributes {dimension_semantics = [#tpu.dimension_semantics<parallel>], iteration_bounds = array<i64: 2>, scalar_prefetch = 0 : i64, scratch_operands = 0 : i64, tpu.core_type = #tpu.core_type<tc>, window_params = [{transform_indices = @transform_0, window_bounds = array<i64: 1, 16, 16, 16>}, {pipeline_mode = #tpu.pipeline_mode<synchronous>, transform_indices = @transform_1, window_bounds = array<i64: 3, 48, 32>}, {pipeline_mode = #tpu.pipeline_mode<synchronous>, transform_indices = @transform_2, window_bounds = array<i64: 1, 32>}, {transform_indices = @transform_3, window_bounds = array<i64: 1, 4, 16>}]} {
    %c0 = arith.constant 0 : index
    %c0_0 = arith.constant 0 : index
    %c0_1 = arith.constant 0 : index
    %c0_2 = arith.constant 0 : index
    %0 = vector.load %arg1[%c0, %c0_0, %c0_1, %c0_2] : memref<1x16x16x16xf32, #tpu.memory_space<vmem>>, vector<1x16x16x16xf32>
    %1 = vector.shape_cast %0 : vector<1x16x16x16xf32> to vector<16x16x16xf32>
    %2 = arith.truncf %1 : vector<16x16x16xf32> to vector<16x16x16xbf16>
    %3 = vector.extract_strided_slice %2 {offsets = [0, 0, 0], sizes = [1, 16, 16], strides = [1, 1, 1]} : vector<16x16x16xbf16> to vector<1x16x16xbf16>
    %4 = vector.extract_strided_slice %2 {offsets = [15, 0, 0], sizes = [1, 16, 16], strides = [1, 1, 1]} : vector<16x16x16xbf16> to vector<1x16x16xbf16>
    %5 = tpu.concatenate %3, %2, %4 in 0 : vector<1x16x16xbf16>, vector<16x16x16xbf16>, vector<1x16x16xbf16> -> vector<18x16x16xbf16>
    %6 = vector.extract_strided_slice %5 {offsets = [0, 0, 0], sizes = [18, 1, 16], strides = [1, 1, 1]} : vector<18x16x16xbf16> to vector<18x1x16xbf16>
    %7 = vector.extract_strided_slice %5 {offsets = [0, 15, 0], sizes = [18, 1, 16], strides = [1, 1, 1]} : vector<18x16x16xbf16> to vector<18x1x16xbf16>
    %8 = tpu.concatenate %6, %5, %7 in 1 : vector<18x1x16xbf16>, vector<18x16x16xbf16>, vector<18x1x16xbf16> -> vector<18x18x16xbf16>
    %cst = arith.constant 0.000000e+00 : f32
    %9 = vector.broadcast %cst : f32 to vector<256x32xf32>
    %10 = vector.extract_strided_slice %8 {offsets = [0, 0, 0], sizes = [16, 16, 16], strides = [1, 1, 1]} : vector<18x18x16xbf16> to vector<16x16x16xbf16>
    %11 = vector.extract_strided_slice %8 {offsets = [0, 1, 0], sizes = [16, 16, 16], strides = [1, 1, 1]} : vector<18x18x16xbf16> to vector<16x16x16xbf16>
    %12 = vector.extract_strided_slice %8 {offsets = [0, 2, 0], sizes = [16, 16, 16], strides = [1, 1, 1]} : vector<18x18x16xbf16> to vector<16x16x16xbf16>
    %13 = tpu.concatenate %10, %11, %12 in 2 : vector<16x16x16xbf16>, vector<16x16x16xbf16>, vector<16x16x16xbf16> -> vector<16x16x48xbf16>
    %14 = vector.shape_cast %13 : vector<16x16x48xbf16> to vector<256x48xbf16>
    %c0_3 = arith.constant 0 : index
    %c0_4 = arith.constant 0 : index
    %c0_5 = arith.constant 0 : index
    %15 = vector.load %arg2[%c0_3, %c0_4, %c0_5] : memref<3x48x32xbf16, #tpu.memory_space<vmem>>, vector<1x48x32xbf16>
    %16 = vector.shape_cast %15 : vector<1x48x32xbf16> to vector<48x32xbf16>
    %cst_6 = arith.constant dense<0.000000e+00> : vector<256x32xf32>
    %17 = tpu.matmul %14, %16, %cst_6 {dimension_numbers = #tpu.dot_dimension_numbers<[1], [0], [0], [1], [0, 0, 1, 1], [], []>} : vector<256x48xbf16>, vector<48x32xbf16>, vector<256x32xf32> -> vector<256x32xf32>
    %18 = arith.addf %9, %17 : vector<256x32xf32>
    %19 = vector.extract_strided_slice %8 {offsets = [1, 0, 0], sizes = [16, 16, 16], strides = [1, 1, 1]} : vector<18x18x16xbf16> to vector<16x16x16xbf16>
    %20 = vector.extract_strided_slice %8 {offsets = [1, 1, 0], sizes = [16, 16, 16], strides = [1, 1, 1]} : vector<18x18x16xbf16> to vector<16x16x16xbf16>
    %21 = vector.extract_strided_slice %8 {offsets = [1, 2, 0], sizes = [16, 16, 16], strides = [1, 1, 1]} : vector<18x18x16xbf16> to vector<16x16x16xbf16>
    %22 = tpu.concatenate %19, %20, %21 in 2 : vector<16x16x16xbf16>, vector<16x16x16xbf16>, vector<16x16x16xbf16> -> vector<16x16x48xbf16>
    %23 = vector.shape_cast %22 : vector<16x16x48xbf16> to vector<256x48xbf16>
    %c1 = arith.constant 1 : index
    %c0_7 = arith.constant 0 : index
    %c0_8 = arith.constant 0 : index
    %24 = vector.load %arg2[%c1, %c0_7, %c0_8] : memref<3x48x32xbf16, #tpu.memory_space<vmem>>, vector<1x48x32xbf16>
    %25 = vector.shape_cast %24 : vector<1x48x32xbf16> to vector<48x32xbf16>
    %cst_9 = arith.constant dense<0.000000e+00> : vector<256x32xf32>
    %26 = tpu.matmul %23, %25, %cst_9 {dimension_numbers = #tpu.dot_dimension_numbers<[1], [0], [0], [1], [0, 0, 1, 1], [], []>} : vector<256x48xbf16>, vector<48x32xbf16>, vector<256x32xf32> -> vector<256x32xf32>
    %27 = arith.addf %18, %26 : vector<256x32xf32>
    %28 = vector.extract_strided_slice %8 {offsets = [2, 0, 0], sizes = [16, 16, 16], strides = [1, 1, 1]} : vector<18x18x16xbf16> to vector<16x16x16xbf16>
    %29 = vector.extract_strided_slice %8 {offsets = [2, 1, 0], sizes = [16, 16, 16], strides = [1, 1, 1]} : vector<18x18x16xbf16> to vector<16x16x16xbf16>
    %30 = vector.extract_strided_slice %8 {offsets = [2, 2, 0], sizes = [16, 16, 16], strides = [1, 1, 1]} : vector<18x18x16xbf16> to vector<16x16x16xbf16>
    %31 = tpu.concatenate %28, %29, %30 in 2 : vector<16x16x16xbf16>, vector<16x16x16xbf16>, vector<16x16x16xbf16> -> vector<16x16x48xbf16>
    %32 = vector.shape_cast %31 : vector<16x16x48xbf16> to vector<256x48xbf16>
    %c2 = arith.constant 2 : index
    %c0_10 = arith.constant 0 : index
    %c0_11 = arith.constant 0 : index
    %33 = vector.load %arg2[%c2, %c0_10, %c0_11] : memref<3x48x32xbf16, #tpu.memory_space<vmem>>, vector<1x48x32xbf16>
    %34 = vector.shape_cast %33 : vector<1x48x32xbf16> to vector<48x32xbf16>
    %cst_12 = arith.constant dense<0.000000e+00> : vector<256x32xf32>
    %35 = tpu.matmul %32, %34, %cst_12 {dimension_numbers = #tpu.dot_dimension_numbers<[1], [0], [0], [1], [0, 0, 1, 1], [], []>} : vector<256x48xbf16>, vector<48x32xbf16>, vector<256x32xf32> -> vector<256x32xf32>
    %36 = arith.addf %27, %35 : vector<256x32xf32>
    %c0_13 = arith.constant 0 : index
    %c0_14 = arith.constant 0 : index
    %37 = vector.load %arg3[%c0_13, %c0_14] : memref<1x32xf32, #tpu.memory_space<vmem>>, vector<1x32xf32>
    %38 = vector.broadcast %37 : vector<1x32xf32> to vector<256x32xf32>
    %39 = arith.addf %36, %38 : vector<256x32xf32>
    %cst_15 = arith.constant 0.000000e+00 : f32
    %40 = vector.broadcast %cst_15 : f32 to vector<256x32xf32>
    %41 = arith.cmpf ogt, %39, %40 : vector<256x32xf32>
    %cst_16 = arith.constant 0.000000e+00 : f32
    %42 = vector.broadcast %cst_16 : f32 to vector<256x32xf32>
    %43 = arith.minimumf %39, %42 : vector<256x32xf32>
    %44 = math.exp %43 : vector<256x32xf32>
    %cst_17 = arith.constant 1.000000e+00 : f32
    %45 = vector.broadcast %cst_17 : f32 to vector<256x32xf32>
    %46 = arith.subf %44, %45 : vector<256x32xf32>
    %47 = arith.select %41, %39, %46 : vector<256x32xi1>, vector<256x32xf32>
    %48 = vector.shape_cast %47 : vector<256x32xf32> to vector<16x16x32xf32>
    %49 = vector.shape_cast %48 : vector<16x16x32xf32> to vector<4x4x16x32xf32>
    %50 = vector.extract_strided_slice %49 {offsets = [0, 0, 0, 0], sizes = [4, 1, 16, 32], strides = [1, 1, 1, 1]} : vector<4x4x16x32xf32> to vector<4x1x16x32xf32>
    %51 = vector.shape_cast %50 : vector<4x1x16x32xf32> to vector<4x16x32xf32>
    %52 = vector.extract_strided_slice %49 {offsets = [0, 1, 0, 0], sizes = [4, 1, 16, 32], strides = [1, 1, 1, 1]} : vector<4x4x16x32xf32> to vector<4x1x16x32xf32>
    %53 = vector.shape_cast %52 : vector<4x1x16x32xf32> to vector<4x16x32xf32>
    %54 = arith.maximumf %51, %53 : vector<4x16x32xf32>
    %55 = vector.extract_strided_slice %49 {offsets = [0, 2, 0, 0], sizes = [4, 1, 16, 32], strides = [1, 1, 1, 1]} : vector<4x4x16x32xf32> to vector<4x1x16x32xf32>
    %56 = vector.shape_cast %55 : vector<4x1x16x32xf32> to vector<4x16x32xf32>
    %57 = arith.maximumf %54, %56 : vector<4x16x32xf32>
    %58 = vector.extract_strided_slice %49 {offsets = [0, 3, 0, 0], sizes = [4, 1, 16, 32], strides = [1, 1, 1, 1]} : vector<4x4x16x32xf32> to vector<4x1x16x32xf32>
    %59 = vector.shape_cast %58 : vector<4x1x16x32xf32> to vector<4x16x32xf32>
    %60 = arith.maximumf %57, %59 : vector<4x16x32xf32>
    %61 = vector.shape_cast %60 : vector<4x16x32xf32> to vector<4x4x4x32xf32>
    %62 = vector.extract_strided_slice %61 {offsets = [0, 0, 0, 0], sizes = [4, 4, 1, 32], strides = [1, 1, 1, 1]} : vector<4x4x4x32xf32> to vector<4x4x1x32xf32>
    %63 = vector.shape_cast %62 : vector<4x4x1x32xf32> to vector<4x4x32xf32>
    %64 = vector.extract_strided_slice %61 {offsets = [0, 0, 1, 0], sizes = [4, 4, 1, 32], strides = [1, 1, 1, 1]} : vector<4x4x4x32xf32> to vector<4x4x1x32xf32>
    %65 = vector.shape_cast %64 : vector<4x4x1x32xf32> to vector<4x4x32xf32>
    %66 = arith.maximumf %63, %65 : vector<4x4x32xf32>
    %67 = vector.extract_strided_slice %61 {offsets = [0, 0, 2, 0], sizes = [4, 4, 1, 32], strides = [1, 1, 1, 1]} : vector<4x4x4x32xf32> to vector<4x4x1x32xf32>
    %68 = vector.shape_cast %67 : vector<4x4x1x32xf32> to vector<4x4x32xf32>
    %69 = arith.maximumf %66, %68 : vector<4x4x32xf32>
    %70 = vector.extract_strided_slice %61 {offsets = [0, 0, 3, 0], sizes = [4, 4, 1, 32], strides = [1, 1, 1, 1]} : vector<4x4x4x32xf32> to vector<4x4x1x32xf32>
    %71 = vector.shape_cast %70 : vector<4x4x1x32xf32> to vector<4x4x32xf32>
    %72 = arith.maximumf %69, %71 : vector<4x4x32xf32>
    %73 = vector.shape_cast %72 : vector<4x4x32xf32> to vector<16x4x8xf32>
    %cst_18 = arith.constant dense<0xFF800000> : vector<16x4xf32>
    %74 = vector.multi_reduction <maximumf>, %73, %cst_18 [2] : vector<16x4x8xf32> to vector<16x4xf32>
    %75 = tpu.transpose %74, [1, 0] : vector<16x4xf32> -> vector<4x16xf32>
    %76 = vector.shape_cast %75 : vector<4x16xf32> to vector<1x4x16xf32>
    %c0_19 = arith.constant 0 : index
    %c0_20 = arith.constant 0 : index
    %c0_21 = arith.constant 0 : index
    %77 = vector.load %arg4[%c0_19, %c0_20, %c0_21] : memref<1x4x16xf32, #tpu.memory_space<vmem>>, vector<1x4x16xf32>
    tpu.vector_store %arg4[%c0_19, %c0_20, %c0_21], %76 {strides = array<i32>} : memref<1x4x16xf32, #tpu.memory_space<vmem>>, vector<1x4x16xf32>,
    return
  }
  func.func @transform_0(%arg0: i32) -> (i32, i32, i32, i32) {
    %c0_i32 = arith.constant 0 : i32
    %c0_i32_0 = arith.constant 0 : i32
    %c0_i32_1 = arith.constant 0 : i32
    %c0_i32_2 = arith.constant 0 : i32
    return %arg0, %c0_i32, %c0_i32_0, %c0_i32_1 : i32, i32, i32, i32
  }
  func.func @transform_1(%arg0: i32) -> (i32, i32, i32) {
    %c0_i32 = arith.constant 0 : i32
    %c0_i32_0 = arith.constant 0 : i32
    %c0_i32_1 = arith.constant 0 : i32
    %c0_i32_2 = arith.constant 0 : i32
    return %c0_i32, %c0_i32_0, %c0_i32_1 : i32, i32, i32
  }
  func.func @transform_2(%arg0: i32) -> (i32, i32) {
    %c0_i32 = arith.constant 0 : i32
    %c0_i32_0 = arith.constant 0 : i32
    %c0_i32_1 = arith.constant 0 : i32
    return %c0_i32, %c0_i32_0 : i32, i32
  }
  func.func @transform_3(%arg0: i32) -> (i32, i32, i32) {
    %c0_i32 = arith.constant 0 : i32
    %c0_i32_0 = arith.constant 0 : i32
    %c0_i32_1 = arith.constant 0 : i32
    return %arg0, %c0_i32, %c0_i32_0 : i32, i32, i32
  }
}

module attributes {stable_mosaic.version = 11 : i64} {
  func.func @_linear_kernel(%arg0: i32, %arg1: i32, %arg2: memref<1x128xf32, #tpu.memory_space<vmem>>, %arg3: memref<128x256xbf16, #tpu.memory_space<vmem>>, %arg4: memref<1x256xf32, #tpu.memory_space<vmem>>, %arg5: memref<1x256xf32, #tpu.memory_space<vmem>>) attributes {dimension_semantics = [#tpu.dimension_semantics<parallel>, #tpu.dimension_semantics<arbitrary>], iteration_bounds = array<i64: 1, 1>, scalar_prefetch = 0 : i64, scratch_operands = 0 : i64, tpu.core_type = #tpu.core_type<tc>, window_params = [{transform_indices = @transform_0, window_bounds = array<i64: 1, 128>}, {transform_indices = @transform_1, window_bounds = array<i64: 128, 256>}, {transform_indices = @transform_2, window_bounds = array<i64: 1, 256>}, {transform_indices = @transform_3, window_bounds = array<i64: 1, 256>}]} {
    %c0_i32 = arith.constant 0 : i32
    %0 = arith.cmpi eq, %arg1, %c0_i32 : i32
    %1 = arith.extui %0 : i1 to i32
    %c0_i32_0 = arith.constant 0 : i32
    %2 = arith.cmpi ne, %1, %c0_i32_0 : i32
    scf.if %2 {
      %cst_10 = arith.constant 0.000000e+00 : f32
      %13 = vector.broadcast %cst_10 : f32 to vector<1x256xf32>
      %c0_11 = arith.constant 0 : index
      %c0_12 = arith.constant 0 : index
      %14 = vector.load %arg5[%c0_11, %c0_12] : memref<1x256xf32, #tpu.memory_space<vmem>>, vector<1x256xf32>
      tpu.vector_store %arg5[%c0_11, %c0_12], %13 {strides = array<i32>} : memref<1x256xf32, #tpu.memory_space<vmem>>, vector<1x256xf32>,
    } else {
    }
    %c0 = arith.constant 0 : index
    %c0_1 = arith.constant 0 : index
    %3 = vector.load %arg5[%c0, %c0_1] : memref<1x256xf32, #tpu.memory_space<vmem>>, vector<1x256xf32>
    %c0_2 = arith.constant 0 : index
    %c0_3 = arith.constant 0 : index
    %4 = vector.load %arg2[%c0_2, %c0_3] : memref<1x128xf32, #tpu.memory_space<vmem>>, vector<1x128xf32>
    %5 = arith.truncf %4 : vector<1x128xf32> to vector<1x128xbf16>
    %c0_4 = arith.constant 0 : index
    %c0_5 = arith.constant 0 : index
    %6 = vector.load %arg3[%c0_4, %c0_5] : memref<128x256xbf16, #tpu.memory_space<vmem>>, vector<128x256xbf16>
    %cst = arith.constant dense<0.000000e+00> : vector<1x256xf32>
    %7 = tpu.matmul %5, %6, %cst {dimension_numbers = #tpu.dot_dimension_numbers<[1], [0], [0], [1], [0, 0, 1, 1], [], []>} : vector<1x128xbf16>, vector<128x256xbf16>, vector<1x256xf32> -> vector<1x256xf32>
    %8 = arith.addf %3, %7 : vector<1x256xf32>
    %c0_6 = arith.constant 0 : index
    %c0_7 = arith.constant 0 : index
    %9 = vector.load %arg5[%c0_6, %c0_7] : memref<1x256xf32, #tpu.memory_space<vmem>>, vector<1x256xf32>
    tpu.vector_store %arg5[%c0_6, %c0_7], %8 {strides = array<i32>} : memref<1x256xf32, #tpu.memory_space<vmem>>, vector<1x256xf32>,
    %c0_i32_8 = arith.constant 0 : i32
    %10 = arith.cmpi eq, %arg1, %c0_i32_8 : i32
    %11 = arith.extui %10 : i1 to i32
    %c0_i32_9 = arith.constant 0 : i32
    %12 = arith.cmpi ne, %11, %c0_i32_9 : i32
    scf.if %12 {
      %c0_10 = arith.constant 0 : index
      %c0_11 = arith.constant 0 : index
      %13 = vector.load %arg5[%c0_10, %c0_11] : memref<1x256xf32, #tpu.memory_space<vmem>>, vector<1x256xf32>
      %c0_12 = arith.constant 0 : index
      %c0_13 = arith.constant 0 : index
      %14 = vector.load %arg4[%c0_12, %c0_13] : memref<1x256xf32, #tpu.memory_space<vmem>>, vector<1x256xf32>
      %15 = arith.addf %13, %14 : vector<1x256xf32>
      %cst_14 = arith.constant 0.000000e+00 : f32
      %16 = vector.broadcast %cst_14 : f32 to vector<1x256xf32>
      %17 = arith.maximumf %15, %16 : vector<1x256xf32>
      %c0_15 = arith.constant 0 : index
      %c0_16 = arith.constant 0 : index
      %18 = vector.load %arg5[%c0_15, %c0_16] : memref<1x256xf32, #tpu.memory_space<vmem>>, vector<1x256xf32>
      tpu.vector_store %arg5[%c0_15, %c0_16], %17 {strides = array<i32>} : memref<1x256xf32, #tpu.memory_space<vmem>>, vector<1x256xf32>,
    } else {
    }
    return
  }
  func.func @transform_0(%arg0: i32, %arg1: i32) -> (i32, i32) {
    %c0_i32 = arith.constant 0 : i32
    %c0_i32_0 = arith.constant 0 : i32
    return %c0_i32, %arg1 : i32, i32
  }
  func.func @transform_1(%arg0: i32, %arg1: i32) -> (i32, i32) {
    %c0_i32 = arith.constant 0 : i32
    return %arg1, %arg0 : i32, i32
  }
  func.func @transform_2(%arg0: i32, %arg1: i32) -> (i32, i32) {
    %c0_i32 = arith.constant 0 : i32
    %c0_i32_0 = arith.constant 0 : i32
    return %c0_i32, %arg0 : i32, i32
  }
  func.func @transform_3(%arg0: i32, %arg1: i32) -> (i32, i32) {
    %c0_i32 = arith.constant 0 : i32
    %c0_i32_0 = arith.constant 0 : i32
    return %c0_i32, %arg0 : i32, i32
  }
}

module attributes {stable_mosaic.version = 11 : i64} {
  func.func @_linear_kernel(%arg0: i32, %arg1: i32, %arg2: memref<1x256xf32, #tpu.memory_space<vmem>>, %arg3: memref<256x256xbf16, #tpu.memory_space<vmem>>, %arg4: memref<1x256xf32, #tpu.memory_space<vmem>>, %arg5: memref<1x256xf32, #tpu.memory_space<vmem>>) attributes {dimension_semantics = [#tpu.dimension_semantics<parallel>, #tpu.dimension_semantics<arbitrary>], iteration_bounds = array<i64: 1, 1>, scalar_prefetch = 0 : i64, scratch_operands = 0 : i64, tpu.core_type = #tpu.core_type<tc>, window_params = [{transform_indices = @transform_0, window_bounds = array<i64: 1, 256>}, {transform_indices = @transform_1, window_bounds = array<i64: 256, 256>}, {transform_indices = @transform_2, window_bounds = array<i64: 1, 256>}, {transform_indices = @transform_3, window_bounds = array<i64: 1, 256>}]} {
    %c0_i32 = arith.constant 0 : i32
    %0 = arith.cmpi eq, %arg1, %c0_i32 : i32
    %1 = arith.extui %0 : i1 to i32
    %c0_i32_0 = arith.constant 0 : i32
    %2 = arith.cmpi ne, %1, %c0_i32_0 : i32
    scf.if %2 {
      %cst_10 = arith.constant 0.000000e+00 : f32
      %13 = vector.broadcast %cst_10 : f32 to vector<1x256xf32>
      %c0_11 = arith.constant 0 : index
      %c0_12 = arith.constant 0 : index
      %14 = vector.load %arg5[%c0_11, %c0_12] : memref<1x256xf32, #tpu.memory_space<vmem>>, vector<1x256xf32>
      tpu.vector_store %arg5[%c0_11, %c0_12], %13 {strides = array<i32>} : memref<1x256xf32, #tpu.memory_space<vmem>>, vector<1x256xf32>,
    } else {
    }
    %c0 = arith.constant 0 : index
    %c0_1 = arith.constant 0 : index
    %3 = vector.load %arg5[%c0, %c0_1] : memref<1x256xf32, #tpu.memory_space<vmem>>, vector<1x256xf32>
    %c0_2 = arith.constant 0 : index
    %c0_3 = arith.constant 0 : index
    %4 = vector.load %arg2[%c0_2, %c0_3] : memref<1x256xf32, #tpu.memory_space<vmem>>, vector<1x256xf32>
    %5 = arith.truncf %4 : vector<1x256xf32> to vector<1x256xbf16>
    %c0_4 = arith.constant 0 : index
    %c0_5 = arith.constant 0 : index
    %6 = vector.load %arg3[%c0_4, %c0_5] : memref<256x256xbf16, #tpu.memory_space<vmem>>, vector<256x256xbf16>
    %cst = arith.constant dense<0.000000e+00> : vector<1x256xf32>
    %7 = tpu.matmul %5, %6, %cst {dimension_numbers = #tpu.dot_dimension_numbers<[1], [0], [0], [1], [0, 0, 1, 1], [], []>} : vector<1x256xbf16>, vector<256x256xbf16>, vector<1x256xf32> -> vector<1x256xf32>
    %8 = arith.addf %3, %7 : vector<1x256xf32>
    %c0_6 = arith.constant 0 : index
    %c0_7 = arith.constant 0 : index
    %9 = vector.load %arg5[%c0_6, %c0_7] : memref<1x256xf32, #tpu.memory_space<vmem>>, vector<1x256xf32>
    tpu.vector_store %arg5[%c0_6, %c0_7], %8 {strides = array<i32>} : memref<1x256xf32, #tpu.memory_space<vmem>>, vector<1x256xf32>,
    %c0_i32_8 = arith.constant 0 : i32
    %10 = arith.cmpi eq, %arg1, %c0_i32_8 : i32
    %11 = arith.extui %10 : i1 to i32
    %c0_i32_9 = arith.constant 0 : i32
    %12 = arith.cmpi ne, %11, %c0_i32_9 : i32
    scf.if %12 {
      %c0_10 = arith.constant 0 : index
      %c0_11 = arith.constant 0 : index
      %13 = vector.load %arg5[%c0_10, %c0_11] : memref<1x256xf32, #tpu.memory_space<vmem>>, vector<1x256xf32>
      %c0_12 = arith.constant 0 : index
      %c0_13 = arith.constant 0 : index
      %14 = vector.load %arg4[%c0_12, %c0_13] : memref<1x256xf32, #tpu.memory_space<vmem>>, vector<1x256xf32>
      %15 = arith.addf %13, %14 : vector<1x256xf32>
      %cst_14 = arith.constant 0.000000e+00 : f32
      %16 = vector.broadcast %cst_14 : f32 to vector<1x256xf32>
      %17 = arith.maximumf %15, %16 : vector<1x256xf32>
      %c0_15 = arith.constant 0 : index
      %c0_16 = arith.constant 0 : index
      %18 = vector.load %arg5[%c0_15, %c0_16] : memref<1x256xf32, #tpu.memory_space<vmem>>, vector<1x256xf32>
      tpu.vector_store %arg5[%c0_15, %c0_16], %17 {strides = array<i32>} : memref<1x256xf32, #tpu.memory_space<vmem>>, vector<1x256xf32>,
    } else {
    }
    return
  }
  func.func @transform_0(%arg0: i32, %arg1: i32) -> (i32, i32) {
    %c0_i32 = arith.constant 0 : i32
    %c0_i32_0 = arith.constant 0 : i32
    return %c0_i32, %arg1 : i32, i32
  }
  func.func @transform_1(%arg0: i32, %arg1: i32) -> (i32, i32) {
    %c0_i32 = arith.constant 0 : i32
    return %arg1, %arg0 : i32, i32
  }
  func.func @transform_2(%arg0: i32, %arg1: i32) -> (i32, i32) {
    %c0_i32 = arith.constant 0 : i32
    %c0_i32_0 = arith.constant 0 : i32
    return %c0_i32, %arg0 : i32, i32
  }
  func.func @transform_3(%arg0: i32, %arg1: i32) -> (i32, i32) {
    %c0_i32 = arith.constant 0 : i32
    %c0_i32_0 = arith.constant 0 : i32
    return %c0_i32, %arg0 : i32, i32
  }
}

module attributes {stable_mosaic.version = 11 : i64} {
  func.func @_linear_kernel(%arg0: i32, %arg1: i32, %arg2: memref<1x256xf32, #tpu.memory_space<vmem>>, %arg3: memref<256x128xbf16, #tpu.memory_space<vmem>>, %arg4: memref<1x128xf32, #tpu.memory_space<vmem>>, %arg5: memref<1x128xf32, #tpu.memory_space<vmem>>) attributes {dimension_semantics = [#tpu.dimension_semantics<parallel>, #tpu.dimension_semantics<arbitrary>], iteration_bounds = array<i64: 1, 1>, scalar_prefetch = 0 : i64, scratch_operands = 0 : i64, tpu.core_type = #tpu.core_type<tc>, window_params = [{transform_indices = @transform_0, window_bounds = array<i64: 1, 256>}, {transform_indices = @transform_1, window_bounds = array<i64: 256, 128>}, {transform_indices = @transform_2, window_bounds = array<i64: 1, 128>}, {transform_indices = @transform_3, window_bounds = array<i64: 1, 128>}]} {
    %c0_i32 = arith.constant 0 : i32
    %0 = arith.cmpi eq, %arg1, %c0_i32 : i32
    %1 = arith.extui %0 : i1 to i32
    %c0_i32_0 = arith.constant 0 : i32
    %2 = arith.cmpi ne, %1, %c0_i32_0 : i32
    scf.if %2 {
      %cst_10 = arith.constant 0.000000e+00 : f32
      %13 = vector.broadcast %cst_10 : f32 to vector<1x128xf32>
      %c0_11 = arith.constant 0 : index
      %c0_12 = arith.constant 0 : index
      %14 = vector.load %arg5[%c0_11, %c0_12] : memref<1x128xf32, #tpu.memory_space<vmem>>, vector<1x128xf32>
      tpu.vector_store %arg5[%c0_11, %c0_12], %13 {strides = array<i32>} : memref<1x128xf32, #tpu.memory_space<vmem>>, vector<1x128xf32>,
    } else {
    }
    %c0 = arith.constant 0 : index
    %c0_1 = arith.constant 0 : index
    %3 = vector.load %arg5[%c0, %c0_1] : memref<1x128xf32, #tpu.memory_space<vmem>>, vector<1x128xf32>
    %c0_2 = arith.constant 0 : index
    %c0_3 = arith.constant 0 : index
    %4 = vector.load %arg2[%c0_2, %c0_3] : memref<1x256xf32, #tpu.memory_space<vmem>>, vector<1x256xf32>
    %5 = arith.truncf %4 : vector<1x256xf32> to vector<1x256xbf16>
    %c0_4 = arith.constant 0 : index
    %c0_5 = arith.constant 0 : index
    %6 = vector.load %arg3[%c0_4, %c0_5] : memref<256x128xbf16, #tpu.memory_space<vmem>>, vector<256x128xbf16>
    %cst = arith.constant dense<0.000000e+00> : vector<1x128xf32>
    %7 = tpu.matmul %5, %6, %cst {dimension_numbers = #tpu.dot_dimension_numbers<[1], [0], [0], [1], [0, 0, 1, 1], [], []>} : vector<1x256xbf16>, vector<256x128xbf16>, vector<1x128xf32> -> vector<1x128xf32>
    %8 = arith.addf %3, %7 : vector<1x128xf32>
    %c0_6 = arith.constant 0 : index
    %c0_7 = arith.constant 0 : index
    %9 = vector.load %arg5[%c0_6, %c0_7] : memref<1x128xf32, #tpu.memory_space<vmem>>, vector<1x128xf32>
    tpu.vector_store %arg5[%c0_6, %c0_7], %8 {strides = array<i32>} : memref<1x128xf32, #tpu.memory_space<vmem>>, vector<1x128xf32>,
    %c0_i32_8 = arith.constant 0 : i32
    %10 = arith.cmpi eq, %arg1, %c0_i32_8 : i32
    %11 = arith.extui %10 : i1 to i32
    %c0_i32_9 = arith.constant 0 : i32
    %12 = arith.cmpi ne, %11, %c0_i32_9 : i32
    scf.if %12 {
      %c0_10 = arith.constant 0 : index
      %c0_11 = arith.constant 0 : index
      %13 = vector.load %arg5[%c0_10, %c0_11] : memref<1x128xf32, #tpu.memory_space<vmem>>, vector<1x128xf32>
      %c0_12 = arith.constant 0 : index
      %c0_13 = arith.constant 0 : index
      %14 = vector.load %arg4[%c0_12, %c0_13] : memref<1x128xf32, #tpu.memory_space<vmem>>, vector<1x128xf32>
      %15 = arith.addf %13, %14 : vector<1x128xf32>
      %cst_14 = arith.constant 0.000000e+00 : f32
      %16 = vector.broadcast %cst_14 : f32 to vector<1x128xf32>
      %17 = arith.maximumf %15, %16 : vector<1x128xf32>
      %c0_15 = arith.constant 0 : index
      %c0_16 = arith.constant 0 : index
      %18 = vector.load %arg5[%c0_15, %c0_16] : memref<1x128xf32, #tpu.memory_space<vmem>>, vector<1x128xf32>
      tpu.vector_store %arg5[%c0_15, %c0_16], %17 {strides = array<i32>} : memref<1x128xf32, #tpu.memory_space<vmem>>, vector<1x128xf32>,
    } else {
    }
    return
  }
  func.func @transform_0(%arg0: i32, %arg1: i32) -> (i32, i32) {
    %c0_i32 = arith.constant 0 : i32
    %c0_i32_0 = arith.constant 0 : i32
    return %c0_i32, %arg1 : i32, i32
  }
  func.func @transform_1(%arg0: i32, %arg1: i32) -> (i32, i32) {
    %c0_i32 = arith.constant 0 : i32
    return %arg1, %arg0 : i32, i32
  }
  func.func @transform_2(%arg0: i32, %arg1: i32) -> (i32, i32) {
    %c0_i32 = arith.constant 0 : i32
    %c0_i32_0 = arith.constant 0 : i32
    return %c0_i32, %arg0 : i32, i32
  }
  func.func @transform_3(%arg0: i32, %arg1: i32) -> (i32, i32) {
    %c0_i32 = arith.constant 0 : i32
    %c0_i32_0 = arith.constant 0 : i32
    return %c0_i32, %arg0 : i32, i32
  }
}

module attributes {stable_mosaic.version = 11 : i64} {
  func.func @_linear_kernel(%arg0: i32, %arg1: i32, %arg2: memref<1x128xf32, #tpu.memory_space<vmem>>, %arg3: memref<128x128xbf16, #tpu.memory_space<vmem>>, %arg4: memref<1x128xf32, #tpu.memory_space<vmem>>, %arg5: memref<1x128xf32, #tpu.memory_space<vmem>>) attributes {dimension_semantics = [#tpu.dimension_semantics<parallel>, #tpu.dimension_semantics<arbitrary>], iteration_bounds = array<i64: 1, 1>, scalar_prefetch = 0 : i64, scratch_operands = 0 : i64, tpu.core_type = #tpu.core_type<tc>, window_params = [{transform_indices = @transform_0, window_bounds = array<i64: 1, 128>}, {transform_indices = @transform_1, window_bounds = array<i64: 128, 128>}, {transform_indices = @transform_2, window_bounds = array<i64: 1, 128>}, {transform_indices = @transform_3, window_bounds = array<i64: 1, 128>}]} {
    %c0_i32 = arith.constant 0 : i32
    %0 = arith.cmpi eq, %arg1, %c0_i32 : i32
    %1 = arith.extui %0 : i1 to i32
    %c0_i32_0 = arith.constant 0 : i32
    %2 = arith.cmpi ne, %1, %c0_i32_0 : i32
    scf.if %2 {
      %cst_10 = arith.constant 0.000000e+00 : f32
      %13 = vector.broadcast %cst_10 : f32 to vector<1x128xf32>
      %c0_11 = arith.constant 0 : index
      %c0_12 = arith.constant 0 : index
      %14 = vector.load %arg5[%c0_11, %c0_12] : memref<1x128xf32, #tpu.memory_space<vmem>>, vector<1x128xf32>
      tpu.vector_store %arg5[%c0_11, %c0_12], %13 {strides = array<i32>} : memref<1x128xf32, #tpu.memory_space<vmem>>, vector<1x128xf32>,
    } else {
    }
    %c0 = arith.constant 0 : index
    %c0_1 = arith.constant 0 : index
    %3 = vector.load %arg5[%c0, %c0_1] : memref<1x128xf32, #tpu.memory_space<vmem>>, vector<1x128xf32>
    %c0_2 = arith.constant 0 : index
    %c0_3 = arith.constant 0 : index
    %4 = vector.load %arg2[%c0_2, %c0_3] : memref<1x128xf32, #tpu.memory_space<vmem>>, vector<1x128xf32>
    %5 = arith.truncf %4 : vector<1x128xf32> to vector<1x128xbf16>
    %c0_4 = arith.constant 0 : index
    %c0_5 = arith.constant 0 : index
    %6 = vector.load %arg3[%c0_4, %c0_5] : memref<128x128xbf16, #tpu.memory_space<vmem>>, vector<128x128xbf16>
    %cst = arith.constant dense<0.000000e+00> : vector<1x128xf32>
    %7 = tpu.matmul %5, %6, %cst {dimension_numbers = #tpu.dot_dimension_numbers<[1], [0], [0], [1], [0, 0, 1, 1], [], []>} : vector<1x128xbf16>, vector<128x128xbf16>, vector<1x128xf32> -> vector<1x128xf32>
    %8 = arith.addf %3, %7 : vector<1x128xf32>
    %c0_6 = arith.constant 0 : index
    %c0_7 = arith.constant 0 : index
    %9 = vector.load %arg5[%c0_6, %c0_7] : memref<1x128xf32, #tpu.memory_space<vmem>>, vector<1x128xf32>
    tpu.vector_store %arg5[%c0_6, %c0_7], %8 {strides = array<i32>} : memref<1x128xf32, #tpu.memory_space<vmem>>, vector<1x128xf32>,
    %c0_i32_8 = arith.constant 0 : i32
    %10 = arith.cmpi eq, %arg1, %c0_i32_8 : i32
    %11 = arith.extui %10 : i1 to i32
    %c0_i32_9 = arith.constant 0 : i32
    %12 = arith.cmpi ne, %11, %c0_i32_9 : i32
    scf.if %12 {
      %c0_10 = arith.constant 0 : index
      %c0_11 = arith.constant 0 : index
      %13 = vector.load %arg5[%c0_10, %c0_11] : memref<1x128xf32, #tpu.memory_space<vmem>>, vector<1x128xf32>
      %c0_12 = arith.constant 0 : index
      %c0_13 = arith.constant 0 : index
      %14 = vector.load %arg4[%c0_12, %c0_13] : memref<1x128xf32, #tpu.memory_space<vmem>>, vector<1x128xf32>
      %15 = arith.addf %13, %14 : vector<1x128xf32>
      %c0_14 = arith.constant 0 : index
      %c0_15 = arith.constant 0 : index
      %16 = vector.load %arg5[%c0_14, %c0_15] : memref<1x128xf32, #tpu.memory_space<vmem>>, vector<1x128xf32>
      tpu.vector_store %arg5[%c0_14, %c0_15], %15 {strides = array<i32>} : memref<1x128xf32, #tpu.memory_space<vmem>>, vector<1x128xf32>,
    } else {
    }
    return
  }
  func.func @transform_0(%arg0: i32, %arg1: i32) -> (i32, i32) {
    %c0_i32 = arith.constant 0 : i32
    %c0_i32_0 = arith.constant 0 : i32
    return %c0_i32, %arg1 : i32, i32
  }
  func.func @transform_1(%arg0: i32, %arg1: i32) -> (i32, i32) {
    %c0_i32 = arith.constant 0 : i32
    return %arg1, %arg0 : i32, i32
  }
  func.func @transform_2(%arg0: i32, %arg1: i32) -> (i32, i32) {
    %c0_i32 = arith.constant 0 : i32
    %c0_i32_0 = arith.constant 0 : i32
    return %c0_i32, %arg0 : i32, i32
  }
  func.func @transform_3(%arg0: i32, %arg1: i32) -> (i32, i32) {
    %c0_i32 = arith.constant 0 : i32
    %c0_i32_0 = arith.constant 0 : i32
    return %c0_i32, %arg0 : i32, i32
  }
}

</mosaic_0001>

<llo_original>
// kernel: _lambda_.9
$region0: #{_lambda_.9}
  #allocation0 [shape = 'u32[]', space=smem, size = 0x4, offset = 0x4, fixed_abs, tag = 'smem constant byte address 0x4 - core index']
  #allocation1 [shape = 'u32[144,128]{1,0:T(1,128)}', space=vmem, size = 0x12000, scoped, tag = 'internal scratch']
  %s0 = inlined_call_operand.vmem [shape: f32[2,16,16,1], index: 0, kind: input, shape index: {}]
  %s1 = inlined_call_operand.vmem [shape: bf16[3,3,8], index: 1, kind: input, shape index: {}]
  %s2 = inlined_call_operand.vmem [shape: f32[1,8], index: 2, kind: input, shape index: {}]
  %s3 = inlined_call_operand.vmem [shape: f32[2,16,16,8], index: 3, kind: output, shape index: {}]
  %s4 = sld [smem:[#allocation0]]
  $region45: #{_lambda_.9} parent=0
    _
  %s6 = ssub.s32 1, %s4
  %s7 = scalar_select 0, %s6, %s4
  loop: start=0, step=1, limit=4
  $region2: #{_lambda_.9} parent=0 // loop_pre_header
    _
  $region3: #{_lambda_.9} parent=0 // loop_header
    %s9 = sphi 0, %s13
    %p10 = scmp.ge.s32.totalorder %s9, 4
    %s19 = sphi 0, %s21
    %s22 = sphi 0, %s19
    %s23 = sphi 0, %s22
    %s39 = sphi 0, %s23
    %s43 = sphi 0, %s43
    %s45 = sphi 0, %s43
    %s46 = sphi 0, %s45
    %s60 = sphi 0, %s46
    %s64 = sphi 0, %s64
    %s66 = sphi 0, %s64
    %s67 = sphi 0, %s66
    %s81 = sphi 0, %s67
    %s87 = sphi 0, %s89
    %s90 = sphi 0, %s87
    %s91 = sphi 0, %s90
    %s107 = sphi 0, %s91
  $region4: #{_lambda_.9} parent=0 // loop_header_branch
    %12 = sbr.rel (%p10) target = $region8
  $region5: #{_lambda_.9} parent=0 // loop_body
    %s14 = ssub.s32 %s9, 1
    %s15 = ssub.s32 %s9, 2
    %s16 = sadd.s32 %s9, 1
    %s17 = ssub.s32 %s9, %s16
    %p18 = scmp.eq.s32.totalorder %s17, 0
    %s20 = sadd.s32 %s19, 1
    %s21 = scalar_select %p18, %s19, %s20
    %p24 = pneg %p18
    %p25 = scmp.eq.s32.totalorder %s9, 1
    %p26 = por %p24, %p25
    %p27 = scmp.ne.s32.totalorder %s19, %s22
    %p28 = scmp.eq.s32.totalorder %s9, 0
    %p29 = por %p27, %p28
    %p30 = scmp.ne.s32.totalorder %s19, %s22
    %p31 = scmp.eq.s32.totalorder %s14, 1
    %p32 = por %p30, %p31
    %p33 = scmp.ne.s32.totalorder %s22, %s23
    %p34 = scmp.eq.s32.totalorder %s14, 0
    %p35 = por %p33, %p34
    %p36 = scmp.ne.s32.totalorder %s22, %s23
    %p37 = scmp.eq.s32.totalorder %s15, 1
    %p38 = por %p36, %p37
    %p40 = scmp.ne.s32.totalorder %s23, %s39
    %p41 = scmp.eq.s32.totalorder %s15, 0
    %p42 = por %p40, %p41
    %s44 = sadd.s32 %s43, 1
    %p47 = scmp.eq.s32.totalorder %s9, 1
    %p48 = scmp.ne.s32.totalorder %s43, %s45
    %p49 = scmp.eq.s32.totalorder %s9, 0
    %p50 = por %p48, %p49
    %p51 = scmp.ne.s32.totalorder %s43, %s45
    %p52 = scmp.eq.s32.totalorder %s14, 1
    %p53 = por %p51, %p52
    %p54 = scmp.ne.s32.totalorder %s45, %s46
    %p55 = scmp.eq.s32.totalorder %s14, 0
    %p56 = por %p54, %p55
    %p57 = scmp.ne.s32.totalorder %s45, %s46
    %p58 = scmp.eq.s32.totalorder %s15, 1
    %p59 = por %p57, %p58
    %p61 = scmp.ne.s32.totalorder %s46, %s60
    %p62 = scmp.eq.s32.totalorder %s15, 0
    %p63 = por %p61, %p62
    %s65 = sadd.s32 %s64, 1
    %p68 = scmp.eq.s32.totalorder %s9, 1
    %p69 = scmp.ne.s32.totalorder %s64, %s66
    %p70 = scmp.eq.s32.totalorder %s9, 0
    %p71 = por %p69, %p70
    %p72 = scmp.ne.s32.totalorder %s64, %s66
    %p73 = scmp.eq.s32.totalorder %s14, 1
    %p74 = por %p72, %p73
    %p75 = scmp.ne.s32.totalorder %s66, %s67
    %p76 = scmp.eq.s32.totalorder %s14, 0
    %p77 = por %p75, %p76
    %p78 = scmp.ne.s32.totalorder %s66, %s67
    %p79 = scmp.eq.s32.totalorder %s15, 1
    %p80 = por %p78, %p79
    %p82 = scmp.ne.s32.totalorder %s67, %s81
    %p83 = scmp.eq.s32.totalorder %s15, 0
    %p84 = por %p82, %p83
    %s85 = ssub.s32 %s9, %s16
    %p86 = scmp.eq.s32.totalorder %s85, 0
    %s88 = sadd.s32 %s87, 1
    %s89 = scalar_select %p86, %s87, %s88
    %p92 = pneg %p86
    %p93 = scmp.eq.s32.totalorder %s9, 1
    %p94 = por %p92, %p93
    %p95 = scmp.ne.s32.totalorder %s87, %s90
    %p96 = scmp.eq.s32.totalorder %s9, 0
    %p97 = por %p95, %p96
    %p98 = scmp.ne.s32.totalorder %s87, %s90
    %p99 = scmp.eq.s32.totalorder %s14, 1
    %p100 = por %p98, %p99
    %p101 = scmp.ne.s32.totalorder %s90, %s91
    %p102 = scmp.eq.s32.totalorder %s14, 0
    %p103 = por %p101, %p102
    %p104 = scmp.ne.s32.totalorder %s90, %s91
    %p105 = scmp.eq.s32.totalorder %s15, 1
    %p106 = por %p104, %p105
    %p108 = scmp.ne.s32.totalorder %s91, %s107
    %p109 = scmp.eq.s32.totalorder %s15, 0
    %p110 = por %p108, %p109
    %p111 = scmp.le.s32.totalorder 1, %s9
    %p112 = scmp.lt.s32.totalorder %s9, 3
    %p113 = pnand %p111, %p112
    %p114 = pneg %p113
    // Predicated region
    $region9: #{_lambda_.9} parent=5 // pred_check
      _
    $region10: #{_lambda_.9} parent=5 // pred_check_branch
      %116 = sbr.rel (%p113) target = $region12
    $region11: #{_lambda_.9} parent=5 // pred_region
      %s117 = ssub.s32 %s9, 1
      // Predicated region
      $region13: #{_lambda_.9} parent=11 // pred_check
        %p118 = pneg %p56
      $region14: #{_lambda_.9} parent=11 // pred_check_branch
        %120 = sbr.rel (%p118) target = $region16
      $region15: #{_lambda_.9} parent=11 // pred_region
        _
      $region16: #{_lambda_.9} parent=11 // pred_fallthru
        _
      // Predicated region
      $region17: #{_lambda_.9} parent=11 // pred_check
        %p121 = pneg %p77
      $region18: #{_lambda_.9} parent=11 // pred_check_branch
        %123 = sbr.rel (%p121) target = $region20
      $region19: #{_lambda_.9} parent=11 // pred_region
        _
      $region20: #{_lambda_.9} parent=11 // pred_fallthru
        _
    $region12: #{_lambda_.9} parent=5 // pred_fallthru
      _
    %p124 = scmp.lt.s32.totalorder %s9, 2
    // Predicated region
    $region21: #{_lambda_.9} parent=5 // pred_check
      %p125 = pneg %p124
    $region22: #{_lambda_.9} parent=5 // pred_check_branch
      %127 = sbr.rel (%p125) target = $region24
    $region23: #{_lambda_.9} parent=5 // pred_region
      // Predicated region
      $region25: #{_lambda_.9} parent=23 // pred_check
        %p128 = pneg %p29
      $region26: #{_lambda_.9} parent=23 // pred_check_branch
        %130 = sbr.rel (%p128) target = $region28
      $region27: #{_lambda_.9} parent=23 // pred_region
        %p131 = scmp.lt.s32.totalorder %s9, 1
        %s132 = scalar_select %p131, %s9, 1
        %s133 = smul.addr %s132, 32
        %s134 = smul.addr %s133, 8
        %s135 = scalar_lea.vmem %s0, %s134
      $region28: #{_lambda_.9} parent=23 // pred_fallthru
        _
    $region24: #{_lambda_.9} parent=5 // pred_fallthru
      _
    %p136 = scmp.le.s32.totalorder 1, %s9
    %p137 = scmp.lt.s32.totalorder %s9, 3
    %p138 = pnand %p136, %p137
    %p139 = pneg %p138
    // Predicated region
    $region29: #{_lambda_.9} parent=5 // pred_check
      _
    $region30: #{_lambda_.9} parent=5 // pred_check_branch
      %141 = sbr.rel (%p138) target = $region32
    $region31: #{_lambda_.9} parent=5 // pred_region
      %s142 = ssub.s32 %s9, 1
      %p143 = scmp.lt.s32.totalorder %s14, 1
      %s144 = scalar_select %p143, %s14, 1
      %s145 = smul.addr %s144, 32
      %s146 = smul.addr %s145, 8
      %s147 = scalar_lea.vmem %s0, %s146
      %p148 = pneg %p35
      %p149 = pneg %p32
      %p150 = pneg %p56
      %p151 = pneg %p53
      %p152 = pneg %p77
      %p153 = pneg %p74
      %p154 = pneg %p103
      %p155 = pneg %p100
      %p156 = scmp.lt.s32.totalorder %s14, 1
      %s157 = scalar_select %p156, %s14, 1
      %s158 = smul.addr %s157, 32
      %s159 = smul.addr %s158, 8
      %s160 = scalar_lea.vmem %s3, %s159
      %p161 = scmp.lt.s32.totalorder %s14, 1
      %s162 = scalar_select %p161, %s14, 1
      %s163 = smul.addr %s162, 32
      %s164 = smul.addr %s163, 8
      %s165 = scalar_lea.vmem %s0, %s164
      %p166 = scmp.lt.s32.totalorder %s14, 1
      %s167 = scalar_select %p166, %s14, 1
      %s168 = smul.addr %s167, 32
      %s169 = smul.addr %s168, 8
      %s170 = scalar_lea.vmem %s3, %s169
      %v172 = vld [vmem:[%s165] sm:$0xff]
      %v173 = vld [vmem:[%s165 + $0x8] sm:$0xff]
      %v174 = vld [vmem:[%s165 + $0x10] sm:$0xff]
      %v175 = vld [vmem:[%s165 + $0x18] sm:$0xff]
      %v176 = vld [vmem:[%s165 + $0x20] sm:$0xff]
      %v177 = vld [vmem:[%s165 + $0x28] sm:$0xff]
      %v178 = vld [vmem:[%s165 + $0x30] sm:$0xff]
      %v179 = vld [vmem:[%s165 + $0x38] sm:$0xff]
      %v180 = vld [vmem:[%s165 + $0x40] sm:$0xff]
      %v181 = vld [vmem:[%s165 + $0x48] sm:$0xff]
      %v182 = vld [vmem:[%s165 + $0x50] sm:$0xff]
      %v183 = vld [vmem:[%s165 + $0x58] sm:$0xff]
      %v184 = vld [vmem:[%s165 + $0x60] sm:$0xff]
      %v185 = vld [vmem:[%s165 + $0x68] sm:$0xff]
      %v186 = vld [vmem:[%s165 + $0x70] sm:$0xff]
      %v187 = vld [vmem:[%s165 + $0x78] sm:$0xff]
      %v188 = vld [vmem:[%s165 + $0x80] sm:$0xff]
      %v189 = vld [vmem:[%s165 + $0x88] sm:$0xff]
      %v190 = vld [vmem:[%s165 + $0x90] sm:$0xff]
      %v191 = vld [vmem:[%s165 + $0x98] sm:$0xff]
      %v192 = vld [vmem:[%s165 + $0xa0] sm:$0xff]
      %v193 = vld [vmem:[%s165 + $0xa8] sm:$0xff]
      %v194 = vld [vmem:[%s165 + $0xb0] sm:$0xff]
      %v195 = vld [vmem:[%s165 + $0xb8] sm:$0xff]
      %v196 = vld [vmem:[%s165 + $0xc0] sm:$0xff]
      %v197 = vld [vmem:[%s165 + $0xc8] sm:$0xff]
      %v198 = vld [vmem:[%s165 + $0xd0] sm:$0xff]
      %v199 = vld [vmem:[%s165 + $0xd8] sm:$0xff]
      %v200 = vld [vmem:[%s165 + $0xe0] sm:$0xff]
      %v201 = vld [vmem:[%s165 + $0xe8] sm:$0xff]
      %v202 = vld [vmem:[%s165 + $0xf0] sm:$0xff]
      %v203 = vld [vmem:[%s165 + $0xf8] sm:$0xff]
      %v204 = vpack.c.bf16 %v173, %v172
      %v205 = vpack.c.bf16 %v175, %v174
      %v206 = vpack.c.bf16 %v177, %v176
      %v207 = vpack.c.bf16 %v179, %v178
      %v208 = vpack.c.bf16 %v181, %v180
      %v209 = vpack.c.bf16 %v183, %v182
      %v210 = vpack.c.bf16 %v185, %v184
      %v211 = vpack.c.bf16 %v187, %v186
      %v212 = vpack.c.bf16 %v189, %v188
      %v213 = vpack.c.bf16 %v191, %v190
      %v214 = vpack.c.bf16 %v193, %v192
      %v215 = vpack.c.bf16 %v195, %v194
      %v216 = vpack.c.bf16 %v197, %v196
      %v217 = vpack.c.bf16 %v199, %v198
      %v218 = vpack.c.bf16 %v201, %v200
      %v219 = vpack.c.bf16 %v203, %v202
      %v221 = vshrl.u32 %v204, 16
      %v223 = vrot.slane %v221, 7
      %v224 = vshll.u32 %v204, 16
      %v226 = vor.u32 %v223, %v224
      %v228 = vshrl.u32 %v205, 16
      %v230 = vrot.slane %v228, 7
      %v231 = vshll.u32 %v205, 16
      %v233 = vor.u32 %v230, %v231
      %v235 = vshrl.u32 %v206, 16
      %v237 = vrot.slane %v235, 7
      %v238 = vshll.u32 %v206, 16
      %v240 = vor.u32 %v237, %v238
      %v242 = vshrl.u32 %v207, 16
      %v244 = vrot.slane %v242, 7
      %v245 = vshll.u32 %v207, 16
      %v247 = vor.u32 %v244, %v245
      %v249 = vshrl.u32 %v208, 16
      %v251 = vrot.slane %v249, 7
      %v252 = vshll.u32 %v208, 16
      %v254 = vor.u32 %v251, %v252
      %v256 = vshrl.u32 %v209, 16
      %v258 = vrot.slane %v256, 7
      %v259 = vshll.u32 %v209, 16
      %v261 = vor.u32 %v258, %v259
      %v263 = vshrl.u32 %v210, 16
      %v265 = vrot.slane %v263, 7
      %v266 = vshll.u32 %v210, 16
      %v268 = vor.u32 %v265, %v266
      %v270 = vshrl.u32 %v211, 16
      %v272 = vrot.slane %v270, 7
      %v273 = vshll.u32 %v211, 16
      %v275 = vor.u32 %v272, %v273
      %v277 = vshrl.u32 %v212, 16
      %v279 = vrot.slane %v277, 7
      %v280 = vshll.u32 %v212, 16
      %v282 = vor.u32 %v279, %v280
      %v284 = vshrl.u32 %v213, 16
      %v286 = vrot.slane %v284, 7
      %v287 = vshll.u32 %v213, 16
      %v289 = vor.u32 %v286, %v287
      %v291 = vshrl.u32 %v214, 16
      %v293 = vrot.slane %v291, 7
      %v294 = vshll.u32 %v214, 16
      %v296 = vor.u32 %v293, %v294
      %v298 = vshrl.u32 %v215, 16
      %v300 = vrot.slane %v298, 7
      %v301 = vshll.u32 %v215, 16
      %v303 = vor.u32 %v300, %v301
      %v305 = vshrl.u32 %v216, 16
      %v307 = vrot.slane %v305, 7
      %v308 = vshll.u32 %v216, 16
      %v310 = vor.u32 %v307, %v308
      %v312 = vshrl.u32 %v217, 16
      %v314 = vrot.slane %v312, 7
      %v315 = vshll.u32 %v217, 16
      %v317 = vor.u32 %v314, %v315
      %v319 = vshrl.u32 %v218, 16
      %v321 = vrot.slane %v319, 7
      %v322 = vshll.u32 %v218, 16
      %v324 = vor.u32 %v321, %v322
      %v326 = vshrl.u32 %v219, 16
      %v328 = vrot.slane %v326, 7
      %v329 = vshll.u32 %v219, 16
      %v331 = vor.u32 %v328, %v329
      %v380 = vrot.slane %v204, 7
      %v381 = vrot.slane %v205, 7
      %v382 = vrot.slane %v206, 7
      %v383 = vrot.slane %v207, 7
      %v384 = vrot.slane %v208, 7
      %v385 = vrot.slane %v209, 7
      %v386 = vrot.slane %v210, 7
      %v387 = vrot.slane %v211, 7
      %v388 = vrot.slane %v212, 7
      %v389 = vrot.slane %v213, 7
      %v390 = vrot.slane %v214, 7
      %v391 = vrot.slane %v215, 7
      %v392 = vrot.slane %v216, 7
      %v393 = vrot.slane %v217, 7
      %v394 = vrot.slane %v218, 7
      %v395 = vrot.slane %v219, 7
      %vm412 = vcmask 1040384
      %vm413 = vsmask.f32 256
      %vm414 = vmand %vm412, %vm413
      %v415 = vsel %vm414, %v204, %v226
      %v416 = vsel %vm414, %v205, %v233
      %v417 = vsel %vm414, %v206, %v240
      %v418 = vsel %vm414, %v207, %v247
      %v419 = vsel %vm414, %v208, %v254
      %v420 = vsel %vm414, %v209, %v261
      %v421 = vsel %vm414, %v210, %v268
      %v422 = vsel %vm414, %v211, %v275
      %v423 = vsel %vm414, %v212, %v282
      %v424 = vsel %vm414, %v213, %v289
      %v425 = vsel %vm414, %v214, %v296
      %v426 = vsel %vm414, %v215, %v303
      %v427 = vsel %vm414, %v216, %v310
      %v428 = vsel %vm414, %v217, %v317
      %v429 = vsel %vm414, %v218, %v324
      %v430 = vsel %vm414, %v219, %v331
      %v431 = vsel %vm414, %v223, %v380
      %v432 = vsel %vm414, %v230, %v381
      %v433 = vsel %vm414, %v237, %v382
      %v434 = vsel %vm414, %v244, %v383
      %v435 = vsel %vm414, %v251, %v384
      %v436 = vsel %vm414, %v258, %v385
      %v437 = vsel %vm414, %v265, %v386
      %v438 = vsel %vm414, %v272, %v387
      %v439 = vsel %vm414, %v279, %v388
      %v440 = vsel %vm414, %v286, %v389
      %v441 = vsel %vm414, %v293, %v390
      %v442 = vsel %vm414, %v300, %v391
      %v443 = vsel %vm414, %v307, %v392
      %v444 = vsel %vm414, %v314, %v393
      %v445 = vsel %vm414, %v321, %v394
      %v446 = vsel %vm414, %v328, %v395
      %vm447 = vsmask.f32 7424
      %v449 = vshrl.u32 %v415, 16
      %v451 = vshll.u32 %v415, 16
      %v453 = vrot.slane %v451, 1
      %v454 = vor.u32 %v449, %v453
      %v456 = vshll.u32 %v431, 16
      %v458 = vrot.slane %v456, 1
      %v459 = vsel %vm447, %v454, %v458
      %v461 = vshrl.u32 %v416, 16
      %v463 = vshll.u32 %v416, 16
      %v465 = vrot.slane %v463, 1
      %v466 = vor.u32 %v461, %v465
      %v468 = vshll.u32 %v432, 16
      %v470 = vrot.slane %v468, 1
      %v471 = vsel %vm447, %v466, %v470
      %v473 = vshrl.u32 %v417, 16
      %v475 = vshll.u32 %v417, 16
      %v477 = vrot.slane %v475, 1
      %v478 = vor.u32 %v473, %v477
      %v480 = vshll.u32 %v433, 16
      %v482 = vrot.slane %v480, 1
      %v483 = vsel %vm447, %v478, %v482
      %v485 = vshrl.u32 %v418, 16
      %v487 = vshll.u32 %v418, 16
      %v489 = vrot.slane %v487, 1
      %v490 = vor.u32 %v485, %v489
      %v492 = vshll.u32 %v434, 16
      %v494 = vrot.slane %v492, 1
      %v495 = vsel %vm447, %v490, %v494
      %v497 = vshrl.u32 %v419, 16
      %v499 = vshll.u32 %v419, 16
      %v501 = vrot.slane %v499, 1
      %v502 = vor.u32 %v497, %v501
      %v504 = vshll.u32 %v435, 16
      %v506 = vrot.slane %v504, 1
      %v507 = vsel %vm447, %v502, %v506
      %v509 = vshrl.u32 %v420, 16
      %v511 = vshll.u32 %v420, 16
      %v513 = vrot.slane %v511, 1
      %v514 = vor.u32 %v509, %v513
      %v516 = vshll.u32 %v436, 16
      %v518 = vrot.slane %v516, 1
      %v519 = vsel %vm447, %v514, %v518
      %v521 = vshrl.u32 %v421, 16
      %v523 = vshll.u32 %v421, 16
      %v525 = vrot.slane %v523, 1
      %v526 = vor.u32 %v521, %v525
      %v528 = vshll.u32 %v437, 16
      %v530 = vrot.slane %v528, 1
      %v531 = vsel %vm447, %v526, %v530
      %v533 = vshrl.u32 %v422, 16
      %v535 = vshll.u32 %v422, 16
      %v537 = vrot.slane %v535, 1
      %v538 = vor.u32 %v533, %v537
      %v540 = vshll.u32 %v438, 16
      %v542 = vrot.slane %v540, 1
      %v543 = vsel %vm447, %v538, %v542
      %v545 = vshrl.u32 %v423, 16
      %v547 = vshll.u32 %v423, 16
      %v549 = vrot.slane %v547, 1
      %v550 = vor.u32 %v545, %v549
      %v552 = vshll.u32 %v439, 16
      %v554 = vrot.slane %v552, 1
      %v555 = vsel %vm447, %v550, %v554
      %v557 = vshrl.u32 %v424, 16
      %v559 = vshll.u32 %v424, 16
      %v561 = vrot.slane %v559, 1
      %v562 = vor.u32 %v557, %v561
      %v564 = vshll.u32 %v440, 16
      %v566 = vrot.slane %v564, 1
      %v567 = vsel %vm447, %v562, %v566
      %v569 = vshrl.u32 %v425, 16
      %v571 = vshll.u32 %v425, 16
      %v573 = vrot.slane %v571, 1
      %v574 = vor.u32 %v569, %v573
      %v576 = vshll.u32 %v441, 16
      %v578 = vrot.slane %v576, 1
      %v579 = vsel %vm447, %v574, %v578
      %v581 = vshrl.u32 %v426, 16
      %v583 = vshll.u32 %v426, 16
      %v585 = vrot.slane %v583, 1
      %v586 = vor.u32 %v581, %v585
      %v588 = vshll.u32 %v442, 16
      %v590 = vrot.slane %v588, 1
      %v591 = vsel %vm447, %v586, %v590
      %v593 = vshrl.u32 %v427, 16
      %v595 = vshll.u32 %v427, 16
      %v597 = vrot.slane %v595, 1
      %v598 = vor.u32 %v593, %v597
      %v600 = vshll.u32 %v443, 16
      %v602 = vrot.slane %v600, 1
      %v603 = vsel %vm447, %v598, %v602
      %v605 = vshrl.u32 %v428, 16
      %v607 = vshll.u32 %v428, 16
      %v609 = vrot.slane %v607, 1
      %v610 = vor.u32 %v605, %v609
      %v612 = vshll.u32 %v444, 16
      %v614 = vrot.slane %v612, 1
      %v615 = vsel %vm447, %v610, %v614
      %v617 = vshrl.u32 %v429, 16
      %v619 = vshll.u32 %v429, 16
      %v621 = vrot.slane %v619, 1
      %v622 = vor.u32 %v617, %v621
      %v624 = vshll.u32 %v445, 16
      %v626 = vrot.slane %v624, 1
      %v627 = vsel %vm447, %v622, %v626
      %628 = vrot.lane.b32.xlu0 %v459, 1
      %v629 = vpop.permute.xlu0 %628
      %630 = vrot.lane.b32.xlu0 %v471, 1
      %v631 = vpop.permute.xlu0 %630
      %632 = vrot.lane.b32.xlu0 %v483, 1
      %v633 = vpop.permute.xlu0 %632
      %634 = vrot.lane.b32.xlu0 %v495, 1
      %v635 = vpop.permute.xlu0 %634
      %636 = vrot.lane.b32.xlu0 %v507, 1
      %v637 = vpop.permute.xlu0 %636
      %638 = vrot.lane.b32.xlu0 %v519, 1
      %v639 = vpop.permute.xlu0 %638
      %640 = vrot.lane.b32.xlu0 %v531, 1
      %v641 = vpop.permute.xlu0 %640
      %642 = vrot.lane.b32.xlu0 %v543, 1
      %v643 = vpop.permute.xlu0 %642
      %644 = vrot.lane.b32.xlu0 %v555, 1
      %v645 = vpop.permute.xlu0 %644
      %646 = vrot.lane.b32.xlu0 %v567, 1
      %v647 = vpop.permute.xlu0 %646
      %648 = vrot.lane.b32.xlu0 %v579, 1
      %v649 = vpop.permute.xlu0 %648
      %650 = vrot.lane.b32.xlu0 %v591, 1
      %v651 = vpop.permute.xlu0 %650
      %652 = vrot.lane.b32.xlu0 %v603, 1
      %v653 = vpop.permute.xlu0 %652
      %654 = vrot.lane.b32.xlu0 %v615, 1
      %v655 = vpop.permute.xlu0 %654
      %656 = vrot.lane.b32.xlu0 %v627, 1
      %v657 = vpop.permute.xlu0 %656
      %vm688 = vcmask 1046528
      %v689 = vrot.slane %v415, 1
      %v690 = vrot.slane %v431, 1
      %v691 = vsel %vm688, %v689, %v690
      %v692 = vrot.slane %v416, 1
      %v693 = vrot.slane %v432, 1
      %v694 = vsel %vm688, %v692, %v693
      %v695 = vrot.slane %v417, 1
      %v696 = vrot.slane %v433, 1
      %v697 = vsel %vm688, %v695, %v696
      %v698 = vrot.slane %v418, 1
      %v699 = vrot.slane %v434, 1
      %v700 = vsel %vm688, %v698, %v699
      %v701 = vrot.slane %v419, 1
      %v702 = vrot.slane %v435, 1
      %v703 = vsel %vm688, %v701, %v702
      %v704 = vrot.slane %v420, 1
      %v705 = vrot.slane %v436, 1
      %v706 = vsel %vm688, %v704, %v705
      %v707 = vrot.slane %v421, 1
      %v708 = vrot.slane %v437, 1
      %v709 = vsel %vm688, %v707, %v708
      %v710 = vrot.slane %v422, 1
      %v711 = vrot.slane %v438, 1
      %v712 = vsel %vm688, %v710, %v711
      %v713 = vrot.slane %v423, 1
      %v714 = vrot.slane %v439, 1
      %v715 = vsel %vm688, %v713, %v714
      %v716 = vrot.slane %v424, 1
      %v717 = vrot.slane %v440, 1
      %v718 = vsel %vm688, %v716, %v717
      %v719 = vrot.slane %v425, 1
      %v720 = vrot.slane %v441, 1
      %v721 = vsel %vm688, %v719, %v720
      %v722 = vrot.slane %v426, 1
      %v723 = vrot.slane %v442, 1
      %v724 = vsel %vm688, %v722, %v723
      %v725 = vrot.slane %v427, 1
      %v726 = vrot.slane %v443, 1
      %v727 = vsel %vm688, %v725, %v726
      %v728 = vrot.slane %v428, 1
      %v729 = vrot.slane %v444, 1
      %v730 = vsel %vm688, %v728, %v729
      %v731 = vrot.slane %v429, 1
      %v732 = vrot.slane %v445, 1
      %v733 = vsel %vm688, %v731, %v732
      %734 = vrot.lane.b32.xlu0 %v691, 2
      %v735 = vpop.permute.xlu0 %734
      %736 = vrot.lane.b32.xlu0 %v694, 2
      %v737 = vpop.permute.xlu0 %736
      %738 = vrot.lane.b32.xlu0 %v697, 2
      %v739 = vpop.permute.xlu0 %738
      %740 = vrot.lane.b32.xlu0 %v700, 2
      %v741 = vpop.permute.xlu0 %740
      %742 = vrot.lane.b32.xlu0 %v703, 2
      %v743 = vpop.permute.xlu0 %742
      %744 = vrot.lane.b32.xlu0 %v706, 2
      %v745 = vpop.permute.xlu0 %744
      %746 = vrot.lane.b32.xlu0 %v709, 2
      %v747 = vpop.permute.xlu0 %746
      %748 = vrot.lane.b32.xlu0 %v712, 2
      %v749 = vpop.permute.xlu0 %748
      %750 = vrot.lane.b32.xlu0 %v715, 2
      %v751 = vpop.permute.xlu0 %750
      %752 = vrot.lane.b32.xlu0 %v718, 2
      %v753 = vpop.permute.xlu0 %752
      %754 = vrot.lane.b32.xlu0 %v721, 2
      %v755 = vpop.permute.xlu0 %754
      %756 = vrot.lane.b32.xlu0 %v724, 2
      %v757 = vpop.permute.xlu0 %756
      %758 = vrot.lane.b32.xlu0 %v727, 2
      %v759 = vpop.permute.xlu0 %758
      %760 = vrot.lane.b32.xlu0 %v730, 2
      %v761 = vpop.permute.xlu0 %760
      %762 = vrot.lane.b32.xlu0 %v733, 2
      %v763 = vpop.permute.xlu0 %762
      %vm764 = vcmask 7168
      %v766 = vsel %vm764, %v415, %v629
      %v768 = vsel %vm764, %v416, %v631
      %v770 = vsel %vm764, %v417, %v633
      %v772 = vsel %vm764, %v418, %v635
      %v774 = vsel %vm764, %v419, %v637
      %v776 = vsel %vm764, %v420, %v639
      %v778 = vsel %vm764, %v421, %v641
      %v780 = vsel %vm764, %v422, %v643
      %v782 = vsel %vm764, %v423, %v645
      %v784 = vsel %vm764, %v424, %v647
      %v786 = vsel %vm764, %v425, %v649
      %v788 = vsel %vm764, %v426, %v651
      %v790 = vsel %vm764, %v427, %v653
      %v792 = vsel %vm764, %v428, %v655
      %v794 = vsel %vm764, %v429, %v657
      %vm795 = vcmask 15360
      %v797 = vsel %vm795, %v766, %v735
      %v799 = vsel %vm795, %v768, %v737
      %v801 = vsel %vm795, %v770, %v739
      %v803 = vsel %vm795, %v772, %v741
      %v805 = vsel %vm795, %v774, %v743
      %v807 = vsel %vm795, %v776, %v745
      %v809 = vsel %vm795, %v778, %v747
      %v811 = vsel %vm795, %v780, %v749
      %v813 = vsel %vm795, %v782, %v751
      %v815 = vsel %vm795, %v784, %v753
      %v817 = vsel %vm795, %v786, %v755
      %v819 = vsel %vm795, %v788, %v757
      %v821 = vsel %vm795, %v790, %v759
      %v823 = vsel %vm795, %v792, %v761
      %v825 = vsel %vm795, %v794, %v763
      %v826 = vld [vmem:[%s1] sm:$0x3]
      %v828 = vshrl.u32 %v430, 16
      %v830 = vshll.u32 %v430, 16
      %v832 = vrot.slane %v830, 1
      %v833 = vor.u32 %v828, %v832
      %v835 = vshll.u32 %v446, 16
      %v837 = vrot.slane %v835, 1
      %v838 = vsel %vm447, %v833, %v837
      %839 = vrot.lane.b32.xlu0 %v838, 1
      %v840 = vpop.permute.xlu0 %839
      %v843 = vrot.slane %v430, 1
      %v844 = vrot.slane %v446, 1
      %v845 = vsel %vm688, %v843, %v844
      %846 = vrot.lane.b32.xlu0 %v845, 2
      %v847 = vpop.permute.xlu0 %846
      %v849 = vsel %vm764, %v430, %v840
      %v851 = vsel %vm795, %v849, %v847
      %s852 = scalar_lea.vmem %s1, 2
      %v853 = vld [vmem:[%s852] sm:$0x3]
      %vm854 = vcmask 23552
      %v855 = vsel %vm854, %v797, 0
      %v857 = vsel %vm854, %v799, 0
      %v859 = vsel %vm854, %v801, 0
      %v861 = vsel %vm854, %v803, 0
      %v863 = vsel %vm854, %v805, 0
      %v865 = vsel %vm854, %v807, 0
      %v867 = vsel %vm854, %v809, 0
      %v869 = vsel %vm854, %v811, 0
      %v871 = vsel %vm854, %v813, 0
      %v873 = vsel %vm854, %v815, 0
      %v875 = vsel %vm854, %v817, 0
      %v877 = vsel %vm854, %v819, 0
      %v879 = vsel %vm854, %v821, 0
      %v881 = vsel %vm854, %v823, 0
      %v883 = vsel %vm854, %v825, 0
      %v885 = vsel %vm854, %v851, 0
      %vm887 = vcmask 1040384
      %vm888 = vcmask 1041408
      %v889 = vsel %vm887, 4294967295, 65535
      %v890 = vsel %vm888, %v889, 0
      %v892 = vand.u32 %v853, %v890
      %894 = vmatprep.subr.bf16.mxu0 0
      %895 = vmatpush1.bf16.msra.mxu0 %v892
      %896 = vmatprep.subr.bf16.mxu0 0
      %897 = vmatpush1.bf16.msra.mxu0 0
      %898 = vmatprep.subr.bf16.mxu0 0
      %899 = vmatpush1.bf16.msra.mxu0 0
      %900 = vmatprep.subr.bf16.mxu0 0
      %901 = vmatpush1.bf16.msra.mxu0 0
      %902 = vmatprep.subr.bf16.mxu0 0
      %903 = vmatpush1.bf16.msra.mxu0 0
      %904 = vmatprep.subr.bf16.mxu0 0
      %905 = vmatpush1.bf16.msra.mxu0 0
      %906 = vmatprep.subr.bf16.mxu0 0
      %907 = vmatpush1.bf16.msra.mxu0 0
      %908 = vmatprep.subr.bf16.mxu0 0
      %909 = vmatpush1.bf16.msra.mxu0 0
      %910 = vmatprep.subr.bf16.mxu0 0
      %911 = vmatpush1.bf16.msra.mxu0 0
      %912 = vmatprep.subr.bf16.mxu0 0
      %913 = vmatpush1.bf16.msra.mxu0 0
      %914 = vmatprep.subr.bf16.mxu0 0
      %915 = vmatpush1.bf16.msra.mxu0 0
      %916 = vmatprep.subr.bf16.mxu0 0
      %917 = vmatpush1.bf16.msra.mxu0 0
      %918 = vmatprep.subr.bf16.mxu0 0
      %919 = vmatpush1.bf16.msra.mxu0 0
      %920 = vmatprep.subr.bf16.mxu0 0
      %921 = vmatpush1.bf16.msra.mxu0 0
      %922 = vmatprep.subr.bf16.mxu0 0
      %923 = vmatpush1.bf16.msra.mxu0 0
      %924 = vmatprep.subr.bf16.mxu0 0
      %925 = vmatpush1.bf16.msra.mxu0 0
      %926 = vmatprep.mubr.bf16.mxu0 0
      %927 = vmatmul.mubr.bf16.gmra.mrb[0].mxu0 %v855
      %v928 = vpop.f32.mrb[0].mxu0
      %v929 = vadd.f32 0.0, %v928
      %v930 = vpop.f32.mrb[0].mxu0
      %v931 = vpop.f32.mrb[0].mxu0
      %v932 = vadd.f32 0.0, %v931
      %v933 = vpop.f32.mrb[0].mxu0
      %934 = vmatprep.mubr.bf16.mxu0 0
      %935 = vmatmul.mubr.bf16.gmra.mrb[0].mxu0 %v857
      %v936 = vpop.f32.mrb[0].mxu0
      %v937 = vadd.f32 0.0, %v936
      %v938 = vpop.f32.mrb[0].mxu0
      %v939 = vpop.f32.mrb[0].mxu0
      %v940 = vadd.f32 0.0, %v939
      %v941 = vpop.f32.mrb[0].mxu0
      %942 = vmatprep.mubr.bf16.mxu0 0
      %943 = vmatmul.mubr.bf16.gmra.mrb[0].mxu0 %v859
      %v944 = vpop.f32.mrb[0].mxu0
      %v945 = vadd.f32 0.0, %v944
      %v946 = vpop.f32.mrb[0].mxu0
      %v947 = vpop.f32.mrb[0].mxu0
      %v948 = vadd.f32 0.0, %v947
      %v949 = vpop.f32.mrb[0].mxu0
      %950 = vmatprep.mubr.bf16.mxu0 0
      %951 = vmatmul.mubr.bf16.gmra.mrb[0].mxu0 %v861
      %v952 = vpop.f32.mrb[0].mxu0
      %v953 = vadd.f32 0.0, %v952
      %v954 = vpop.f32.mrb[0].mxu0
      %v955 = vpop.f32.mrb[0].mxu0
      %v956 = vadd.f32 0.0, %v955
      %v957 = vpop.f32.mrb[0].mxu0
      %958 = vmatprep.mubr.bf16.mxu0 0
      %959 = vmatmul.mubr.bf16.gmra.mrb[0].mxu0 %v863
      %v960 = vpop.f32.mrb[0].mxu0
      %v961 = vadd.f32 0.0, %v960
      %v962 = vpop.f32.mrb[0].mxu0
      %v963 = vpop.f32.mrb[0].mxu0
      %v964 = vadd.f32 0.0, %v963
      %v965 = vpop.f32.mrb[0].mxu0
      %966 = vmatprep.mubr.bf16.mxu0 0
      %967 = vmatmul.mubr.bf16.gmra.mrb[0].mxu0 %v865
      %v968 = vpop.f32.mrb[0].mxu0
      %v969 = vadd.f32 0.0, %v968
      %v970 = vpop.f32.mrb[0].mxu0
      %v971 = vpop.f32.mrb[0].mxu0
      %v972 = vadd.f32 0.0, %v971
      %v973 = vpop.f32.mrb[0].mxu0
      %974 = vmatprep.mubr.bf16.mxu0 0
      %975 = vmatmul.mubr.bf16.gmra.mrb[0].mxu0 %v867
      %v976 = vpop.f32.mrb[0].mxu0
      %v977 = vadd.f32 0.0, %v976
      %v978 = vpop.f32.mrb[0].mxu0
      %v979 = vpop.f32.mrb[0].mxu0
      %v980 = vadd.f32 0.0, %v979
      %v981 = vpop.f32.mrb[0].mxu0
      %982 = vmatprep.mubr.bf16.mxu0 0
      %983 = vmatmul.mubr.bf16.gmra.mrb[0].mxu0 %v869
      %v984 = vpop.f32.mrb[0].mxu0
      %v985 = vadd.f32 0.0, %v984
      %v986 = vpop.f32.mrb[0].mxu0
      %v987 = vpop.f32.mrb[0].mxu0
      %v988 = vadd.f32 0.0, %v987
      %v989 = vpop.f32.mrb[0].mxu0
      %990 = vmatprep.mubr.bf16.mxu0 0
      %991 = vmatmul.mubr.bf16.gmra.mrb[0].mxu0 %v871
      %v992 = vpop.f32.mrb[0].mxu0
      %v993 = vadd.f32 0.0, %v992
      %v994 = vpop.f32.mrb[0].mxu0
      %v995 = vpop.f32.mrb[0].mxu0
      %v996 = vadd.f32 0.0, %v995
      %v997 = vpop.f32.mrb[0].mxu0
      %998 = vmatprep.mubr.bf16.mxu0 0
      %999 = vmatmul.mubr.bf16.gmra.mrb[0].mxu0 %v873
      %v1000 = vpop.f32.mrb[0].mxu0
      %v1001 = vadd.f32 0.0, %v1000
      %v1002 = vpop.f32.mrb[0].mxu0
      %v1003 = vpop.f32.mrb[0].mxu0
      %v1004 = vadd.f32 0.0, %v1003
      %v1005 = vpop.f32.mrb[0].mxu0
      %1006 = vmatprep.mubr.bf16.mxu0 0
      %1007 = vmatmul.mubr.bf16.gmra.mrb[0].mxu0 %v875
      %v1008 = vpop.f32.mrb[0].mxu0
      %v1009 = vadd.f32 0.0, %v1008
      %v1010 = vpop.f32.mrb[0].mxu0
      %v1011 = vpop.f32.mrb[0].mxu0
      %v1012 = vadd.f32 0.0, %v1011
      %v1013 = vpop.f32.mrb[0].mxu0
      %1014 = vmatprep.mubr.bf16.mxu0 0
      %1015 = vmatmul.mubr.bf16.gmra.mrb[0].mxu0 %v877
      %v1016 = vpop.f32.mrb[0].mxu0
      %v1017 = vadd.f32 0.0, %v1016
      %v1018 = vpop.f32.mrb[0].mxu0
      %v1019 = vpop.f32.mrb[0].mxu0
      %v1020 = vadd.f32 0.0, %v1019
      %v1021 = vpop.f32.mrb[0].mxu0
      %1022 = vmatprep.mubr.bf16.mxu0 0
      %1023 = vmatmul.mubr.bf16.gmra.mrb[0].mxu0 %v879
      %v1024 = vpop.f32.mrb[0].mxu0
      %v1025 = vadd.f32 0.0, %v1024
      %v1026 = vpop.f32.mrb[0].mxu0
      %v1027 = vpop.f32.mrb[0].mxu0
      %v1028 = vadd.f32 0.0, %v1027
      %v1029 = vpop.f32.mrb[0].mxu0
      %1030 = vmatprep.mubr.bf16.mxu0 0
      %1031 = vmatmul.mubr.bf16.gmra.mrb[0].mxu0 %v881
      %v1032 = vpop.f32.mrb[0].mxu0
      %v1033 = vadd.f32 0.0, %v1032
      %v1034 = vpop.f32.mrb[0].mxu0
      %v1035 = vpop.f32.mrb[0].mxu0
      %v1036 = vadd.f32 0.0, %v1035
      %v1037 = vpop.f32.mrb[0].mxu0
      %1038 = vmatprep.mubr.bf16.mxu0 0
      %1039 = vmatmul.mubr.bf16.gmra.mrb[0].mxu0 %v883
      %v1040 = vpop.f32.mrb[0].mxu0
      %v1041 = vadd.f32 0.0, %v1040
      %v1042 = vpop.f32.mrb[0].mxu0
      %v1043 = vpop.f32.mrb[0].mxu0
      %v1044 = vadd.f32 0.0, %v1043
      %v1045 = vpop.f32.mrb[0].mxu0
      %1046 = vmatprep.mubr.bf16.mxu0 0
      %1047 = vmatmul.mubr.bf16.gmra.mrb[0].mxu0 %v885
      %v1048 = vpop.f32.mrb[0].mxu0
      %v1049 = vadd.f32 0.0, %v1048
      %v1050 = vpop.f32.mrb[0].mxu0
      %v1051 = vpop.f32.mrb[0].mxu0
      %v1052 = vadd.f32 0.0, %v1051
      %v1053 = vpop.f32.mrb[0].mxu0
      %1054 = vdwg.mxu0
      %v1056 = vand.u32 %v826, %v890
      %1058 = vmatprep.subr.bf16.mxu0 0
      %1059 = vmatpush1.bf16.msra.mxu0 %v1056
      %1060 = vmatprep.subr.bf16.mxu0 0
      %1061 = vmatpush1.bf16.msra.mxu0 0
      %1062 = vmatprep.subr.bf16.mxu0 0
      %1063 = vmatpush1.bf16.msra.mxu0 0
      %1064 = vmatprep.subr.bf16.mxu0 0
      %1065 = vmatpush1.bf16.msra.mxu0 0
      %1066 = vmatprep.subr.bf16.mxu0 0
      %1067 = vmatpush1.bf16.msra.mxu0 0
      %1068 = vmatprep.subr.bf16.mxu0 0
      %1069 = vmatpush1.bf16.msra.mxu0 0
      %1070 = vmatprep.subr.bf16.mxu0 0
      %1071 = vmatpush1.bf16.msra.mxu0 0
      %1072 = vmatprep.subr.bf16.mxu0 0
      %1073 = vmatpush1.bf16.msra.mxu0 0
      %1074 = vmatprep.subr.bf16.mxu0 0
      %1075 = vmatpush1.bf16.msra.mxu0 0
      %1076 = vmatprep.subr.bf16.mxu0 0
      %1077 = vmatpush1.bf16.msra.mxu0 0
      %1078 = vmatprep.subr.bf16.mxu0 0
      %1079 = vmatpush1.bf16.msra.mxu0 0
      %1080 = vmatprep.subr.bf16.mxu0 0
      %1081 = vmatpush1.bf16.msra.mxu0 0
      %1082 = vmatprep.subr.bf16.mxu0 0
      %1083 = vmatpush1.bf16.msra.mxu0 0
      %1084 = vmatprep.subr.bf16.mxu0 0
      %1085 = vmatpush1.bf16.msra.mxu0 0
      %1086 = vmatprep.subr.bf16.mxu0 0
      %1087 = vmatpush1.bf16.msra.mxu0 0
      %1088 = vmatprep.subr.bf16.mxu0 0
      %1089 = vmatpush1.bf16.msra.mxu0 0
      %1090 = vmatprep.mubr.bf16.mxu0 0
      %1091 = vmatmul.mubr.bf16.gmra.mrb[0].mxu0 %v855
      %v1092 = vpop.f32.mrb[0].mxu0
      %v1093 = vadd.f32 %v929, %v1092
      %v1094 = vpop.f32.mrb[0].mxu0
      %v1095 = vpop.f32.mrb[0].mxu0
      %v1096 = vadd.f32 %v932, %v1095
      %v1097 = vpop.f32.mrb[0].mxu0
      %1098 = vmatprep.mubr.bf16.mxu0 0
      %1099 = vmatmul.mubr.bf16.gmra.mrb[0].mxu0 %v855
      %v1100 = vpop.f32.mrb[0].mxu0
      %v1101 = vadd.f32 %v937, %v1100
      %v1102 = vpop.f32.mrb[0].mxu0
      %v1103 = vpop.f32.mrb[0].mxu0
      %v1104 = vadd.f32 %v940, %v1103
      %v1105 = vpop.f32.mrb[0].mxu0
      %1106 = vmatprep.mubr.bf16.mxu0 0
      %1107 = vmatmul.mubr.bf16.gmra.mrb[0].mxu0 %v857
      %v1108 = vpop.f32.mrb[0].mxu0
      %v1109 = vadd.f32 %v945, %v1108
      %v1110 = vpop.f32.mrb[0].mxu0
      %v1111 = vpop.f32.mrb[0].mxu0
      %v1112 = vadd.f32 %v948, %v1111
      %v1113 = vpop.f32.mrb[0].mxu0
      %1114 = vmatprep.mubr.bf16.mxu0 0
      %1115 = vmatmul.mubr.bf16.gmra.mrb[0].mxu0 %v859
      %v1116 = vpop.f32.mrb[0].mxu0
      %v1117 = vadd.f32 %v953, %v1116
      %v1118 = vpop.f32.mrb[0].mxu0
      %v1119 = vpop.f32.mrb[0].mxu0
      %v1120 = vadd.f32 %v956, %v1119
      %v1121 = vpop.f32.mrb[0].mxu0
      %1122 = vmatprep.mubr.bf16.mxu0 0
      %1123 = vmatmul.mubr.bf16.gmra.mrb[0].mxu0 %v861
      %v1124 = vpop.f32.mrb[0].mxu0
      %v1125 = vadd.f32 %v961, %v1124
      %v1126 = vpop.f32.mrb[0].mxu0
      %v1127 = vpop.f32.mrb[0].mxu0
      %v1128 = vadd.f32 %v964, %v1127
      %v1129 = vpop.f32.mrb[0].mxu0
      %1130 = vmatprep.mubr.bf16.mxu0 0
      %1131 = vmatmul.mubr.bf16.gmra.mrb[0].mxu0 %v863
      %v1132 = vpop.f32.mrb[0].mxu0
      %v1133 = vadd.f32 %v969, %v1132
      %v1134 = vpop.f32.mrb[0].mxu0
      %v1135 = vpop.f32.mrb[0].mxu0
      %v1136 = vadd.f32 %v972, %v1135
      %v1137 = vpop.f32.mrb[0].mxu0
      %1138 = vmatprep.mubr.bf16.mxu0 0
      %1139 = vmatmul.mubr.bf16.gmra.mrb[0].mxu0 %v865
      %v1140 = vpop.f32.mrb[0].mxu0
      %v1141 = vadd.f32 %v977, %v1140
      %v1142 = vpop.f32.mrb[0].mxu0
      %v1143 = vpop.f32.mrb[0].mxu0
      %v1144 = vadd.f32 %v980, %v1143
      %v1145 = vpop.f32.mrb[0].mxu0
      %1146 = vmatprep.mubr.bf16.mxu0 0
      %1147 = vmatmul.mubr.bf16.gmra.mrb[0].mxu0 %v867
      %v1148 = vpop.f32.mrb[0].mxu0
      %v1149 = vadd.f32 %v985, %v1148
      %v1150 = vpop.f32.mrb[0].mxu0
      %v1151 = vpop.f32.mrb[0].mxu0
      %v1152 = vadd.f32 %v988, %v1151
      %v1153 = vpop.f32.mrb[0].mxu0
      %1154 = vmatprep.mubr.bf16.mxu0 0
      %1155 = vmatmul.mubr.bf16.gmra.mrb[0].mxu0 %v869
      %v1156 = vpop.f32.mrb[0].mxu0
      %v1157 = vadd.f32 %v993, %v1156
      %v1158 = vpop.f32.mrb[0].mxu0
      %v1159 = vpop.f32.mrb[0].mxu0
      %v1160 = vadd.f32 %v996, %v1159
      %v1161 = vpop.f32.mrb[0].mxu0
      %1162 = vmatprep.mubr.bf16.mxu0 0
      %1163 = vmatmul.mubr.bf16.gmra.mrb[0].mxu0 %v871
      %v1164 = vpop.f32.mrb[0].mxu0
      %v1165 = vadd.f32 %v1001, %v1164
      %v1166 = vpop.f32.mrb[0].mxu0
      %v1167 = vpop.f32.mrb[0].mxu0
      %v1168 = vadd.f32 %v1004, %v1167
      %v1169 = vpop.f32.mrb[0].mxu0
      %1170 = vmatprep.mubr.bf16.mxu0 0
      %1171 = vmatmul.mubr.bf16.gmra.mrb[0].mxu0 %v873
      %v1172 = vpop.f32.mrb[0].mxu0
      %v1173 = vadd.f32 %v1009, %v1172
      %v1174 = vpop.f32.mrb[0].mxu0
      %v1175 = vpop.f32.mrb[0].mxu0
      %v1176 = vadd.f32 %v1012, %v1175
      %v1177 = vpop.f32.mrb[0].mxu0
      %1178 = vmatprep.mubr.bf16.mxu0 0
      %1179 = vmatmul.mubr.bf16.gmra.mrb[0].mxu0 %v875
      %v1180 = vpop.f32.mrb[0].mxu0
      %v1181 = vadd.f32 %v1017, %v1180
      %v1182 = vpop.f32.mrb[0].mxu0
      %v1183 = vpop.f32.mrb[0].mxu0
      %v1184 = vadd.f32 %v1020, %v1183
      %v1185 = vpop.f32.mrb[0].mxu0
      %1186 = vmatprep.mubr.bf16.mxu0 0
      %1187 = vmatmul.mubr.bf16.gmra.mrb[0].mxu0 %v877
      %v1188 = vpop.f32.mrb[0].mxu0
      %v1189 = vadd.f32 %v1025, %v1188
      %v1190 = vpop.f32.mrb[0].mxu0
      %v1191 = vpop.f32.mrb[0].mxu0
      %v1192 = vadd.f32 %v1028, %v1191
      %v1193 = vpop.f32.mrb[0].mxu0
      %1194 = vmatprep.mubr.bf16.mxu0 0
      %1195 = vmatmul.mubr.bf16.gmra.mrb[0].mxu0 %v879
      %v1196 = vpop.f32.mrb[0].mxu0
      %v1197 = vadd.f32 %v1033, %v1196
      %v1198 = vpop.f32.mrb[0].mxu0
      %v1199 = vpop.f32.mrb[0].mxu0
      %v1200 = vadd.f32 %v1036, %v1199
      %v1201 = vpop.f32.mrb[0].mxu0
      %1202 = vmatprep.mubr.bf16.mxu0 0
      %1203 = vmatmul.mubr.bf16.gmra.mrb[0].mxu0 %v881
      %v1204 = vpop.f32.mrb[0].mxu0
      %v1205 = vadd.f32 %v1041, %v1204
      %v1206 = vpop.f32.mrb[0].mxu0
      %v1207 = vpop.f32.mrb[0].mxu0
      %v1208 = vadd.f32 %v1044, %v1207
      %v1209 = vpop.f32.mrb[0].mxu0
      %1210 = vmatprep.mubr.bf16.mxu0 0
      %1211 = vmatmul.mubr.bf16.gmra.mrb[0].mxu0 %v883
      %v1212 = vpop.f32.mrb[0].mxu0
      %v1213 = vadd.f32 %v1049, %v1212
      %v1214 = vpop.f32.mrb[0].mxu0
      %v1215 = vpop.f32.mrb[0].mxu0
      %v1216 = vadd.f32 %v1052, %v1215
      %v1217 = vpop.f32.mrb[0].mxu0
      %1218 = vdwg.mxu0
      %s1219 = scalar_lea.vmem %s1, 4
      %v1220 = vld [vmem:[%s1219] sm:$0x3]
      %v1222 = vand.u32 %v1220, %v890
      %1224 = vmatprep.subr.bf16.mxu0 0
      %1225 = vmatpush1.bf16.msra.mxu0 %v1222
      %1226 = vmatprep.subr.bf16.mxu0 0
      %1227 = vmatpush1.bf16.msra.mxu0 0
      %1228 = vmatprep.subr.bf16.mxu0 0
      %1229 = vmatpush1.bf16.msra.mxu0 0
      %1230 = vmatprep.subr.bf16.mxu0 0
      %1231 = vmatpush1.bf16.msra.mxu0 0
      %1232 = vmatprep.subr.bf16.mxu0 0
      %1233 = vmatpush1.bf16.msra.mxu0 0
      %1234 = vmatprep.subr.bf16.mxu0 0
      %1235 = vmatpush1.bf16.msra.mxu0 0
      %1236 = vmatprep.subr.bf16.mxu0 0
      %1237 = vmatpush1.bf16.msra.mxu0 0
      %1238 = vmatprep.subr.bf16.mxu0 0
      %1239 = vmatpush1.bf16.msra.mxu0 0
      %1240 = vmatprep.subr.bf16.mxu0 0
      %1241 = vmatpush1.bf16.msra.mxu0 0
      %1242 = vmatprep.subr.bf16.mxu0 0
      %1243 = vmatpush1.bf16.msra.mxu0 0
      %1244 = vmatprep.subr.bf16.mxu0 0
      %1245 = vmatpush1.bf16.msra.mxu0 0
      %1246 = vmatprep.subr.bf16.mxu0 0
      %1247 = vmatpush1.bf16.msra.mxu0 0
      %1248 = vmatprep.subr.bf16.mxu0 0
      %1249 = vmatpush1.bf16.msra.mxu0 0
      %1250 = vmatprep.subr.bf16.mxu0 0
      %1251 = vmatpush1.bf16.msra.mxu0 0
      %1252 = vmatprep.subr.bf16.mxu0 0
      %1253 = vmatpush1.bf16.msra.mxu0 0
      %1254 = vmatprep.subr.bf16.mxu0 0
      %1255 = vmatpush1.bf16.msra.mxu0 0
      %1256 = vmatprep.mubr.bf16.mxu0 0
      %1257 = vmatmul.mubr.bf16.gmra.mrb[0].mxu0 %v857
      %v1258 = vpop.f32.mrb[0].mxu0
      %v1259 = vadd.f32 0.0, %v1258
      %v1260 = vpop.f32.mrb[0].mxu0
      %v1261 = vpop.f32.mrb[0].mxu0
      %v1262 = vadd.f32 0.0, %v1261
      %v1263 = vpop.f32.mrb[0].mxu0
      %1264 = vmatprep.mubr.bf16.mxu0 0
      %1265 = vmatmul.mubr.bf16.gmra.mrb[0].mxu0 %v859
      %v1266 = vpop.f32.mrb[0].mxu0
      %v1267 = vadd.f32 0.0, %v1266
      %v1268 = vpop.f32.mrb[0].mxu0
      %v1269 = vpop.f32.mrb[0].mxu0
      %v1270 = vadd.f32 0.0, %v1269
      %v1271 = vpop.f32.mrb[0].mxu0
      %1272 = vmatprep.mubr.bf16.mxu0 0
      %1273 = vmatmul.mubr.bf16.gmra.mrb[0].mxu0 %v861
      %v1274 = vpop.f32.mrb[0].mxu0
      %v1275 = vadd.f32 0.0, %v1274
      %v1276 = vpop.f32.mrb[0].mxu0
      %v1277 = vpop.f32.mrb[0].mxu0
      %v1278 = vadd.f32 0.0, %v1277
      %v1279 = vpop.f32.mrb[0].mxu0
      %1280 = vmatprep.mubr.bf16.mxu0 0
      %1281 = vmatmul.mubr.bf16.gmra.mrb[0].mxu0 %v863
      %v1282 = vpop.f32.mrb[0].mxu0
      %v1283 = vadd.f32 0.0, %v1282
      %v1284 = vpop.f32.mrb[0].mxu0
      %v1285 = vpop.f32.mrb[0].mxu0
      %v1286 = vadd.f32 0.0, %v1285
      %v1287 = vpop.f32.mrb[0].mxu0
      %1288 = vmatprep.mubr.bf16.mxu0 0
      %1289 = vmatmul.mubr.bf16.gmra.mrb[0].mxu0 %v865
      %v1290 = vpop.f32.mrb[0].mxu0
      %v1291 = vadd.f32 0.0, %v1290
      %v1292 = vpop.f32.mrb[0].mxu0
      %v1293 = vpop.f32.mrb[0].mxu0
      %v1294 = vadd.f32 0.0, %v1293
      %v1295 = vpop.f32.mrb[0].mxu0
      %1296 = vmatprep.mubr.bf16.mxu0 0
      %1297 = vmatmul.mubr.bf16.gmra.mrb[0].mxu0 %v867
      %v1298 = vpop.f32.mrb[0].mxu0
      %v1299 = vadd.f32 0.0, %v1298
      %v1300 = vpop.f32.mrb[0].mxu0
      %v1301 = vpop.f32.mrb[0].mxu0
      %v1302 = vadd.f32 0.0, %v1301
      %v1303 = vpop.f32.mrb[0].mxu0
      %1304 = vmatprep.mubr.bf16.mxu0 0
      %1305 = vmatmul.mubr.bf16.gmra.mrb[0].mxu0 %v869
      %v1306 = vpop.f32.mrb[0].mxu0
      %v1307 = vadd.f32 0.0, %v1306
      %v1308 = vpop.f32.mrb[0].mxu0
      %v1309 = vpop.f32.mrb[0].mxu0
      %v1310 = vadd.f32 0.0, %v1309
      %v1311 = vpop.f32.mrb[0].mxu0
      %1312 = vmatprep.mubr.bf16.mxu0 0
      %1313 = vmatmul.mubr.bf16.gmra.mrb[0].mxu0 %v871
      %v1314 = vpop.f32.mrb[0].mxu0
      %v1315 = vadd.f32 0.0, %v1314
      %v1316 = vpop.f32.mrb[0].mxu0
      %v1317 = vpop.f32.mrb[0].mxu0
      %v1318 = vadd.f32 0.0, %v1317
      %v1319 = vpop.f32.mrb[0].mxu0
      %1320 = vmatprep.mubr.bf16.mxu0 0
      %1321 = vmatmul.mubr.bf16.gmra.mrb[0].mxu0 %v873
      %v1322 = vpop.f32.mrb[0].mxu0
      %v1323 = vadd.f32 0.0, %v1322
      %v1324 = vpop.f32.mrb[0].mxu0
      %v1325 = vpop.f32.mrb[0].mxu0
      %v1326 = vadd.f32 0.0, %v1325
      %v1327 = vpop.f32.mrb[0].mxu0
      %1328 = vmatprep.mubr.bf16.mxu0 0
      %1329 = vmatmul.mubr.bf16.gmra.mrb[0].mxu0 %v875
      %v1330 = vpop.f32.mrb[0].mxu0
      %v1331 = vadd.f32 0.0, %v1330
      %v1332 = vpop.f32.mrb[0].mxu0
      %v1333 = vpop.f32.mrb[0].mxu0
      %v1334 = vadd.f32 0.0, %v1333
      %v1335 = vpop.f32.mrb[0].mxu0
      %1336 = vmatprep.mubr.bf16.mxu0 0
      %1337 = vmatmul.mubr.bf16.gmra.mrb[0].mxu0 %v877
      %v1338 = vpop.f32.mrb[0].mxu0
      %v1339 = vadd.f32 0.0, %v1338
      %v1340 = vpop.f32.mrb[0].mxu0
      %v1341 = vpop.f32.mrb[0].mxu0
      %v1342 = vadd.f32 0.0, %v1341
      %v1343 = vpop.f32.mrb[0].mxu0
      %1344 = vmatprep.mubr.bf16.mxu0 0
      %1345 = vmatmul.mubr.bf16.gmra.mrb[0].mxu0 %v879
      %v1346 = vpop.f32.mrb[0].mxu0
      %v1347 = vadd.f32 0.0, %v1346
      %v1348 = vpop.f32.mrb[0].mxu0
      %v1349 = vpop.f32.mrb[0].mxu0
      %v1350 = vadd.f32 0.0, %v1349
      %v1351 = vpop.f32.mrb[0].mxu0
      %1352 = vmatprep.mubr.bf16.mxu0 0
      %1353 = vmatmul.mubr.bf16.gmra.mrb[0].mxu0 %v881
      %v1354 = vpop.f32.mrb[0].mxu0
      %v1355 = vadd.f32 0.0, %v1354
      %v1356 = vpop.f32.mrb[0].mxu0
      %v1357 = vpop.f32.mrb[0].mxu0
      %v1358 = vadd.f32 0.0, %v1357
      %v1359 = vpop.f32.mrb[0].mxu0
      %1360 = vmatprep.mubr.bf16.mxu0 0
      %1361 = vmatmul.mubr.bf16.gmra.mrb[0].mxu0 %v883
      %v1362 = vpop.f32.mrb[0].mxu0
      %v1363 = vadd.f32 0.0, %v1362
      %v1364 = vpop.f32.mrb[0].mxu0
      %v1365 = vpop.f32.mrb[0].mxu0
      %v1366 = vadd.f32 0.0, %v1365
      %v1367 = vpop.f32.mrb[0].mxu0
      %1368 = vmatprep.mubr.bf16.mxu0 0
      %1369 = vmatmul.mubr.bf16.gmra.mrb[0].mxu0 %v885
      %v1370 = vpop.f32.mrb[0].mxu0
      %v1371 = vadd.f32 0.0, %v1370
      %v1372 = vpop.f32.mrb[0].mxu0
      %v1373 = vpop.f32.mrb[0].mxu0
      %v1374 = vadd.f32 0.0, %v1373
      %v1375 = vpop.f32.mrb[0].mxu0
      %1376 = vmatprep.mubr.bf16.mxu0 0
      %1377 = vmatmul.mubr.bf16.gmra.mrb[0].mxu0 %v885
      %v1378 = vpop.f32.mrb[0].mxu0
      %v1379 = vadd.f32 0.0, %v1378
      %v1380 = vpop.f32.mrb[0].mxu0
      %v1381 = vpop.f32.mrb[0].mxu0
      %v1382 = vadd.f32 0.0, %v1381
      %v1383 = vpop.f32.mrb[0].mxu0
      %1384 = vdwg.mxu0
      %v1385 = vadd.f32 %v1093, %v1259
      %v1386 = vadd.f32 %v1096, %v1262
      %v1387 = vadd.f32 %v1101, %v1267
      %v1388 = vadd.f32 %v1104, %v1270
      %v1389 = vadd.f32 %v1109, %v1275
      %v1390 = vadd.f32 %v1112, %v1278
      %v1391 = vadd.f32 %v1117, %v1283
      %v1392 = vadd.f32 %v1120, %v1286
      %v1393 = vadd.f32 %v1125, %v1291
      %v1394 = vadd.f32 %v1128, %v1294
      %v1395 = vadd.f32 %v1133, %v1299
      %v1396 = vadd.f32 %v1136, %v1302
      %v1397 = vadd.f32 %v1141, %v1307
      %v1398 = vadd.f32 %v1144, %v1310
      %v1399 = vadd.f32 %v1149, %v1315
      %v1400 = vadd.f32 %v1152, %v1318
      %v1401 = vadd.f32 %v1157, %v1323
      %v1402 = vadd.f32 %v1160, %v1326
      %v1403 = vadd.f32 %v1165, %v1331
      %v1404 = vadd.f32 %v1168, %v1334
      %v1405 = vadd.f32 %v1173, %v1339
      %v1406 = vadd.f32 %v1176, %v1342
      %v1407 = vadd.f32 %v1181, %v1347
      %v1408 = vadd.f32 %v1184, %v1350
      %v1409 = vadd.f32 %v1189, %v1355
      %v1410 = vadd.f32 %v1192, %v1358
      %v1411 = vadd.f32 %v1197, %v1363
      %v1412 = vadd.f32 %v1200, %v1366
      %v1413 = vadd.f32 %v1205, %v1371
      %v1414 = vadd.f32 %v1208, %v1374
      %v1415 = vadd.f32 %v1213, %v1379
      %v1416 = vadd.f32 %v1216, %v1382
      %v1417 = vld [vmem:[%s2] sm:$0x1]
      %v1419 = vlaneseq
      %v1420 = vshrl.u32 %v1419, 7
      %v1421 = vsub.s32 0, %v1420
      %v1422 = vrot.slane %v1417, %v1421
      %v1424 = vadd.f32 %v1385, %v1422
      %v1425 = vadd.f32 %v1386, %v1422
      %v1426 = vadd.f32 %v1387, %v1422
      %v1427 = vadd.f32 %v1388, %v1422
      %v1428 = vadd.f32 %v1389, %v1422
      %v1429 = vadd.f32 %v1390, %v1422
      %v1430 = vadd.f32 %v1391, %v1422
      %v1431 = vadd.f32 %v1392, %v1422
      %v1432 = vadd.f32 %v1393, %v1422
      %v1433 = vadd.f32 %v1394, %v1422
      %v1434 = vadd.f32 %v1395, %v1422
      %v1435 = vadd.f32 %v1396, %v1422
      %v1436 = vadd.f32 %v1397, %v1422
      %v1437 = vadd.f32 %v1398, %v1422
      %v1438 = vadd.f32 %v1399, %v1422
      %v1439 = vadd.f32 %v1400, %v1422
      %v1440 = vadd.f32 %v1401, %v1422
      %v1441 = vadd.f32 %v1402, %v1422
      %v1442 = vadd.f32 %v1403, %v1422
      %v1443 = vadd.f32 %v1404, %v1422
      %v1444 = vadd.f32 %v1405, %v1422
      %v1445 = vadd.f32 %v1406, %v1422
      %v1446 = vadd.f32 %v1407, %v1422
      %v1447 = vadd.f32 %v1408, %v1422
      %v1448 = vadd.f32 %v1409, %v1422
      %v1449 = vadd.f32 %v1410, %v1422
      %v1450 = vadd.f32 %v1411, %v1422
      %v1451 = vadd.f32 %v1412, %v1422
      %v1452 = vadd.f32 %v1413, %v1422
      %v1453 = vadd.f32 %v1414, %v1422
      %v1454 = vadd.f32 %v1415, %v1422
      %v1455 = vadd.f32 %v1416, %v1422
      %vm1456 = vcmp.gt.f32.partialorder %v1424, 0.0
      %vm1457 = vcmp.gt.f32.partialorder %v1425, 0.0
      %vm1458 = vcmp.gt.f32.partialorder %v1426, 0.0
      %vm1459 = vcmp.gt.f32.partialorder %v1427, 0.0
      %vm1460 = vcmp.gt.f32.partialorder %v1428, 0.0
      %vm1461 = vcmp.gt.f32.partialorder %v1429, 0.0
      %vm1462 = vcmp.gt.f32.partialorder %v1430, 0.0
      %vm1463 = vcmp.gt.f32.partialorder %v1431, 0.0
      %vm1464 = vcmp.gt.f32.partialorder %v1432, 0.0
      %vm1465 = vcmp.gt.f32.partialorder %v1433, 0.0
      %vm1466 = vcmp.gt.f32.partialorder %v1434, 0.0
      %vm1467 = vcmp.gt.f32.partialorder %v1435, 0.0
      %vm1468 = vcmp.gt.f32.partialorder %v1436, 0.0
      %vm1469 = vcmp.gt.f32.partialorder %v1437, 0.0
      %vm1470 = vcmp.gt.f32.partialorder %v1438, 0.0
      %vm1471 = vcmp.gt.f32.partialorder %v1439, 0.0
      %vm1472 = vcmp.gt.f32.partialorder %v1440, 0.0
      %vm1473 = vcmp.gt.f32.partialorder %v1441, 0.0
      %vm1474 = vcmp.gt.f32.partialorder %v1442, 0.0
      %vm1475 = vcmp.gt.f32.partialorder %v1443, 0.0
      %vm1476 = vcmp.gt.f32.partialorder %v1444, 0.0
      %vm1477 = vcmp.gt.f32.partialorder %v1445, 0.0
      %vm1478 = vcmp.gt.f32.partialorder %v1446, 0.0
      %vm1479 = vcmp.gt.f32.partialorder %v1447, 0.0
      %vm1480 = vcmp.gt.f32.partialorder %v1448, 0.0
      %vm1481 = vcmp.gt.f32.partialorder %v1449, 0.0
      %vm1482 = vcmp.gt.f32.partialorder %v1450, 0.0
      %vm1483 = vcmp.gt.f32.partialorder %v1451, 0.0
      %vm1484 = vcmp.gt.f32.partialorder %v1452, 0.0
      %vm1485 = vcmp.gt.f32.partialorder %v1453, 0.0
      %vm1486 = vcmp.gt.f32.partialorder %v1454, 0.0
      %vm1487 = vcmp.gt.f32.partialorder %v1455, 0.0
      %v1488 = vmin.f32 %v1424, 0.0
      %v1489 = vmin.f32 %v1425, 0.0
      %v1490 = vmin.f32 %v1426, 0.0
      %v1491 = vmin.f32 %v1427, 0.0
      %v1492 = vmin.f32 %v1428, 0.0
      %v1493 = vmin.f32 %v1429, 0.0
      %v1494 = vmin.f32 %v1430, 0.0
      %v1495 = vmin.f32 %v1431, 0.0
      %v1496 = vmin.f32 %v1432, 0.0
      %v1497 = vmin.f32 %v1433, 0.0
      %v1498 = vmin.f32 %v1434, 0.0
      %v1499 = vmin.f32 %v1435, 0.0
      %v1500 = vmin.f32 %v1436, 0.0
      %v1501 = vmin.f32 %v1437, 0.0
      %v1502 = vmin.f32 %v1438, 0.0
      %v1503 = vmin.f32 %v1439, 0.0
      %v1504 = vmin.f32 %v1440, 0.0
      %v1505 = vmin.f32 %v1441, 0.0
      %v1506 = vmin.f32 %v1442, 0.0
      %v1507 = vmin.f32 %v1443, 0.0
      %v1508 = vmin.f32 %v1444, 0.0
      %v1509 = vmin.f32 %v1445, 0.0
      %v1510 = vmin.f32 %v1446, 0.0
      %v1511 = vmin.f32 %v1447, 0.0
      %v1512 = vmin.f32 %v1448, 0.0
      %v1513 = vmin.f32 %v1449, 0.0
      %v1514 = vmin.f32 %v1450, 0.0
      %v1515 = vmin.f32 %v1451, 0.0
      %v1516 = vmin.f32 %v1452, 0.0
      %v1517 = vmin.f32 %v1453, 0.0
      %v1518 = vmin.f32 %v1454, 0.0
      %v1519 = vmin.f32 %v1455, 0.0
      %v1520 = vmul.f32 %v1488, 1.442695
      %v1521 = vpow.pop %v1520
      %v1522 = vmul.f32 %v1489, 1.442695
      %v1523 = vpow.pop %v1522
      %v1524 = vmul.f32 %v1490, 1.442695
      %v1525 = vpow.pop %v1524
      %v1526 = vmul.f32 %v1491, 1.442695
      %v1527 = vpow.pop %v1526
      %v1528 = vmul.f32 %v1492, 1.442695
      %v1529 = vpow.pop %v1528
      %v1530 = vmul.f32 %v1493, 1.442695
      %v1531 = vpow.pop %v1530
      %v1532 = vmul.f32 %v1494, 1.442695
      %v1533 = vpow.pop %v1532
      %v1534 = vmul.f32 %v1495, 1.442695
      %v1535 = vpow.pop %v1534
      %v1536 = vmul.f32 %v1496, 1.442695
      %v1537 = vpow.pop %v1536
      %v1538 = vmul.f32 %v1497, 1.442695
      %v1539 = vpow.pop %v1538
      %v1540 = vmul.f32 %v1498, 1.442695
      %v1541 = vpow.pop %v1540
      %v1542 = vmul.f32 %v1499, 1.442695
      %v1543 = vpow.pop %v1542
      %v1544 = vmul.f32 %v1500, 1.442695
      %v1545 = vpow.pop %v1544
      %v1546 = vmul.f32 %v1501, 1.442695
      %v1547 = vpow.pop %v1546
      %v1548 = vmul.f32 %v1502, 1.442695
      %v1549 = vpow.pop %v1548
      %v1550 = vmul.f32 %v1503, 1.442695
      %v1551 = vpow.pop %v1550
      %v1552 = vmul.f32 %v1504, 1.442695
      %v1553 = vpow.pop %v1552
      %v1554 = vmul.f32 %v1505, 1.442695
      %v1555 = vpow.pop %v1554
      %v1556 = vmul.f32 %v1506, 1.442695
      %v1557 = vpow.pop %v1556
      %v1558 = vmul.f32 %v1507, 1.442695
      %v1559 = vpow.pop %v1558
      %v1560 = vmul.f32 %v1508, 1.442695
      %v1561 = vpow.pop %v1560
      %v1562 = vmul.f32 %v1509, 1.442695
      %v1563 = vpow.pop %v1562
      %v1564 = vmul.f32 %v1510, 1.442695
      %v1565 = vpow.pop %v1564
      %v1566 = vmul.f32 %v1511, 1.442695
      %v1567 = vpow.pop %v1566
      %v1568 = vmul.f32 %v1512, 1.442695
      %v1569 = vpow.pop %v1568
      %v1570 = vmul.f32 %v1513, 1.442695
      %v1571 = vpow.pop %v1570
      %v1572 = vmul.f32 %v1514, 1.442695
      %v1573 = vpow.pop %v1572
      %v1574 = vmul.f32 %v1515, 1.442695
      %v1575 = vpow.pop %v1574
      %v1576 = vmul.f32 %v1516, 1.442695
      %v1577 = vpow.pop %v1576
      %v1578 = vmul.f32 %v1517, 1.442695
      %v1579 = vpow.pop %v1578
      %v1580 = vmul.f32 %v1518, 1.442695
      %v1581 = vpow.pop %v1580
      %v1582 = vmul.f32 %v1519, 1.442695
      %v1583 = vpow.pop %v1582
      %v1584 = vsub.f32 %v1521, 1.0
      %v1585 = vsub.f32 %v1523, 1.0
      %v1586 = vsub.f32 %v1525, 1.0
      %v1587 = vsub.f32 %v1527, 1.0
      %v1588 = vsub.f32 %v1529, 1.0
      %v1589 = vsub.f32 %v1531, 1.0
      %v1590 = vsub.f32 %v1533, 1.0
      %v1591 = vsub.f32 %v1535, 1.0
      %v1592 = vsub.f32 %v1537, 1.0
      %v1593 = vsub.f32 %v1539, 1.0
      %v1594 = vsub.f32 %v1541, 1.0
      %v1595 = vsub.f32 %v1543, 1.0
      %v1596 = vsub.f32 %v1545, 1.0
      %v1597 = vsub.f32 %v1547, 1.0
      %v1598 = vsub.f32 %v1549, 1.0
      %v1599 = vsub.f32 %v1551, 1.0
      %v1600 = vsub.f32 %v1553, 1.0
      %v1601 = vsub.f32 %v1555, 1.0
      %v1602 = vsub.f32 %v1557, 1.0
      %v1603 = vsub.f32 %v1559, 1.0
      %v1604 = vsub.f32 %v1561, 1.0
      %v1605 = vsub.f32 %v1563, 1.0
      %v1606 = vsub.f32 %v1565, 1.0
      %v1607 = vsub.f32 %v1567, 1.0
      %v1608 = vsub.f32 %v1569, 1.0
      %v1609 = vsub.f32 %v1571, 1.0
      %v1610 = vsub.f32 %v1573, 1.0
      %v1611 = vsub.f32 %v1575, 1.0
      %v1612 = vsub.f32 %v1577, 1.0
      %v1613 = vsub.f32 %v1579, 1.0
      %v1614 = vsub.f32 %v1581, 1.0
      %v1615 = vsub.f32 %v1583, 1.0
      %v1616 = vsel %vm1456, %v1424, %v1584
      %v1617 = vsel %vm1457, %v1425, %v1585
      %v1618 = vsel %vm1458, %v1426, %v1586
      %v1619 = vsel %vm1459, %v1427, %v1587
      %v1620 = vsel %vm1460, %v1428, %v1588
      %v1621 = vsel %vm1461, %v1429, %v1589
      %v1622 = vsel %vm1462, %v1430, %v1590
      %v1623 = vsel %vm1463, %v1431, %v1591
      %v1624 = vsel %vm1464, %v1432, %v1592
      %v1625 = vsel %vm1465, %v1433, %v1593
      %v1626 = vsel %vm1466, %v1434, %v1594
      %v1627 = vsel %vm1467, %v1435, %v1595
      %v1628 = vsel %vm1468, %v1436, %v1596
      %v1629 = vsel %vm1469, %v1437, %v1597
      %v1630 = vsel %vm1470, %v1438, %v1598
      %v1631 = vsel %vm1471, %v1439, %v1599
      %v1632 = vsel %vm1472, %v1440, %v1600
      %v1633 = vsel %vm1473, %v1441, %v1601
      %v1634 = vsel %vm1474, %v1442, %v1602
      %v1635 = vsel %vm1475, %v1443, %v1603
      %v1636 = vsel %vm1476, %v1444, %v1604
      %v1637 = vsel %vm1477, %v1445, %v1605
      %v1638 = vsel %vm1478, %v1446, %v1606
      %v1639 = vsel %vm1479, %v1447, %v1607
      %v1640 = vsel %vm1480, %v1448, %v1608
      %v1641 = vsel %vm1481, %v1449, %v1609
      %v1642 = vsel %vm1482, %v1450, %v1610
      %v1643 = vsel %vm1483, %v1451, %v1611
      %v1644 = vsel %vm1484, %v1452, %v1612
      %v1645 = vsel %vm1485, %v1453, %v1613
      %v1646 = vsel %vm1486, %v1454, %v1614
      %v1647 = vsel %vm1487, %v1455, %v1615
      %vm1648 = vcmask 64512
      %1649 = vst.msk [vmem:[%s170] sm:$0xff] %vm1648, %v1616
      %1650 = vst.msk [vmem:[%s170 + $0x8] sm:$0xff] %vm1648, %v1617
      %1651 = vst.msk [vmem:[%s170 + $0x10] sm:$0xff] %vm1648, %v1618
      %1652 = vst.msk [vmem:[%s170 + $0x18] sm:$0xff] %vm1648, %v1619
      %1653 = vst.msk [vmem:[%s170 + $0x20] sm:$0xff] %vm1648, %v1620
      %1654 = vst.msk [vmem:[%s170 + $0x28] sm:$0xff] %vm1648, %v1621
      %1655 = vst.msk [vmem:[%s170 + $0x30] sm:$0xff] %vm1648, %v1622
      %1656 = vst.msk [vmem:[%s170 + $0x38] sm:$0xff] %vm1648, %v1623
      %1657 = vst.msk [vmem:[%s170 + $0x40] sm:$0xff] %vm1648, %v1624
      %1658 = vst.msk [vmem:[%s170 + $0x48] sm:$0xff] %vm1648, %v1625
      %1659 = vst.msk [vmem:[%s170 + $0x50] sm:$0xff] %vm1648, %v1626
      %1660 = vst.msk [vmem:[%s170 + $0x58] sm:$0xff] %vm1648, %v1627
      %1661 = vst.msk [vmem:[%s170 + $0x60] sm:$0xff] %vm1648, %v1628
      %1662 = vst.msk [vmem:[%s170 + $0x68] sm:$0xff] %vm1648, %v1629
      %1663 = vst.msk [vmem:[%s170 + $0x70] sm:$0xff] %vm1648, %v1630
      %1664 = vst.msk [vmem:[%s170 + $0x78] sm:$0xff] %vm1648, %v1631
      %1665 = vst.msk [vmem:[%s170 + $0x80] sm:$0xff] %vm1648, %v1632
      %1666 = vst.msk [vmem:[%s170 + $0x88] sm:$0xff] %vm1648, %v1633
      %1667 = vst.msk [vmem:[%s170 + $0x90] sm:$0xff] %vm1648, %v1634
      %1668 = vst.msk [vmem:[%s170 + $0x98] sm:$0xff] %vm1648, %v1635
      %1669 = vst.msk [vmem:[%s170 + $0xa0] sm:$0xff] %vm1648, %v1636
      %1670 = vst.msk [vmem:[%s170 + $0xa8] sm:$0xff] %vm1648, %v1637
      %1671 = vst.msk [vmem:[%s170 + $0xb0] sm:$0xff] %vm1648, %v1638
      %1672 = vst.msk [vmem:[%s170 + $0xb8] sm:$0xff] %vm1648, %v1639
      %1673 = vst.msk [vmem:[%s170 + $0xc0] sm:$0xff] %vm1648, %v1640
      %1674 = vst.msk [vmem:[%s170 + $0xc8] sm:$0xff] %vm1648, %v1641
      %1675 = vst.msk [vmem:[%s170 + $0xd0] sm:$0xff] %vm1648, %v1642
      %1676 = vst.msk [vmem:[%s170 + $0xd8] sm:$0xff] %vm1648, %v1643
      %1677 = vst.msk [vmem:[%s170 + $0xe0] sm:$0xff] %vm1648, %v1644
      %1678 = vst.msk [vmem:[%s170 + $0xe8] sm:$0xff] %vm1648, %v1645
      %1679 = vst.msk [vmem:[%s170 + $0xf0] sm:$0xff] %vm1648, %v1646
      %1680 = vst.msk [vmem:[%s170 + $0xf8] sm:$0xff] %vm1648, %v1647
      %p1681 = scmp.lt.s32.totalorder %s14, 1
      %s1682 = scalar_select %p1681, %s14, 1
      %s1683 = smul.addr %s1682, 32
      %s1684 = smul.addr %s1683, 8
      %s1685 = scalar_lea.vmem %s3, %s1684
      // Predicated region
      $region33: #{_lambda_.9} parent=31 // pred_check
        %p1686 = pneg %p100
      $region34: #{_lambda_.9} parent=31 // pred_check_branch
        %1688 = sbr.rel (%p1686) target = $region36
      $region35: #{_lambda_.9} parent=31 // pred_region
        _
      $region36: #{_lambda_.9} parent=31 // pred_fallthru
        _
    $region32: #{_lambda_.9} parent=5 // pred_fallthru
      _
    %p1689 = scmp.le.s32.totalorder 2, %s9
    // Predicated region
    $region37: #{_lambda_.9} parent=5 // pred_check
      %p1690 = pneg %p1689
    $region38: #{_lambda_.9} parent=5 // pred_check_branch
      %1692 = sbr.rel (%p1690) target = $region40
    $region39: #{_lambda_.9} parent=5 // pred_region
      %s1693 = ssub.s32 %s9, 2
      // Predicated region
      $region41: #{_lambda_.9} parent=39 // pred_check
        %p1694 = pneg %p106
      $region42: #{_lambda_.9} parent=39 // pred_check_branch
        %1696 = sbr.rel (%p1694) target = $region44
      $region43: #{_lambda_.9} parent=39 // pred_region
        %p1697 = scmp.lt.s32.totalorder %s15, 1
        %s1698 = scalar_select %p1697, %s15, 1
        %s1699 = smul.addr %s1698, 32
        %s1700 = smul.addr %s1699, 8
        %s1701 = scalar_lea.vmem %s3, %s1700
      $region44: #{_lambda_.9} parent=39 // pred_fallthru
        _
    $region40: #{_lambda_.9} parent=5 // pred_fallthru
      _
  $region6: #{_lambda_.9} parent=0 // loop_footer
    %s13 = sadd.s32 1, %s9
  $region7: #{_lambda_.9} parent=0 // loop_footer_branch
    %8 = sbr.rel target = $region3
  $region8: #{_lambda_.9} parent=0 // loop_exit
    _

// kernel: _lambda_.10
$region0: #{_lambda_.10}
  #allocation0 [shape = 'u32[]', space=smem, size = 0x4, offset = 0x4, fixed_abs, tag = 'smem constant byte address 0x4 - core index']
  #allocation1 [shape = 'u32[144,128]{1,0:T(1,128)}', space=vmem, size = 0x12000, scoped, tag = 'internal scratch']
  %s0 = inlined_call_operand.vmem [shape: f32[2,16,16,8], index: 0, kind: input, shape index: {}]
  %s1 = inlined_call_operand.vmem [shape: bf16[3,24,8], index: 1, kind: input, shape index: {}]
  %s2 = inlined_call_operand.vmem [shape: f32[1,8], index: 2, kind: input, shape index: {}]
  %s3 = inlined_call_operand.vmem [shape: f32[2,16,16,8], index: 3, kind: output, shape index: {}]
  %s4 = sld [smem:[#allocation0]]
  $region45: #{_lambda_.10} parent=0
    _
  %s6 = ssub.s32 1, %s4
  %s7 = scalar_select 0, %s6, %s4
  loop: start=0, step=1, limit=4
  $region2: #{_lambda_.10} parent=0 // loop_pre_header
    _
  $region3: #{_lambda_.10} parent=0 // loop_header
    %s9 = sphi 0, %s13
    %p10 = scmp.ge.s32.totalorder %s9, 4
    %s19 = sphi 0, %s21
    %s22 = sphi 0, %s19
    %s23 = sphi 0, %s22
    %s39 = sphi 0, %s23
    %s43 = sphi 0, %s43
    %s45 = sphi 0, %s43
    %s46 = sphi 0, %s45
    %s60 = sphi 0, %s46
    %s64 = sphi 0, %s64
    %s66 = sphi 0, %s64
    %s67 = sphi 0, %s66
    %s81 = sphi 0, %s67
    %s87 = sphi 0, %s89
    %s90 = sphi 0, %s87
    %s91 = sphi 0, %s90
    %s107 = sphi 0, %s91
  $region4: #{_lambda_.10} parent=0 // loop_header_branch
    %12 = sbr.rel (%p10) target = $region8
  $region5: #{_lambda_.10} parent=0 // loop_body
    %s14 = ssub.s32 %s9, 1
    %s15 = ssub.s32 %s9, 2
    %s16 = sadd.s32 %s9, 1
    %s17 = ssub.s32 %s9, %s16
    %p18 = scmp.eq.s32.totalorder %s17, 0
    %s20 = sadd.s32 %s19, 1
    %s21 = scalar_select %p18, %s19, %s20
    %p24 = pneg %p18
    %p25 = scmp.eq.s32.totalorder %s9, 1
    %p26 = por %p24, %p25
    %p27 = scmp.ne.s32.totalorder %s19, %s22
    %p28 = scmp.eq.s32.totalorder %s9, 0
    %p29 = por %p27, %p28
    %p30 = scmp.ne.s32.totalorder %s19, %s22
    %p31 = scmp.eq.s32.totalorder %s14, 1
    %p32 = por %p30, %p31
    %p33 = scmp.ne.s32.totalorder %s22, %s23
    %p34 = scmp.eq.s32.totalorder %s14, 0
    %p35 = por %p33, %p34
    %p36 = scmp.ne.s32.totalorder %s22, %s23
    %p37 = scmp.eq.s32.totalorder %s15, 1
    %p38 = por %p36, %p37
    %p40 = scmp.ne.s32.totalorder %s23, %s39
    %p41 = scmp.eq.s32.totalorder %s15, 0
    %p42 = por %p40, %p41
    %s44 = sadd.s32 %s43, 1
    %p47 = scmp.eq.s32.totalorder %s9, 1
    %p48 = scmp.ne.s32.totalorder %s43, %s45
    %p49 = scmp.eq.s32.totalorder %s9, 0
    %p50 = por %p48, %p49
    %p51 = scmp.ne.s32.totalorder %s43, %s45
    %p52 = scmp.eq.s32.totalorder %s14, 1
    %p53 = por %p51, %p52
    %p54 = scmp.ne.s32.totalorder %s45, %s46
    %p55 = scmp.eq.s32.totalorder %s14, 0
    %p56 = por %p54, %p55
    %p57 = scmp.ne.s32.totalorder %s45, %s46
    %p58 = scmp.eq.s32.totalorder %s15, 1
    %p59 = por %p57, %p58
    %p61 = scmp.ne.s32.totalorder %s46, %s60
    %p62 = scmp.eq.s32.totalorder %s15, 0
    %p63 = por %p61, %p62
    %s65 = sadd.s32 %s64, 1
    %p68 = scmp.eq.s32.totalorder %s9, 1
    %p69 = scmp.ne.s32.totalorder %s64, %s66
    %p70 = scmp.eq.s32.totalorder %s9, 0
    %p71 = por %p69, %p70
    %p72 = scmp.ne.s32.totalorder %s64, %s66
    %p73 = scmp.eq.s32.totalorder %s14, 1
    %p74 = por %p72, %p73
    %p75 = scmp.ne.s32.totalorder %s66, %s67
    %p76 = scmp.eq.s32.totalorder %s14, 0
    %p77 = por %p75, %p76
    %p78 = scmp.ne.s32.totalorder %s66, %s67
    %p79 = scmp.eq.s32.totalorder %s15, 1
    %p80 = por %p78, %p79
    %p82 = scmp.ne.s32.totalorder %s67, %s81
    %p83 = scmp.eq.s32.totalorder %s15, 0
    %p84 = por %p82, %p83
    %s85 = ssub.s32 %s9, %s16
    %p86 = scmp.eq.s32.totalorder %s85, 0
    %s88 = sadd.s32 %s87, 1
    %s89 = scalar_select %p86, %s87, %s88
    %p92 = pneg %p86
    %p93 = scmp.eq.s32.totalorder %s9, 1
    %p94 = por %p92, %p93
    %p95 = scmp.ne.s32.totalorder %s87, %s90
    %p96 = scmp.eq.s32.totalorder %s9, 0
    %p97 = por %p95, %p96
    %p98 = scmp.ne.s32.totalorder %s87, %s90
    %p99 = scmp.eq.s32.totalorder %s14, 1
    %p100 = por %p98, %p99
    %p101 = scmp.ne.s32.totalorder %s90, %s91
    %p102 = scmp.eq.s32.totalorder %s14, 0
    %p103 = por %p101, %p102
    %p104 = scmp.ne.s32.totalorder %s90, %s91
    %p105 = scmp.eq.s32.totalorder %s15, 1
    %p106 = por %p104, %p105
    %p108 = scmp.ne.s32.totalorder %s91, %s107
    %p109 = scmp.eq.s32.totalorder %s15, 0
    %p110 = por %p108, %p109
    %p111 = scmp.le.s32.totalorder 1, %s9
    %p112 = scmp.lt.s32.totalorder %s9, 3
    %p113 = pnand %p111, %p112
    %p114 = pneg %p113
    // Predicated region
    $region9: #{_lambda_.10} parent=5 // pred_check
      _
    $region10: #{_lambda_.10} parent=5 // pred_check_branch
      %116 = sbr.rel (%p113) target = $region12
    $region11: #{_lambda_.10} parent=5 // pred_region
      %s117 = ssub.s32 %s9, 1
      // Predicated region
      $region13: #{_lambda_.10} parent=11 // pred_check
        %p118 = pneg %p56
      $region14: #{_lambda_.10} parent=11 // pred_check_branch
        %120 = sbr.rel (%p118) target = $region16
      $region15: #{_lambda_.10} parent=11 // pred_region
        _
      $region16: #{_lambda_.10} parent=11 // pred_fallthru
        _
      // Predicated region
      $region17: #{_lambda_.10} parent=11 // pred_check
        %p121 = pneg %p77
      $region18: #{_lambda_.10} parent=11 // pred_check_branch
        %123 = sbr.rel (%p121) target = $region20
      $region19: #{_lambda_.10} parent=11 // pred_region
        _
      $region20: #{_lambda_.10} parent=11 // pred_fallthru
        _
    $region12: #{_lambda_.10} parent=5 // pred_fallthru
      _
    %p124 = scmp.lt.s32.totalorder %s9, 2
    // Predicated region
    $region21: #{_lambda_.10} parent=5 // pred_check
      %p125 = pneg %p124
    $region22: #{_lambda_.10} parent=5 // pred_check_branch
      %127 = sbr.rel (%p125) target = $region24
    $region23: #{_lambda_.10} parent=5 // pred_region
      // Predicated region
      $region25: #{_lambda_.10} parent=23 // pred_check
        %p128 = pneg %p29
      $region26: #{_lambda_.10} parent=23 // pred_check_branch
        %130 = sbr.rel (%p128) target = $region28
      $region27: #{_lambda_.10} parent=23 // pred_region
        %p131 = scmp.lt.s32.totalorder %s9, 1
        %s132 = scalar_select %p131, %s9, 1
        %s133 = smul.addr %s132, 32
        %s134 = smul.addr %s133, 8
        %s135 = scalar_lea.vmem %s0, %s134
      $region28: #{_lambda_.10} parent=23 // pred_fallthru
        _
    $region24: #{_lambda_.10} parent=5 // pred_fallthru
      _
    %p136 = scmp.le.s32.totalorder 1, %s9
    %p137 = scmp.lt.s32.totalorder %s9, 3
    %p138 = pnand %p136, %p137
    %p139 = pneg %p138
    // Predicated region
    $region29: #{_lambda_.10} parent=5 // pred_check
      _
    $region30: #{_lambda_.10} parent=5 // pred_check_branch
      %141 = sbr.rel (%p138) target = $region32
    $region31: #{_lambda_.10} parent=5 // pred_region
      %s142 = ssub.s32 %s9, 1
      %p143 = scmp.lt.s32.totalorder %s14, 1
      %s144 = scalar_select %p143, %s14, 1
      %s145 = smul.addr %s144, 32
      %s146 = smul.addr %s145, 8
      %s147 = scalar_lea.vmem %s0, %s146
      %p148 = pneg %p35
      %p149 = pneg %p32
      %p150 = pneg %p56
      %p151 = pneg %p53
      %p152 = pneg %p77
      %p153 = pneg %p74
      %p154 = pneg %p103
      %p155 = pneg %p100
      %p156 = scmp.lt.s32.totalorder %s14, 1
      %s157 = scalar_select %p156, %s14, 1
      %s158 = smul.addr %s157, 32
      %s159 = smul.addr %s158, 8
      %s160 = scalar_lea.vmem %s3, %s159
      %p161 = scmp.lt.s32.totalorder %s14, 1
      %s162 = scalar_select %p161, %s14, 1
      %s163 = smul.addr %s162, 32
      %s164 = smul.addr %s163, 8
      %s165 = scalar_lea.vmem %s0, %s164
      %p166 = scmp.lt.s32.totalorder %s14, 1
      %s167 = scalar_select %p166, %s14, 1
      %s168 = smul.addr %s167, 32
      %s169 = smul.addr %s168, 8
      %s170 = scalar_lea.vmem %s3, %s169
      %v172 = vld [vmem:[%s165] sm:$0xff]
      %v173 = vld [vmem:[%s165 + $0x8] sm:$0xff]
      %v174 = vld [vmem:[%s165 + $0x10] sm:$0xff]
      %v175 = vld [vmem:[%s165 + $0x18] sm:$0xff]
      %v176 = vld [vmem:[%s165 + $0x20] sm:$0xff]
      %v177 = vld [vmem:[%s165 + $0x28] sm:$0xff]
      %v178 = vld [vmem:[%s165 + $0x30] sm:$0xff]
      %v179 = vld [vmem:[%s165 + $0x38] sm:$0xff]
      %v180 = vld [vmem:[%s165 + $0x40] sm:$0xff]
      %v181 = vld [vmem:[%s165 + $0x48] sm:$0xff]
      %v182 = vld [vmem:[%s165 + $0x50] sm:$0xff]
      %v183 = vld [vmem:[%s165 + $0x58] sm:$0xff]
      %v184 = vld [vmem:[%s165 + $0x60] sm:$0xff]
      %v185 = vld [vmem:[%s165 + $0x68] sm:$0xff]
      %v186 = vld [vmem:[%s165 + $0x70] sm:$0xff]
      %v187 = vld [vmem:[%s165 + $0x78] sm:$0xff]
      %v188 = vld [vmem:[%s165 + $0x80] sm:$0xff]
      %v189 = vld [vmem:[%s165 + $0x88] sm:$0xff]
      %v190 = vld [vmem:[%s165 + $0x90] sm:$0xff]
      %v191 = vld [vmem:[%s165 + $0x98] sm:$0xff]
      %v192 = vld [vmem:[%s165 + $0xa0] sm:$0xff]
      %v193 = vld [vmem:[%s165 + $0xa8] sm:$0xff]
      %v194 = vld [vmem:[%s165 + $0xb0] sm:$0xff]
      %v195 = vld [vmem:[%s165 + $0xb8] sm:$0xff]
      %v196 = vld [vmem:[%s165 + $0xc0] sm:$0xff]
      %v197 = vld [vmem:[%s165 + $0xc8] sm:$0xff]
      %v198 = vld [vmem:[%s165 + $0xd0] sm:$0xff]
      %v199 = vld [vmem:[%s165 + $0xd8] sm:$0xff]
      %v200 = vld [vmem:[%s165 + $0xe0] sm:$0xff]
      %v201 = vld [vmem:[%s165 + $0xe8] sm:$0xff]
      %v202 = vld [vmem:[%s165 + $0xf0] sm:$0xff]
      %v203 = vld [vmem:[%s165 + $0xf8] sm:$0xff]
      %v204 = vpack.c.bf16 %v173, %v172
      %v205 = vpack.c.bf16 %v175, %v174
      %v206 = vpack.c.bf16 %v177, %v176
      %v207 = vpack.c.bf16 %v179, %v178
      %v208 = vpack.c.bf16 %v181, %v180
      %v209 = vpack.c.bf16 %v183, %v182
      %v210 = vpack.c.bf16 %v185, %v184
      %v211 = vpack.c.bf16 %v187, %v186
      %v212 = vpack.c.bf16 %v189, %v188
      %v213 = vpack.c.bf16 %v191, %v190
      %v214 = vpack.c.bf16 %v193, %v192
      %v215 = vpack.c.bf16 %v195, %v194
      %v216 = vpack.c.bf16 %v197, %v196
      %v217 = vpack.c.bf16 %v199, %v198
      %v218 = vpack.c.bf16 %v201, %v200
      %v219 = vpack.c.bf16 %v203, %v202
      %v221 = vshrl.u32 %v204, 16
      %v223 = vrot.slane %v221, 7
      %v224 = vshll.u32 %v204, 16
      %v226 = vor.u32 %v223, %v224
      %v228 = vshrl.u32 %v205, 16
      %v230 = vrot.slane %v228, 7
      %v231 = vshll.u32 %v205, 16
      %v233 = vor.u32 %v230, %v231
      %v235 = vshrl.u32 %v206, 16
      %v237 = vrot.slane %v235, 7
      %v238 = vshll.u32 %v206, 16
      %v240 = vor.u32 %v237, %v238
      %v242 = vshrl.u32 %v207, 16
      %v244 = vrot.slane %v242, 7
      %v245 = vshll.u32 %v207, 16
      %v247 = vor.u32 %v244, %v245
      %v249 = vshrl.u32 %v208, 16
      %v251 = vrot.slane %v249, 7
      %v252 = vshll.u32 %v208, 16
      %v254 = vor.u32 %v251, %v252
      %v256 = vshrl.u32 %v209, 16
      %v258 = vrot.slane %v256, 7
      %v259 = vshll.u32 %v209, 16
      %v261 = vor.u32 %v258, %v259
      %v263 = vshrl.u32 %v210, 16
      %v265 = vrot.slane %v263, 7
      %v266 = vshll.u32 %v210, 16
      %v268 = vor.u32 %v265, %v266
      %v270 = vshrl.u32 %v211, 16
      %v272 = vrot.slane %v270, 7
      %v273 = vshll.u32 %v211, 16
      %v275 = vor.u32 %v272, %v273
      %v277 = vshrl.u32 %v212, 16
      %v279 = vrot.slane %v277, 7
      %v280 = vshll.u32 %v212, 16
      %v282 = vor.u32 %v279, %v280
      %v284 = vshrl.u32 %v213, 16
      %v286 = vrot.slane %v284, 7
      %v287 = vshll.u32 %v213, 16
      %v289 = vor.u32 %v286, %v287
      %v291 = vshrl.u32 %v214, 16
      %v293 = vrot.slane %v291, 7
      %v294 = vshll.u32 %v214, 16
      %v296 = vor.u32 %v293, %v294
      %v298 = vshrl.u32 %v215, 16
      %v300 = vrot.slane %v298, 7
      %v301 = vshll.u32 %v215, 16
      %v303 = vor.u32 %v300, %v301
      %v305 = vshrl.u32 %v216, 16
      %v307 = vrot.slane %v305, 7
      %v308 = vshll.u32 %v216, 16
      %v310 = vor.u32 %v307, %v308
      %v312 = vshrl.u32 %v217, 16
      %v314 = vrot.slane %v312, 7
      %v315 = vshll.u32 %v217, 16
      %v317 = vor.u32 %v314, %v315
      %v319 = vshrl.u32 %v218, 16
      %v321 = vrot.slane %v319, 7
      %v322 = vshll.u32 %v218, 16
      %v324 = vor.u32 %v321, %v322
      %v326 = vshrl.u32 %v219, 16
      %v328 = vrot.slane %v326, 7
      %v329 = vshll.u32 %v219, 16
      %v331 = vor.u32 %v328, %v329
      %v380 = vrot.slane %v204, 7
      %v381 = vrot.slane %v205, 7
      %v382 = vrot.slane %v206, 7
      %v383 = vrot.slane %v207, 7
      %v384 = vrot.slane %v208, 7
      %v385 = vrot.slane %v209, 7
      %v386 = vrot.slane %v210, 7
      %v387 = vrot.slane %v211, 7
      %v388 = vrot.slane %v212, 7
      %v389 = vrot.slane %v213, 7
      %v390 = vrot.slane %v214, 7
      %v391 = vrot.slane %v215, 7
      %v392 = vrot.slane %v216, 7
      %v393 = vrot.slane %v217, 7
      %v394 = vrot.slane %v218, 7
      %v395 = vrot.slane %v219, 7
      %vm412 = vcmask 1040384
      %vm413 = vsmask.f32 256
      %vm414 = vmand %vm412, %vm413
      %v415 = vsel %vm414, %v204, %v226
      %v416 = vsel %vm414, %v205, %v233
      %v417 = vsel %vm414, %v206, %v240
      %v418 = vsel %vm414, %v207, %v247
      %v419 = vsel %vm414, %v208, %v254
      %v420 = vsel %vm414, %v209, %v261
      %v421 = vsel %vm414, %v210, %v268
      %v422 = vsel %vm414, %v211, %v275
      %v423 = vsel %vm414, %v212, %v282
      %v424 = vsel %vm414, %v213, %v289
      %v425 = vsel %vm414, %v214, %v296
      %v426 = vsel %vm414, %v215, %v303
      %v427 = vsel %vm414, %v216, %v310
      %v428 = vsel %vm414, %v217, %v317
      %v429 = vsel %vm414, %v218, %v324
      %v430 = vsel %vm414, %v219, %v331
      %v431 = vsel %vm414, %v223, %v380
      %v432 = vsel %vm414, %v230, %v381
      %v433 = vsel %vm414, %v237, %v382
      %v434 = vsel %vm414, %v244, %v383
      %v435 = vsel %vm414, %v251, %v384
      %v436 = vsel %vm414, %v258, %v385
      %v437 = vsel %vm414, %v265, %v386
      %v438 = vsel %vm414, %v272, %v387
      %v439 = vsel %vm414, %v279, %v388
      %v440 = vsel %vm414, %v286, %v389
      %v441 = vsel %vm414, %v293, %v390
      %v442 = vsel %vm414, %v300, %v391
      %v443 = vsel %vm414, %v307, %v392
      %v444 = vsel %vm414, %v314, %v393
      %v445 = vsel %vm414, %v321, %v394
      %v446 = vsel %vm414, %v328, %v395
      %vm447 = vsmask.f32 7424
      %v449 = vshrl.u32 %v415, 16
      %v451 = vshll.u32 %v415, 16
      %v453 = vrot.slane %v451, 1
      %v454 = vor.u32 %v449, %v453
      %v456 = vshll.u32 %v431, 16
      %v458 = vrot.slane %v456, 1
      %v459 = vsel %vm447, %v454, %v458
      %v461 = vshrl.u32 %v416, 16
      %v463 = vshll.u32 %v416, 16
      %v465 = vrot.slane %v463, 1
      %v466 = vor.u32 %v461, %v465
      %v468 = vshll.u32 %v432, 16
      %v470 = vrot.slane %v468, 1
      %v471 = vsel %vm447, %v466, %v470
      %v473 = vshrl.u32 %v417, 16
      %v475 = vshll.u32 %v417, 16
      %v477 = vrot.slane %v475, 1
      %v478 = vor.u32 %v473, %v477
      %v480 = vshll.u32 %v433, 16
      %v482 = vrot.slane %v480, 1
      %v483 = vsel %vm447, %v478, %v482
      %v485 = vshrl.u32 %v418, 16
      %v487 = vshll.u32 %v418, 16
      %v489 = vrot.slane %v487, 1
      %v490 = vor.u32 %v485, %v489
      %v492 = vshll.u32 %v434, 16
      %v494 = vrot.slane %v492, 1
      %v495 = vsel %vm447, %v490, %v494
      %v497 = vshrl.u32 %v419, 16
      %v499 = vshll.u32 %v419, 16
      %v501 = vrot.slane %v499, 1
      %v502 = vor.u32 %v497, %v501
      %v504 = vshll.u32 %v435, 16
      %v506 = vrot.slane %v504, 1
      %v507 = vsel %vm447, %v502, %v506
      %v509 = vshrl.u32 %v420, 16
      %v511 = vshll.u32 %v420, 16
      %v513 = vrot.slane %v511, 1
      %v514 = vor.u32 %v509, %v513
      %v516 = vshll.u32 %v436, 16
      %v518 = vrot.slane %v516, 1
      %v519 = vsel %vm447, %v514, %v518
      %v521 = vshrl.u32 %v421, 16
      %v523 = vshll.u32 %v421, 16
      %v525 = vrot.slane %v523, 1
      %v526 = vor.u32 %v521, %v525
      %v528 = vshll.u32 %v437, 16
      %v530 = vrot.slane %v528, 1
      %v531 = vsel %vm447, %v526, %v530
      %v533 = vshrl.u32 %v422, 16
      %v535 = vshll.u32 %v422, 16
      %v537 = vrot.slane %v535, 1
      %v538 = vor.u32 %v533, %v537
      %v540 = vshll.u32 %v438, 16
      %v542 = vrot.slane %v540, 1
      %v543 = vsel %vm447, %v538, %v542
      %v545 = vshrl.u32 %v423, 16
      %v547 = vshll.u32 %v423, 16
      %v549 = vrot.slane %v547, 1
      %v550 = vor.u32 %v545, %v549
      %v552 = vshll.u32 %v439, 16
      %v554 = vrot.slane %v552, 1
      %v555 = vsel %vm447, %v550, %v554
      %v557 = vshrl.u32 %v424, 16
      %v559 = vshll.u32 %v424, 16
      %v561 = vrot.slane %v559, 1
      %v562 = vor.u32 %v557, %v561
      %v564 = vshll.u32 %v440, 16
      %v566 = vrot.slane %v564, 1
      %v567 = vsel %vm447, %v562, %v566
      %v569 = vshrl.u32 %v425, 16
      %v571 = vshll.u32 %v425, 16
      %v573 = vrot.slane %v571, 1
      %v574 = vor.u32 %v569, %v573
      %v576 = vshll.u32 %v441, 16
      %v578 = vrot.slane %v576, 1
      %v579 = vsel %vm447, %v574, %v578
      %v581 = vshrl.u32 %v426, 16
      %v583 = vshll.u32 %v426, 16
      %v585 = vrot.slane %v583, 1
      %v586 = vor.u32 %v581, %v585
      %v588 = vshll.u32 %v442, 16
      %v590 = vrot.slane %v588, 1
      %v591 = vsel %vm447, %v586, %v590
      %v593 = vshrl.u32 %v427, 16
      %v595 = vshll.u32 %v427, 16
      %v597 = vrot.slane %v595, 1
      %v598 = vor.u32 %v593, %v597
      %v600 = vshll.u32 %v443, 16
      %v602 = vrot.slane %v600, 1
      %v603 = vsel %vm447, %v598, %v602
      %v605 = vshrl.u32 %v428, 16
      %v607 = vshll.u32 %v428, 16
      %v609 = vrot.slane %v607, 1
      %v610 = vor.u32 %v605, %v609
      %v612 = vshll.u32 %v444, 16
      %v614 = vrot.slane %v612, 1
      %v615 = vsel %vm447, %v610, %v614
      %v617 = vshrl.u32 %v429, 16
      %v619 = vshll.u32 %v429, 16
      %v621 = vrot.slane %v619, 1
      %v622 = vor.u32 %v617, %v621
      %v624 = vshll.u32 %v445, 16
      %v626 = vrot.slane %v624, 1
      %v627 = vsel %vm447, %v622, %v626
      %628 = vrot.lane.b32.xlu0 %v459, 8
      %v629 = vpop.permute.xlu0 %628
      %630 = vrot.lane.b32.xlu0 %v471, 8
      %v631 = vpop.permute.xlu0 %630
      %632 = vrot.lane.b32.xlu0 %v483, 8
      %v633 = vpop.permute.xlu0 %632
      %634 = vrot.lane.b32.xlu0 %v495, 8
      %v635 = vpop.permute.xlu0 %634
      %636 = vrot.lane.b32.xlu0 %v507, 8
      %v637 = vpop.permute.xlu0 %636
      %638 = vrot.lane.b32.xlu0 %v519, 8
      %v639 = vpop.permute.xlu0 %638
      %640 = vrot.lane.b32.xlu0 %v531, 8
      %v641 = vpop.permute.xlu0 %640
      %642 = vrot.lane.b32.xlu0 %v543, 8
      %v643 = vpop.permute.xlu0 %642
      %644 = vrot.lane.b32.xlu0 %v555, 8
      %v645 = vpop.permute.xlu0 %644
      %646 = vrot.lane.b32.xlu0 %v567, 8
      %v647 = vpop.permute.xlu0 %646
      %648 = vrot.lane.b32.xlu0 %v579, 8
      %v649 = vpop.permute.xlu0 %648
      %650 = vrot.lane.b32.xlu0 %v591, 8
      %v651 = vpop.permute.xlu0 %650
      %652 = vrot.lane.b32.xlu0 %v603, 8
      %v653 = vpop.permute.xlu0 %652
      %654 = vrot.lane.b32.xlu0 %v615, 8
      %v655 = vpop.permute.xlu0 %654
      %656 = vrot.lane.b32.xlu0 %v627, 8
      %v657 = vpop.permute.xlu0 %656
      %vm688 = vcmask 1046528
      %v689 = vrot.slane %v415, 1
      %v690 = vrot.slane %v431, 1
      %v691 = vsel %vm688, %v689, %v690
      %v692 = vrot.slane %v416, 1
      %v693 = vrot.slane %v432, 1
      %v694 = vsel %vm688, %v692, %v693
      %v695 = vrot.slane %v417, 1
      %v696 = vrot.slane %v433, 1
      %v697 = vsel %vm688, %v695, %v696
      %v698 = vrot.slane %v418, 1
      %v699 = vrot.slane %v434, 1
      %v700 = vsel %vm688, %v698, %v699
      %v701 = vrot.slane %v419, 1
      %v702 = vrot.slane %v435, 1
      %v703 = vsel %vm688, %v701, %v702
      %v704 = vrot.slane %v420, 1
      %v705 = vrot.slane %v436, 1
      %v706 = vsel %vm688, %v704, %v705
      %v707 = vrot.slane %v421, 1
      %v708 = vrot.slane %v437, 1
      %v709 = vsel %vm688, %v707, %v708
      %v710 = vrot.slane %v422, 1
      %v711 = vrot.slane %v438, 1
      %v712 = vsel %vm688, %v710, %v711
      %v713 = vrot.slane %v423, 1
      %v714 = vrot.slane %v439, 1
      %v715 = vsel %vm688, %v713, %v714
      %v716 = vrot.slane %v424, 1
      %v717 = vrot.slane %v440, 1
      %v718 = vsel %vm688, %v716, %v717
      %v719 = vrot.slane %v425, 1
      %v720 = vrot.slane %v441, 1
      %v721 = vsel %vm688, %v719, %v720
      %v722 = vrot.slane %v426, 1
      %v723 = vrot.slane %v442, 1
      %v724 = vsel %vm688, %v722, %v723
      %v725 = vrot.slane %v427, 1
      %v726 = vrot.slane %v443, 1
      %v727 = vsel %vm688, %v725, %v726
      %v728 = vrot.slane %v428, 1
      %v729 = vrot.slane %v444, 1
      %v730 = vsel %vm688, %v728, %v729
      %v731 = vrot.slane %v429, 1
      %v732 = vrot.slane %v445, 1
      %v733 = vsel %vm688, %v731, %v732
      %734 = vrot.lane.b32.xlu0 %v691, 16
      %v735 = vpop.permute.xlu0 %734
      %736 = vrot.lane.b32.xlu0 %v694, 16
      %v737 = vpop.permute.xlu0 %736
      %738 = vrot.lane.b32.xlu0 %v697, 16
      %v739 = vpop.permute.xlu0 %738
      %740 = vrot.lane.b32.xlu0 %v700, 16
      %v741 = vpop.permute.xlu0 %740
      %742 = vrot.lane.b32.xlu0 %v703, 16
      %v743 = vpop.permute.xlu0 %742
      %744 = vrot.lane.b32.xlu0 %v706, 16
      %v745 = vpop.permute.xlu0 %744
      %746 = vrot.lane.b32.xlu0 %v709, 16
      %v747 = vpop.permute.xlu0 %746
      %748 = vrot.lane.b32.xlu0 %v712, 16
      %v749 = vpop.permute.xlu0 %748
      %750 = vrot.lane.b32.xlu0 %v715, 16
      %v751 = vpop.permute.xlu0 %750
      %752 = vrot.lane.b32.xlu0 %v718, 16
      %v753 = vpop.permute.xlu0 %752
      %754 = vrot.lane.b32.xlu0 %v721, 16
      %v755 = vpop.permute.xlu0 %754
      %756 = vrot.lane.b32.xlu0 %v724, 16
      %v757 = vpop.permute.xlu0 %756
      %758 = vrot.lane.b32.xlu0 %v727, 16
      %v759 = vpop.permute.xlu0 %758
      %760 = vrot.lane.b32.xlu0 %v730, 16
      %v761 = vpop.permute.xlu0 %760
      %762 = vrot.lane.b32.xlu0 %v733, 16
      %v763 = vpop.permute.xlu0 %762
      %vm764 = vcmask 64512
      %v766 = vsel %vm764, %v415, %v629
      %v768 = vsel %vm764, %v416, %v631
      %v770 = vsel %vm764, %v417, %v633
      %v772 = vsel %vm764, %v418, %v635
      %v774 = vsel %vm764, %v419, %v637
      %v776 = vsel %vm764, %v420, %v639
      %v778 = vsel %vm764, %v421, %v641
      %v780 = vsel %vm764, %v422, %v643
      %v782 = vsel %vm764, %v423, %v645
      %v784 = vsel %vm764, %v424, %v647
      %v786 = vsel %vm764, %v425, %v649
      %v788 = vsel %vm764, %v426, %v651
      %v790 = vsel %vm764, %v427, %v653
      %v792 = vsel %vm764, %v428, %v655
      %v794 = vsel %vm764, %v429, %v657
      %vm795 = vcmask 130048
      %v797 = vsel %vm795, %v766, %v735
      %v799 = vsel %vm795, %v768, %v737
      %v801 = vsel %vm795, %v770, %v739
      %v803 = vsel %vm795, %v772, %v741
      %v805 = vsel %vm795, %v774, %v743
      %v807 = vsel %vm795, %v776, %v745
      %v809 = vsel %vm795, %v778, %v747
      %v811 = vsel %vm795, %v780, %v749
      %v813 = vsel %vm795, %v782, %v751
      %v815 = vsel %vm795, %v784, %v753
      %v817 = vsel %vm795, %v786, %v755
      %v819 = vsel %vm795, %v788, %v757
      %v821 = vsel %vm795, %v790, %v759
      %v823 = vsel %vm795, %v792, %v761
      %v825 = vsel %vm795, %v794, %v763
      %v826 = vld [vmem:[%s1] sm:$0xf]
      %v827 = vld [vmem:[%s1 + $0x4] sm:$0xf]
      %v828 = vld [vmem:[%s1 + $0x8] sm:$0xf]
      %v830 = vshrl.u32 %v430, 16
      %v832 = vshll.u32 %v430, 16
      %v834 = vrot.slane %v832, 1
      %v835 = vor.u32 %v830, %v834
      %v837 = vshll.u32 %v446, 16
      %v839 = vrot.slane %v837, 1
      %v840 = vsel %vm447, %v835, %v839
      %841 = vrot.lane.b32.xlu0 %v840, 8
      %v842 = vpop.permute.xlu0 %841
      %v845 = vrot.slane %v430, 1
      %v846 = vrot.slane %v446, 1
      %v847 = vsel %vm688, %v845, %v846
      %848 = vrot.lane.b32.xlu0 %v847, 16
      %v849 = vpop.permute.xlu0 %848
      %v851 = vsel %vm764, %v430, %v842
      %v853 = vsel %vm795, %v851, %v849
      %s854 = scalar_lea.vmem %s1, 12
      %v855 = vld [vmem:[%s854] sm:$0xf]
      %v856 = vld [vmem:[%s854 + $0x4] sm:$0xf]
      %v857 = vld [vmem:[%s854 + $0x8] sm:$0xf]
      %v861 = vunpack.c.l.b16 %v855
      %v862 = vunpack.c.l.b16 %v856
      %v863 = vunpack.c.l.b16 %v857
      %v864 = vpack.c.b16 %v862, %v861
      %v865 = vpack.c.b16 %v863, %v863
      %vm867 = vcmask 195584
      %v868 = vsel %vm867, %v797, 0
      %v870 = vsel %vm867, %v799, 0
      %v872 = vsel %vm867, %v801, 0
      %v874 = vsel %vm867, %v803, 0
      %v876 = vsel %vm867, %v805, 0
      %v878 = vsel %vm867, %v807, 0
      %v880 = vsel %vm867, %v809, 0
      %v882 = vsel %vm867, %v811, 0
      %v884 = vsel %vm867, %v813, 0
      %v886 = vsel %vm867, %v815, 0
      %v888 = vsel %vm867, %v817, 0
      %v890 = vsel %vm867, %v819, 0
      %v892 = vsel %vm867, %v821, 0
      %v894 = vsel %vm867, %v823, 0
      %v896 = vsel %vm867, %v825, 0
      %v898 = vsel %vm867, %v853, 0
      %vm900 = vcmask 1043456
      %v902 = vsel %vm900, %v865, 0
      %904 = vmatprep.subr.bf16.mxu0 0
      %905 = vmatpush1.bf16.msra.mxu0 %v864
      %906 = vmatprep.subr.bf16.mxu0 0
      %907 = vmatpush1.bf16.msra.mxu0 %v902
      %908 = vmatprep.subr.bf16.mxu0 0
      %909 = vmatpush1.bf16.msra.mxu0 0
      %910 = vmatprep.subr.bf16.mxu0 0
      %911 = vmatpush1.bf16.msra.mxu0 0
      %912 = vmatprep.subr.bf16.mxu0 0
      %913 = vmatpush1.bf16.msra.mxu0 0
      %914 = vmatprep.subr.bf16.mxu0 0
      %915 = vmatpush1.bf16.msra.mxu0 0
      %916 = vmatprep.subr.bf16.mxu0 0
      %917 = vmatpush1.bf16.msra.mxu0 0
      %918 = vmatprep.subr.bf16.mxu0 0
      %919 = vmatpush1.bf16.msra.mxu0 0
      %920 = vmatprep.subr.bf16.mxu0 0
      %921 = vmatpush1.bf16.msra.mxu0 0
      %922 = vmatprep.subr.bf16.mxu0 0
      %923 = vmatpush1.bf16.msra.mxu0 0
      %924 = vmatprep.subr.bf16.mxu0 0
      %925 = vmatpush1.bf16.msra.mxu0 0
      %926 = vmatprep.subr.bf16.mxu0 0
      %927 = vmatpush1.bf16.msra.mxu0 0
      %928 = vmatprep.subr.bf16.mxu0 0
      %929 = vmatpush1.bf16.msra.mxu0 0
      %930 = vmatprep.subr.bf16.mxu0 0
      %931 = vmatpush1.bf16.msra.mxu0 0
      %932 = vmatprep.subr.bf16.mxu0 0
      %933 = vmatpush1.bf16.msra.mxu0 0
      %934 = vmatprep.subr.bf16.mxu0 0
      %935 = vmatpush1.bf16.msra.mxu0 0
      %936 = vmatprep.mubr.bf16.mxu0 0
      %937 = vmatmul.mubr.bf16.gmra.mrb[0].mxu0 %v868
      %v938 = vpop.f32.mrb[0].mxu0
      %v939 = vadd.f32 0.0, %v938
      %v940 = vpop.f32.mrb[0].mxu0
      %v941 = vpop.f32.mrb[0].mxu0
      %v942 = vadd.f32 0.0, %v941
      %v943 = vpop.f32.mrb[0].mxu0
      %944 = vmatprep.mubr.bf16.mxu0 0
      %945 = vmatmul.mubr.bf16.gmra.mrb[0].mxu0 %v870
      %v946 = vpop.f32.mrb[0].mxu0
      %v947 = vadd.f32 0.0, %v946
      %v948 = vpop.f32.mrb[0].mxu0
      %v949 = vpop.f32.mrb[0].mxu0
      %v950 = vadd.f32 0.0, %v949
      %v951 = vpop.f32.mrb[0].mxu0
      %952 = vmatprep.mubr.bf16.mxu0 0
      %953 = vmatmul.mubr.bf16.gmra.mrb[0].mxu0 %v872
      %v954 = vpop.f32.mrb[0].mxu0
      %v955 = vadd.f32 0.0, %v954
      %v956 = vpop.f32.mrb[0].mxu0
      %v957 = vpop.f32.mrb[0].mxu0
      %v958 = vadd.f32 0.0, %v957
      %v959 = vpop.f32.mrb[0].mxu0
      %960 = vmatprep.mubr.bf16.mxu0 0
      %961 = vmatmul.mubr.bf16.gmra.mrb[0].mxu0 %v874
      %v962 = vpop.f32.mrb[0].mxu0
      %v963 = vadd.f32 0.0, %v962
      %v964 = vpop.f32.mrb[0].mxu0
      %v965 = vpop.f32.mrb[0].mxu0
      %v966 = vadd.f32 0.0, %v965
      %v967 = vpop.f32.mrb[0].mxu0
      %968 = vmatprep.mubr.bf16.mxu0 0
      %969 = vmatmul.mubr.bf16.gmra.mrb[0].mxu0 %v876
      %v970 = vpop.f32.mrb[0].mxu0
      %v971 = vadd.f32 0.0, %v970
      %v972 = vpop.f32.mrb[0].mxu0
      %v973 = vpop.f32.mrb[0].mxu0
      %v974 = vadd.f32 0.0, %v973
      %v975 = vpop.f32.mrb[0].mxu0
      %976 = vmatprep.mubr.bf16.mxu0 0
      %977 = vmatmul.mubr.bf16.gmra.mrb[0].mxu0 %v878
      %v978 = vpop.f32.mrb[0].mxu0
      %v979 = vadd.f32 0.0, %v978
      %v980 = vpop.f32.mrb[0].mxu0
      %v981 = vpop.f32.mrb[0].mxu0
      %v982 = vadd.f32 0.0, %v981
      %v983 = vpop.f32.mrb[0].mxu0
      %984 = vmatprep.mubr.bf16.mxu0 0
      %985 = vmatmul.mubr.bf16.gmra.mrb[0].mxu0 %v880
      %v986 = vpop.f32.mrb[0].mxu0
      %v987 = vadd.f32 0.0, %v986
      %v988 = vpop.f32.mrb[0].mxu0
      %v989 = vpop.f32.mrb[0].mxu0
      %v990 = vadd.f32 0.0, %v989
      %v991 = vpop.f32.mrb[0].mxu0
      %992 = vmatprep.mubr.bf16.mxu0 0
      %993 = vmatmul.mubr.bf16.gmra.mrb[0].mxu0 %v882
      %v994 = vpop.f32.mrb[0].mxu0
      %v995 = vadd.f32 0.0, %v994
      %v996 = vpop.f32.mrb[0].mxu0
      %v997 = vpop.f32.mrb[0].mxu0
      %v998 = vadd.f32 0.0, %v997
      %v999 = vpop.f32.mrb[0].mxu0
      %1000 = vmatprep.mubr.bf16.mxu0 0
      %1001 = vmatmul.mubr.bf16.gmra.mrb[0].mxu0 %v884
      %v1002 = vpop.f32.mrb[0].mxu0
      %v1003 = vadd.f32 0.0, %v1002
      %v1004 = vpop.f32.mrb[0].mxu0
      %v1005 = vpop.f32.mrb[0].mxu0
      %v1006 = vadd.f32 0.0, %v1005
      %v1007 = vpop.f32.mrb[0].mxu0
      %1008 = vmatprep.mubr.bf16.mxu0 0
      %1009 = vmatmul.mubr.bf16.gmra.mrb[0].mxu0 %v886
      %v1010 = vpop.f32.mrb[0].mxu0
      %v1011 = vadd.f32 0.0, %v1010
      %v1012 = vpop.f32.mrb[0].mxu0
      %v1013 = vpop.f32.mrb[0].mxu0
      %v1014 = vadd.f32 0.0, %v1013
      %v1015 = vpop.f32.mrb[0].mxu0
      %1016 = vmatprep.mubr.bf16.mxu0 0
      %1017 = vmatmul.mubr.bf16.gmra.mrb[0].mxu0 %v888
      %v1018 = vpop.f32.mrb[0].mxu0
      %v1019 = vadd.f32 0.0, %v1018
      %v1020 = vpop.f32.mrb[0].mxu0
      %v1021 = vpop.f32.mrb[0].mxu0
      %v1022 = vadd.f32 0.0, %v1021
      %v1023 = vpop.f32.mrb[0].mxu0
      %1024 = vmatprep.mubr.bf16.mxu0 0
      %1025 = vmatmul.mubr.bf16.gmra.mrb[0].mxu0 %v890
      %v1026 = vpop.f32.mrb[0].mxu0
      %v1027 = vadd.f32 0.0, %v1026
      %v1028 = vpop.f32.mrb[0].mxu0
      %v1029 = vpop.f32.mrb[0].mxu0
      %v1030 = vadd.f32 0.0, %v1029
      %v1031 = vpop.f32.mrb[0].mxu0
      %1032 = vmatprep.mubr.bf16.mxu0 0
      %1033 = vmatmul.mubr.bf16.gmra.mrb[0].mxu0 %v892
      %v1034 = vpop.f32.mrb[0].mxu0
      %v1035 = vadd.f32 0.0, %v1034
      %v1036 = vpop.f32.mrb[0].mxu0
      %v1037 = vpop.f32.mrb[0].mxu0
      %v1038 = vadd.f32 0.0, %v1037
      %v1039 = vpop.f32.mrb[0].mxu0
      %1040 = vmatprep.mubr.bf16.mxu0 0
      %1041 = vmatmul.mubr.bf16.gmra.mrb[0].mxu0 %v894
      %v1042 = vpop.f32.mrb[0].mxu0
      %v1043 = vadd.f32 0.0, %v1042
      %v1044 = vpop.f32.mrb[0].mxu0
      %v1045 = vpop.f32.mrb[0].mxu0
      %v1046 = vadd.f32 0.0, %v1045
      %v1047 = vpop.f32.mrb[0].mxu0
      %1048 = vmatprep.mubr.bf16.mxu0 0
      %1049 = vmatmul.mubr.bf16.gmra.mrb[0].mxu0 %v896
      %v1050 = vpop.f32.mrb[0].mxu0
      %v1051 = vadd.f32 0.0, %v1050
      %v1052 = vpop.f32.mrb[0].mxu0
      %v1053 = vpop.f32.mrb[0].mxu0
      %v1054 = vadd.f32 0.0, %v1053
      %v1055 = vpop.f32.mrb[0].mxu0
      %1056 = vmatprep.mubr.bf16.mxu0 0
      %1057 = vmatmul.mubr.bf16.gmra.mrb[0].mxu0 %v898
      %v1058 = vpop.f32.mrb[0].mxu0
      %v1059 = vadd.f32 0.0, %v1058
      %v1060 = vpop.f32.mrb[0].mxu0
      %v1061 = vpop.f32.mrb[0].mxu0
      %v1062 = vadd.f32 0.0, %v1061
      %v1063 = vpop.f32.mrb[0].mxu0
      %1064 = vdwg.mxu0
      %v1068 = vunpack.c.l.b16 %v826
      %v1069 = vunpack.c.l.b16 %v827
      %v1070 = vunpack.c.l.b16 %v828
      %v1071 = vpack.c.b16 %v1069, %v1068
      %v1072 = vpack.c.b16 %v1070, %v1070
      %v1075 = vsel %vm900, %v1072, 0
      %1077 = vmatprep.subr.bf16.mxu0 0
      %1078 = vmatpush1.bf16.msra.mxu0 %v1071
      %1079 = vmatprep.subr.bf16.mxu0 0
      %1080 = vmatpush1.bf16.msra.mxu0 %v1075
      %1081 = vmatprep.subr.bf16.mxu0 0
      %1082 = vmatpush1.bf16.msra.mxu0 0
      %1083 = vmatprep.subr.bf16.mxu0 0
      %1084 = vmatpush1.bf16.msra.mxu0 0
      %1085 = vmatprep.subr.bf16.mxu0 0
      %1086 = vmatpush1.bf16.msra.mxu0 0
      %1087 = vmatprep.subr.bf16.mxu0 0
      %1088 = vmatpush1.bf16.msra.mxu0 0
      %1089 = vmatprep.subr.bf16.mxu0 0
      %1090 = vmatpush1.bf16.msra.mxu0 0
      %1091 = vmatprep.subr.bf16.mxu0 0
      %1092 = vmatpush1.bf16.msra.mxu0 0
      %1093 = vmatprep.subr.bf16.mxu0 0
      %1094 = vmatpush1.bf16.msra.mxu0 0
      %1095 = vmatprep.subr.bf16.mxu0 0
      %1096 = vmatpush1.bf16.msra.mxu0 0
      %1097 = vmatprep.subr.bf16.mxu0 0
      %1098 = vmatpush1.bf16.msra.mxu0 0
      %1099 = vmatprep.subr.bf16.mxu0 0
      %1100 = vmatpush1.bf16.msra.mxu0 0
      %1101 = vmatprep.subr.bf16.mxu0 0
      %1102 = vmatpush1.bf16.msra.mxu0 0
      %1103 = vmatprep.subr.bf16.mxu0 0
      %1104 = vmatpush1.bf16.msra.mxu0 0
      %1105 = vmatprep.subr.bf16.mxu0 0
      %1106 = vmatpush1.bf16.msra.mxu0 0
      %1107 = vmatprep.subr.bf16.mxu0 0
      %1108 = vmatpush1.bf16.msra.mxu0 0
      %1109 = vmatprep.mubr.bf16.mxu0 0
      %1110 = vmatmul.mubr.bf16.gmra.mrb[0].mxu0 %v868
      %v1111 = vpop.f32.mrb[0].mxu0
      %v1112 = vadd.f32 %v939, %v1111
      %v1113 = vpop.f32.mrb[0].mxu0
      %v1114 = vpop.f32.mrb[0].mxu0
      %v1115 = vadd.f32 %v942, %v1114
      %v1116 = vpop.f32.mrb[0].mxu0
      %1117 = vmatprep.mubr.bf16.mxu0 0
      %1118 = vmatmul.mubr.bf16.gmra.mrb[0].mxu0 %v868
      %v1119 = vpop.f32.mrb[0].mxu0
      %v1120 = vadd.f32 %v947, %v1119
      %v1121 = vpop.f32.mrb[0].mxu0
      %v1122 = vpop.f32.mrb[0].mxu0
      %v1123 = vadd.f32 %v950, %v1122
      %v1124 = vpop.f32.mrb[0].mxu0
      %1125 = vmatprep.mubr.bf16.mxu0 0
      %1126 = vmatmul.mubr.bf16.gmra.mrb[0].mxu0 %v870
      %v1127 = vpop.f32.mrb[0].mxu0
      %v1128 = vadd.f32 %v955, %v1127
      %v1129 = vpop.f32.mrb[0].mxu0
      %v1130 = vpop.f32.mrb[0].mxu0
      %v1131 = vadd.f32 %v958, %v1130
      %v1132 = vpop.f32.mrb[0].mxu0
      %1133 = vmatprep.mubr.bf16.mxu0 0
      %1134 = vmatmul.mubr.bf16.gmra.mrb[0].mxu0 %v872
      %v1135 = vpop.f32.mrb[0].mxu0
      %v1136 = vadd.f32 %v963, %v1135
      %v1137 = vpop.f32.mrb[0].mxu0
      %v1138 = vpop.f32.mrb[0].mxu0
      %v1139 = vadd.f32 %v966, %v1138
      %v1140 = vpop.f32.mrb[0].mxu0
      %1141 = vmatprep.mubr.bf16.mxu0 0
      %1142 = vmatmul.mubr.bf16.gmra.mrb[0].mxu0 %v874
      %v1143 = vpop.f32.mrb[0].mxu0
      %v1144 = vadd.f32 %v971, %v1143
      %v1145 = vpop.f32.mrb[0].mxu0
      %v1146 = vpop.f32.mrb[0].mxu0
      %v1147 = vadd.f32 %v974, %v1146
      %v1148 = vpop.f32.mrb[0].mxu0
      %1149 = vmatprep.mubr.bf16.mxu0 0
      %1150 = vmatmul.mubr.bf16.gmra.mrb[0].mxu0 %v876
      %v1151 = vpop.f32.mrb[0].mxu0
      %v1152 = vadd.f32 %v979, %v1151
      %v1153 = vpop.f32.mrb[0].mxu0
      %v1154 = vpop.f32.mrb[0].mxu0
      %v1155 = vadd.f32 %v982, %v1154
      %v1156 = vpop.f32.mrb[0].mxu0
      %1157 = vmatprep.mubr.bf16.mxu0 0
      %1158 = vmatmul.mubr.bf16.gmra.mrb[0].mxu0 %v878
      %v1159 = vpop.f32.mrb[0].mxu0
      %v1160 = vadd.f32 %v987, %v1159
      %v1161 = vpop.f32.mrb[0].mxu0
      %v1162 = vpop.f32.mrb[0].mxu0
      %v1163 = vadd.f32 %v990, %v1162
      %v1164 = vpop.f32.mrb[0].mxu0
      %1165 = vmatprep.mubr.bf16.mxu0 0
      %1166 = vmatmul.mubr.bf16.gmra.mrb[0].mxu0 %v880
      %v1167 = vpop.f32.mrb[0].mxu0
      %v1168 = vadd.f32 %v995, %v1167
      %v1169 = vpop.f32.mrb[0].mxu0
      %v1170 = vpop.f32.mrb[0].mxu0
      %v1171 = vadd.f32 %v998, %v1170
      %v1172 = vpop.f32.mrb[0].mxu0
      %1173 = vmatprep.mubr.bf16.mxu0 0
      %1174 = vmatmul.mubr.bf16.gmra.mrb[0].mxu0 %v882
      %v1175 = vpop.f32.mrb[0].mxu0
      %v1176 = vadd.f32 %v1003, %v1175
      %v1177 = vpop.f32.mrb[0].mxu0
      %v1178 = vpop.f32.mrb[0].mxu0
      %v1179 = vadd.f32 %v1006, %v1178
      %v1180 = vpop.f32.mrb[0].mxu0
      %1181 = vmatprep.mubr.bf16.mxu0 0
      %1182 = vmatmul.mubr.bf16.gmra.mrb[0].mxu0 %v884
      %v1183 = vpop.f32.mrb[0].mxu0
      %v1184 = vadd.f32 %v1011, %v1183
      %v1185 = vpop.f32.mrb[0].mxu0
      %v1186 = vpop.f32.mrb[0].mxu0
      %v1187 = vadd.f32 %v1014, %v1186
      %v1188 = vpop.f32.mrb[0].mxu0
      %1189 = vmatprep.mubr.bf16.mxu0 0
      %1190 = vmatmul.mubr.bf16.gmra.mrb[0].mxu0 %v886
      %v1191 = vpop.f32.mrb[0].mxu0
      %v1192 = vadd.f32 %v1019, %v1191
      %v1193 = vpop.f32.mrb[0].mxu0
      %v1194 = vpop.f32.mrb[0].mxu0
      %v1195 = vadd.f32 %v1022, %v1194
      %v1196 = vpop.f32.mrb[0].mxu0
      %1197 = vmatprep.mubr.bf16.mxu0 0
      %1198 = vmatmul.mubr.bf16.gmra.mrb[0].mxu0 %v888
      %v1199 = vpop.f32.mrb[0].mxu0
      %v1200 = vadd.f32 %v1027, %v1199
      %v1201 = vpop.f32.mrb[0].mxu0
      %v1202 = vpop.f32.mrb[0].mxu0
      %v1203 = vadd.f32 %v1030, %v1202
      %v1204 = vpop.f32.mrb[0].mxu0
      %1205 = vmatprep.mubr.bf16.mxu0 0
      %1206 = vmatmul.mubr.bf16.gmra.mrb[0].mxu0 %v890
      %v1207 = vpop.f32.mrb[0].mxu0
      %v1208 = vadd.f32 %v1035, %v1207
      %v1209 = vpop.f32.mrb[0].mxu0
      %v1210 = vpop.f32.mrb[0].mxu0
      %v1211 = vadd.f32 %v1038, %v1210
      %v1212 = vpop.f32.mrb[0].mxu0
      %1213 = vmatprep.mubr.bf16.mxu0 0
      %1214 = vmatmul.mubr.bf16.gmra.mrb[0].mxu0 %v892
      %v1215 = vpop.f32.mrb[0].mxu0
      %v1216 = vadd.f32 %v1043, %v1215
      %v1217 = vpop.f32.mrb[0].mxu0
      %v1218 = vpop.f32.mrb[0].mxu0
      %v1219 = vadd.f32 %v1046, %v1218
      %v1220 = vpop.f32.mrb[0].mxu0
      %1221 = vmatprep.mubr.bf16.mxu0 0
      %1222 = vmatmul.mubr.bf16.gmra.mrb[0].mxu0 %v894
      %v1223 = vpop.f32.mrb[0].mxu0
      %v1224 = vadd.f32 %v1051, %v1223
      %v1225 = vpop.f32.mrb[0].mxu0
      %v1226 = vpop.f32.mrb[0].mxu0
      %v1227 = vadd.f32 %v1054, %v1226
      %v1228 = vpop.f32.mrb[0].mxu0
      %1229 = vmatprep.mubr.bf16.mxu0 0
      %1230 = vmatmul.mubr.bf16.gmra.mrb[0].mxu0 %v896
      %v1231 = vpop.f32.mrb[0].mxu0
      %v1232 = vadd.f32 %v1059, %v1231
      %v1233 = vpop.f32.mrb[0].mxu0
      %v1234 = vpop.f32.mrb[0].mxu0
      %v1235 = vadd.f32 %v1062, %v1234
      %v1236 = vpop.f32.mrb[0].mxu0
      %1237 = vdwg.mxu0
      %s1238 = scalar_lea.vmem %s1, 24
      %v1239 = vld [vmem:[%s1238] sm:$0xf]
      %v1240 = vld [vmem:[%s1238 + $0x4] sm:$0xf]
      %v1241 = vld [vmem:[%s1238 + $0x8] sm:$0xf]
      %v1245 = vunpack.c.l.b16 %v1239
      %v1246 = vunpack.c.l.b16 %v1240
      %v1247 = vunpack.c.l.b16 %v1241
      %v1248 = vpack.c.b16 %v1246, %v1245
      %v1249 = vpack.c.b16 %v1247, %v1247
      %v1252 = vsel %vm900, %v1249, 0
      %1254 = vmatprep.subr.bf16.mxu0 0
      %1255 = vmatpush1.bf16.msra.mxu0 %v1248
      %1256 = vmatprep.subr.bf16.mxu0 0
      %1257 = vmatpush1.bf16.msra.mxu0 %v1252
      %1258 = vmatprep.subr.bf16.mxu0 0
      %1259 = vmatpush1.bf16.msra.mxu0 0
      %1260 = vmatprep.subr.bf16.mxu0 0
      %1261 = vmatpush1.bf16.msra.mxu0 0
      %1262 = vmatprep.subr.bf16.mxu0 0
      %1263 = vmatpush1.bf16.msra.mxu0 0
      %1264 = vmatprep.subr.bf16.mxu0 0
      %1265 = vmatpush1.bf16.msra.mxu0 0
      %1266 = vmatprep.subr.bf16.mxu0 0
      %1267 = vmatpush1.bf16.msra.mxu0 0
      %1268 = vmatprep.subr.bf16.mxu0 0
      %1269 = vmatpush1.bf16.msra.mxu0 0
      %1270 = vmatprep.subr.bf16.mxu0 0
      %1271 = vmatpush1.bf16.msra.mxu0 0
      %1272 = vmatprep.subr.bf16.mxu0 0
      %1273 = vmatpush1.bf16.msra.mxu0 0
      %1274 = vmatprep.subr.bf16.mxu0 0
      %1275 = vmatpush1.bf16.msra.mxu0 0
      %1276 = vmatprep.subr.bf16.mxu0 0
      %1277 = vmatpush1.bf16.msra.mxu0 0
      %1278 = vmatprep.subr.bf16.mxu0 0
      %1279 = vmatpush1.bf16.msra.mxu0 0
      %1280 = vmatprep.subr.bf16.mxu0 0
      %1281 = vmatpush1.bf16.msra.mxu0 0
      %1282 = vmatprep.subr.bf16.mxu0 0
      %1283 = vmatpush1.bf16.msra.mxu0 0
      %1284 = vmatprep.subr.bf16.mxu0 0
      %1285 = vmatpush1.bf16.msra.mxu0 0
      %1286 = vmatprep.mubr.bf16.mxu0 0
      %1287 = vmatmul.mubr.bf16.gmra.mrb[0].mxu0 %v870
      %v1288 = vpop.f32.mrb[0].mxu0
      %v1289 = vadd.f32 0.0, %v1288
      %v1290 = vpop.f32.mrb[0].mxu0
      %v1291 = vpop.f32.mrb[0].mxu0
      %v1292 = vadd.f32 0.0, %v1291
      %v1293 = vpop.f32.mrb[0].mxu0
      %1294 = vmatprep.mubr.bf16.mxu0 0
      %1295 = vmatmul.mubr.bf16.gmra.mrb[0].mxu0 %v872
      %v1296 = vpop.f32.mrb[0].mxu0
      %v1297 = vadd.f32 0.0, %v1296
      %v1298 = vpop.f32.mrb[0].mxu0
      %v1299 = vpop.f32.mrb[0].mxu0
      %v1300 = vadd.f32 0.0, %v1299
      %v1301 = vpop.f32.mrb[0].mxu0
      %1302 = vmatprep.mubr.bf16.mxu0 0
      %1303 = vmatmul.mubr.bf16.gmra.mrb[0].mxu0 %v874
      %v1304 = vpop.f32.mrb[0].mxu0
      %v1305 = vadd.f32 0.0, %v1304
      %v1306 = vpop.f32.mrb[0].mxu0
      %v1307 = vpop.f32.mrb[0].mxu0
      %v1308 = vadd.f32 0.0, %v1307
      %v1309 = vpop.f32.mrb[0].mxu0
      %1310 = vmatprep.mubr.bf16.mxu0 0
      %1311 = vmatmul.mubr.bf16.gmra.mrb[0].mxu0 %v876
      %v1312 = vpop.f32.mrb[0].mxu0
      %v1313 = vadd.f32 0.0, %v1312
      %v1314 = vpop.f32.mrb[0].mxu0
      %v1315 = vpop.f32.mrb[0].mxu0
      %v1316 = vadd.f32 0.0, %v1315
      %v1317 = vpop.f32.mrb[0].mxu0
      %1318 = vmatprep.mubr.bf16.mxu0 0
      %1319 = vmatmul.mubr.bf16.gmra.mrb[0].mxu0 %v878
      %v1320 = vpop.f32.mrb[0].mxu0
      %v1321 = vadd.f32 0.0, %v1320
      %v1322 = vpop.f32.mrb[0].mxu0
      %v1323 = vpop.f32.mrb[0].mxu0
      %v1324 = vadd.f32 0.0, %v1323
      %v1325 = vpop.f32.mrb[0].mxu0
      %1326 = vmatprep.mubr.bf16.mxu0 0
      %1327 = vmatmul.mubr.bf16.gmra.mrb[0].mxu0 %v880
      %v1328 = vpop.f32.mrb[0].mxu0
      %v1329 = vadd.f32 0.0, %v1328
      %v1330 = vpop.f32.mrb[0].mxu0
      %v1331 = vpop.f32.mrb[0].mxu0
      %v1332 = vadd.f32 0.0, %v1331
      %v1333 = vpop.f32.mrb[0].mxu0
      %1334 = vmatprep.mubr.bf16.mxu0 0
      %1335 = vmatmul.mubr.bf16.gmra.mrb[0].mxu0 %v882
      %v1336 = vpop.f32.mrb[0].mxu0
      %v1337 = vadd.f32 0.0, %v1336
      %v1338 = vpop.f32.mrb[0].mxu0
      %v1339 = vpop.f32.mrb[0].mxu0
      %v1340 = vadd.f32 0.0, %v1339
      %v1341 = vpop.f32.mrb[0].mxu0
      %1342 = vmatprep.mubr.bf16.mxu0 0
      %1343 = vmatmul.mubr.bf16.gmra.mrb[0].mxu0 %v884
      %v1344 = vpop.f32.mrb[0].mxu0
      %v1345 = vadd.f32 0.0, %v1344
      %v1346 = vpop.f32.mrb[0].mxu0
      %v1347 = vpop.f32.mrb[0].mxu0
      %v1348 = vadd.f32 0.0, %v1347
      %v1349 = vpop.f32.mrb[0].mxu0
      %1350 = vmatprep.mubr.bf16.mxu0 0
      %1351 = vmatmul.mubr.bf16.gmra.mrb[0].mxu0 %v886
      %v1352 = vpop.f32.mrb[0].mxu0
      %v1353 = vadd.f32 0.0, %v1352
      %v1354 = vpop.f32.mrb[0].mxu0
      %v1355 = vpop.f32.mrb[0].mxu0
      %v1356 = vadd.f32 0.0, %v1355
      %v1357 = vpop.f32.mrb[0].mxu0
      %1358 = vmatprep.mubr.bf16.mxu0 0
      %1359 = vmatmul.mubr.bf16.gmra.mrb[0].mxu0 %v888
      %v1360 = vpop.f32.mrb[0].mxu0
      %v1361 = vadd.f32 0.0, %v1360
      %v1362 = vpop.f32.mrb[0].mxu0
      %v1363 = vpop.f32.mrb[0].mxu0
      %v1364 = vadd.f32 0.0, %v1363
      %v1365 = vpop.f32.mrb[0].mxu0
      %1366 = vmatprep.mubr.bf16.mxu0 0
      %1367 = vmatmul.mubr.bf16.gmra.mrb[0].mxu0 %v890
      %v1368 = vpop.f32.mrb[0].mxu0
      %v1369 = vadd.f32 0.0, %v1368
      %v1370 = vpop.f32.mrb[0].mxu0
      %v1371 = vpop.f32.mrb[0].mxu0
      %v1372 = vadd.f32 0.0, %v1371
      %v1373 = vpop.f32.mrb[0].mxu0
      %1374 = vmatprep.mubr.bf16.mxu0 0
      %1375 = vmatmul.mubr.bf16.gmra.mrb[0].mxu0 %v892
      %v1376 = vpop.f32.mrb[0].mxu0
      %v1377 = vadd.f32 0.0, %v1376
      %v1378 = vpop.f32.mrb[0].mxu0
      %v1379 = vpop.f32.mrb[0].mxu0
      %v1380 = vadd.f32 0.0, %v1379
      %v1381 = vpop.f32.mrb[0].mxu0
      %1382 = vmatprep.mubr.bf16.mxu0 0
      %1383 = vmatmul.mubr.bf16.gmra.mrb[0].mxu0 %v894
      %v1384 = vpop.f32.mrb[0].mxu0
      %v1385 = vadd.f32 0.0, %v1384
      %v1386 = vpop.f32.mrb[0].mxu0
      %v1387 = vpop.f32.mrb[0].mxu0
      %v1388 = vadd.f32 0.0, %v1387
      %v1389 = vpop.f32.mrb[0].mxu0
      %1390 = vmatprep.mubr.bf16.mxu0 0
      %1391 = vmatmul.mubr.bf16.gmra.mrb[0].mxu0 %v896
      %v1392 = vpop.f32.mrb[0].mxu0
      %v1393 = vadd.f32 0.0, %v1392
      %v1394 = vpop.f32.mrb[0].mxu0
      %v1395 = vpop.f32.mrb[0].mxu0
      %v1396 = vadd.f32 0.0, %v1395
      %v1397 = vpop.f32.mrb[0].mxu0
      %1398 = vmatprep.mubr.bf16.mxu0 0
      %1399 = vmatmul.mubr.bf16.gmra.mrb[0].mxu0 %v898
      %v1400 = vpop.f32.mrb[0].mxu0
      %v1401 = vadd.f32 0.0, %v1400
      %v1402 = vpop.f32.mrb[0].mxu0
      %v1403 = vpop.f32.mrb[0].mxu0
      %v1404 = vadd.f32 0.0, %v1403
      %v1405 = vpop.f32.mrb[0].mxu0
      %1406 = vmatprep.mubr.bf16.mxu0 0
      %1407 = vmatmul.mubr.bf16.gmra.mrb[0].mxu0 %v898
      %v1408 = vpop.f32.mrb[0].mxu0
      %v1409 = vadd.f32 0.0, %v1408
      %v1410 = vpop.f32.mrb[0].mxu0
      %v1411 = vpop.f32.mrb[0].mxu0
      %v1412 = vadd.f32 0.0, %v1411
      %v1413 = vpop.f32.mrb[0].mxu0
      %1414 = vdwg.mxu0
      %v1415 = vadd.f32 %v1112, %v1289
      %v1416 = vadd.f32 %v1115, %v1292
      %v1417 = vadd.f32 %v1120, %v1297
      %v1418 = vadd.f32 %v1123, %v1300
      %v1419 = vadd.f32 %v1128, %v1305
      %v1420 = vadd.f32 %v1131, %v1308
      %v1421 = vadd.f32 %v1136, %v1313
      %v1422 = vadd.f32 %v1139, %v1316
      %v1423 = vadd.f32 %v1144, %v1321
      %v1424 = vadd.f32 %v1147, %v1324
      %v1425 = vadd.f32 %v1152, %v1329
      %v1426 = vadd.f32 %v1155, %v1332
      %v1427 = vadd.f32 %v1160, %v1337
      %v1428 = vadd.f32 %v1163, %v1340
      %v1429 = vadd.f32 %v1168, %v1345
      %v1430 = vadd.f32 %v1171, %v1348
      %v1431 = vadd.f32 %v1176, %v1353
      %v1432 = vadd.f32 %v1179, %v1356
      %v1433 = vadd.f32 %v1184, %v1361
      %v1434 = vadd.f32 %v1187, %v1364
      %v1435 = vadd.f32 %v1192, %v1369
      %v1436 = vadd.f32 %v1195, %v1372
      %v1437 = vadd.f32 %v1200, %v1377
      %v1438 = vadd.f32 %v1203, %v1380
      %v1439 = vadd.f32 %v1208, %v1385
      %v1440 = vadd.f32 %v1211, %v1388
      %v1441 = vadd.f32 %v1216, %v1393
      %v1442 = vadd.f32 %v1219, %v1396
      %v1443 = vadd.f32 %v1224, %v1401
      %v1444 = vadd.f32 %v1227, %v1404
      %v1445 = vadd.f32 %v1232, %v1409
      %v1446 = vadd.f32 %v1235, %v1412
      %v1447 = vld [vmem:[%s2] sm:$0x1]
      %v1449 = vlaneseq
      %v1450 = vshrl.u32 %v1449, 7
      %v1451 = vsub.s32 0, %v1450
      %v1452 = vrot.slane %v1447, %v1451
      %v1454 = vadd.f32 %v1415, %v1452
      %v1455 = vadd.f32 %v1416, %v1452
      %v1456 = vadd.f32 %v1417, %v1452
      %v1457 = vadd.f32 %v1418, %v1452
      %v1458 = vadd.f32 %v1419, %v1452
      %v1459 = vadd.f32 %v1420, %v1452
      %v1460 = vadd.f32 %v1421, %v1452
      %v1461 = vadd.f32 %v1422, %v1452
      %v1462 = vadd.f32 %v1423, %v1452
      %v1463 = vadd.f32 %v1424, %v1452
      %v1464 = vadd.f32 %v1425, %v1452
      %v1465 = vadd.f32 %v1426, %v1452
      %v1466 = vadd.f32 %v1427, %v1452
      %v1467 = vadd.f32 %v1428, %v1452
      %v1468 = vadd.f32 %v1429, %v1452
      %v1469 = vadd.f32 %v1430, %v1452
      %v1470 = vadd.f32 %v1431, %v1452
      %v1471 = vadd.f32 %v1432, %v1452
      %v1472 = vadd.f32 %v1433, %v1452
      %v1473 = vadd.f32 %v1434, %v1452
      %v1474 = vadd.f32 %v1435, %v1452
      %v1475 = vadd.f32 %v1436, %v1452
      %v1476 = vadd.f32 %v1437, %v1452
      %v1477 = vadd.f32 %v1438, %v1452
      %v1478 = vadd.f32 %v1439, %v1452
      %v1479 = vadd.f32 %v1440, %v1452
      %v1480 = vadd.f32 %v1441, %v1452
      %v1481 = vadd.f32 %v1442, %v1452
      %v1482 = vadd.f32 %v1443, %v1452
      %v1483 = vadd.f32 %v1444, %v1452
      %v1484 = vadd.f32 %v1445, %v1452
      %v1485 = vadd.f32 %v1446, %v1452
      %vm1486 = vcmp.gt.f32.partialorder %v1454, 0.0
      %vm1487 = vcmp.gt.f32.partialorder %v1455, 0.0
      %vm1488 = vcmp.gt.f32.partialorder %v1456, 0.0
      %vm1489 = vcmp.gt.f32.partialorder %v1457, 0.0
      %vm1490 = vcmp.gt.f32.partialorder %v1458, 0.0
      %vm1491 = vcmp.gt.f32.partialorder %v1459, 0.0
      %vm1492 = vcmp.gt.f32.partialorder %v1460, 0.0
      %vm1493 = vcmp.gt.f32.partialorder %v1461, 0.0
      %vm1494 = vcmp.gt.f32.partialorder %v1462, 0.0
      %vm1495 = vcmp.gt.f32.partialorder %v1463, 0.0
      %vm1496 = vcmp.gt.f32.partialorder %v1464, 0.0
      %vm1497 = vcmp.gt.f32.partialorder %v1465, 0.0
      %vm1498 = vcmp.gt.f32.partialorder %v1466, 0.0
      %vm1499 = vcmp.gt.f32.partialorder %v1467, 0.0
      %vm1500 = vcmp.gt.f32.partialorder %v1468, 0.0
      %vm1501 = vcmp.gt.f32.partialorder %v1469, 0.0
      %vm1502 = vcmp.gt.f32.partialorder %v1470, 0.0
      %vm1503 = vcmp.gt.f32.partialorder %v1471, 0.0
      %vm1504 = vcmp.gt.f32.partialorder %v1472, 0.0
      %vm1505 = vcmp.gt.f32.partialorder %v1473, 0.0
      %vm1506 = vcmp.gt.f32.partialorder %v1474, 0.0
      %vm1507 = vcmp.gt.f32.partialorder %v1475, 0.0
      %vm1508 = vcmp.gt.f32.partialorder %v1476, 0.0
      %vm1509 = vcmp.gt.f32.partialorder %v1477, 0.0
      %vm1510 = vcmp.gt.f32.partialorder %v1478, 0.0
      %vm1511 = vcmp.gt.f32.partialorder %v1479, 0.0
      %vm1512 = vcmp.gt.f32.partialorder %v1480, 0.0
      %vm1513 = vcmp.gt.f32.partialorder %v1481, 0.0
      %vm1514 = vcmp.gt.f32.partialorder %v1482, 0.0
      %vm1515 = vcmp.gt.f32.partialorder %v1483, 0.0
      %vm1516 = vcmp.gt.f32.partialorder %v1484, 0.0
      %vm1517 = vcmp.gt.f32.partialorder %v1485, 0.0
      %v1518 = vmin.f32 %v1454, 0.0
      %v1519 = vmin.f32 %v1455, 0.0
      %v1520 = vmin.f32 %v1456, 0.0
      %v1521 = vmin.f32 %v1457, 0.0
      %v1522 = vmin.f32 %v1458, 0.0
      %v1523 = vmin.f32 %v1459, 0.0
      %v1524 = vmin.f32 %v1460, 0.0
      %v1525 = vmin.f32 %v1461, 0.0
      %v1526 = vmin.f32 %v1462, 0.0
      %v1527 = vmin.f32 %v1463, 0.0
      %v1528 = vmin.f32 %v1464, 0.0
      %v1529 = vmin.f32 %v1465, 0.0
      %v1530 = vmin.f32 %v1466, 0.0
      %v1531 = vmin.f32 %v1467, 0.0
      %v1532 = vmin.f32 %v1468, 0.0
      %v1533 = vmin.f32 %v1469, 0.0
      %v1534 = vmin.f32 %v1470, 0.0
      %v1535 = vmin.f32 %v1471, 0.0
      %v1536 = vmin.f32 %v1472, 0.0
      %v1537 = vmin.f32 %v1473, 0.0
      %v1538 = vmin.f32 %v1474, 0.0
      %v1539 = vmin.f32 %v1475, 0.0
      %v1540 = vmin.f32 %v1476, 0.0
      %v1541 = vmin.f32 %v1477, 0.0
      %v1542 = vmin.f32 %v1478, 0.0
      %v1543 = vmin.f32 %v1479, 0.0
      %v1544 = vmin.f32 %v1480, 0.0
      %v1545 = vmin.f32 %v1481, 0.0
      %v1546 = vmin.f32 %v1482, 0.0
      %v1547 = vmin.f32 %v1483, 0.0
      %v1548 = vmin.f32 %v1484, 0.0
      %v1549 = vmin.f32 %v1485, 0.0
      %v1550 = vmul.f32 %v1518, 1.442695
      %v1551 = vpow.pop %v1550
      %v1552 = vmul.f32 %v1519, 1.442695
      %v1553 = vpow.pop %v1552
      %v1554 = vmul.f32 %v1520, 1.442695
      %v1555 = vpow.pop %v1554
      %v1556 = vmul.f32 %v1521, 1.442695
      %v1557 = vpow.pop %v1556
      %v1558 = vmul.f32 %v1522, 1.442695
      %v1559 = vpow.pop %v1558
      %v1560 = vmul.f32 %v1523, 1.442695
      %v1561 = vpow.pop %v1560
      %v1562 = vmul.f32 %v1524, 1.442695
      %v1563 = vpow.pop %v1562
      %v1564 = vmul.f32 %v1525, 1.442695
      %v1565 = vpow.pop %v1564
      %v1566 = vmul.f32 %v1526, 1.442695
      %v1567 = vpow.pop %v1566
      %v1568 = vmul.f32 %v1527, 1.442695
      %v1569 = vpow.pop %v1568
      %v1570 = vmul.f32 %v1528, 1.442695
      %v1571 = vpow.pop %v1570
      %v1572 = vmul.f32 %v1529, 1.442695
      %v1573 = vpow.pop %v1572
      %v1574 = vmul.f32 %v1530, 1.442695
      %v1575 = vpow.pop %v1574
      %v1576 = vmul.f32 %v1531, 1.442695
      %v1577 = vpow.pop %v1576
      %v1578 = vmul.f32 %v1532, 1.442695
      %v1579 = vpow.pop %v1578
      %v1580 = vmul.f32 %v1533, 1.442695
      %v1581 = vpow.pop %v1580
      %v1582 = vmul.f32 %v1534, 1.442695
      %v1583 = vpow.pop %v1582
      %v1584 = vmul.f32 %v1535, 1.442695
      %v1585 = vpow.pop %v1584
      %v1586 = vmul.f32 %v1536, 1.442695
      %v1587 = vpow.pop %v1586
      %v1588 = vmul.f32 %v1537, 1.442695
      %v1589 = vpow.pop %v1588
      %v1590 = vmul.f32 %v1538, 1.442695
      %v1591 = vpow.pop %v1590
      %v1592 = vmul.f32 %v1539, 1.442695
      %v1593 = vpow.pop %v1592
      %v1594 = vmul.f32 %v1540, 1.442695
      %v1595 = vpow.pop %v1594
      %v1596 = vmul.f32 %v1541, 1.442695
      %v1597 = vpow.pop %v1596
      %v1598 = vmul.f32 %v1542, 1.442695
      %v1599 = vpow.pop %v1598
      %v1600 = vmul.f32 %v1543, 1.442695
      %v1601 = vpow.pop %v1600
      %v1602 = vmul.f32 %v1544, 1.442695
      %v1603 = vpow.pop %v1602
      %v1604 = vmul.f32 %v1545, 1.442695
      %v1605 = vpow.pop %v1604
      %v1606 = vmul.f32 %v1546, 1.442695
      %v1607 = vpow.pop %v1606
      %v1608 = vmul.f32 %v1547, 1.442695
      %v1609 = vpow.pop %v1608
      %v1610 = vmul.f32 %v1548, 1.442695
      %v1611 = vpow.pop %v1610
      %v1612 = vmul.f32 %v1549, 1.442695
      %v1613 = vpow.pop %v1612
      %v1614 = vsub.f32 %v1551, 1.0
      %v1615 = vsub.f32 %v1553, 1.0
      %v1616 = vsub.f32 %v1555, 1.0
      %v1617 = vsub.f32 %v1557, 1.0
      %v1618 = vsub.f32 %v1559, 1.0
      %v1619 = vsub.f32 %v1561, 1.0
      %v1620 = vsub.f32 %v1563, 1.0
      %v1621 = vsub.f32 %v1565, 1.0
      %v1622 = vsub.f32 %v1567, 1.0
      %v1623 = vsub.f32 %v1569, 1.0
      %v1624 = vsub.f32 %v1571, 1.0
      %v1625 = vsub.f32 %v1573, 1.0
      %v1626 = vsub.f32 %v1575, 1.0
      %v1627 = vsub.f32 %v1577, 1.0
      %v1628 = vsub.f32 %v1579, 1.0
      %v1629 = vsub.f32 %v1581, 1.0
      %v1630 = vsub.f32 %v1583, 1.0
      %v1631 = vsub.f32 %v1585, 1.0
      %v1632 = vsub.f32 %v1587, 1.0
      %v1633 = vsub.f32 %v1589, 1.0
      %v1634 = vsub.f32 %v1591, 1.0
      %v1635 = vsub.f32 %v1593, 1.0
      %v1636 = vsub.f32 %v1595, 1.0
      %v1637 = vsub.f32 %v1597, 1.0
      %v1638 = vsub.f32 %v1599, 1.0
      %v1639 = vsub.f32 %v1601, 1.0
      %v1640 = vsub.f32 %v1603, 1.0
      %v1641 = vsub.f32 %v1605, 1.0
      %v1642 = vsub.f32 %v1607, 1.0
      %v1643 = vsub.f32 %v1609, 1.0
      %v1644 = vsub.f32 %v1611, 1.0
      %v1645 = vsub.f32 %v1613, 1.0
      %v1646 = vsel %vm1486, %v1454, %v1614
      %v1647 = vsel %vm1487, %v1455, %v1615
      %v1648 = vsel %vm1488, %v1456, %v1616
      %v1649 = vsel %vm1489, %v1457, %v1617
      %v1650 = vsel %vm1490, %v1458, %v1618
      %v1651 = vsel %vm1491, %v1459, %v1619
      %v1652 = vsel %vm1492, %v1460, %v1620
      %v1653 = vsel %vm1493, %v1461, %v1621
      %v1654 = vsel %vm1494, %v1462, %v1622
      %v1655 = vsel %vm1495, %v1463, %v1623
      %v1656 = vsel %vm1496, %v1464, %v1624
      %v1657 = vsel %vm1497, %v1465, %v1625
      %v1658 = vsel %vm1498, %v1466, %v1626
      %v1659 = vsel %vm1499, %v1467, %v1627
      %v1660 = vsel %vm1500, %v1468, %v1628
      %v1661 = vsel %vm1501, %v1469, %v1629
      %v1662 = vsel %vm1502, %v1470, %v1630
      %v1663 = vsel %vm1503, %v1471, %v1631
      %v1664 = vsel %vm1504, %v1472, %v1632
      %v1665 = vsel %vm1505, %v1473, %v1633
      %v1666 = vsel %vm1506, %v1474, %v1634
      %v1667 = vsel %vm1507, %v1475, %v1635
      %v1668 = vsel %vm1508, %v1476, %v1636
      %v1669 = vsel %vm1509, %v1477, %v1637
      %v1670 = vsel %vm1510, %v1478, %v1638
      %v1671 = vsel %vm1511, %v1479, %v1639
      %v1672 = vsel %vm1512, %v1480, %v1640
      %v1673 = vsel %vm1513, %v1481, %v1641
      %v1674 = vsel %vm1514, %v1482, %v1642
      %v1675 = vsel %vm1515, %v1483, %v1643
      %v1676 = vsel %vm1516, %v1484, %v1644
      %v1677 = vsel %vm1517, %v1485, %v1645
      %1678 = vst.msk [vmem:[%s170] sm:$0xff] %vm764, %v1646
      %1679 = vst.msk [vmem:[%s170 + $0x8] sm:$0xff] %vm764, %v1647
      %1680 = vst.msk [vmem:[%s170 + $0x10] sm:$0xff] %vm764, %v1648
      %1681 = vst.msk [vmem:[%s170 + $0x18] sm:$0xff] %vm764, %v1649
      %1682 = vst.msk [vmem:[%s170 + $0x20] sm:$0xff] %vm764, %v1650
      %1683 = vst.msk [vmem:[%s170 + $0x28] sm:$0xff] %vm764, %v1651
      %1684 = vst.msk [vmem:[%s170 + $0x30] sm:$0xff] %vm764, %v1652
      %1685 = vst.msk [vmem:[%s170 + $0x38] sm:$0xff] %vm764, %v1653
      %1686 = vst.msk [vmem:[%s170 + $0x40] sm:$0xff] %vm764, %v1654
      %1687 = vst.msk [vmem:[%s170 + $0x48] sm:$0xff] %vm764, %v1655
      %1688 = vst.msk [vmem:[%s170 + $0x50] sm:$0xff] %vm764, %v1656
      %1689 = vst.msk [vmem:[%s170 + $0x58] sm:$0xff] %vm764, %v1657
      %1690 = vst.msk [vmem:[%s170 + $0x60] sm:$0xff] %vm764, %v1658
      %1691 = vst.msk [vmem:[%s170 + $0x68] sm:$0xff] %vm764, %v1659
      %1692 = vst.msk [vmem:[%s170 + $0x70] sm:$0xff] %vm764, %v1660
      %1693 = vst.msk [vmem:[%s170 + $0x78] sm:$0xff] %vm764, %v1661
      %1694 = vst.msk [vmem:[%s170 + $0x80] sm:$0xff] %vm764, %v1662
      %1695 = vst.msk [vmem:[%s170 + $0x88] sm:$0xff] %vm764, %v1663
      %1696 = vst.msk [vmem:[%s170 + $0x90] sm:$0xff] %vm764, %v1664
      %1697 = vst.msk [vmem:[%s170 + $0x98] sm:$0xff] %vm764, %v1665
      %1698 = vst.msk [vmem:[%s170 + $0xa0] sm:$0xff] %vm764, %v1666
      %1699 = vst.msk [vmem:[%s170 + $0xa8] sm:$0xff] %vm764, %v1667
      %1700 = vst.msk [vmem:[%s170 + $0xb0] sm:$0xff] %vm764, %v1668
      %1701 = vst.msk [vmem:[%s170 + $0xb8] sm:$0xff] %vm764, %v1669
      %1702 = vst.msk [vmem:[%s170 + $0xc0] sm:$0xff] %vm764, %v1670
      %1703 = vst.msk [vmem:[%s170 + $0xc8] sm:$0xff] %vm764, %v1671
      %1704 = vst.msk [vmem:[%s170 + $0xd0] sm:$0xff] %vm764, %v1672
      %1705 = vst.msk [vmem:[%s170 + $0xd8] sm:$0xff] %vm764, %v1673
      %1706 = vst.msk [vmem:[%s170 + $0xe0] sm:$0xff] %vm764, %v1674
      %1707 = vst.msk [vmem:[%s170 + $0xe8] sm:$0xff] %vm764, %v1675
      %1708 = vst.msk [vmem:[%s170 + $0xf0] sm:$0xff] %vm764, %v1676
      %1709 = vst.msk [vmem:[%s170 + $0xf8] sm:$0xff] %vm764, %v1677
      %p1710 = scmp.lt.s32.totalorder %s14, 1
      %s1711 = scalar_select %p1710, %s14, 1
      %s1712 = smul.addr %s1711, 32
      %s1713 = smul.addr %s1712, 8
      %s1714 = scalar_lea.vmem %s3, %s1713
      // Predicated region
      $region33: #{_lambda_.10} parent=31 // pred_check
        %p1715 = pneg %p100
      $region34: #{_lambda_.10} parent=31 // pred_check_branch
        %1717 = sbr.rel (%p1715) target = $region36
      $region35: #{_lambda_.10} parent=31 // pred_region
        _
      $region36: #{_lambda_.10} parent=31 // pred_fallthru
        _
    $region32: #{_lambda_.10} parent=5 // pred_fallthru
      _
    %p1718 = scmp.le.s32.totalorder 2, %s9
    // Predicated region
    $region37: #{_lambda_.10} parent=5 // pred_check
      %p1719 = pneg %p1718
    $region38: #{_lambda_.10} parent=5 // pred_check_branch
      %1721 = sbr.rel (%p1719) target = $region40
    $region39: #{_lambda_.10} parent=5 // pred_region
      %s1722 = ssub.s32 %s9, 2
      // Predicated region
      $region41: #{_lambda_.10} parent=39 // pred_check
        %p1723 = pneg %p106
      $region42: #{_lambda_.10} parent=39 // pred_check_branch
        %1725 = sbr.rel (%p1723) target = $region44
      $region43: #{_lambda_.10} parent=39 // pred_region
        %p1726 = scmp.lt.s32.totalorder %s15, 1
        %s1727 = scalar_select %p1726, %s15, 1
        %s1728 = smul.addr %s1727, 32
        %s1729 = smul.addr %s1728, 8
        %s1730 = scalar_lea.vmem %s3, %s1729
      $region44: #{_lambda_.10} parent=39 // pred_fallthru
        _
    $region40: #{_lambda_.10} parent=5 // pred_fallthru
      _
  $region6: #{_lambda_.10} parent=0 // loop_footer
    %s13 = sadd.s32 1, %s9
  $region7: #{_lambda_.10} parent=0 // loop_footer_branch
    %8 = sbr.rel target = $region3
  $region8: #{_lambda_.10} parent=0 // loop_exit
    _

// kernel: _lambda_.12
$region0: #{_lambda_.12}
  #allocation0 [shape = 'u32[]', space=smem, size = 0x4, offset = 0x4, fixed_abs, tag = 'smem constant byte address 0x4 - core index']
  #allocation1 [shape = 'u32[144,128]{1,0:T(1,128)}', space=vmem, size = 0x12000, scoped, tag = 'internal scratch']
  %s0 = inlined_call_operand.vmem [shape: f32[2,16,16,8], index: 0, kind: input, shape index: {}]
  %s1 = inlined_call_operand.vmem [shape: bf16[3,24,16], index: 1, kind: input, shape index: {}]
  %s2 = inlined_call_operand.vmem [shape: f32[1,16], index: 2, kind: input, shape index: {}]
  %s3 = inlined_call_operand.vmem [shape: f32[2,16,16,16], index: 3, kind: output, shape index: {}]
  %s4 = sld [smem:[#allocation0]]
  $region45: #{_lambda_.12} parent=0
    _
  %s6 = ssub.s32 1, %s4
  %s7 = scalar_select 0, %s6, %s4
  loop: start=0, step=1, limit=4
  $region2: #{_lambda_.12} parent=0 // loop_pre_header
    _
  $region3: #{_lambda_.12} parent=0 // loop_header
    %s9 = sphi 0, %s13
    %p10 = scmp.ge.s32.totalorder %s9, 4
    %s19 = sphi 0, %s21
    %s22 = sphi 0, %s19
    %s23 = sphi 0, %s22
    %s39 = sphi 0, %s23
    %s43 = sphi 0, %s43
    %s45 = sphi 0, %s43
    %s46 = sphi 0, %s45
    %s60 = sphi 0, %s46
    %s64 = sphi 0, %s64
    %s66 = sphi 0, %s64
    %s67 = sphi 0, %s66
    %s81 = sphi 0, %s67
    %s87 = sphi 0, %s89
    %s90 = sphi 0, %s87
    %s91 = sphi 0, %s90
    %s107 = sphi 0, %s91
  $region4: #{_lambda_.12} parent=0 // loop_header_branch
    %12 = sbr.rel (%p10) target = $region8
  $region5: #{_lambda_.12} parent=0 // loop_body
    %s14 = ssub.s32 %s9, 1
    %s15 = ssub.s32 %s9, 2
    %s16 = sadd.s32 %s9, 1
    %s17 = ssub.s32 %s9, %s16
    %p18 = scmp.eq.s32.totalorder %s17, 0
    %s20 = sadd.s32 %s19, 1
    %s21 = scalar_select %p18, %s19, %s20
    %p24 = pneg %p18
    %p25 = scmp.eq.s32.totalorder %s9, 1
    %p26 = por %p24, %p25
    %p27 = scmp.ne.s32.totalorder %s19, %s22
    %p28 = scmp.eq.s32.totalorder %s9, 0
    %p29 = por %p27, %p28
    %p30 = scmp.ne.s32.totalorder %s19, %s22
    %p31 = scmp.eq.s32.totalorder %s14, 1
    %p32 = por %p30, %p31
    %p33 = scmp.ne.s32.totalorder %s22, %s23
    %p34 = scmp.eq.s32.totalorder %s14, 0
    %p35 = por %p33, %p34
    %p36 = scmp.ne.s32.totalorder %s22, %s23
    %p37 = scmp.eq.s32.totalorder %s15, 1
    %p38 = por %p36, %p37
    %p40 = scmp.ne.s32.totalorder %s23, %s39
    %p41 = scmp.eq.s32.totalorder %s15, 0
    %p42 = por %p40, %p41
    %s44 = sadd.s32 %s43, 1
    %p47 = scmp.eq.s32.totalorder %s9, 1
    %p48 = scmp.ne.s32.totalorder %s43, %s45
    %p49 = scmp.eq.s32.totalorder %s9, 0
    %p50 = por %p48, %p49
    %p51 = scmp.ne.s32.totalorder %s43, %s45
    %p52 = scmp.eq.s32.totalorder %s14, 1
    %p53 = por %p51, %p52
    %p54 = scmp.ne.s32.totalorder %s45, %s46
    %p55 = scmp.eq.s32.totalorder %s14, 0
    %p56 = por %p54, %p55
    %p57 = scmp.ne.s32.totalorder %s45, %s46
    %p58 = scmp.eq.s32.totalorder %s15, 1
    %p59 = por %p57, %p58
    %p61 = scmp.ne.s32.totalorder %s46, %s60
    %p62 = scmp.eq.s32.totalorder %s15, 0
    %p63 = por %p61, %p62
    %s65 = sadd.s32 %s64, 1
    %p68 = scmp.eq.s32.totalorder %s9, 1
    %p69 = scmp.ne.s32.totalorder %s64, %s66
    %p70 = scmp.eq.s32.totalorder %s9, 0
    %p71 = por %p69, %p70
    %p72 = scmp.ne.s32.totalorder %s64, %s66
    %p73 = scmp.eq.s32.totalorder %s14, 1
    %p74 = por %p72, %p73
    %p75 = scmp.ne.s32.totalorder %s66, %s67
    %p76 = scmp.eq.s32.totalorder %s14, 0
    %p77 = por %p75, %p76
    %p78 = scmp.ne.s32.totalorder %s66, %s67
    %p79 = scmp.eq.s32.totalorder %s15, 1
    %p80 = por %p78, %p79
    %p82 = scmp.ne.s32.totalorder %s67, %s81
    %p83 = scmp.eq.s32.totalorder %s15, 0
    %p84 = por %p82, %p83
    %s85 = ssub.s32 %s9, %s16
    %p86 = scmp.eq.s32.totalorder %s85, 0
    %s88 = sadd.s32 %s87, 1
    %s89 = scalar_select %p86, %s87, %s88
    %p92 = pneg %p86
    %p93 = scmp.eq.s32.totalorder %s9, 1
    %p94 = por %p92, %p93
    %p95 = scmp.ne.s32.totalorder %s87, %s90
    %p96 = scmp.eq.s32.totalorder %s9, 0
    %p97 = por %p95, %p96
    %p98 = scmp.ne.s32.totalorder %s87, %s90
    %p99 = scmp.eq.s32.totalorder %s14, 1
    %p100 = por %p98, %p99
    %p101 = scmp.ne.s32.totalorder %s90, %s91
    %p102 = scmp.eq.s32.totalorder %s14, 0
    %p103 = por %p101, %p102
    %p104 = scmp.ne.s32.totalorder %s90, %s91
    %p105 = scmp.eq.s32.totalorder %s15, 1
    %p106 = por %p104, %p105
    %p108 = scmp.ne.s32.totalorder %s91, %s107
    %p109 = scmp.eq.s32.totalorder %s15, 0
    %p110 = por %p108, %p109
    %p111 = scmp.le.s32.totalorder 1, %s9
    %p112 = scmp.lt.s32.totalorder %s9, 3
    %p113 = pnand %p111, %p112
    %p114 = pneg %p113
    // Predicated region
    $region9: #{_lambda_.12} parent=5 // pred_check
      _
    $region10: #{_lambda_.12} parent=5 // pred_check_branch
      %116 = sbr.rel (%p113) target = $region12
    $region11: #{_lambda_.12} parent=5 // pred_region
      %s117 = ssub.s32 %s9, 1
      // Predicated region
      $region13: #{_lambda_.12} parent=11 // pred_check
        %p118 = pneg %p56
      $region14: #{_lambda_.12} parent=11 // pred_check_branch
        %120 = sbr.rel (%p118) target = $region16
      $region15: #{_lambda_.12} parent=11 // pred_region
        _
      $region16: #{_lambda_.12} parent=11 // pred_fallthru
        _
      // Predicated region
      $region17: #{_lambda_.12} parent=11 // pred_check
        %p121 = pneg %p77
      $region18: #{_lambda_.12} parent=11 // pred_check_branch
        %123 = sbr.rel (%p121) target = $region20
      $region19: #{_lambda_.12} parent=11 // pred_region
        _
      $region20: #{_lambda_.12} parent=11 // pred_fallthru
        _
    $region12: #{_lambda_.12} parent=5 // pred_fallthru
      _
    %p124 = scmp.lt.s32.totalorder %s9, 2
    // Predicated region
    $region21: #{_lambda_.12} parent=5 // pred_check
      %p125 = pneg %p124
    $region22: #{_lambda_.12} parent=5 // pred_check_branch
      %127 = sbr.rel (%p125) target = $region24
    $region23: #{_lambda_.12} parent=5 // pred_region
      // Predicated region
      $region25: #{_lambda_.12} parent=23 // pred_check
        %p128 = pneg %p29
      $region26: #{_lambda_.12} parent=23 // pred_check_branch
        %130 = sbr.rel (%p128) target = $region28
      $region27: #{_lambda_.12} parent=23 // pred_region
        %p131 = scmp.lt.s32.totalorder %s9, 1
        %s132 = scalar_select %p131, %s9, 1
        %s133 = smul.addr %s132, 32
        %s134 = smul.addr %s133, 8
        %s135 = scalar_lea.vmem %s0, %s134
      $region28: #{_lambda_.12} parent=23 // pred_fallthru
        _
    $region24: #{_lambda_.12} parent=5 // pred_fallthru
      _
    %p136 = scmp.le.s32.totalorder 1, %s9
    %p137 = scmp.lt.s32.totalorder %s9, 3
    %p138 = pnand %p136, %p137
    %p139 = pneg %p138
    // Predicated region
    $region29: #{_lambda_.12} parent=5 // pred_check
      _
    $region30: #{_lambda_.12} parent=5 // pred_check_branch
      %141 = sbr.rel (%p138) target = $region32
    $region31: #{_lambda_.12} parent=5 // pred_region
      %s142 = ssub.s32 %s9, 1
      %p143 = scmp.lt.s32.totalorder %s14, 1
      %s144 = scalar_select %p143, %s14, 1
      %s145 = smul.addr %s144, 32
      %s146 = smul.addr %s145, 8
      %s147 = scalar_lea.vmem %s0, %s146
      %p148 = pneg %p35
      %p149 = pneg %p32
      %p150 = pneg %p56
      %p151 = pneg %p53
      %p152 = pneg %p77
      %p153 = pneg %p74
      %p154 = pneg %p103
      %p155 = pneg %p100
      %p156 = scmp.lt.s32.totalorder %s14, 1
      %s157 = scalar_select %p156, %s14, 1
      %s158 = smul.addr %s157, 32
      %s159 = smul.addr %s158, 8
      %s160 = scalar_lea.vmem %s3, %s159
      %p161 = scmp.lt.s32.totalorder %s14, 1
      %s162 = scalar_select %p161, %s14, 1
      %s163 = smul.addr %s162, 32
      %s164 = smul.addr %s163, 8
      %s165 = scalar_lea.vmem %s0, %s164
      %p166 = scmp.lt.s32.totalorder %s14, 1
      %s167 = scalar_select %p166, %s14, 1
      %s168 = smul.addr %s167, 32
      %s169 = smul.addr %s168, 8
      %s170 = scalar_lea.vmem %s3, %s169
      %v172 = vld [vmem:[%s165] sm:$0xff]
      %v173 = vld [vmem:[%s165 + $0x8] sm:$0xff]
      %v174 = vld [vmem:[%s165 + $0x10] sm:$0xff]
      %v175 = vld [vmem:[%s165 + $0x18] sm:$0xff]
      %v176 = vld [vmem:[%s165 + $0x20] sm:$0xff]
      %v177 = vld [vmem:[%s165 + $0x28] sm:$0xff]
      %v178 = vld [vmem:[%s165 + $0x30] sm:$0xff]
      %v179 = vld [vmem:[%s165 + $0x38] sm:$0xff]
      %v180 = vld [vmem:[%s165 + $0x40] sm:$0xff]
      %v181 = vld [vmem:[%s165 + $0x48] sm:$0xff]
      %v182 = vld [vmem:[%s165 + $0x50] sm:$0xff]
      %v183 = vld [vmem:[%s165 + $0x58] sm:$0xff]
      %v184 = vld [vmem:[%s165 + $0x60] sm:$0xff]
      %v185 = vld [vmem:[%s165 + $0x68] sm:$0xff]
      %v186 = vld [vmem:[%s165 + $0x70] sm:$0xff]
      %v187 = vld [vmem:[%s165 + $0x78] sm:$0xff]
      %v188 = vld [vmem:[%s165 + $0x80] sm:$0xff]
      %v189 = vld [vmem:[%s165 + $0x88] sm:$0xff]
      %v190 = vld [vmem:[%s165 + $0x90] sm:$0xff]
      %v191 = vld [vmem:[%s165 + $0x98] sm:$0xff]
      %v192 = vld [vmem:[%s165 + $0xa0] sm:$0xff]
      %v193 = vld [vmem:[%s165 + $0xa8] sm:$0xff]
      %v194 = vld [vmem:[%s165 + $0xb0] sm:$0xff]
      %v195 = vld [vmem:[%s165 + $0xb8] sm:$0xff]
      %v196 = vld [vmem:[%s165 + $0xc0] sm:$0xff]
      %v197 = vld [vmem:[%s165 + $0xc8] sm:$0xff]
      %v198 = vld [vmem:[%s165 + $0xd0] sm:$0xff]
      %v199 = vld [vmem:[%s165 + $0xd8] sm:$0xff]
      %v200 = vld [vmem:[%s165 + $0xe0] sm:$0xff]
      %v201 = vld [vmem:[%s165 + $0xe8] sm:$0xff]
      %v202 = vld [vmem:[%s165 + $0xf0] sm:$0xff]
      %v203 = vld [vmem:[%s165 + $0xf8] sm:$0xff]
      %v204 = vpack.c.bf16 %v173, %v172
      %v205 = vpack.c.bf16 %v175, %v174
      %v206 = vpack.c.bf16 %v177, %v176
      %v207 = vpack.c.bf16 %v179, %v178
      %v208 = vpack.c.bf16 %v181, %v180
      %v209 = vpack.c.bf16 %v183, %v182
      %v210 = vpack.c.bf16 %v185, %v184
      %v211 = vpack.c.bf16 %v187, %v186
      %v212 = vpack.c.bf16 %v189, %v188
      %v213 = vpack.c.bf16 %v191, %v190
      %v214 = vpack.c.bf16 %v193, %v192
      %v215 = vpack.c.bf16 %v195, %v194
      %v216 = vpack.c.bf16 %v197, %v196
      %v217 = vpack.c.bf16 %v199, %v198
      %v218 = vpack.c.bf16 %v201, %v200
      %v219 = vpack.c.bf16 %v203, %v202
      %v221 = vshrl.u32 %v204, 16
      %v223 = vrot.slane %v221, 7
      %v224 = vshll.u32 %v204, 16
      %v226 = vor.u32 %v223, %v224
      %v228 = vshrl.u32 %v205, 16
      %v230 = vrot.slane %v228, 7
      %v231 = vshll.u32 %v205, 16
      %v233 = vor.u32 %v230, %v231
      %v235 = vshrl.u32 %v206, 16
      %v237 = vrot.slane %v235, 7
      %v238 = vshll.u32 %v206, 16
      %v240 = vor.u32 %v237, %v238
      %v242 = vshrl.u32 %v207, 16
      %v244 = vrot.slane %v242, 7
      %v245 = vshll.u32 %v207, 16
      %v247 = vor.u32 %v244, %v245
      %v249 = vshrl.u32 %v208, 16
      %v251 = vrot.slane %v249, 7
      %v252 = vshll.u32 %v208, 16
      %v254 = vor.u32 %v251, %v252
      %v256 = vshrl.u32 %v209, 16
      %v258 = vrot.slane %v256, 7
      %v259 = vshll.u32 %v209, 16
      %v261 = vor.u32 %v258, %v259
      %v263 = vshrl.u32 %v210, 16
      %v265 = vrot.slane %v263, 7
      %v266 = vshll.u32 %v210, 16
      %v268 = vor.u32 %v265, %v266
      %v270 = vshrl.u32 %v211, 16
      %v272 = vrot.slane %v270, 7
      %v273 = vshll.u32 %v211, 16
      %v275 = vor.u32 %v272, %v273
      %v277 = vshrl.u32 %v212, 16
      %v279 = vrot.slane %v277, 7
      %v280 = vshll.u32 %v212, 16
      %v282 = vor.u32 %v279, %v280
      %v284 = vshrl.u32 %v213, 16
      %v286 = vrot.slane %v284, 7
      %v287 = vshll.u32 %v213, 16
      %v289 = vor.u32 %v286, %v287
      %v291 = vshrl.u32 %v214, 16
      %v293 = vrot.slane %v291, 7
      %v294 = vshll.u32 %v214, 16
      %v296 = vor.u32 %v293, %v294
      %v298 = vshrl.u32 %v215, 16
      %v300 = vrot.slane %v298, 7
      %v301 = vshll.u32 %v215, 16
      %v303 = vor.u32 %v300, %v301
      %v305 = vshrl.u32 %v216, 16
      %v307 = vrot.slane %v305, 7
      %v308 = vshll.u32 %v216, 16
      %v310 = vor.u32 %v307, %v308
      %v312 = vshrl.u32 %v217, 16
      %v314 = vrot.slane %v312, 7
      %v315 = vshll.u32 %v217, 16
      %v317 = vor.u32 %v314, %v315
      %v319 = vshrl.u32 %v218, 16
      %v321 = vrot.slane %v319, 7
      %v322 = vshll.u32 %v218, 16
      %v324 = vor.u32 %v321, %v322
      %v326 = vshrl.u32 %v219, 16
      %v328 = vrot.slane %v326, 7
      %v329 = vshll.u32 %v219, 16
      %v331 = vor.u32 %v328, %v329
      %v380 = vrot.slane %v204, 7
      %v381 = vrot.slane %v205, 7
      %v382 = vrot.slane %v206, 7
      %v383 = vrot.slane %v207, 7
      %v384 = vrot.slane %v208, 7
      %v385 = vrot.slane %v209, 7
      %v386 = vrot.slane %v210, 7
      %v387 = vrot.slane %v211, 7
      %v388 = vrot.slane %v212, 7
      %v389 = vrot.slane %v213, 7
      %v390 = vrot.slane %v214, 7
      %v391 = vrot.slane %v215, 7
      %v392 = vrot.slane %v216, 7
      %v393 = vrot.slane %v217, 7
      %v394 = vrot.slane %v218, 7
      %v395 = vrot.slane %v219, 7
      %vm412 = vcmask 1040384
      %vm413 = vsmask.f32 256
      %vm414 = vmand %vm412, %vm413
      %v415 = vsel %vm414, %v204, %v226
      %v416 = vsel %vm414, %v205, %v233
      %v417 = vsel %vm414, %v206, %v240
      %v418 = vsel %vm414, %v207, %v247
      %v419 = vsel %vm414, %v208, %v254
      %v420 = vsel %vm414, %v209, %v261
      %v421 = vsel %vm414, %v210, %v268
      %v422 = vsel %vm414, %v211, %v275
      %v423 = vsel %vm414, %v212, %v282
      %v424 = vsel %vm414, %v213, %v289
      %v425 = vsel %vm414, %v214, %v296
      %v426 = vsel %vm414, %v215, %v303
      %v427 = vsel %vm414, %v216, %v310
      %v428 = vsel %vm414, %v217, %v317
      %v429 = vsel %vm414, %v218, %v324
      %v430 = vsel %vm414, %v219, %v331
      %v431 = vsel %vm414, %v223, %v380
      %v432 = vsel %vm414, %v230, %v381
      %v433 = vsel %vm414, %v237, %v382
      %v434 = vsel %vm414, %v244, %v383
      %v435 = vsel %vm414, %v251, %v384
      %v436 = vsel %vm414, %v258, %v385
      %v437 = vsel %vm414, %v265, %v386
      %v438 = vsel %vm414, %v272, %v387
      %v439 = vsel %vm414, %v279, %v388
      %v440 = vsel %vm414, %v286, %v389
      %v441 = vsel %vm414, %v293, %v390
      %v442 = vsel %vm414, %v300, %v391
      %v443 = vsel %vm414, %v307, %v392
      %v444 = vsel %vm414, %v314, %v393
      %v445 = vsel %vm414, %v321, %v394
      %v446 = vsel %vm414, %v328, %v395
      %vm447 = vsmask.f32 7424
      %v449 = vshrl.u32 %v415, 16
      %v451 = vshll.u32 %v415, 16
      %v453 = vrot.slane %v451, 1
      %v454 = vor.u32 %v449, %v453
      %v456 = vshll.u32 %v431, 16
      %v458 = vrot.slane %v456, 1
      %v459 = vsel %vm447, %v454, %v458
      %v461 = vshrl.u32 %v416, 16
      %v463 = vshll.u32 %v416, 16
      %v465 = vrot.slane %v463, 1
      %v466 = vor.u32 %v461, %v465
      %v468 = vshll.u32 %v432, 16
      %v470 = vrot.slane %v468, 1
      %v471 = vsel %vm447, %v466, %v470
      %v473 = vshrl.u32 %v417, 16
      %v475 = vshll.u32 %v417, 16
      %v477 = vrot.slane %v475, 1
      %v478 = vor.u32 %v473, %v477
      %v480 = vshll.u32 %v433, 16
      %v482 = vrot.slane %v480, 1
      %v483 = vsel %vm447, %v478, %v482
      %v485 = vshrl.u32 %v418, 16
      %v487 = vshll.u32 %v418, 16
      %v489 = vrot.slane %v487, 1
      %v490 = vor.u32 %v485, %v489
      %v492 = vshll.u32 %v434, 16
      %v494 = vrot.slane %v492, 1
      %v495 = vsel %vm447, %v490, %v494
      %v497 = vshrl.u32 %v419, 16
      %v499 = vshll.u32 %v419, 16
      %v501 = vrot.slane %v499, 1
      %v502 = vor.u32 %v497, %v501
      %v504 = vshll.u32 %v435, 16
      %v506 = vrot.slane %v504, 1
      %v507 = vsel %vm447, %v502, %v506
      %v509 = vshrl.u32 %v420, 16
      %v511 = vshll.u32 %v420, 16
      %v513 = vrot.slane %v511, 1
      %v514 = vor.u32 %v509, %v513
      %v516 = vshll.u32 %v436, 16
      %v518 = vrot.slane %v516, 1
      %v519 = vsel %vm447, %v514, %v518
      %v521 = vshrl.u32 %v421, 16
      %v523 = vshll.u32 %v421, 16
      %v525 = vrot.slane %v523, 1
      %v526 = vor.u32 %v521, %v525
      %v528 = vshll.u32 %v437, 16
      %v530 = vrot.slane %v528, 1
      %v531 = vsel %vm447, %v526, %v530
      %v533 = vshrl.u32 %v422, 16
      %v535 = vshll.u32 %v422, 16
      %v537 = vrot.slane %v535, 1
      %v538 = vor.u32 %v533, %v537
      %v540 = vshll.u32 %v438, 16
      %v542 = vrot.slane %v540, 1
      %v543 = vsel %vm447, %v538, %v542
      %v545 = vshrl.u32 %v423, 16
      %v547 = vshll.u32 %v423, 16
      %v549 = vrot.slane %v547, 1
      %v550 = vor.u32 %v545, %v549
      %v552 = vshll.u32 %v439, 16
      %v554 = vrot.slane %v552, 1
      %v555 = vsel %vm447, %v550, %v554
      %v557 = vshrl.u32 %v424, 16
      %v559 = vshll.u32 %v424, 16
      %v561 = vrot.slane %v559, 1
      %v562 = vor.u32 %v557, %v561
      %v564 = vshll.u32 %v440, 16
      %v566 = vrot.slane %v564, 1
      %v567 = vsel %vm447, %v562, %v566
      %v569 = vshrl.u32 %v425, 16
      %v571 = vshll.u32 %v425, 16
      %v573 = vrot.slane %v571, 1
      %v574 = vor.u32 %v569, %v573
      %v576 = vshll.u32 %v441, 16
      %v578 = vrot.slane %v576, 1
      %v579 = vsel %vm447, %v574, %v578
      %v581 = vshrl.u32 %v426, 16
      %v583 = vshll.u32 %v426, 16
      %v585 = vrot.slane %v583, 1
      %v586 = vor.u32 %v581, %v585
      %v588 = vshll.u32 %v442, 16
      %v590 = vrot.slane %v588, 1
      %v591 = vsel %vm447, %v586, %v590
      %v593 = vshrl.u32 %v427, 16
      %v595 = vshll.u32 %v427, 16
      %v597 = vrot.slane %v595, 1
      %v598 = vor.u32 %v593, %v597
      %v600 = vshll.u32 %v443, 16
      %v602 = vrot.slane %v600, 1
      %v603 = vsel %vm447, %v598, %v602
      %v605 = vshrl.u32 %v428, 16
      %v607 = vshll.u32 %v428, 16
      %v609 = vrot.slane %v607, 1
      %v610 = vor.u32 %v605, %v609
      %v612 = vshll.u32 %v444, 16
      %v614 = vrot.slane %v612, 1
      %v615 = vsel %vm447, %v610, %v614
      %v617 = vshrl.u32 %v429, 16
      %v619 = vshll.u32 %v429, 16
      %v621 = vrot.slane %v619, 1
      %v622 = vor.u32 %v617, %v621
      %v624 = vshll.u32 %v445, 16
      %v626 = vrot.slane %v624, 1
      %v627 = vsel %vm447, %v622, %v626
      %628 = vrot.lane.b32.xlu0 %v459, 8
      %v629 = vpop.permute.xlu0 %628
      %630 = vrot.lane.b32.xlu0 %v471, 8
      %v631 = vpop.permute.xlu0 %630
      %632 = vrot.lane.b32.xlu0 %v483, 8
      %v633 = vpop.permute.xlu0 %632
      %634 = vrot.lane.b32.xlu0 %v495, 8
      %v635 = vpop.permute.xlu0 %634
      %636 = vrot.lane.b32.xlu0 %v507, 8
      %v637 = vpop.permute.xlu0 %636
      %638 = vrot.lane.b32.xlu0 %v519, 8
      %v639 = vpop.permute.xlu0 %638
      %640 = vrot.lane.b32.xlu0 %v531, 8
      %v641 = vpop.permute.xlu0 %640
      %642 = vrot.lane.b32.xlu0 %v543, 8
      %v643 = vpop.permute.xlu0 %642
      %644 = vrot.lane.b32.xlu0 %v555, 8
      %v645 = vpop.permute.xlu0 %644
      %646 = vrot.lane.b32.xlu0 %v567, 8
      %v647 = vpop.permute.xlu0 %646
      %648 = vrot.lane.b32.xlu0 %v579, 8
      %v649 = vpop.permute.xlu0 %648
      %650 = vrot.lane.b32.xlu0 %v591, 8
      %v651 = vpop.permute.xlu0 %650
      %652 = vrot.lane.b32.xlu0 %v603, 8
      %v653 = vpop.permute.xlu0 %652
      %654 = vrot.lane.b32.xlu0 %v615, 8
      %v655 = vpop.permute.xlu0 %654
      %656 = vrot.lane.b32.xlu0 %v627, 8
      %v657 = vpop.permute.xlu0 %656
      %vm688 = vcmask 1046528
      %v689 = vrot.slane %v415, 1
      %v690 = vrot.slane %v431, 1
      %v691 = vsel %vm688, %v689, %v690
      %v692 = vrot.slane %v416, 1
      %v693 = vrot.slane %v432, 1
      %v694 = vsel %vm688, %v692, %v693
      %v695 = vrot.slane %v417, 1
      %v696 = vrot.slane %v433, 1
      %v697 = vsel %vm688, %v695, %v696
      %v698 = vrot.slane %v418, 1
      %v699 = vrot.slane %v434, 1
      %v700 = vsel %vm688, %v698, %v699
      %v701 = vrot.slane %v419, 1
      %v702 = vrot.slane %v435, 1
      %v703 = vsel %vm688, %v701, %v702
      %v704 = vrot.slane %v420, 1
      %v705 = vrot.slane %v436, 1
      %v706 = vsel %vm688, %v704, %v705
      %v707 = vrot.slane %v421, 1
      %v708 = vrot.slane %v437, 1
      %v709 = vsel %vm688, %v707, %v708
      %v710 = vrot.slane %v422, 1
      %v711 = vrot.slane %v438, 1
      %v712 = vsel %vm688, %v710, %v711
      %v713 = vrot.slane %v423, 1
      %v714 = vrot.slane %v439, 1
      %v715 = vsel %vm688, %v713, %v714
      %v716 = vrot.slane %v424, 1
      %v717 = vrot.slane %v440, 1
      %v718 = vsel %vm688, %v716, %v717
      %v719 = vrot.slane %v425, 1
      %v720 = vrot.slane %v441, 1
      %v721 = vsel %vm688, %v719, %v720
      %v722 = vrot.slane %v426, 1
      %v723 = vrot.slane %v442, 1
      %v724 = vsel %vm688, %v722, %v723
      %v725 = vrot.slane %v427, 1
      %v726 = vrot.slane %v443, 1
      %v727 = vsel %vm688, %v725, %v726
      %v728 = vrot.slane %v428, 1
      %v729 = vrot.slane %v444, 1
      %v730 = vsel %vm688, %v728, %v729
      %v731 = vrot.slane %v429, 1
      %v732 = vrot.slane %v445, 1
      %v733 = vsel %vm688, %v731, %v732
      %734 = vrot.lane.b32.xlu0 %v691, 16
      %v735 = vpop.permute.xlu0 %734
      %736 = vrot.lane.b32.xlu0 %v694, 16
      %v737 = vpop.permute.xlu0 %736
      %738 = vrot.lane.b32.xlu0 %v697, 16
      %v739 = vpop.permute.xlu0 %738
      %740 = vrot.lane.b32.xlu0 %v700, 16
      %v741 = vpop.permute.xlu0 %740
      %742 = vrot.lane.b32.xlu0 %v703, 16
      %v743 = vpop.permute.xlu0 %742
      %744 = vrot.lane.b32.xlu0 %v706, 16
      %v745 = vpop.permute.xlu0 %744
      %746 = vrot.lane.b32.xlu0 %v709, 16
      %v747 = vpop.permute.xlu0 %746
      %748 = vrot.lane.b32.xlu0 %v712, 16
      %v749 = vpop.permute.xlu0 %748
      %750 = vrot.lane.b32.xlu0 %v715, 16
      %v751 = vpop.permute.xlu0 %750
      %752 = vrot.lane.b32.xlu0 %v718, 16
      %v753 = vpop.permute.xlu0 %752
      %754 = vrot.lane.b32.xlu0 %v721, 16
      %v755 = vpop.permute.xlu0 %754
      %756 = vrot.lane.b32.xlu0 %v724, 16
      %v757 = vpop.permute.xlu0 %756
      %758 = vrot.lane.b32.xlu0 %v727, 16
      %v759 = vpop.permute.xlu0 %758
      %760 = vrot.lane.b32.xlu0 %v730, 16
      %v761 = vpop.permute.xlu0 %760
      %762 = vrot.lane.b32.xlu0 %v733, 16
      %v763 = vpop.permute.xlu0 %762
      %vm764 = vcmask 64512
      %v766 = vsel %vm764, %v415, %v629
      %v768 = vsel %vm764, %v416, %v631
      %v770 = vsel %vm764, %v417, %v633
      %v772 = vsel %vm764, %v418, %v635
      %v774 = vsel %vm764, %v419, %v637
      %v776 = vsel %vm764, %v420, %v639
      %v778 = vsel %vm764, %v421, %v641
      %v780 = vsel %vm764, %v422, %v643
      %v782 = vsel %vm764, %v423, %v645
      %v784 = vsel %vm764, %v424, %v647
      %v786 = vsel %vm764, %v425, %v649
      %v788 = vsel %vm764, %v426, %v651
      %v790 = vsel %vm764, %v427, %v653
      %v792 = vsel %vm764, %v428, %v655
      %v794 = vsel %vm764, %v429, %v657
      %vm795 = vcmask 130048
      %v797 = vsel %vm795, %v766, %v735
      %v799 = vsel %vm795, %v768, %v737
      %v801 = vsel %vm795, %v770, %v739
      %v803 = vsel %vm795, %v772, %v741
      %v805 = vsel %vm795, %v774, %v743
      %v807 = vsel %vm795, %v776, %v745
      %v809 = vsel %vm795, %v778, %v747
      %v811 = vsel %vm795, %v780, %v749
      %v813 = vsel %vm795, %v782, %v751
      %v815 = vsel %vm795, %v784, %v753
      %v817 = vsel %vm795, %v786, %v755
      %v819 = vsel %vm795, %v788, %v757
      %v821 = vsel %vm795, %v790, %v759
      %v823 = vsel %vm795, %v792, %v761
      %v825 = vsel %vm795, %v794, %v763
      %v826 = vld [vmem:[%s1] sm:$0xf]
      %v827 = vld [vmem:[%s1 + $0x4] sm:$0xf]
      %v828 = vld [vmem:[%s1 + $0x8] sm:$0xf]
      %v830 = vshrl.u32 %v430, 16
      %v832 = vshll.u32 %v430, 16
      %v834 = vrot.slane %v832, 1
      %v835 = vor.u32 %v830, %v834
      %v837 = vshll.u32 %v446, 16
      %v839 = vrot.slane %v837, 1
      %v840 = vsel %vm447, %v835, %v839
      %841 = vrot.lane.b32.xlu0 %v840, 8
      %v842 = vpop.permute.xlu0 %841
      %v845 = vrot.slane %v430, 1
      %v846 = vrot.slane %v446, 1
      %v847 = vsel %vm688, %v845, %v846
      %848 = vrot.lane.b32.xlu0 %v847, 16
      %v849 = vpop.permute.xlu0 %848
      %v851 = vsel %vm764, %v430, %v842
      %v853 = vsel %vm795, %v851, %v849
      %s854 = scalar_lea.vmem %s1, 12
      %v855 = vld [vmem:[%s854] sm:$0xf]
      %v856 = vld [vmem:[%s854 + $0x4] sm:$0xf]
      %v857 = vld [vmem:[%s854 + $0x8] sm:$0xf]
      %v861 = vunpack.c.l.b16 %v855
      %v862 = vunpack.c.l.b16 %v856
      %v863 = vunpack.c.l.b16 %v857
      %v864 = vpack.c.b16 %v862, %v861
      %v865 = vpack.c.b16 %v863, %v863
      %vm867 = vcmask 195584
      %v868 = vsel %vm867, %v797, 0
      %v870 = vsel %vm867, %v799, 0
      %v872 = vsel %vm867, %v801, 0
      %v874 = vsel %vm867, %v803, 0
      %v876 = vsel %vm867, %v805, 0
      %v878 = vsel %vm867, %v807, 0
      %v880 = vsel %vm867, %v809, 0
      %v882 = vsel %vm867, %v811, 0
      %v884 = vsel %vm867, %v813, 0
      %v886 = vsel %vm867, %v815, 0
      %v888 = vsel %vm867, %v817, 0
      %v890 = vsel %vm867, %v819, 0
      %v892 = vsel %vm867, %v821, 0
      %v894 = vsel %vm867, %v823, 0
      %v896 = vsel %vm867, %v825, 0
      %v898 = vsel %vm867, %v853, 0
      %vm900 = vcmask 1043456
      %v902 = vsel %vm900, %v865, 0
      %904 = vmatprep.subr.bf16.mxu0 0
      %905 = vmatpush1.bf16.msra.mxu0 %v864
      %906 = vmatprep.subr.bf16.mxu0 0
      %907 = vmatpush1.bf16.msra.mxu0 %v902
      %908 = vmatprep.subr.bf16.mxu0 0
      %909 = vmatpush1.bf16.msra.mxu0 0
      %910 = vmatprep.subr.bf16.mxu0 0
      %911 = vmatpush1.bf16.msra.mxu0 0
      %912 = vmatprep.subr.bf16.mxu0 0
      %913 = vmatpush1.bf16.msra.mxu0 0
      %914 = vmatprep.subr.bf16.mxu0 0
      %915 = vmatpush1.bf16.msra.mxu0 0
      %916 = vmatprep.subr.bf16.mxu0 0
      %917 = vmatpush1.bf16.msra.mxu0 0
      %918 = vmatprep.subr.bf16.mxu0 0
      %919 = vmatpush1.bf16.msra.mxu0 0
      %920 = vmatprep.subr.bf16.mxu0 0
      %921 = vmatpush1.bf16.msra.mxu0 0
      %922 = vmatprep.subr.bf16.mxu0 0
      %923 = vmatpush1.bf16.msra.mxu0 0
      %924 = vmatprep.subr.bf16.mxu0 0
      %925 = vmatpush1.bf16.msra.mxu0 0
      %926 = vmatprep.subr.bf16.mxu0 0
      %927 = vmatpush1.bf16.msra.mxu0 0
      %928 = vmatprep.subr.bf16.mxu0 0
      %929 = vmatpush1.bf16.msra.mxu0 0
      %930 = vmatprep.subr.bf16.mxu0 0
      %931 = vmatpush1.bf16.msra.mxu0 0
      %932 = vmatprep.subr.bf16.mxu0 0
      %933 = vmatpush1.bf16.msra.mxu0 0
      %934 = vmatprep.subr.bf16.mxu0 0
      %935 = vmatpush1.bf16.msra.mxu0 0
      %936 = vmatprep.mubr.bf16.mxu0 0
      %937 = vmatmul.mubr.bf16.gmra.mrb[0].mxu0 %v868
      %v938 = vpop.f32.mrb[0].mxu0
      %v939 = vadd.f32 0.0, %v938
      %v940 = vpop.f32.mrb[0].mxu0
      %v941 = vpop.f32.mrb[0].mxu0
      %v942 = vadd.f32 0.0, %v941
      %v943 = vpop.f32.mrb[0].mxu0
      %944 = vmatprep.mubr.bf16.mxu0 0
      %945 = vmatmul.mubr.bf16.gmra.mrb[0].mxu0 %v870
      %v946 = vpop.f32.mrb[0].mxu0
      %v947 = vadd.f32 0.0, %v946
      %v948 = vpop.f32.mrb[0].mxu0
      %v949 = vpop.f32.mrb[0].mxu0
      %v950 = vadd.f32 0.0, %v949
      %v951 = vpop.f32.mrb[0].mxu0
      %952 = vmatprep.mubr.bf16.mxu0 0
      %953 = vmatmul.mubr.bf16.gmra.mrb[0].mxu0 %v872
      %v954 = vpop.f32.mrb[0].mxu0
      %v955 = vadd.f32 0.0, %v954
      %v956 = vpop.f32.mrb[0].mxu0
      %v957 = vpop.f32.mrb[0].mxu0
      %v958 = vadd.f32 0.0, %v957
      %v959 = vpop.f32.mrb[0].mxu0
      %960 = vmatprep.mubr.bf16.mxu0 0
      %961 = vmatmul.mubr.bf16.gmra.mrb[0].mxu0 %v874
      %v962 = vpop.f32.mrb[0].mxu0
      %v963 = vadd.f32 0.0, %v962
      %v964 = vpop.f32.mrb[0].mxu0
      %v965 = vpop.f32.mrb[0].mxu0
      %v966 = vadd.f32 0.0, %v965
      %v967 = vpop.f32.mrb[0].mxu0
      %968 = vmatprep.mubr.bf16.mxu0 0
      %969 = vmatmul.mubr.bf16.gmra.mrb[0].mxu0 %v876
      %v970 = vpop.f32.mrb[0].mxu0
      %v971 = vadd.f32 0.0, %v970
      %v972 = vpop.f32.mrb[0].mxu0
      %v973 = vpop.f32.mrb[0].mxu0
      %v974 = vadd.f32 0.0, %v973
      %v975 = vpop.f32.mrb[0].mxu0
      %976 = vmatprep.mubr.bf16.mxu0 0
      %977 = vmatmul.mubr.bf16.gmra.mrb[0].mxu0 %v878
      %v978 = vpop.f32.mrb[0].mxu0
      %v979 = vadd.f32 0.0, %v978
      %v980 = vpop.f32.mrb[0].mxu0
      %v981 = vpop.f32.mrb[0].mxu0
      %v982 = vadd.f32 0.0, %v981
      %v983 = vpop.f32.mrb[0].mxu0
      %984 = vmatprep.mubr.bf16.mxu0 0
      %985 = vmatmul.mubr.bf16.gmra.mrb[0].mxu0 %v880
      %v986 = vpop.f32.mrb[0].mxu0
      %v987 = vadd.f32 0.0, %v986
      %v988 = vpop.f32.mrb[0].mxu0
      %v989 = vpop.f32.mrb[0].mxu0
      %v990 = vadd.f32 0.0, %v989
      %v991 = vpop.f32.mrb[0].mxu0
      %992 = vmatprep.mubr.bf16.mxu0 0
      %993 = vmatmul.mubr.bf16.gmra.mrb[0].mxu0 %v882
      %v994 = vpop.f32.mrb[0].mxu0
      %v995 = vadd.f32 0.0, %v994
      %v996 = vpop.f32.mrb[0].mxu0
      %v997 = vpop.f32.mrb[0].mxu0
      %v998 = vadd.f32 0.0, %v997
      %v999 = vpop.f32.mrb[0].mxu0
      %1000 = vmatprep.mubr.bf16.mxu0 0
      %1001 = vmatmul.mubr.bf16.gmra.mrb[0].mxu0 %v884
      %v1002 = vpop.f32.mrb[0].mxu0
      %v1003 = vadd.f32 0.0, %v1002
      %v1004 = vpop.f32.mrb[0].mxu0
      %v1005 = vpop.f32.mrb[0].mxu0
      %v1006 = vadd.f32 0.0, %v1005
      %v1007 = vpop.f32.mrb[0].mxu0
      %1008 = vmatprep.mubr.bf16.mxu0 0
      %1009 = vmatmul.mubr.bf16.gmra.mrb[0].mxu0 %v886
      %v1010 = vpop.f32.mrb[0].mxu0
      %v1011 = vadd.f32 0.0, %v1010
      %v1012 = vpop.f32.mrb[0].mxu0
      %v1013 = vpop.f32.mrb[0].mxu0
      %v1014 = vadd.f32 0.0, %v1013
      %v1015 = vpop.f32.mrb[0].mxu0
      %1016 = vmatprep.mubr.bf16.mxu0 0
      %1017 = vmatmul.mubr.bf16.gmra.mrb[0].mxu0 %v888
      %v1018 = vpop.f32.mrb[0].mxu0
      %v1019 = vadd.f32 0.0, %v1018
      %v1020 = vpop.f32.mrb[0].mxu0
      %v1021 = vpop.f32.mrb[0].mxu0
      %v1022 = vadd.f32 0.0, %v1021
      %v1023 = vpop.f32.mrb[0].mxu0
      %1024 = vmatprep.mubr.bf16.mxu0 0
      %1025 = vmatmul.mubr.bf16.gmra.mrb[0].mxu0 %v890
      %v1026 = vpop.f32.mrb[0].mxu0
      %v1027 = vadd.f32 0.0, %v1026
      %v1028 = vpop.f32.mrb[0].mxu0
      %v1029 = vpop.f32.mrb[0].mxu0
      %v1030 = vadd.f32 0.0, %v1029
      %v1031 = vpop.f32.mrb[0].mxu0
      %1032 = vmatprep.mubr.bf16.mxu0 0
      %1033 = vmatmul.mubr.bf16.gmra.mrb[0].mxu0 %v892
      %v1034 = vpop.f32.mrb[0].mxu0
      %v1035 = vadd.f32 0.0, %v1034
      %v1036 = vpop.f32.mrb[0].mxu0
      %v1037 = vpop.f32.mrb[0].mxu0
      %v1038 = vadd.f32 0.0, %v1037
      %v1039 = vpop.f32.mrb[0].mxu0
      %1040 = vmatprep.mubr.bf16.mxu0 0
      %1041 = vmatmul.mubr.bf16.gmra.mrb[0].mxu0 %v894
      %v1042 = vpop.f32.mrb[0].mxu0
      %v1043 = vadd.f32 0.0, %v1042
      %v1044 = vpop.f32.mrb[0].mxu0
      %v1045 = vpop.f32.mrb[0].mxu0
      %v1046 = vadd.f32 0.0, %v1045
      %v1047 = vpop.f32.mrb[0].mxu0
      %1048 = vmatprep.mubr.bf16.mxu0 0
      %1049 = vmatmul.mubr.bf16.gmra.mrb[0].mxu0 %v896
      %v1050 = vpop.f32.mrb[0].mxu0
      %v1051 = vadd.f32 0.0, %v1050
      %v1052 = vpop.f32.mrb[0].mxu0
      %v1053 = vpop.f32.mrb[0].mxu0
      %v1054 = vadd.f32 0.0, %v1053
      %v1055 = vpop.f32.mrb[0].mxu0
      %1056 = vmatprep.mubr.bf16.mxu0 0
      %1057 = vmatmul.mubr.bf16.gmra.mrb[0].mxu0 %v898
      %v1058 = vpop.f32.mrb[0].mxu0
      %v1059 = vadd.f32 0.0, %v1058
      %v1060 = vpop.f32.mrb[0].mxu0
      %v1061 = vpop.f32.mrb[0].mxu0
      %v1062 = vadd.f32 0.0, %v1061
      %v1063 = vpop.f32.mrb[0].mxu0
      %1064 = vdwg.mxu0
      %v1068 = vunpack.c.l.b16 %v826
      %v1069 = vunpack.c.l.b16 %v827
      %v1070 = vunpack.c.l.b16 %v828
      %v1071 = vpack.c.b16 %v1069, %v1068
      %v1072 = vpack.c.b16 %v1070, %v1070
      %v1075 = vsel %vm900, %v1072, 0
      %1077 = vmatprep.subr.bf16.mxu0 0
      %1078 = vmatpush1.bf16.msra.mxu0 %v1071
      %1079 = vmatprep.subr.bf16.mxu0 0
      %1080 = vmatpush1.bf16.msra.mxu0 %v1075
      %1081 = vmatprep.subr.bf16.mxu0 0
      %1082 = vmatpush1.bf16.msra.mxu0 0
      %1083 = vmatprep.subr.bf16.mxu0 0
      %1084 = vmatpush1.bf16.msra.mxu0 0
      %1085 = vmatprep.subr.bf16.mxu0 0
      %1086 = vmatpush1.bf16.msra.mxu0 0
      %1087 = vmatprep.subr.bf16.mxu0 0
      %1088 = vmatpush1.bf16.msra.mxu0 0
      %1089 = vmatprep.subr.bf16.mxu0 0
      %1090 = vmatpush1.bf16.msra.mxu0 0
      %1091 = vmatprep.subr.bf16.mxu0 0
      %1092 = vmatpush1.bf16.msra.mxu0 0
      %1093 = vmatprep.subr.bf16.mxu0 0
      %1094 = vmatpush1.bf16.msra.mxu0 0
      %1095 = vmatprep.subr.bf16.mxu0 0
      %1096 = vmatpush1.bf16.msra.mxu0 0
      %1097 = vmatprep.subr.bf16.mxu0 0
      %1098 = vmatpush1.bf16.msra.mxu0 0
      %1099 = vmatprep.subr.bf16.mxu0 0
      %1100 = vmatpush1.bf16.msra.mxu0 0
      %1101 = vmatprep.subr.bf16.mxu0 0
      %1102 = vmatpush1.bf16.msra.mxu0 0
      %1103 = vmatprep.subr.bf16.mxu0 0
      %1104 = vmatpush1.bf16.msra.mxu0 0
      %1105 = vmatprep.subr.bf16.mxu0 0
      %1106 = vmatpush1.bf16.msra.mxu0 0
      %1107 = vmatprep.subr.bf16.mxu0 0
      %1108 = vmatpush1.bf16.msra.mxu0 0
      %1109 = vmatprep.mubr.bf16.mxu0 0
      %1110 = vmatmul.mubr.bf16.gmra.mrb[0].mxu0 %v868
      %v1111 = vpop.f32.mrb[0].mxu0
      %v1112 = vadd.f32 %v939, %v1111
      %v1113 = vpop.f32.mrb[0].mxu0
      %v1114 = vpop.f32.mrb[0].mxu0
      %v1115 = vadd.f32 %v942, %v1114
      %v1116 = vpop.f32.mrb[0].mxu0
      %1117 = vmatprep.mubr.bf16.mxu0 0
      %1118 = vmatmul.mubr.bf16.gmra.mrb[0].mxu0 %v868
      %v1119 = vpop.f32.mrb[0].mxu0
      %v1120 = vadd.f32 %v947, %v1119
      %v1121 = vpop.f32.mrb[0].mxu0
      %v1122 = vpop.f32.mrb[0].mxu0
      %v1123 = vadd.f32 %v950, %v1122
      %v1124 = vpop.f32.mrb[0].mxu0
      %1125 = vmatprep.mubr.bf16.mxu0 0
      %1126 = vmatmul.mubr.bf16.gmra.mrb[0].mxu0 %v870
      %v1127 = vpop.f32.mrb[0].mxu0
      %v1128 = vadd.f32 %v955, %v1127
      %v1129 = vpop.f32.mrb[0].mxu0
      %v1130 = vpop.f32.mrb[0].mxu0
      %v1131 = vadd.f32 %v958, %v1130
      %v1132 = vpop.f32.mrb[0].mxu0
      %1133 = vmatprep.mubr.bf16.mxu0 0
      %1134 = vmatmul.mubr.bf16.gmra.mrb[0].mxu0 %v872
      %v1135 = vpop.f32.mrb[0].mxu0
      %v1136 = vadd.f32 %v963, %v1135
      %v1137 = vpop.f32.mrb[0].mxu0
      %v1138 = vpop.f32.mrb[0].mxu0
      %v1139 = vadd.f32 %v966, %v1138
      %v1140 = vpop.f32.mrb[0].mxu0
      %1141 = vmatprep.mubr.bf16.mxu0 0
      %1142 = vmatmul.mubr.bf16.gmra.mrb[0].mxu0 %v874
      %v1143 = vpop.f32.mrb[0].mxu0
      %v1144 = vadd.f32 %v971, %v1143
      %v1145 = vpop.f32.mrb[0].mxu0
      %v1146 = vpop.f32.mrb[0].mxu0
      %v1147 = vadd.f32 %v974, %v1146
      %v1148 = vpop.f32.mrb[0].mxu0
      %1149 = vmatprep.mubr.bf16.mxu0 0
      %1150 = vmatmul.mubr.bf16.gmra.mrb[0].mxu0 %v876
      %v1151 = vpop.f32.mrb[0].mxu0
      %v1152 = vadd.f32 %v979, %v1151
      %v1153 = vpop.f32.mrb[0].mxu0
      %v1154 = vpop.f32.mrb[0].mxu0
      %v1155 = vadd.f32 %v982, %v1154
      %v1156 = vpop.f32.mrb[0].mxu0
      %1157 = vmatprep.mubr.bf16.mxu0 0
      %1158 = vmatmul.mubr.bf16.gmra.mrb[0].mxu0 %v878
      %v1159 = vpop.f32.mrb[0].mxu0
      %v1160 = vadd.f32 %v987, %v1159
      %v1161 = vpop.f32.mrb[0].mxu0
      %v1162 = vpop.f32.mrb[0].mxu0
      %v1163 = vadd.f32 %v990, %v1162
      %v1164 = vpop.f32.mrb[0].mxu0
      %1165 = vmatprep.mubr.bf16.mxu0 0
      %1166 = vmatmul.mubr.bf16.gmra.mrb[0].mxu0 %v880
      %v1167 = vpop.f32.mrb[0].mxu0
      %v1168 = vadd.f32 %v995, %v1167
      %v1169 = vpop.f32.mrb[0].mxu0
      %v1170 = vpop.f32.mrb[0].mxu0
      %v1171 = vadd.f32 %v998, %v1170
      %v1172 = vpop.f32.mrb[0].mxu0
      %1173 = vmatprep.mubr.bf16.mxu0 0
      %1174 = vmatmul.mubr.bf16.gmra.mrb[0].mxu0 %v882
      %v1175 = vpop.f32.mrb[0].mxu0
      %v1176 = vadd.f32 %v1003, %v1175
      %v1177 = vpop.f32.mrb[0].mxu0
      %v1178 = vpop.f32.mrb[0].mxu0
      %v1179 = vadd.f32 %v1006, %v1178
      %v1180 = vpop.f32.mrb[0].mxu0
      %1181 = vmatprep.mubr.bf16.mxu0 0
      %1182 = vmatmul.mubr.bf16.gmra.mrb[0].mxu0 %v884
      %v1183 = vpop.f32.mrb[0].mxu0
      %v1184 = vadd.f32 %v1011, %v1183
      %v1185 = vpop.f32.mrb[0].mxu0
      %v1186 = vpop.f32.mrb[0].mxu0
      %v1187 = vadd.f32 %v1014, %v1186
      %v1188 = vpop.f32.mrb[0].mxu0
      %1189 = vmatprep.mubr.bf16.mxu0 0
      %1190 = vmatmul.mubr.bf16.gmra.mrb[0].mxu0 %v886
      %v1191 = vpop.f32.mrb[0].mxu0
      %v1192 = vadd.f32 %v1019, %v1191
      %v1193 = vpop.f32.mrb[0].mxu0
      %v1194 = vpop.f32.mrb[0].mxu0
      %v1195 = vadd.f32 %v1022, %v1194
      %v1196 = vpop.f32.mrb[0].mxu0
      %1197 = vmatprep.mubr.bf16.mxu0 0
      %1198 = vmatmul.mubr.bf16.gmra.mrb[0].mxu0 %v888
      %v1199 = vpop.f32.mrb[0].mxu0
      %v1200 = vadd.f32 %v1027, %v1199
      %v1201 = vpop.f32.mrb[0].mxu0
      %v1202 = vpop.f32.mrb[0].mxu0
      %v1203 = vadd.f32 %v1030, %v1202
      %v1204 = vpop.f32.mrb[0].mxu0
      %1205 = vmatprep.mubr.bf16.mxu0 0
      %1206 = vmatmul.mubr.bf16.gmra.mrb[0].mxu0 %v890
      %v1207 = vpop.f32.mrb[0].mxu0
      %v1208 = vadd.f32 %v1035, %v1207
      %v1209 = vpop.f32.mrb[0].mxu0
      %v1210 = vpop.f32.mrb[0].mxu0
      %v1211 = vadd.f32 %v1038, %v1210
      %v1212 = vpop.f32.mrb[0].mxu0
      %1213 = vmatprep.mubr.bf16.mxu0 0
      %1214 = vmatmul.mubr.bf16.gmra.mrb[0].mxu0 %v892
      %v1215 = vpop.f32.mrb[0].mxu0
      %v1216 = vadd.f32 %v1043, %v1215
      %v1217 = vpop.f32.mrb[0].mxu0
      %v1218 = vpop.f32.mrb[0].mxu0
      %v1219 = vadd.f32 %v1046, %v1218
      %v1220 = vpop.f32.mrb[0].mxu0
      %1221 = vmatprep.mubr.bf16.mxu0 0
      %1222 = vmatmul.mubr.bf16.gmra.mrb[0].mxu0 %v894
      %v1223 = vpop.f32.mrb[0].mxu0
      %v1224 = vadd.f32 %v1051, %v1223
      %v1225 = vpop.f32.mrb[0].mxu0
      %v1226 = vpop.f32.mrb[0].mxu0
      %v1227 = vadd.f32 %v1054, %v1226
      %v1228 = vpop.f32.mrb[0].mxu0
      %1229 = vmatprep.mubr.bf16.mxu0 0
      %1230 = vmatmul.mubr.bf16.gmra.mrb[0].mxu0 %v896
      %v1231 = vpop.f32.mrb[0].mxu0
      %v1232 = vadd.f32 %v1059, %v1231
      %v1233 = vpop.f32.mrb[0].mxu0
      %v1234 = vpop.f32.mrb[0].mxu0
      %v1235 = vadd.f32 %v1062, %v1234
      %v1236 = vpop.f32.mrb[0].mxu0
      %1237 = vdwg.mxu0
      %s1238 = scalar_lea.vmem %s1, 24
      %v1239 = vld [vmem:[%s1238] sm:$0xf]
      %v1240 = vld [vmem:[%s1238 + $0x4] sm:$0xf]
      %v1241 = vld [vmem:[%s1238 + $0x8] sm:$0xf]
      %v1245 = vunpack.c.l.b16 %v1239
      %v1246 = vunpack.c.l.b16 %v1240
      %v1247 = vunpack.c.l.b16 %v1241
      %v1248 = vpack.c.b16 %v1246, %v1245
      %v1249 = vpack.c.b16 %v1247, %v1247
      %v1252 = vsel %vm900, %v1249, 0
      %1254 = vmatprep.subr.bf16.mxu0 0
      %1255 = vmatpush1.bf16.msra.mxu0 %v1248
      %1256 = vmatprep.subr.bf16.mxu0 0
      %1257 = vmatpush1.bf16.msra.mxu0 %v1252
      %1258 = vmatprep.subr.bf16.mxu0 0
      %1259 = vmatpush1.bf16.msra.mxu0 0
      %1260 = vmatprep.subr.bf16.mxu0 0
      %1261 = vmatpush1.bf16.msra.mxu0 0
      %1262 = vmatprep.subr.bf16.mxu0 0
      %1263 = vmatpush1.bf16.msra.mxu0 0
      %1264 = vmatprep.subr.bf16.mxu0 0
      %1265 = vmatpush1.bf16.msra.mxu0 0
      %1266 = vmatprep.subr.bf16.mxu0 0
      %1267 = vmatpush1.bf16.msra.mxu0 0
      %1268 = vmatprep.subr.bf16.mxu0 0
      %1269 = vmatpush1.bf16.msra.mxu0 0
      %1270 = vmatprep.subr.bf16.mxu0 0
      %1271 = vmatpush1.bf16.msra.mxu0 0
      %1272 = vmatprep.subr.bf16.mxu0 0
      %1273 = vmatpush1.bf16.msra.mxu0 0
      %1274 = vmatprep.subr.bf16.mxu0 0
      %1275 = vmatpush1.bf16.msra.mxu0 0
      %1276 = vmatprep.subr.bf16.mxu0 0
      %1277 = vmatpush1.bf16.msra.mxu0 0
      %1278 = vmatprep.subr.bf16.mxu0 0
      %1279 = vmatpush1.bf16.msra.mxu0 0
      %1280 = vmatprep.subr.bf16.mxu0 0
      %1281 = vmatpush1.bf16.msra.mxu0 0
      %1282 = vmatprep.subr.bf16.mxu0 0
      %1283 = vmatpush1.bf16.msra.mxu0 0
      %1284 = vmatprep.subr.bf16.mxu0 0
      %1285 = vmatpush1.bf16.msra.mxu0 0
      %1286 = vmatprep.mubr.bf16.mxu0 0
      %1287 = vmatmul.mubr.bf16.gmra.mrb[0].mxu0 %v870
      %v1288 = vpop.f32.mrb[0].mxu0
      %v1289 = vadd.f32 0.0, %v1288
      %v1290 = vpop.f32.mrb[0].mxu0
      %v1291 = vpop.f32.mrb[0].mxu0
      %v1292 = vadd.f32 0.0, %v1291
      %v1293 = vpop.f32.mrb[0].mxu0
      %1294 = vmatprep.mubr.bf16.mxu0 0
      %1295 = vmatmul.mubr.bf16.gmra.mrb[0].mxu0 %v872
      %v1296 = vpop.f32.mrb[0].mxu0
      %v1297 = vadd.f32 0.0, %v1296
      %v1298 = vpop.f32.mrb[0].mxu0
      %v1299 = vpop.f32.mrb[0].mxu0
      %v1300 = vadd.f32 0.0, %v1299
      %v1301 = vpop.f32.mrb[0].mxu0
      %1302 = vmatprep.mubr.bf16.mxu0 0
      %1303 = vmatmul.mubr.bf16.gmra.mrb[0].mxu0 %v874
      %v1304 = vpop.f32.mrb[0].mxu0
      %v1305 = vadd.f32 0.0, %v1304
      %v1306 = vpop.f32.mrb[0].mxu0
      %v1307 = vpop.f32.mrb[0].mxu0
      %v1308 = vadd.f32 0.0, %v1307
      %v1309 = vpop.f32.mrb[0].mxu0
      %1310 = vmatprep.mubr.bf16.mxu0 0
      %1311 = vmatmul.mubr.bf16.gmra.mrb[0].mxu0 %v876
      %v1312 = vpop.f32.mrb[0].mxu0
      %v1313 = vadd.f32 0.0, %v1312
      %v1314 = vpop.f32.mrb[0].mxu0
      %v1315 = vpop.f32.mrb[0].mxu0
      %v1316 = vadd.f32 0.0, %v1315
      %v1317 = vpop.f32.mrb[0].mxu0
      %1318 = vmatprep.mubr.bf16.mxu0 0
      %1319 = vmatmul.mubr.bf16.gmra.mrb[0].mxu0 %v878
      %v1320 = vpop.f32.mrb[0].mxu0
      %v1321 = vadd.f32 0.0, %v1320
      %v1322 = vpop.f32.mrb[0].mxu0
      %v1323 = vpop.f32.mrb[0].mxu0
      %v1324 = vadd.f32 0.0, %v1323
      %v1325 = vpop.f32.mrb[0].mxu0
      %1326 = vmatprep.mubr.bf16.mxu0 0
      %1327 = vmatmul.mubr.bf16.gmra.mrb[0].mxu0 %v880
      %v1328 = vpop.f32.mrb[0].mxu0
      %v1329 = vadd.f32 0.0, %v1328
      %v1330 = vpop.f32.mrb[0].mxu0
      %v1331 = vpop.f32.mrb[0].mxu0
      %v1332 = vadd.f32 0.0, %v1331
      %v1333 = vpop.f32.mrb[0].mxu0
      %1334 = vmatprep.mubr.bf16.mxu0 0
      %1335 = vmatmul.mubr.bf16.gmra.mrb[0].mxu0 %v882
      %v1336 = vpop.f32.mrb[0].mxu0
      %v1337 = vadd.f32 0.0, %v1336
      %v1338 = vpop.f32.mrb[0].mxu0
      %v1339 = vpop.f32.mrb[0].mxu0
      %v1340 = vadd.f32 0.0, %v1339
      %v1341 = vpop.f32.mrb[0].mxu0
      %1342 = vmatprep.mubr.bf16.mxu0 0
      %1343 = vmatmul.mubr.bf16.gmra.mrb[0].mxu0 %v884
      %v1344 = vpop.f32.mrb[0].mxu0
      %v1345 = vadd.f32 0.0, %v1344
      %v1346 = vpop.f32.mrb[0].mxu0
      %v1347 = vpop.f32.mrb[0].mxu0
      %v1348 = vadd.f32 0.0, %v1347
      %v1349 = vpop.f32.mrb[0].mxu0
      %1350 = vmatprep.mubr.bf16.mxu0 0
      %1351 = vmatmul.mubr.bf16.gmra.mrb[0].mxu0 %v886
      %v1352 = vpop.f32.mrb[0].mxu0
      %v1353 = vadd.f32 0.0, %v1352
      %v1354 = vpop.f32.mrb[0].mxu0
      %v1355 = vpop.f32.mrb[0].mxu0
      %v1356 = vadd.f32 0.0, %v1355
      %v1357 = vpop.f32.mrb[0].mxu0
      %1358 = vmatprep.mubr.bf16.mxu0 0
      %1359 = vmatmul.mubr.bf16.gmra.mrb[0].mxu0 %v888
      %v1360 = vpop.f32.mrb[0].mxu0
      %v1361 = vadd.f32 0.0, %v1360
      %v1362 = vpop.f32.mrb[0].mxu0
      %v1363 = vpop.f32.mrb[0].mxu0
      %v1364 = vadd.f32 0.0, %v1363
      %v1365 = vpop.f32.mrb[0].mxu0
      %1366 = vmatprep.mubr.bf16.mxu0 0
      %1367 = vmatmul.mubr.bf16.gmra.mrb[0].mxu0 %v890
      %v1368 = vpop.f32.mrb[0].mxu0
      %v1369 = vadd.f32 0.0, %v1368
      %v1370 = vpop.f32.mrb[0].mxu0
      %v1371 = vpop.f32.mrb[0].mxu0
      %v1372 = vadd.f32 0.0, %v1371
      %v1373 = vpop.f32.mrb[0].mxu0
      %1374 = vmatprep.mubr.bf16.mxu0 0
      %1375 = vmatmul.mubr.bf16.gmra.mrb[0].mxu0 %v892
      %v1376 = vpop.f32.mrb[0].mxu0
      %v1377 = vadd.f32 0.0, %v1376
      %v1378 = vpop.f32.mrb[0].mxu0
      %v1379 = vpop.f32.mrb[0].mxu0
      %v1380 = vadd.f32 0.0, %v1379
      %v1381 = vpop.f32.mrb[0].mxu0
      %1382 = vmatprep.mubr.bf16.mxu0 0
      %1383 = vmatmul.mubr.bf16.gmra.mrb[0].mxu0 %v894
      %v1384 = vpop.f32.mrb[0].mxu0
      %v1385 = vadd.f32 0.0, %v1384
      %v1386 = vpop.f32.mrb[0].mxu0
      %v1387 = vpop.f32.mrb[0].mxu0
      %v1388 = vadd.f32 0.0, %v1387
      %v1389 = vpop.f32.mrb[0].mxu0
      %1390 = vmatprep.mubr.bf16.mxu0 0
      %1391 = vmatmul.mubr.bf16.gmra.mrb[0].mxu0 %v896
      %v1392 = vpop.f32.mrb[0].mxu0
      %v1393 = vadd.f32 0.0, %v1392
      %v1394 = vpop.f32.mrb[0].mxu0
      %v1395 = vpop.f32.mrb[0].mxu0
      %v1396 = vadd.f32 0.0, %v1395
      %v1397 = vpop.f32.mrb[0].mxu0
      %1398 = vmatprep.mubr.bf16.mxu0 0
      %1399 = vmatmul.mubr.bf16.gmra.mrb[0].mxu0 %v898
      %v1400 = vpop.f32.mrb[0].mxu0
      %v1401 = vadd.f32 0.0, %v1400
      %v1402 = vpop.f32.mrb[0].mxu0
      %v1403 = vpop.f32.mrb[0].mxu0
      %v1404 = vadd.f32 0.0, %v1403
      %v1405 = vpop.f32.mrb[0].mxu0
      %1406 = vmatprep.mubr.bf16.mxu0 0
      %1407 = vmatmul.mubr.bf16.gmra.mrb[0].mxu0 %v898
      %v1408 = vpop.f32.mrb[0].mxu0
      %v1409 = vadd.f32 0.0, %v1408
      %v1410 = vpop.f32.mrb[0].mxu0
      %v1411 = vpop.f32.mrb[0].mxu0
      %v1412 = vadd.f32 0.0, %v1411
      %v1413 = vpop.f32.mrb[0].mxu0
      %1414 = vdwg.mxu0
      %v1415 = vadd.f32 %v1112, %v1289
      %v1416 = vadd.f32 %v1115, %v1292
      %v1417 = vadd.f32 %v1120, %v1297
      %v1418 = vadd.f32 %v1123, %v1300
      %v1419 = vadd.f32 %v1128, %v1305
      %v1420 = vadd.f32 %v1131, %v1308
      %v1421 = vadd.f32 %v1136, %v1313
      %v1422 = vadd.f32 %v1139, %v1316
      %v1423 = vadd.f32 %v1144, %v1321
      %v1424 = vadd.f32 %v1147, %v1324
      %v1425 = vadd.f32 %v1152, %v1329
      %v1426 = vadd.f32 %v1155, %v1332
      %v1427 = vadd.f32 %v1160, %v1337
      %v1428 = vadd.f32 %v1163, %v1340
      %v1429 = vadd.f32 %v1168, %v1345
      %v1430 = vadd.f32 %v1171, %v1348
      %v1431 = vadd.f32 %v1176, %v1353
      %v1432 = vadd.f32 %v1179, %v1356
      %v1433 = vadd.f32 %v1184, %v1361
      %v1434 = vadd.f32 %v1187, %v1364
      %v1435 = vadd.f32 %v1192, %v1369
      %v1436 = vadd.f32 %v1195, %v1372
      %v1437 = vadd.f32 %v1200, %v1377
      %v1438 = vadd.f32 %v1203, %v1380
      %v1439 = vadd.f32 %v1208, %v1385
      %v1440 = vadd.f32 %v1211, %v1388
      %v1441 = vadd.f32 %v1216, %v1393
      %v1442 = vadd.f32 %v1219, %v1396
      %v1443 = vadd.f32 %v1224, %v1401
      %v1444 = vadd.f32 %v1227, %v1404
      %v1445 = vadd.f32 %v1232, %v1409
      %v1446 = vadd.f32 %v1235, %v1412
      %v1447 = vld [vmem:[%s2] sm:$0x1]
      %v1449 = vlaneseq
      %v1450 = vshrl.u32 %v1449, 7
      %v1451 = vsub.s32 0, %v1450
      %v1452 = vrot.slane %v1447, %v1451
      %v1454 = vadd.f32 %v1415, %v1452
      %v1455 = vadd.f32 %v1416, %v1452
      %v1456 = vadd.f32 %v1417, %v1452
      %v1457 = vadd.f32 %v1418, %v1452
      %v1458 = vadd.f32 %v1419, %v1452
      %v1459 = vadd.f32 %v1420, %v1452
      %v1460 = vadd.f32 %v1421, %v1452
      %v1461 = vadd.f32 %v1422, %v1452
      %v1462 = vadd.f32 %v1423, %v1452
      %v1463 = vadd.f32 %v1424, %v1452
      %v1464 = vadd.f32 %v1425, %v1452
      %v1465 = vadd.f32 %v1426, %v1452
      %v1466 = vadd.f32 %v1427, %v1452
      %v1467 = vadd.f32 %v1428, %v1452
      %v1468 = vadd.f32 %v1429, %v1452
      %v1469 = vadd.f32 %v1430, %v1452
      %v1470 = vadd.f32 %v1431, %v1452
      %v1471 = vadd.f32 %v1432, %v1452
      %v1472 = vadd.f32 %v1433, %v1452
      %v1473 = vadd.f32 %v1434, %v1452
      %v1474 = vadd.f32 %v1435, %v1452
      %v1475 = vadd.f32 %v1436, %v1452
      %v1476 = vadd.f32 %v1437, %v1452
      %v1477 = vadd.f32 %v1438, %v1452
      %v1478 = vadd.f32 %v1439, %v1452
      %v1479 = vadd.f32 %v1440, %v1452
      %v1480 = vadd.f32 %v1441, %v1452
      %v1481 = vadd.f32 %v1442, %v1452
      %v1482 = vadd.f32 %v1443, %v1452
      %v1483 = vadd.f32 %v1444, %v1452
      %v1484 = vadd.f32 %v1445, %v1452
      %v1485 = vadd.f32 %v1446, %v1452
      %vm1486 = vcmp.gt.f32.partialorder %v1454, 0.0
      %vm1487 = vcmp.gt.f32.partialorder %v1455, 0.0
      %vm1488 = vcmp.gt.f32.partialorder %v1456, 0.0
      %vm1489 = vcmp.gt.f32.partialorder %v1457, 0.0
      %vm1490 = vcmp.gt.f32.partialorder %v1458, 0.0
      %vm1491 = vcmp.gt.f32.partialorder %v1459, 0.0
      %vm1492 = vcmp.gt.f32.partialorder %v1460, 0.0
      %vm1493 = vcmp.gt.f32.partialorder %v1461, 0.0
      %vm1494 = vcmp.gt.f32.partialorder %v1462, 0.0
      %vm1495 = vcmp.gt.f32.partialorder %v1463, 0.0
      %vm1496 = vcmp.gt.f32.partialorder %v1464, 0.0
      %vm1497 = vcmp.gt.f32.partialorder %v1465, 0.0
      %vm1498 = vcmp.gt.f32.partialorder %v1466, 0.0
      %vm1499 = vcmp.gt.f32.partialorder %v1467, 0.0
      %vm1500 = vcmp.gt.f32.partialorder %v1468, 0.0
      %vm1501 = vcmp.gt.f32.partialorder %v1469, 0.0
      %vm1502 = vcmp.gt.f32.partialorder %v1470, 0.0
      %vm1503 = vcmp.gt.f32.partialorder %v1471, 0.0
      %vm1504 = vcmp.gt.f32.partialorder %v1472, 0.0
      %vm1505 = vcmp.gt.f32.partialorder %v1473, 0.0
      %vm1506 = vcmp.gt.f32.partialorder %v1474, 0.0
      %vm1507 = vcmp.gt.f32.partialorder %v1475, 0.0
      %vm1508 = vcmp.gt.f32.partialorder %v1476, 0.0
      %vm1509 = vcmp.gt.f32.partialorder %v1477, 0.0
      %vm1510 = vcmp.gt.f32.partialorder %v1478, 0.0
      %vm1511 = vcmp.gt.f32.partialorder %v1479, 0.0
      %vm1512 = vcmp.gt.f32.partialorder %v1480, 0.0
      %vm1513 = vcmp.gt.f32.partialorder %v1481, 0.0
      %vm1514 = vcmp.gt.f32.partialorder %v1482, 0.0
      %vm1515 = vcmp.gt.f32.partialorder %v1483, 0.0
      %vm1516 = vcmp.gt.f32.partialorder %v1484, 0.0
      %vm1517 = vcmp.gt.f32.partialorder %v1485, 0.0
      %v1518 = vmin.f32 %v1454, 0.0
      %v1519 = vmin.f32 %v1455, 0.0
      %v1520 = vmin.f32 %v1456, 0.0
      %v1521 = vmin.f32 %v1457, 0.0
      %v1522 = vmin.f32 %v1458, 0.0
      %v1523 = vmin.f32 %v1459, 0.0
      %v1524 = vmin.f32 %v1460, 0.0
      %v1525 = vmin.f32 %v1461, 0.0
      %v1526 = vmin.f32 %v1462, 0.0
      %v1527 = vmin.f32 %v1463, 0.0
      %v1528 = vmin.f32 %v1464, 0.0
      %v1529 = vmin.f32 %v1465, 0.0
      %v1530 = vmin.f32 %v1466, 0.0
      %v1531 = vmin.f32 %v1467, 0.0
      %v1532 = vmin.f32 %v1468, 0.0
      %v1533 = vmin.f32 %v1469, 0.0
      %v1534 = vmin.f32 %v1470, 0.0
      %v1535 = vmin.f32 %v1471, 0.0
      %v1536 = vmin.f32 %v1472, 0.0
      %v1537 = vmin.f32 %v1473, 0.0
      %v1538 = vmin.f32 %v1474, 0.0
      %v1539 = vmin.f32 %v1475, 0.0
      %v1540 = vmin.f32 %v1476, 0.0
      %v1541 = vmin.f32 %v1477, 0.0
      %v1542 = vmin.f32 %v1478, 0.0
      %v1543 = vmin.f32 %v1479, 0.0
      %v1544 = vmin.f32 %v1480, 0.0
      %v1545 = vmin.f32 %v1481, 0.0
      %v1546 = vmin.f32 %v1482, 0.0
      %v1547 = vmin.f32 %v1483, 0.0
      %v1548 = vmin.f32 %v1484, 0.0
      %v1549 = vmin.f32 %v1485, 0.0
      %v1550 = vmul.f32 %v1518, 1.442695
      %v1551 = vpow.pop %v1550
      %v1552 = vmul.f32 %v1519, 1.442695
      %v1553 = vpow.pop %v1552
      %v1554 = vmul.f32 %v1520, 1.442695
      %v1555 = vpow.pop %v1554
      %v1556 = vmul.f32 %v1521, 1.442695
      %v1557 = vpow.pop %v1556
      %v1558 = vmul.f32 %v1522, 1.442695
      %v1559 = vpow.pop %v1558
      %v1560 = vmul.f32 %v1523, 1.442695
      %v1561 = vpow.pop %v1560
      %v1562 = vmul.f32 %v1524, 1.442695
      %v1563 = vpow.pop %v1562
      %v1564 = vmul.f32 %v1525, 1.442695
      %v1565 = vpow.pop %v1564
      %v1566 = vmul.f32 %v1526, 1.442695
      %v1567 = vpow.pop %v1566
      %v1568 = vmul.f32 %v1527, 1.442695
      %v1569 = vpow.pop %v1568
      %v1570 = vmul.f32 %v1528, 1.442695
      %v1571 = vpow.pop %v1570
      %v1572 = vmul.f32 %v1529, 1.442695
      %v1573 = vpow.pop %v1572
      %v1574 = vmul.f32 %v1530, 1.442695
      %v1575 = vpow.pop %v1574
      %v1576 = vmul.f32 %v1531, 1.442695
      %v1577 = vpow.pop %v1576
      %v1578 = vmul.f32 %v1532, 1.442695
      %v1579 = vpow.pop %v1578
      %v1580 = vmul.f32 %v1533, 1.442695
      %v1581 = vpow.pop %v1580
      %v1582 = vmul.f32 %v1534, 1.442695
      %v1583 = vpow.pop %v1582
      %v1584 = vmul.f32 %v1535, 1.442695
      %v1585 = vpow.pop %v1584
      %v1586 = vmul.f32 %v1536, 1.442695
      %v1587 = vpow.pop %v1586
      %v1588 = vmul.f32 %v1537, 1.442695
      %v1589 = vpow.pop %v1588
      %v1590 = vmul.f32 %v1538, 1.442695
      %v1591 = vpow.pop %v1590
      %v1592 = vmul.f32 %v1539, 1.442695
      %v1593 = vpow.pop %v1592
      %v1594 = vmul.f32 %v1540, 1.442695
      %v1595 = vpow.pop %v1594
      %v1596 = vmul.f32 %v1541, 1.442695
      %v1597 = vpow.pop %v1596
      %v1598 = vmul.f32 %v1542, 1.442695
      %v1599 = vpow.pop %v1598
      %v1600 = vmul.f32 %v1543, 1.442695
      %v1601 = vpow.pop %v1600
      %v1602 = vmul.f32 %v1544, 1.442695
      %v1603 = vpow.pop %v1602
      %v1604 = vmul.f32 %v1545, 1.442695
      %v1605 = vpow.pop %v1604
      %v1606 = vmul.f32 %v1546, 1.442695
      %v1607 = vpow.pop %v1606
      %v1608 = vmul.f32 %v1547, 1.442695
      %v1609 = vpow.pop %v1608
      %v1610 = vmul.f32 %v1548, 1.442695
      %v1611 = vpow.pop %v1610
      %v1612 = vmul.f32 %v1549, 1.442695
      %v1613 = vpow.pop %v1612
      %v1614 = vsub.f32 %v1551, 1.0
      %v1615 = vsub.f32 %v1553, 1.0
      %v1616 = vsub.f32 %v1555, 1.0
      %v1617 = vsub.f32 %v1557, 1.0
      %v1618 = vsub.f32 %v1559, 1.0
      %v1619 = vsub.f32 %v1561, 1.0
      %v1620 = vsub.f32 %v1563, 1.0
      %v1621 = vsub.f32 %v1565, 1.0
      %v1622 = vsub.f32 %v1567, 1.0
      %v1623 = vsub.f32 %v1569, 1.0
      %v1624 = vsub.f32 %v1571, 1.0
      %v1625 = vsub.f32 %v1573, 1.0
      %v1626 = vsub.f32 %v1575, 1.0
      %v1627 = vsub.f32 %v1577, 1.0
      %v1628 = vsub.f32 %v1579, 1.0
      %v1629 = vsub.f32 %v1581, 1.0
      %v1630 = vsub.f32 %v1583, 1.0
      %v1631 = vsub.f32 %v1585, 1.0
      %v1632 = vsub.f32 %v1587, 1.0
      %v1633 = vsub.f32 %v1589, 1.0
      %v1634 = vsub.f32 %v1591, 1.0
      %v1635 = vsub.f32 %v1593, 1.0
      %v1636 = vsub.f32 %v1595, 1.0
      %v1637 = vsub.f32 %v1597, 1.0
      %v1638 = vsub.f32 %v1599, 1.0
      %v1639 = vsub.f32 %v1601, 1.0
      %v1640 = vsub.f32 %v1603, 1.0
      %v1641 = vsub.f32 %v1605, 1.0
      %v1642 = vsub.f32 %v1607, 1.0
      %v1643 = vsub.f32 %v1609, 1.0
      %v1644 = vsub.f32 %v1611, 1.0
      %v1645 = vsub.f32 %v1613, 1.0
      %v1646 = vsel %vm1486, %v1454, %v1614
      %v1647 = vsel %vm1487, %v1455, %v1615
      %v1648 = vsel %vm1488, %v1456, %v1616
      %v1649 = vsel %vm1489, %v1457, %v1617
      %v1650 = vsel %vm1490, %v1458, %v1618
      %v1651 = vsel %vm1491, %v1459, %v1619
      %v1652 = vsel %vm1492, %v1460, %v1620
      %v1653 = vsel %vm1493, %v1461, %v1621
      %v1654 = vsel %vm1494, %v1462, %v1622
      %v1655 = vsel %vm1495, %v1463, %v1623
      %v1656 = vsel %vm1496, %v1464, %v1624
      %v1657 = vsel %vm1497, %v1465, %v1625
      %v1658 = vsel %vm1498, %v1466, %v1626
      %v1659 = vsel %vm1499, %v1467, %v1627
      %v1660 = vsel %vm1500, %v1468, %v1628
      %v1661 = vsel %vm1501, %v1469, %v1629
      %v1662 = vsel %vm1502, %v1470, %v1630
      %v1663 = vsel %vm1503, %v1471, %v1631
      %v1664 = vsel %vm1504, %v1472, %v1632
      %v1665 = vsel %vm1505, %v1473, %v1633
      %v1666 = vsel %vm1506, %v1474, %v1634
      %v1667 = vsel %vm1507, %v1475, %v1635
      %v1668 = vsel %vm1508, %v1476, %v1636
      %v1669 = vsel %vm1509, %v1477, %v1637
      %v1670 = vsel %vm1510, %v1478, %v1638
      %v1671 = vsel %vm1511, %v1479, %v1639
      %v1672 = vsel %vm1512, %v1480, %v1640
      %v1673 = vsel %vm1513, %v1481, %v1641
      %v1674 = vsel %vm1514, %v1482, %v1642
      %v1675 = vsel %vm1515, %v1483, %v1643
      %v1676 = vsel %vm1516, %v1484, %v1644
      %v1677 = vsel %vm1517, %v1485, %v1645
      %1678 = vst.msk [vmem:[%s170] sm:$0xff] %vm795, %v1646
      %1679 = vst.msk [vmem:[%s170 + $0x8] sm:$0xff] %vm795, %v1647
      %1680 = vst.msk [vmem:[%s170 + $0x10] sm:$0xff] %vm795, %v1648
      %1681 = vst.msk [vmem:[%s170 + $0x18] sm:$0xff] %vm795, %v1649
      %1682 = vst.msk [vmem:[%s170 + $0x20] sm:$0xff] %vm795, %v1650
      %1683 = vst.msk [vmem:[%s170 + $0x28] sm:$0xff] %vm795, %v1651
      %1684 = vst.msk [vmem:[%s170 + $0x30] sm:$0xff] %vm795, %v1652
      %1685 = vst.msk [vmem:[%s170 + $0x38] sm:$0xff] %vm795, %v1653
      %1686 = vst.msk [vmem:[%s170 + $0x40] sm:$0xff] %vm795, %v1654
      %1687 = vst.msk [vmem:[%s170 + $0x48] sm:$0xff] %vm795, %v1655
      %1688 = vst.msk [vmem:[%s170 + $0x50] sm:$0xff] %vm795, %v1656
      %1689 = vst.msk [vmem:[%s170 + $0x58] sm:$0xff] %vm795, %v1657
      %1690 = vst.msk [vmem:[%s170 + $0x60] sm:$0xff] %vm795, %v1658
      %1691 = vst.msk [vmem:[%s170 + $0x68] sm:$0xff] %vm795, %v1659
      %1692 = vst.msk [vmem:[%s170 + $0x70] sm:$0xff] %vm795, %v1660
      %1693 = vst.msk [vmem:[%s170 + $0x78] sm:$0xff] %vm795, %v1661
      %1694 = vst.msk [vmem:[%s170 + $0x80] sm:$0xff] %vm795, %v1662
      %1695 = vst.msk [vmem:[%s170 + $0x88] sm:$0xff] %vm795, %v1663
      %1696 = vst.msk [vmem:[%s170 + $0x90] sm:$0xff] %vm795, %v1664
      %1697 = vst.msk [vmem:[%s170 + $0x98] sm:$0xff] %vm795, %v1665
      %1698 = vst.msk [vmem:[%s170 + $0xa0] sm:$0xff] %vm795, %v1666
      %1699 = vst.msk [vmem:[%s170 + $0xa8] sm:$0xff] %vm795, %v1667
      %1700 = vst.msk [vmem:[%s170 + $0xb0] sm:$0xff] %vm795, %v1668
      %1701 = vst.msk [vmem:[%s170 + $0xb8] sm:$0xff] %vm795, %v1669
      %1702 = vst.msk [vmem:[%s170 + $0xc0] sm:$0xff] %vm795, %v1670
      %1703 = vst.msk [vmem:[%s170 + $0xc8] sm:$0xff] %vm795, %v1671
      %1704 = vst.msk [vmem:[%s170 + $0xd0] sm:$0xff] %vm795, %v1672
      %1705 = vst.msk [vmem:[%s170 + $0xd8] sm:$0xff] %vm795, %v1673
      %1706 = vst.msk [vmem:[%s170 + $0xe0] sm:$0xff] %vm795, %v1674
      %1707 = vst.msk [vmem:[%s170 + $0xe8] sm:$0xff] %vm795, %v1675
      %1708 = vst.msk [vmem:[%s170 + $0xf0] sm:$0xff] %vm795, %v1676
      %1709 = vst.msk [vmem:[%s170 + $0xf8] sm:$0xff] %vm795, %v1677
      %p1710 = scmp.lt.s32.totalorder %s14, 1
      %s1711 = scalar_select %p1710, %s14, 1
      %s1712 = smul.addr %s1711, 32
      %s1713 = smul.addr %s1712, 8
      %s1714 = scalar_lea.vmem %s3, %s1713
      // Predicated region
      $region33: #{_lambda_.12} parent=31 // pred_check
        %p1715 = pneg %p100
      $region34: #{_lambda_.12} parent=31 // pred_check_branch
        %1717 = sbr.rel (%p1715) target = $region36
      $region35: #{_lambda_.12} parent=31 // pred_region
        _
      $region36: #{_lambda_.12} parent=31 // pred_fallthru
        _
    $region32: #{_lambda_.12} parent=5 // pred_fallthru
      _
    %p1718 = scmp.le.s32.totalorder 2, %s9
    // Predicated region
    $region37: #{_lambda_.12} parent=5 // pred_check
      %p1719 = pneg %p1718
    $region38: #{_lambda_.12} parent=5 // pred_check_branch
      %1721 = sbr.rel (%p1719) target = $region40
    $region39: #{_lambda_.12} parent=5 // pred_region
      %s1722 = ssub.s32 %s9, 2
      // Predicated region
      $region41: #{_lambda_.12} parent=39 // pred_check
        %p1723 = pneg %p106
      $region42: #{_lambda_.12} parent=39 // pred_check_branch
        %1725 = sbr.rel (%p1723) target = $region44
      $region43: #{_lambda_.12} parent=39 // pred_region
        %p1726 = scmp.lt.s32.totalorder %s15, 1
        %s1727 = scalar_select %p1726, %s15, 1
        %s1728 = smul.addr %s1727, 32
        %s1729 = smul.addr %s1728, 8
        %s1730 = scalar_lea.vmem %s3, %s1729
      $region44: #{_lambda_.12} parent=39 // pred_fallthru
        _
    $region40: #{_lambda_.12} parent=5 // pred_fallthru
      _
  $region6: #{_lambda_.12} parent=0 // loop_footer
    %s13 = sadd.s32 1, %s9
  $region7: #{_lambda_.12} parent=0 // loop_footer_branch
    %8 = sbr.rel target = $region3
  $region8: #{_lambda_.12} parent=0 // loop_exit
    _

// kernel: _lambda_.13
$region0: #{_lambda_.13}
  #allocation0 [shape = 'u32[]', space=smem, size = 0x4, offset = 0x4, fixed_abs, tag = 'smem constant byte address 0x4 - core index']
  #allocation1 [shape = 'u32[144,128]{1,0:T(1,128)}', space=vmem, size = 0x12000, scoped, tag = 'internal scratch']
  %s0 = inlined_call_operand.vmem [shape: f32[2,16,16,16], index: 0, kind: input, shape index: {}]
  %s1 = inlined_call_operand.vmem [shape: bf16[3,48,32], index: 1, kind: input, shape index: {}]
  %s2 = inlined_call_operand.vmem [shape: f32[1,32], index: 2, kind: input, shape index: {}]
  %s3 = inlined_call_operand.vmem [shape: f32[2,4,16], index: 3, kind: output, shape index: {}]
  %s4 = sld [smem:[#allocation0]]
  $region45: #{_lambda_.13} parent=0
    _
  %s6 = ssub.s32 1, %s4
  %s7 = scalar_select 0, %s6, %s4
  loop: start=0, step=1, limit=4
  $region2: #{_lambda_.13} parent=0 // loop_pre_header
    _
  $region3: #{_lambda_.13} parent=0 // loop_header
    %s9 = sphi 0, %s13
    %p10 = scmp.ge.s32.totalorder %s9, 4
    %s19 = sphi 0, %s21
    %s22 = sphi 0, %s19
    %s23 = sphi 0, %s22
    %s39 = sphi 0, %s23
    %s43 = sphi 0, %s43
    %s45 = sphi 0, %s43
    %s46 = sphi 0, %s45
    %s60 = sphi 0, %s46
    %s64 = sphi 0, %s64
    %s66 = sphi 0, %s64
    %s67 = sphi 0, %s66
    %s81 = sphi 0, %s67
    %s87 = sphi 0, %s89
    %s90 = sphi 0, %s87
    %s91 = sphi 0, %s90
    %s107 = sphi 0, %s91
  $region4: #{_lambda_.13} parent=0 // loop_header_branch
    %12 = sbr.rel (%p10) target = $region8
  $region5: #{_lambda_.13} parent=0 // loop_body
    %s14 = ssub.s32 %s9, 1
    %s15 = ssub.s32 %s9, 2
    %s16 = sadd.s32 %s9, 1
    %s17 = ssub.s32 %s9, %s16
    %p18 = scmp.eq.s32.totalorder %s17, 0
    %s20 = sadd.s32 %s19, 1
    %s21 = scalar_select %p18, %s19, %s20
    %p24 = pneg %p18
    %p25 = scmp.eq.s32.totalorder %s9, 1
    %p26 = por %p24, %p25
    %p27 = scmp.ne.s32.totalorder %s19, %s22
    %p28 = scmp.eq.s32.totalorder %s9, 0
    %p29 = por %p27, %p28
    %p30 = scmp.ne.s32.totalorder %s19, %s22
    %p31 = scmp.eq.s32.totalorder %s14, 1
    %p32 = por %p30, %p31
    %p33 = scmp.ne.s32.totalorder %s22, %s23
    %p34 = scmp.eq.s32.totalorder %s14, 0
    %p35 = por %p33, %p34
    %p36 = scmp.ne.s32.totalorder %s22, %s23
    %p37 = scmp.eq.s32.totalorder %s15, 1
    %p38 = por %p36, %p37
    %p40 = scmp.ne.s32.totalorder %s23, %s39
    %p41 = scmp.eq.s32.totalorder %s15, 0
    %p42 = por %p40, %p41
    %s44 = sadd.s32 %s43, 1
    %p47 = scmp.eq.s32.totalorder %s9, 1
    %p48 = scmp.ne.s32.totalorder %s43, %s45
    %p49 = scmp.eq.s32.totalorder %s9, 0
    %p50 = por %p48, %p49
    %p51 = scmp.ne.s32.totalorder %s43, %s45
    %p52 = scmp.eq.s32.totalorder %s14, 1
    %p53 = por %p51, %p52
    %p54 = scmp.ne.s32.totalorder %s45, %s46
    %p55 = scmp.eq.s32.totalorder %s14, 0
    %p56 = por %p54, %p55
    %p57 = scmp.ne.s32.totalorder %s45, %s46
    %p58 = scmp.eq.s32.totalorder %s15, 1
    %p59 = por %p57, %p58
    %p61 = scmp.ne.s32.totalorder %s46, %s60
    %p62 = scmp.eq.s32.totalorder %s15, 0
    %p63 = por %p61, %p62
    %s65 = sadd.s32 %s64, 1
    %p68 = scmp.eq.s32.totalorder %s9, 1
    %p69 = scmp.ne.s32.totalorder %s64, %s66
    %p70 = scmp.eq.s32.totalorder %s9, 0
    %p71 = por %p69, %p70
    %p72 = scmp.ne.s32.totalorder %s64, %s66
    %p73 = scmp.eq.s32.totalorder %s14, 1
    %p74 = por %p72, %p73
    %p75 = scmp.ne.s32.totalorder %s66, %s67
    %p76 = scmp.eq.s32.totalorder %s14, 0
    %p77 = por %p75, %p76
    %p78 = scmp.ne.s32.totalorder %s66, %s67
    %p79 = scmp.eq.s32.totalorder %s15, 1
    %p80 = por %p78, %p79
    %p82 = scmp.ne.s32.totalorder %s67, %s81
    %p83 = scmp.eq.s32.totalorder %s15, 0
    %p84 = por %p82, %p83
    %s85 = ssub.s32 %s9, %s16
    %p86 = scmp.eq.s32.totalorder %s85, 0
    %s88 = sadd.s32 %s87, 1
    %s89 = scalar_select %p86, %s87, %s88
    %p92 = pneg %p86
    %p93 = scmp.eq.s32.totalorder %s9, 1
    %p94 = por %p92, %p93
    %p95 = scmp.ne.s32.totalorder %s87, %s90
    %p96 = scmp.eq.s32.totalorder %s9, 0
    %p97 = por %p95, %p96
    %p98 = scmp.ne.s32.totalorder %s87, %s90
    %p99 = scmp.eq.s32.totalorder %s14, 1
    %p100 = por %p98, %p99
    %p101 = scmp.ne.s32.totalorder %s90, %s91
    %p102 = scmp.eq.s32.totalorder %s14, 0
    %p103 = por %p101, %p102
    %p104 = scmp.ne.s32.totalorder %s90, %s91
    %p105 = scmp.eq.s32.totalorder %s15, 1
    %p106 = por %p104, %p105
    %p108 = scmp.ne.s32.totalorder %s91, %s107
    %p109 = scmp.eq.s32.totalorder %s15, 0
    %p110 = por %p108, %p109
    %p111 = scmp.le.s32.totalorder 1, %s9
    %p112 = scmp.lt.s32.totalorder %s9, 3
    %p113 = pnand %p111, %p112
    %p114 = pneg %p113
    // Predicated region
    $region9: #{_lambda_.13} parent=5 // pred_check
      _
    $region10: #{_lambda_.13} parent=5 // pred_check_branch
      %116 = sbr.rel (%p113) target = $region12
    $region11: #{_lambda_.13} parent=5 // pred_region
      %s117 = ssub.s32 %s9, 1
      // Predicated region
      $region13: #{_lambda_.13} parent=11 // pred_check
        %p118 = pneg %p56
      $region14: #{_lambda_.13} parent=11 // pred_check_branch
        %120 = sbr.rel (%p118) target = $region16
      $region15: #{_lambda_.13} parent=11 // pred_region
        _
      $region16: #{_lambda_.13} parent=11 // pred_fallthru
        _
      // Predicated region
      $region17: #{_lambda_.13} parent=11 // pred_check
        %p121 = pneg %p77
      $region18: #{_lambda_.13} parent=11 // pred_check_branch
        %123 = sbr.rel (%p121) target = $region20
      $region19: #{_lambda_.13} parent=11 // pred_region
        _
      $region20: #{_lambda_.13} parent=11 // pred_fallthru
        _
    $region12: #{_lambda_.13} parent=5 // pred_fallthru
      _
    %p124 = scmp.lt.s32.totalorder %s9, 2
    // Predicated region
    $region21: #{_lambda_.13} parent=5 // pred_check
      %p125 = pneg %p124
    $region22: #{_lambda_.13} parent=5 // pred_check_branch
      %127 = sbr.rel (%p125) target = $region24
    $region23: #{_lambda_.13} parent=5 // pred_region
      // Predicated region
      $region25: #{_lambda_.13} parent=23 // pred_check
        %p128 = pneg %p29
      $region26: #{_lambda_.13} parent=23 // pred_check_branch
        %130 = sbr.rel (%p128) target = $region28
      $region27: #{_lambda_.13} parent=23 // pred_region
        %p131 = scmp.lt.s32.totalorder %s9, 1
        %s132 = scalar_select %p131, %s9, 1
        %s133 = smul.addr %s132, 32
        %s134 = smul.addr %s133, 8
        %s135 = scalar_lea.vmem %s0, %s134
      $region28: #{_lambda_.13} parent=23 // pred_fallthru
        _
    $region24: #{_lambda_.13} parent=5 // pred_fallthru
      _
    %p136 = scmp.le.s32.totalorder 1, %s9
    %p137 = scmp.lt.s32.totalorder %s9, 3
    %p138 = pnand %p136, %p137
    %p139 = pneg %p138
    // Predicated region
    $region29: #{_lambda_.13} parent=5 // pred_check
      _
    $region30: #{_lambda_.13} parent=5 // pred_check_branch
      %141 = sbr.rel (%p138) target = $region32
    $region31: #{_lambda_.13} parent=5 // pred_region
      %s142 = ssub.s32 %s9, 1
      %p143 = scmp.lt.s32.totalorder %s14, 1
      %s144 = scalar_select %p143, %s14, 1
      %s145 = smul.addr %s144, 32
      %s146 = smul.addr %s145, 8
      %s147 = scalar_lea.vmem %s0, %s146
      %p148 = pneg %p35
      %p149 = pneg %p32
      %p150 = pneg %p56
      %p151 = pneg %p53
      %p152 = pneg %p77
      %p153 = pneg %p74
      %p154 = pneg %p103
      %p155 = pneg %p100
      %p156 = scmp.lt.s32.totalorder %s14, 1
      %s157 = scalar_select %p156, %s14, 1
      %s158 = smul.addr %s157, 4
      %s159 = scalar_lea.vmem %s3, %s158
      %p160 = scmp.lt.s32.totalorder %s14, 1
      %s161 = scalar_select %p160, %s14, 1
      %s162 = smul.addr %s161, 32
      %s163 = smul.addr %s162, 8
      %s164 = scalar_lea.vmem %s0, %s163
      %p165 = scmp.lt.s32.totalorder %s14, 1
      %s166 = scalar_select %p165, %s14, 1
      %s167 = smul.addr %s166, 4
      %s168 = scalar_lea.vmem %s3, %s167
      %v170 = vld [vmem:[%s164] sm:$0xff]
      %v171 = vld [vmem:[%s164 + $0x8] sm:$0xff]
      %v172 = vld [vmem:[%s164 + $0x10] sm:$0xff]
      %v173 = vld [vmem:[%s164 + $0x18] sm:$0xff]
      %v174 = vld [vmem:[%s164 + $0x20] sm:$0xff]
      %v175 = vld [vmem:[%s164 + $0x28] sm:$0xff]
      %v176 = vld [vmem:[%s164 + $0x30] sm:$0xff]
      %v177 = vld [vmem:[%s164 + $0x38] sm:$0xff]
      %v178 = vld [vmem:[%s164 + $0x40] sm:$0xff]
      %v179 = vld [vmem:[%s164 + $0x48] sm:$0xff]
      %v180 = vld [vmem:[%s164 + $0x50] sm:$0xff]
      %v181 = vld [vmem:[%s164 + $0x58] sm:$0xff]
      %v182 = vld [vmem:[%s164 + $0x60] sm:$0xff]
      %v183 = vld [vmem:[%s164 + $0x68] sm:$0xff]
      %v184 = vld [vmem:[%s164 + $0x70] sm:$0xff]
      %v185 = vld [vmem:[%s164 + $0x78] sm:$0xff]
      %v186 = vld [vmem:[%s164 + $0x80] sm:$0xff]
      %v187 = vld [vmem:[%s164 + $0x88] sm:$0xff]
      %v188 = vld [vmem:[%s164 + $0x90] sm:$0xff]
      %v189 = vld [vmem:[%s164 + $0x98] sm:$0xff]
      %v190 = vld [vmem:[%s164 + $0xa0] sm:$0xff]
      %v191 = vld [vmem:[%s164 + $0xa8] sm:$0xff]
      %v192 = vld [vmem:[%s164 + $0xb0] sm:$0xff]
      %v193 = vld [vmem:[%s164 + $0xb8] sm:$0xff]
      %v194 = vld [vmem:[%s164 + $0xc0] sm:$0xff]
      %v195 = vld [vmem:[%s164 + $0xc8] sm:$0xff]
      %v196 = vld [vmem:[%s164 + $0xd0] sm:$0xff]
      %v197 = vld [vmem:[%s164 + $0xd8] sm:$0xff]
      %v198 = vld [vmem:[%s164 + $0xe0] sm:$0xff]
      %v199 = vld [vmem:[%s164 + $0xe8] sm:$0xff]
      %v200 = vld [vmem:[%s164 + $0xf0] sm:$0xff]
      %v201 = vld [vmem:[%s164 + $0xf8] sm:$0xff]
      %v202 = vpack.c.bf16 %v171, %v170
      %v203 = vpack.c.bf16 %v173, %v172
      %v204 = vpack.c.bf16 %v175, %v174
      %v205 = vpack.c.bf16 %v177, %v176
      %v206 = vpack.c.bf16 %v179, %v178
      %v207 = vpack.c.bf16 %v181, %v180
      %v208 = vpack.c.bf16 %v183, %v182
      %v209 = vpack.c.bf16 %v185, %v184
      %v210 = vpack.c.bf16 %v187, %v186
      %v211 = vpack.c.bf16 %v189, %v188
      %v212 = vpack.c.bf16 %v191, %v190
      %v213 = vpack.c.bf16 %v193, %v192
      %v214 = vpack.c.bf16 %v195, %v194
      %v215 = vpack.c.bf16 %v197, %v196
      %v216 = vpack.c.bf16 %v199, %v198
      %v217 = vpack.c.bf16 %v201, %v200
      %v219 = vshrl.u32 %v202, 16
      %v221 = vrot.slane %v219, 7
      %v222 = vshll.u32 %v202, 16
      %v224 = vor.u32 %v221, %v222
      %v226 = vshrl.u32 %v203, 16
      %v228 = vrot.slane %v226, 7
      %v229 = vshll.u32 %v203, 16
      %v231 = vor.u32 %v228, %v229
      %v233 = vshrl.u32 %v204, 16
      %v235 = vrot.slane %v233, 7
      %v236 = vshll.u32 %v204, 16
      %v238 = vor.u32 %v235, %v236
      %v240 = vshrl.u32 %v205, 16
      %v242 = vrot.slane %v240, 7
      %v243 = vshll.u32 %v205, 16
      %v245 = vor.u32 %v242, %v243
      %v247 = vshrl.u32 %v206, 16
      %v249 = vrot.slane %v247, 7
      %v250 = vshll.u32 %v206, 16
      %v252 = vor.u32 %v249, %v250
      %v254 = vshrl.u32 %v207, 16
      %v256 = vrot.slane %v254, 7
      %v257 = vshll.u32 %v207, 16
      %v259 = vor.u32 %v256, %v257
      %v261 = vshrl.u32 %v208, 16
      %v263 = vrot.slane %v261, 7
      %v264 = vshll.u32 %v208, 16
      %v266 = vor.u32 %v263, %v264
      %v268 = vshrl.u32 %v209, 16
      %v270 = vrot.slane %v268, 7
      %v271 = vshll.u32 %v209, 16
      %v273 = vor.u32 %v270, %v271
      %v275 = vshrl.u32 %v210, 16
      %v277 = vrot.slane %v275, 7
      %v278 = vshll.u32 %v210, 16
      %v280 = vor.u32 %v277, %v278
      %v282 = vshrl.u32 %v211, 16
      %v284 = vrot.slane %v282, 7
      %v285 = vshll.u32 %v211, 16
      %v287 = vor.u32 %v284, %v285
      %v289 = vshrl.u32 %v212, 16
      %v291 = vrot.slane %v289, 7
      %v292 = vshll.u32 %v212, 16
      %v294 = vor.u32 %v291, %v292
      %v296 = vshrl.u32 %v213, 16
      %v298 = vrot.slane %v296, 7
      %v299 = vshll.u32 %v213, 16
      %v301 = vor.u32 %v298, %v299
      %v303 = vshrl.u32 %v214, 16
      %v305 = vrot.slane %v303, 7
      %v306 = vshll.u32 %v214, 16
      %v308 = vor.u32 %v305, %v306
      %v310 = vshrl.u32 %v215, 16
      %v312 = vrot.slane %v310, 7
      %v313 = vshll.u32 %v215, 16
      %v315 = vor.u32 %v312, %v313
      %v317 = vshrl.u32 %v216, 16
      %v319 = vrot.slane %v317, 7
      %v320 = vshll.u32 %v216, 16
      %v322 = vor.u32 %v319, %v320
      %v324 = vshrl.u32 %v217, 16
      %v326 = vrot.slane %v324, 7
      %v327 = vshll.u32 %v217, 16
      %v329 = vor.u32 %v326, %v327
      %v378 = vrot.slane %v202, 7
      %v379 = vrot.slane %v203, 7
      %v380 = vrot.slane %v204, 7
      %v381 = vrot.slane %v205, 7
      %v382 = vrot.slane %v206, 7
      %v383 = vrot.slane %v207, 7
      %v384 = vrot.slane %v208, 7
      %v385 = vrot.slane %v209, 7
      %v386 = vrot.slane %v210, 7
      %v387 = vrot.slane %v211, 7
      %v388 = vrot.slane %v212, 7
      %v389 = vrot.slane %v213, 7
      %v390 = vrot.slane %v214, 7
      %v391 = vrot.slane %v215, 7
      %v392 = vrot.slane %v216, 7
      %v393 = vrot.slane %v217, 7
      %vm410 = vcmask 1040384
      %vm411 = vsmask.f32 256
      %vm412 = vmand %vm410, %vm411
      %v413 = vsel %vm412, %v202, %v224
      %v414 = vsel %vm412, %v203, %v231
      %v415 = vsel %vm412, %v204, %v238
      %v416 = vsel %vm412, %v205, %v245
      %v417 = vsel %vm412, %v206, %v252
      %v418 = vsel %vm412, %v207, %v259
      %v419 = vsel %vm412, %v208, %v266
      %v420 = vsel %vm412, %v209, %v273
      %v421 = vsel %vm412, %v210, %v280
      %v422 = vsel %vm412, %v211, %v287
      %v423 = vsel %vm412, %v212, %v294
      %v424 = vsel %vm412, %v213, %v301
      %v425 = vsel %vm412, %v214, %v308
      %v426 = vsel %vm412, %v215, %v315
      %v427 = vsel %vm412, %v216, %v322
      %v428 = vsel %vm412, %v217, %v329
      %v429 = vsel %vm412, %v221, %v378
      %v430 = vsel %vm412, %v228, %v379
      %v431 = vsel %vm412, %v235, %v380
      %v432 = vsel %vm412, %v242, %v381
      %v433 = vsel %vm412, %v249, %v382
      %v434 = vsel %vm412, %v256, %v383
      %v435 = vsel %vm412, %v263, %v384
      %v436 = vsel %vm412, %v270, %v385
      %v437 = vsel %vm412, %v277, %v386
      %v438 = vsel %vm412, %v284, %v387
      %v439 = vsel %vm412, %v291, %v388
      %v440 = vsel %vm412, %v298, %v389
      %v441 = vsel %vm412, %v305, %v390
      %v442 = vsel %vm412, %v312, %v391
      %v443 = vsel %vm412, %v319, %v392
      %v444 = vsel %vm412, %v326, %v393
      %vm445 = vsmask.f32 7424
      %v447 = vshrl.u32 %v413, 16
      %v449 = vshll.u32 %v413, 16
      %v451 = vrot.slane %v449, 1
      %v452 = vor.u32 %v447, %v451
      %v454 = vshll.u32 %v429, 16
      %v456 = vrot.slane %v454, 1
      %v457 = vsel %vm445, %v452, %v456
      %v459 = vshrl.u32 %v414, 16
      %v461 = vshll.u32 %v414, 16
      %v463 = vrot.slane %v461, 1
      %v464 = vor.u32 %v459, %v463
      %v466 = vshll.u32 %v430, 16
      %v468 = vrot.slane %v466, 1
      %v469 = vsel %vm445, %v464, %v468
      %v471 = vshrl.u32 %v415, 16
      %v473 = vshll.u32 %v415, 16
      %v475 = vrot.slane %v473, 1
      %v476 = vor.u32 %v471, %v475
      %v478 = vshll.u32 %v431, 16
      %v480 = vrot.slane %v478, 1
      %v481 = vsel %vm445, %v476, %v480
      %v483 = vshrl.u32 %v416, 16
      %v485 = vshll.u32 %v416, 16
      %v487 = vrot.slane %v485, 1
      %v488 = vor.u32 %v483, %v487
      %v490 = vshll.u32 %v432, 16
      %v492 = vrot.slane %v490, 1
      %v493 = vsel %vm445, %v488, %v492
      %v495 = vshrl.u32 %v417, 16
      %v497 = vshll.u32 %v417, 16
      %v499 = vrot.slane %v497, 1
      %v500 = vor.u32 %v495, %v499
      %v502 = vshll.u32 %v433, 16
      %v504 = vrot.slane %v502, 1
      %v505 = vsel %vm445, %v500, %v504
      %v507 = vshrl.u32 %v418, 16
      %v509 = vshll.u32 %v418, 16
      %v511 = vrot.slane %v509, 1
      %v512 = vor.u32 %v507, %v511
      %v514 = vshll.u32 %v434, 16
      %v516 = vrot.slane %v514, 1
      %v517 = vsel %vm445, %v512, %v516
      %v519 = vshrl.u32 %v419, 16
      %v521 = vshll.u32 %v419, 16
      %v523 = vrot.slane %v521, 1
      %v524 = vor.u32 %v519, %v523
      %v526 = vshll.u32 %v435, 16
      %v528 = vrot.slane %v526, 1
      %v529 = vsel %vm445, %v524, %v528
      %v531 = vshrl.u32 %v420, 16
      %v533 = vshll.u32 %v420, 16
      %v535 = vrot.slane %v533, 1
      %v536 = vor.u32 %v531, %v535
      %v538 = vshll.u32 %v436, 16
      %v540 = vrot.slane %v538, 1
      %v541 = vsel %vm445, %v536, %v540
      %v543 = vshrl.u32 %v421, 16
      %v545 = vshll.u32 %v421, 16
      %v547 = vrot.slane %v545, 1
      %v548 = vor.u32 %v543, %v547
      %v550 = vshll.u32 %v437, 16
      %v552 = vrot.slane %v550, 1
      %v553 = vsel %vm445, %v548, %v552
      %v555 = vshrl.u32 %v422, 16
      %v557 = vshll.u32 %v422, 16
      %v559 = vrot.slane %v557, 1
      %v560 = vor.u32 %v555, %v559
      %v562 = vshll.u32 %v438, 16
      %v564 = vrot.slane %v562, 1
      %v565 = vsel %vm445, %v560, %v564
      %v567 = vshrl.u32 %v423, 16
      %v569 = vshll.u32 %v423, 16
      %v571 = vrot.slane %v569, 1
      %v572 = vor.u32 %v567, %v571
      %v574 = vshll.u32 %v439, 16
      %v576 = vrot.slane %v574, 1
      %v577 = vsel %vm445, %v572, %v576
      %v579 = vshrl.u32 %v424, 16
      %v581 = vshll.u32 %v424, 16
      %v583 = vrot.slane %v581, 1
      %v584 = vor.u32 %v579, %v583
      %v586 = vshll.u32 %v440, 16
      %v588 = vrot.slane %v586, 1
      %v589 = vsel %vm445, %v584, %v588
      %v591 = vshrl.u32 %v425, 16
      %v593 = vshll.u32 %v425, 16
      %v595 = vrot.slane %v593, 1
      %v596 = vor.u32 %v591, %v595
      %v598 = vshll.u32 %v441, 16
      %v600 = vrot.slane %v598, 1
      %v601 = vsel %vm445, %v596, %v600
      %v603 = vshrl.u32 %v426, 16
      %v605 = vshll.u32 %v426, 16
      %v607 = vrot.slane %v605, 1
      %v608 = vor.u32 %v603, %v607
      %v610 = vshll.u32 %v442, 16
      %v612 = vrot.slane %v610, 1
      %v613 = vsel %vm445, %v608, %v612
      %v615 = vshrl.u32 %v427, 16
      %v617 = vshll.u32 %v427, 16
      %v619 = vrot.slane %v617, 1
      %v620 = vor.u32 %v615, %v619
      %v622 = vshll.u32 %v443, 16
      %v624 = vrot.slane %v622, 1
      %v625 = vsel %vm445, %v620, %v624
      %626 = vrot.lane.b32.xlu0 %v457, 16
      %v627 = vpop.permute.xlu0 %626
      %628 = vrot.lane.b32.xlu0 %v469, 16
      %v629 = vpop.permute.xlu0 %628
      %630 = vrot.lane.b32.xlu0 %v481, 16
      %v631 = vpop.permute.xlu0 %630
      %632 = vrot.lane.b32.xlu0 %v493, 16
      %v633 = vpop.permute.xlu0 %632
      %634 = vrot.lane.b32.xlu0 %v505, 16
      %v635 = vpop.permute.xlu0 %634
      %636 = vrot.lane.b32.xlu0 %v517, 16
      %v637 = vpop.permute.xlu0 %636
      %638 = vrot.lane.b32.xlu0 %v529, 16
      %v639 = vpop.permute.xlu0 %638
      %640 = vrot.lane.b32.xlu0 %v541, 16
      %v641 = vpop.permute.xlu0 %640
      %642 = vrot.lane.b32.xlu0 %v553, 16
      %v643 = vpop.permute.xlu0 %642
      %644 = vrot.lane.b32.xlu0 %v565, 16
      %v645 = vpop.permute.xlu0 %644
      %646 = vrot.lane.b32.xlu0 %v577, 16
      %v647 = vpop.permute.xlu0 %646
      %648 = vrot.lane.b32.xlu0 %v589, 16
      %v649 = vpop.permute.xlu0 %648
      %650 = vrot.lane.b32.xlu0 %v601, 16
      %v651 = vpop.permute.xlu0 %650
      %652 = vrot.lane.b32.xlu0 %v613, 16
      %v653 = vpop.permute.xlu0 %652
      %654 = vrot.lane.b32.xlu0 %v625, 16
      %v655 = vpop.permute.xlu0 %654
      %vm686 = vcmask 1046528
      %v687 = vrot.slane %v413, 1
      %v688 = vrot.slane %v429, 1
      %v689 = vsel %vm686, %v687, %v688
      %v690 = vrot.slane %v414, 1
      %v691 = vrot.slane %v430, 1
      %v692 = vsel %vm686, %v690, %v691
      %v693 = vrot.slane %v415, 1
      %v694 = vrot.slane %v431, 1
      %v695 = vsel %vm686, %v693, %v694
      %v696 = vrot.slane %v416, 1
      %v697 = vrot.slane %v432, 1
      %v698 = vsel %vm686, %v696, %v697
      %v699 = vrot.slane %v417, 1
      %v700 = vrot.slane %v433, 1
      %v701 = vsel %vm686, %v699, %v700
      %v702 = vrot.slane %v418, 1
      %v703 = vrot.slane %v434, 1
      %v704 = vsel %vm686, %v702, %v703
      %v705 = vrot.slane %v419, 1
      %v706 = vrot.slane %v435, 1
      %v707 = vsel %vm686, %v705, %v706
      %v708 = vrot.slane %v420, 1
      %v709 = vrot.slane %v436, 1
      %v710 = vsel %vm686, %v708, %v709
      %v711 = vrot.slane %v421, 1
      %v712 = vrot.slane %v437, 1
      %v713 = vsel %vm686, %v711, %v712
      %v714 = vrot.slane %v422, 1
      %v715 = vrot.slane %v438, 1
      %v716 = vsel %vm686, %v714, %v715
      %v717 = vrot.slane %v423, 1
      %v718 = vrot.slane %v439, 1
      %v719 = vsel %vm686, %v717, %v718
      %v720 = vrot.slane %v424, 1
      %v721 = vrot.slane %v440, 1
      %v722 = vsel %vm686, %v720, %v721
      %v723 = vrot.slane %v425, 1
      %v724 = vrot.slane %v441, 1
      %v725 = vsel %vm686, %v723, %v724
      %v726 = vrot.slane %v426, 1
      %v727 = vrot.slane %v442, 1
      %v728 = vsel %vm686, %v726, %v727
      %v729 = vrot.slane %v427, 1
      %v730 = vrot.slane %v443, 1
      %v731 = vsel %vm686, %v729, %v730
      %732 = vrot.lane.b32.xlu0 %v689, 32
      %v733 = vpop.permute.xlu0 %732
      %734 = vrot.lane.b32.xlu0 %v692, 32
      %v735 = vpop.permute.xlu0 %734
      %736 = vrot.lane.b32.xlu0 %v695, 32
      %v737 = vpop.permute.xlu0 %736
      %738 = vrot.lane.b32.xlu0 %v698, 32
      %v739 = vpop.permute.xlu0 %738
      %740 = vrot.lane.b32.xlu0 %v701, 32
      %v741 = vpop.permute.xlu0 %740
      %742 = vrot.lane.b32.xlu0 %v704, 32
      %v743 = vpop.permute.xlu0 %742
      %744 = vrot.lane.b32.xlu0 %v707, 32
      %v745 = vpop.permute.xlu0 %744
      %746 = vrot.lane.b32.xlu0 %v710, 32
      %v747 = vpop.permute.xlu0 %746
      %748 = vrot.lane.b32.xlu0 %v713, 32
      %v749 = vpop.permute.xlu0 %748
      %750 = vrot.lane.b32.xlu0 %v716, 32
      %v751 = vpop.permute.xlu0 %750
      %752 = vrot.lane.b32.xlu0 %v719, 32
      %v753 = vpop.permute.xlu0 %752
      %754 = vrot.lane.b32.xlu0 %v722, 32
      %v755 = vpop.permute.xlu0 %754
      %756 = vrot.lane.b32.xlu0 %v725, 32
      %v757 = vpop.permute.xlu0 %756
      %758 = vrot.lane.b32.xlu0 %v728, 32
      %v759 = vpop.permute.xlu0 %758
      %760 = vrot.lane.b32.xlu0 %v731, 32
      %v761 = vpop.permute.xlu0 %760
      %vm762 = vcmask 130048
      %v764 = vsel %vm762, %v413, %v627
      %v766 = vsel %vm762, %v414, %v629
      %v768 = vsel %vm762, %v415, %v631
      %v770 = vsel %vm762, %v416, %v633
      %v772 = vsel %vm762, %v417, %v635
      %v774 = vsel %vm762, %v418, %v637
      %v776 = vsel %vm762, %v419, %v639
      %v778 = vsel %vm762, %v420, %v641
      %v780 = vsel %vm762, %v421, %v643
      %v782 = vsel %vm762, %v422, %v645
      %v784 = vsel %vm762, %v423, %v647
      %v786 = vsel %vm762, %v424, %v649
      %v788 = vsel %vm762, %v425, %v651
      %v790 = vsel %vm762, %v426, %v653
      %v792 = vsel %vm762, %v427, %v655
      %vm793 = vcmask 261120
      %v795 = vsel %vm793, %v764, %v733
      %v797 = vsel %vm793, %v766, %v735
      %v799 = vsel %vm793, %v768, %v737
      %v801 = vsel %vm793, %v770, %v739
      %v803 = vsel %vm793, %v772, %v741
      %v805 = vsel %vm793, %v774, %v743
      %v807 = vsel %vm793, %v776, %v745
      %v809 = vsel %vm793, %v778, %v747
      %v811 = vsel %vm793, %v780, %v749
      %v813 = vsel %vm793, %v782, %v751
      %v815 = vsel %vm793, %v784, %v753
      %v817 = vsel %vm793, %v786, %v755
      %v819 = vsel %vm793, %v788, %v757
      %v821 = vsel %vm793, %v790, %v759
      %v823 = vsel %vm793, %v792, %v761
      %v824 = vld [vmem:[%s1] sm:$0xf]
      %v825 = vld [vmem:[%s1 + $0x4] sm:$0xf]
      %v826 = vld [vmem:[%s1 + $0x8] sm:$0xf]
      %v827 = vld [vmem:[%s1 + $0xc] sm:$0xf]
      %v828 = vld [vmem:[%s1 + $0x10] sm:$0xf]
      %v829 = vld [vmem:[%s1 + $0x14] sm:$0xf]
      %v831 = vshrl.u32 %v428, 16
      %v833 = vshll.u32 %v428, 16
      %v835 = vrot.slane %v833, 1
      %v836 = vor.u32 %v831, %v835
      %v838 = vshll.u32 %v444, 16
      %v840 = vrot.slane %v838, 1
      %v841 = vsel %vm445, %v836, %v840
      %842 = vrot.lane.b32.xlu0 %v841, 16
      %v843 = vpop.permute.xlu0 %842
      %v846 = vrot.slane %v428, 1
      %v847 = vrot.slane %v444, 1
      %v848 = vsel %vm686, %v846, %v847
      %849 = vrot.lane.b32.xlu0 %v848, 32
      %v850 = vpop.permute.xlu0 %849
      %v852 = vsel %vm762, %v428, %v843
      %v854 = vsel %vm793, %v852, %v850
      %s855 = scalar_lea.vmem %s1, 24
      %v856 = vld [vmem:[%s855] sm:$0xf]
      %v857 = vld [vmem:[%s855 + $0x4] sm:$0xf]
      %v858 = vld [vmem:[%s855 + $0x8] sm:$0xf]
      %v859 = vld [vmem:[%s855 + $0xc] sm:$0xf]
      %v860 = vld [vmem:[%s855 + $0x10] sm:$0xf]
      %v861 = vld [vmem:[%s855 + $0x14] sm:$0xf]
      %v868 = vunpack.c.l.b16 %v856
      %v869 = vunpack.c.l.b16 %v857
      %v870 = vunpack.c.l.b16 %v858
      %v871 = vunpack.c.l.b16 %v859
      %v872 = vunpack.c.l.b16 %v860
      %v873 = vunpack.c.l.b16 %v861
      %v874 = vpack.c.b16 %v869, %v868
      %v875 = vpack.c.b16 %v871, %v870
      %v876 = vpack.c.b16 %v873, %v872
      %vm880 = vcmask 392192
      %v881 = vsel %vm880, %v795, 0
      %v883 = vsel %vm880, %v797, 0
      %v885 = vsel %vm880, %v799, 0
      %v887 = vsel %vm880, %v801, 0
      %v889 = vsel %vm880, %v803, 0
      %v891 = vsel %vm880, %v805, 0
      %v893 = vsel %vm880, %v807, 0
      %v895 = vsel %vm880, %v809, 0
      %v897 = vsel %vm880, %v811, 0
      %v899 = vsel %vm880, %v813, 0
      %v901 = vsel %vm880, %v815, 0
      %v903 = vsel %vm880, %v817, 0
      %v905 = vsel %vm880, %v819, 0
      %v907 = vsel %vm880, %v821, 0
      %v909 = vsel %vm880, %v823, 0
      %v911 = vsel %vm880, %v854, 0
      %913 = vmatprep.subr.bf16.mxu0 0
      %914 = vmatpush1.bf16.msra.mxu0 %v874
      %915 = vmatprep.subr.bf16.mxu0 0
      %916 = vmatpush1.bf16.msra.mxu0 %v875
      %917 = vmatprep.subr.bf16.mxu0 0
      %918 = vmatpush1.bf16.msra.mxu0 %v876
      %919 = vmatprep.subr.bf16.mxu0 0
      %920 = vmatpush1.bf16.msra.mxu0 0
      %921 = vmatprep.subr.bf16.mxu0 0
      %922 = vmatpush1.bf16.msra.mxu0 0
      %923 = vmatprep.subr.bf16.mxu0 0
      %924 = vmatpush1.bf16.msra.mxu0 0
      %925 = vmatprep.subr.bf16.mxu0 0
      %926 = vmatpush1.bf16.msra.mxu0 0
      %927 = vmatprep.subr.bf16.mxu0 0
      %928 = vmatpush1.bf16.msra.mxu0 0
      %929 = vmatprep.subr.bf16.mxu0 0
      %930 = vmatpush1.bf16.msra.mxu0 0
      %931 = vmatprep.subr.bf16.mxu0 0
      %932 = vmatpush1.bf16.msra.mxu0 0
      %933 = vmatprep.subr.bf16.mxu0 0
      %934 = vmatpush1.bf16.msra.mxu0 0
      %935 = vmatprep.subr.bf16.mxu0 0
      %936 = vmatpush1.bf16.msra.mxu0 0
      %937 = vmatprep.subr.bf16.mxu0 0
      %938 = vmatpush1.bf16.msra.mxu0 0
      %939 = vmatprep.subr.bf16.mxu0 0
      %940 = vmatpush1.bf16.msra.mxu0 0
      %941 = vmatprep.subr.bf16.mxu0 0
      %942 = vmatpush1.bf16.msra.mxu0 0
      %943 = vmatprep.subr.bf16.mxu0 0
      %944 = vmatpush1.bf16.msra.mxu0 0
      %945 = vmatprep.mubr.bf16.mxu0 0
      %946 = vmatmul.mubr.bf16.gmra.mrb[0].mxu0 %v881
      %v947 = vpop.f32.mrb[0].mxu0
      %v948 = vadd.f32 0.0, %v947
      %v949 = vpop.f32.mrb[0].mxu0
      %v950 = vpop.f32.mrb[0].mxu0
      %v951 = vadd.f32 0.0, %v950
      %v952 = vpop.f32.mrb[0].mxu0
      %953 = vmatprep.mubr.bf16.mxu0 0
      %954 = vmatmul.mubr.bf16.gmra.mrb[0].mxu0 %v883
      %v955 = vpop.f32.mrb[0].mxu0
      %v956 = vadd.f32 0.0, %v955
      %v957 = vpop.f32.mrb[0].mxu0
      %v958 = vpop.f32.mrb[0].mxu0
      %v959 = vadd.f32 0.0, %v958
      %v960 = vpop.f32.mrb[0].mxu0
      %961 = vmatprep.mubr.bf16.mxu0 0
      %962 = vmatmul.mubr.bf16.gmra.mrb[0].mxu0 %v885
      %v963 = vpop.f32.mrb[0].mxu0
      %v964 = vadd.f32 0.0, %v963
      %v965 = vpop.f32.mrb[0].mxu0
      %v966 = vpop.f32.mrb[0].mxu0
      %v967 = vadd.f32 0.0, %v966
      %v968 = vpop.f32.mrb[0].mxu0
      %969 = vmatprep.mubr.bf16.mxu0 0
      %970 = vmatmul.mubr.bf16.gmra.mrb[0].mxu0 %v887
      %v971 = vpop.f32.mrb[0].mxu0
      %v972 = vadd.f32 0.0, %v971
      %v973 = vpop.f32.mrb[0].mxu0
      %v974 = vpop.f32.mrb[0].mxu0
      %v975 = vadd.f32 0.0, %v974
      %v976 = vpop.f32.mrb[0].mxu0
      %977 = vmatprep.mubr.bf16.mxu0 0
      %978 = vmatmul.mubr.bf16.gmra.mrb[0].mxu0 %v889
      %v979 = vpop.f32.mrb[0].mxu0
      %v980 = vadd.f32 0.0, %v979
      %v981 = vpop.f32.mrb[0].mxu0
      %v982 = vpop.f32.mrb[0].mxu0
      %v983 = vadd.f32 0.0, %v982
      %v984 = vpop.f32.mrb[0].mxu0
      %985 = vmatprep.mubr.bf16.mxu0 0
      %986 = vmatmul.mubr.bf16.gmra.mrb[0].mxu0 %v891
      %v987 = vpop.f32.mrb[0].mxu0
      %v988 = vadd.f32 0.0, %v987
      %v989 = vpop.f32.mrb[0].mxu0
      %v990 = vpop.f32.mrb[0].mxu0
      %v991 = vadd.f32 0.0, %v990
      %v992 = vpop.f32.mrb[0].mxu0
      %993 = vmatprep.mubr.bf16.mxu0 0
      %994 = vmatmul.mubr.bf16.gmra.mrb[0].mxu0 %v893
      %v995 = vpop.f32.mrb[0].mxu0
      %v996 = vadd.f32 0.0, %v995
      %v997 = vpop.f32.mrb[0].mxu0
      %v998 = vpop.f32.mrb[0].mxu0
      %v999 = vadd.f32 0.0, %v998
      %v1000 = vpop.f32.mrb[0].mxu0
      %1001 = vmatprep.mubr.bf16.mxu0 0
      %1002 = vmatmul.mubr.bf16.gmra.mrb[0].mxu0 %v895
      %v1003 = vpop.f32.mrb[0].mxu0
      %v1004 = vadd.f32 0.0, %v1003
      %v1005 = vpop.f32.mrb[0].mxu0
      %v1006 = vpop.f32.mrb[0].mxu0
      %v1007 = vadd.f32 0.0, %v1006
      %v1008 = vpop.f32.mrb[0].mxu0
      %1009 = vmatprep.mubr.bf16.mxu0 0
      %1010 = vmatmul.mubr.bf16.gmra.mrb[0].mxu0 %v897
      %v1011 = vpop.f32.mrb[0].mxu0
      %v1012 = vadd.f32 0.0, %v1011
      %v1013 = vpop.f32.mrb[0].mxu0
      %v1014 = vpop.f32.mrb[0].mxu0
      %v1015 = vadd.f32 0.0, %v1014
      %v1016 = vpop.f32.mrb[0].mxu0
      %1017 = vmatprep.mubr.bf16.mxu0 0
      %1018 = vmatmul.mubr.bf16.gmra.mrb[0].mxu0 %v899
      %v1019 = vpop.f32.mrb[0].mxu0
      %v1020 = vadd.f32 0.0, %v1019
      %v1021 = vpop.f32.mrb[0].mxu0
      %v1022 = vpop.f32.mrb[0].mxu0
      %v1023 = vadd.f32 0.0, %v1022
      %v1024 = vpop.f32.mrb[0].mxu0
      %1025 = vmatprep.mubr.bf16.mxu0 0
      %1026 = vmatmul.mubr.bf16.gmra.mrb[0].mxu0 %v901
      %v1027 = vpop.f32.mrb[0].mxu0
      %v1028 = vadd.f32 0.0, %v1027
      %v1029 = vpop.f32.mrb[0].mxu0
      %v1030 = vpop.f32.mrb[0].mxu0
      %v1031 = vadd.f32 0.0, %v1030
      %v1032 = vpop.f32.mrb[0].mxu0
      %1033 = vmatprep.mubr.bf16.mxu0 0
      %1034 = vmatmul.mubr.bf16.gmra.mrb[0].mxu0 %v903
      %v1035 = vpop.f32.mrb[0].mxu0
      %v1036 = vadd.f32 0.0, %v1035
      %v1037 = vpop.f32.mrb[0].mxu0
      %v1038 = vpop.f32.mrb[0].mxu0
      %v1039 = vadd.f32 0.0, %v1038
      %v1040 = vpop.f32.mrb[0].mxu0
      %1041 = vmatprep.mubr.bf16.mxu0 0
      %1042 = vmatmul.mubr.bf16.gmra.mrb[0].mxu0 %v905
      %v1043 = vpop.f32.mrb[0].mxu0
      %v1044 = vadd.f32 0.0, %v1043
      %v1045 = vpop.f32.mrb[0].mxu0
      %v1046 = vpop.f32.mrb[0].mxu0
      %v1047 = vadd.f32 0.0, %v1046
      %v1048 = vpop.f32.mrb[0].mxu0
      %1049 = vmatprep.mubr.bf16.mxu0 0
      %1050 = vmatmul.mubr.bf16.gmra.mrb[0].mxu0 %v907
      %v1051 = vpop.f32.mrb[0].mxu0
      %v1052 = vadd.f32 0.0, %v1051
      %v1053 = vpop.f32.mrb[0].mxu0
      %v1054 = vpop.f32.mrb[0].mxu0
      %v1055 = vadd.f32 0.0, %v1054
      %v1056 = vpop.f32.mrb[0].mxu0
      %1057 = vmatprep.mubr.bf16.mxu0 0
      %1058 = vmatmul.mubr.bf16.gmra.mrb[0].mxu0 %v909
      %v1059 = vpop.f32.mrb[0].mxu0
      %v1060 = vadd.f32 0.0, %v1059
      %v1061 = vpop.f32.mrb[0].mxu0
      %v1062 = vpop.f32.mrb[0].mxu0
      %v1063 = vadd.f32 0.0, %v1062
      %v1064 = vpop.f32.mrb[0].mxu0
      %1065 = vmatprep.mubr.bf16.mxu0 0
      %1066 = vmatmul.mubr.bf16.gmra.mrb[0].mxu0 %v911
      %v1067 = vpop.f32.mrb[0].mxu0
      %v1068 = vadd.f32 0.0, %v1067
      %v1069 = vpop.f32.mrb[0].mxu0
      %v1070 = vpop.f32.mrb[0].mxu0
      %v1071 = vadd.f32 0.0, %v1070
      %v1072 = vpop.f32.mrb[0].mxu0
      %1073 = vdwg.mxu0
      %v1080 = vunpack.c.l.b16 %v824
      %v1081 = vunpack.c.l.b16 %v825
      %v1082 = vunpack.c.l.b16 %v826
      %v1083 = vunpack.c.l.b16 %v827
      %v1084 = vunpack.c.l.b16 %v828
      %v1085 = vunpack.c.l.b16 %v829
      %v1086 = vpack.c.b16 %v1081, %v1080
      %v1087 = vpack.c.b16 %v1083, %v1082
      %v1088 = vpack.c.b16 %v1085, %v1084
      %1092 = vmatprep.subr.bf16.mxu0 0
      %1093 = vmatpush1.bf16.msra.mxu0 %v1086
      %1094 = vmatprep.subr.bf16.mxu0 0
      %1095 = vmatpush1.bf16.msra.mxu0 %v1087
      %1096 = vmatprep.subr.bf16.mxu0 0
      %1097 = vmatpush1.bf16.msra.mxu0 %v1088
      %1098 = vmatprep.subr.bf16.mxu0 0
      %1099 = vmatpush1.bf16.msra.mxu0 0
      %1100 = vmatprep.subr.bf16.mxu0 0
      %1101 = vmatpush1.bf16.msra.mxu0 0
      %1102 = vmatprep.subr.bf16.mxu0 0
      %1103 = vmatpush1.bf16.msra.mxu0 0
      %1104 = vmatprep.subr.bf16.mxu0 0
      %1105 = vmatpush1.bf16.msra.mxu0 0
      %1106 = vmatprep.subr.bf16.mxu0 0
      %1107 = vmatpush1.bf16.msra.mxu0 0
      %1108 = vmatprep.subr.bf16.mxu0 0
      %1109 = vmatpush1.bf16.msra.mxu0 0
      %1110 = vmatprep.subr.bf16.mxu0 0
      %1111 = vmatpush1.bf16.msra.mxu0 0
      %1112 = vmatprep.subr.bf16.mxu0 0
      %1113 = vmatpush1.bf16.msra.mxu0 0
      %1114 = vmatprep.subr.bf16.mxu0 0
      %1115 = vmatpush1.bf16.msra.mxu0 0
      %1116 = vmatprep.subr.bf16.mxu0 0
      %1117 = vmatpush1.bf16.msra.mxu0 0
      %1118 = vmatprep.subr.bf16.mxu0 0
      %1119 = vmatpush1.bf16.msra.mxu0 0
      %1120 = vmatprep.subr.bf16.mxu0 0
      %1121 = vmatpush1.bf16.msra.mxu0 0
      %1122 = vmatprep.subr.bf16.mxu0 0
      %1123 = vmatpush1.bf16.msra.mxu0 0
      %1124 = vmatprep.mubr.bf16.mxu0 0
      %1125 = vmatmul.mubr.bf16.gmra.mrb[0].mxu0 %v881
      %v1126 = vpop.f32.mrb[0].mxu0
      %v1127 = vadd.f32 %v948, %v1126
      %v1128 = vpop.f32.mrb[0].mxu0
      %v1129 = vpop.f32.mrb[0].mxu0
      %v1130 = vadd.f32 %v951, %v1129
      %v1131 = vpop.f32.mrb[0].mxu0
      %1132 = vmatprep.mubr.bf16.mxu0 0
      %1133 = vmatmul.mubr.bf16.gmra.mrb[0].mxu0 %v881
      %v1134 = vpop.f32.mrb[0].mxu0
      %v1135 = vadd.f32 %v956, %v1134
      %v1136 = vpop.f32.mrb[0].mxu0
      %v1137 = vpop.f32.mrb[0].mxu0
      %v1138 = vadd.f32 %v959, %v1137
      %v1139 = vpop.f32.mrb[0].mxu0
      %1140 = vmatprep.mubr.bf16.mxu0 0
      %1141 = vmatmul.mubr.bf16.gmra.mrb[0].mxu0 %v883
      %v1142 = vpop.f32.mrb[0].mxu0
      %v1143 = vadd.f32 %v964, %v1142
      %v1144 = vpop.f32.mrb[0].mxu0
      %v1145 = vpop.f32.mrb[0].mxu0
      %v1146 = vadd.f32 %v967, %v1145
      %v1147 = vpop.f32.mrb[0].mxu0
      %1148 = vmatprep.mubr.bf16.mxu0 0
      %1149 = vmatmul.mubr.bf16.gmra.mrb[0].mxu0 %v885
      %v1150 = vpop.f32.mrb[0].mxu0
      %v1151 = vadd.f32 %v972, %v1150
      %v1152 = vpop.f32.mrb[0].mxu0
      %v1153 = vpop.f32.mrb[0].mxu0
      %v1154 = vadd.f32 %v975, %v1153
      %v1155 = vpop.f32.mrb[0].mxu0
      %1156 = vmatprep.mubr.bf16.mxu0 0
      %1157 = vmatmul.mubr.bf16.gmra.mrb[0].mxu0 %v887
      %v1158 = vpop.f32.mrb[0].mxu0
      %v1159 = vadd.f32 %v980, %v1158
      %v1160 = vpop.f32.mrb[0].mxu0
      %v1161 = vpop.f32.mrb[0].mxu0
      %v1162 = vadd.f32 %v983, %v1161
      %v1163 = vpop.f32.mrb[0].mxu0
      %1164 = vmatprep.mubr.bf16.mxu0 0
      %1165 = vmatmul.mubr.bf16.gmra.mrb[0].mxu0 %v889
      %v1166 = vpop.f32.mrb[0].mxu0
      %v1167 = vadd.f32 %v988, %v1166
      %v1168 = vpop.f32.mrb[0].mxu0
      %v1169 = vpop.f32.mrb[0].mxu0
      %v1170 = vadd.f32 %v991, %v1169
      %v1171 = vpop.f32.mrb[0].mxu0
      %1172 = vmatprep.mubr.bf16.mxu0 0
      %1173 = vmatmul.mubr.bf16.gmra.mrb[0].mxu0 %v891
      %v1174 = vpop.f32.mrb[0].mxu0
      %v1175 = vadd.f32 %v996, %v1174
      %v1176 = vpop.f32.mrb[0].mxu0
      %v1177 = vpop.f32.mrb[0].mxu0
      %v1178 = vadd.f32 %v999, %v1177
      %v1179 = vpop.f32.mrb[0].mxu0
      %1180 = vmatprep.mubr.bf16.mxu0 0
      %1181 = vmatmul.mubr.bf16.gmra.mrb[0].mxu0 %v893
      %v1182 = vpop.f32.mrb[0].mxu0
      %v1183 = vadd.f32 %v1004, %v1182
      %v1184 = vpop.f32.mrb[0].mxu0
      %v1185 = vpop.f32.mrb[0].mxu0
      %v1186 = vadd.f32 %v1007, %v1185
      %v1187 = vpop.f32.mrb[0].mxu0
      %1188 = vmatprep.mubr.bf16.mxu0 0
      %1189 = vmatmul.mubr.bf16.gmra.mrb[0].mxu0 %v895
      %v1190 = vpop.f32.mrb[0].mxu0
      %v1191 = vadd.f32 %v1012, %v1190
      %v1192 = vpop.f32.mrb[0].mxu0
      %v1193 = vpop.f32.mrb[0].mxu0
      %v1194 = vadd.f32 %v1015, %v1193
      %v1195 = vpop.f32.mrb[0].mxu0
      %1196 = vmatprep.mubr.bf16.mxu0 0
      %1197 = vmatmul.mubr.bf16.gmra.mrb[0].mxu0 %v897
      %v1198 = vpop.f32.mrb[0].mxu0
      %v1199 = vadd.f32 %v1020, %v1198
      %v1200 = vpop.f32.mrb[0].mxu0
      %v1201 = vpop.f32.mrb[0].mxu0
      %v1202 = vadd.f32 %v1023, %v1201
      %v1203 = vpop.f32.mrb[0].mxu0
      %1204 = vmatprep.mubr.bf16.mxu0 0
      %1205 = vmatmul.mubr.bf16.gmra.mrb[0].mxu0 %v899
      %v1206 = vpop.f32.mrb[0].mxu0
      %v1207 = vadd.f32 %v1028, %v1206
      %v1208 = vpop.f32.mrb[0].mxu0
      %v1209 = vpop.f32.mrb[0].mxu0
      %v1210 = vadd.f32 %v1031, %v1209
      %v1211 = vpop.f32.mrb[0].mxu0
      %1212 = vmatprep.mubr.bf16.mxu0 0
      %1213 = vmatmul.mubr.bf16.gmra.mrb[0].mxu0 %v901
      %v1214 = vpop.f32.mrb[0].mxu0
      %v1215 = vadd.f32 %v1036, %v1214
      %v1216 = vpop.f32.mrb[0].mxu0
      %v1217 = vpop.f32.mrb[0].mxu0
      %v1218 = vadd.f32 %v1039, %v1217
      %v1219 = vpop.f32.mrb[0].mxu0
      %1220 = vmatprep.mubr.bf16.mxu0 0
      %1221 = vmatmul.mubr.bf16.gmra.mrb[0].mxu0 %v903
      %v1222 = vpop.f32.mrb[0].mxu0
      %v1223 = vadd.f32 %v1044, %v1222
      %v1224 = vpop.f32.mrb[0].mxu0
      %v1225 = vpop.f32.mrb[0].mxu0
      %v1226 = vadd.f32 %v1047, %v1225
      %v1227 = vpop.f32.mrb[0].mxu0
      %1228 = vmatprep.mubr.bf16.mxu0 0
      %1229 = vmatmul.mubr.bf16.gmra.mrb[0].mxu0 %v905
      %v1230 = vpop.f32.mrb[0].mxu0
      %v1231 = vadd.f32 %v1052, %v1230
      %v1232 = vpop.f32.mrb[0].mxu0
      %v1233 = vpop.f32.mrb[0].mxu0
      %v1234 = vadd.f32 %v1055, %v1233
      %v1235 = vpop.f32.mrb[0].mxu0
      %1236 = vmatprep.mubr.bf16.mxu0 0
      %1237 = vmatmul.mubr.bf16.gmra.mrb[0].mxu0 %v907
      %v1238 = vpop.f32.mrb[0].mxu0
      %v1239 = vadd.f32 %v1060, %v1238
      %v1240 = vpop.f32.mrb[0].mxu0
      %v1241 = vpop.f32.mrb[0].mxu0
      %v1242 = vadd.f32 %v1063, %v1241
      %v1243 = vpop.f32.mrb[0].mxu0
      %1244 = vmatprep.mubr.bf16.mxu0 0
      %1245 = vmatmul.mubr.bf16.gmra.mrb[0].mxu0 %v909
      %v1246 = vpop.f32.mrb[0].mxu0
      %v1247 = vadd.f32 %v1068, %v1246
      %v1248 = vpop.f32.mrb[0].mxu0
      %v1249 = vpop.f32.mrb[0].mxu0
      %v1250 = vadd.f32 %v1071, %v1249
      %v1251 = vpop.f32.mrb[0].mxu0
      %1252 = vdwg.mxu0
      %s1253 = scalar_lea.vmem %s1, 48
      %v1254 = vld [vmem:[%s1253] sm:$0xf]
      %v1255 = vld [vmem:[%s1253 + $0x4] sm:$0xf]
      %v1256 = vld [vmem:[%s1253 + $0x8] sm:$0xf]
      %v1257 = vld [vmem:[%s1253 + $0xc] sm:$0xf]
      %v1258 = vld [vmem:[%s1253 + $0x10] sm:$0xf]
      %v1259 = vld [vmem:[%s1253 + $0x14] sm:$0xf]
      %v1266 = vunpack.c.l.b16 %v1254
      %v1267 = vunpack.c.l.b16 %v1255
      %v1268 = vunpack.c.l.b16 %v1256
      %v1269 = vunpack.c.l.b16 %v1257
      %v1270 = vunpack.c.l.b16 %v1258
      %v1271 = vunpack.c.l.b16 %v1259
      %v1272 = vpack.c.b16 %v1267, %v1266
      %v1273 = vpack.c.b16 %v1269, %v1268
      %v1274 = vpack.c.b16 %v1271, %v1270
      %1278 = vmatprep.subr.bf16.mxu0 0
      %1279 = vmatpush1.bf16.msra.mxu0 %v1272
      %1280 = vmatprep.subr.bf16.mxu0 0
      %1281 = vmatpush1.bf16.msra.mxu0 %v1273
      %1282 = vmatprep.subr.bf16.mxu0 0
      %1283 = vmatpush1.bf16.msra.mxu0 %v1274
      %1284 = vmatprep.subr.bf16.mxu0 0
      %1285 = vmatpush1.bf16.msra.mxu0 0
      %1286 = vmatprep.subr.bf16.mxu0 0
      %1287 = vmatpush1.bf16.msra.mxu0 0
      %1288 = vmatprep.subr.bf16.mxu0 0
      %1289 = vmatpush1.bf16.msra.mxu0 0
      %1290 = vmatprep.subr.bf16.mxu0 0
      %1291 = vmatpush1.bf16.msra.mxu0 0
      %1292 = vmatprep.subr.bf16.mxu0 0
      %1293 = vmatpush1.bf16.msra.mxu0 0
      %1294 = vmatprep.subr.bf16.mxu0 0
      %1295 = vmatpush1.bf16.msra.mxu0 0
      %1296 = vmatprep.subr.bf16.mxu0 0
      %1297 = vmatpush1.bf16.msra.mxu0 0
      %1298 = vmatprep.subr.bf16.mxu0 0
      %1299 = vmatpush1.bf16.msra.mxu0 0
      %1300 = vmatprep.subr.bf16.mxu0 0
      %1301 = vmatpush1.bf16.msra.mxu0 0
      %1302 = vmatprep.subr.bf16.mxu0 0
      %1303 = vmatpush1.bf16.msra.mxu0 0
      %1304 = vmatprep.subr.bf16.mxu0 0
      %1305 = vmatpush1.bf16.msra.mxu0 0
      %1306 = vmatprep.subr.bf16.mxu0 0
      %1307 = vmatpush1.bf16.msra.mxu0 0
      %1308 = vmatprep.subr.bf16.mxu0 0
      %1309 = vmatpush1.bf16.msra.mxu0 0
      %1310 = vmatprep.mubr.bf16.mxu0 0
      %1311 = vmatmul.mubr.bf16.gmra.mrb[0].mxu0 %v883
      %v1312 = vpop.f32.mrb[0].mxu0
      %v1313 = vadd.f32 0.0, %v1312
      %v1314 = vpop.f32.mrb[0].mxu0
      %v1315 = vpop.f32.mrb[0].mxu0
      %v1316 = vadd.f32 0.0, %v1315
      %v1317 = vpop.f32.mrb[0].mxu0
      %1318 = vmatprep.mubr.bf16.mxu0 0
      %1319 = vmatmul.mubr.bf16.gmra.mrb[0].mxu0 %v885
      %v1320 = vpop.f32.mrb[0].mxu0
      %v1321 = vadd.f32 0.0, %v1320
      %v1322 = vpop.f32.mrb[0].mxu0
      %v1323 = vpop.f32.mrb[0].mxu0
      %v1324 = vadd.f32 0.0, %v1323
      %v1325 = vpop.f32.mrb[0].mxu0
      %1326 = vmatprep.mubr.bf16.mxu0 0
      %1327 = vmatmul.mubr.bf16.gmra.mrb[0].mxu0 %v887
      %v1328 = vpop.f32.mrb[0].mxu0
      %v1329 = vadd.f32 0.0, %v1328
      %v1330 = vpop.f32.mrb[0].mxu0
      %v1331 = vpop.f32.mrb[0].mxu0
      %v1332 = vadd.f32 0.0, %v1331
      %v1333 = vpop.f32.mrb[0].mxu0
      %1334 = vmatprep.mubr.bf16.mxu0 0
      %1335 = vmatmul.mubr.bf16.gmra.mrb[0].mxu0 %v889
      %v1336 = vpop.f32.mrb[0].mxu0
      %v1337 = vadd.f32 0.0, %v1336
      %v1338 = vpop.f32.mrb[0].mxu0
      %v1339 = vpop.f32.mrb[0].mxu0
      %v1340 = vadd.f32 0.0, %v1339
      %v1341 = vpop.f32.mrb[0].mxu0
      %1342 = vmatprep.mubr.bf16.mxu0 0
      %1343 = vmatmul.mubr.bf16.gmra.mrb[0].mxu0 %v891
      %v1344 = vpop.f32.mrb[0].mxu0
      %v1345 = vadd.f32 0.0, %v1344
      %v1346 = vpop.f32.mrb[0].mxu0
      %v1347 = vpop.f32.mrb[0].mxu0
      %v1348 = vadd.f32 0.0, %v1347
      %v1349 = vpop.f32.mrb[0].mxu0
      %1350 = vmatprep.mubr.bf16.mxu0 0
      %1351 = vmatmul.mubr.bf16.gmra.mrb[0].mxu0 %v893
      %v1352 = vpop.f32.mrb[0].mxu0
      %v1353 = vadd.f32 0.0, %v1352
      %v1354 = vpop.f32.mrb[0].mxu0
      %v1355 = vpop.f32.mrb[0].mxu0
      %v1356 = vadd.f32 0.0, %v1355
      %v1357 = vpop.f32.mrb[0].mxu0
      %1358 = vmatprep.mubr.bf16.mxu0 0
      %1359 = vmatmul.mubr.bf16.gmra.mrb[0].mxu0 %v895
      %v1360 = vpop.f32.mrb[0].mxu0
      %v1361 = vadd.f32 0.0, %v1360
      %v1362 = vpop.f32.mrb[0].mxu0
      %v1363 = vpop.f32.mrb[0].mxu0
      %v1364 = vadd.f32 0.0, %v1363
      %v1365 = vpop.f32.mrb[0].mxu0
      %1366 = vmatprep.mubr.bf16.mxu0 0
      %1367 = vmatmul.mubr.bf16.gmra.mrb[0].mxu0 %v897
      %v1368 = vpop.f32.mrb[0].mxu0
      %v1369 = vadd.f32 0.0, %v1368
      %v1370 = vpop.f32.mrb[0].mxu0
      %v1371 = vpop.f32.mrb[0].mxu0
      %v1372 = vadd.f32 0.0, %v1371
      %v1373 = vpop.f32.mrb[0].mxu0
      %1374 = vmatprep.mubr.bf16.mxu0 0
      %1375 = vmatmul.mubr.bf16.gmra.mrb[0].mxu0 %v899
      %v1376 = vpop.f32.mrb[0].mxu0
      %v1377 = vadd.f32 0.0, %v1376
      %v1378 = vpop.f32.mrb[0].mxu0
      %v1379 = vpop.f32.mrb[0].mxu0
      %v1380 = vadd.f32 0.0, %v1379
      %v1381 = vpop.f32.mrb[0].mxu0
      %1382 = vmatprep.mubr.bf16.mxu0 0
      %1383 = vmatmul.mubr.bf16.gmra.mrb[0].mxu0 %v901
      %v1384 = vpop.f32.mrb[0].mxu0
      %v1385 = vadd.f32 0.0, %v1384
      %v1386 = vpop.f32.mrb[0].mxu0
      %v1387 = vpop.f32.mrb[0].mxu0
      %v1388 = vadd.f32 0.0, %v1387
      %v1389 = vpop.f32.mrb[0].mxu0
      %1390 = vmatprep.mubr.bf16.mxu0 0
      %1391 = vmatmul.mubr.bf16.gmra.mrb[0].mxu0 %v903
      %v1392 = vpop.f32.mrb[0].mxu0
      %v1393 = vadd.f32 0.0, %v1392
      %v1394 = vpop.f32.mrb[0].mxu0
      %v1395 = vpop.f32.mrb[0].mxu0
      %v1396 = vadd.f32 0.0, %v1395
      %v1397 = vpop.f32.mrb[0].mxu0
      %1398 = vmatprep.mubr.bf16.mxu0 0
      %1399 = vmatmul.mubr.bf16.gmra.mrb[0].mxu0 %v905
      %v1400 = vpop.f32.mrb[0].mxu0
      %v1401 = vadd.f32 0.0, %v1400
      %v1402 = vpop.f32.mrb[0].mxu0
      %v1403 = vpop.f32.mrb[0].mxu0
      %v1404 = vadd.f32 0.0, %v1403
      %v1405 = vpop.f32.mrb[0].mxu0
      %1406 = vmatprep.mubr.bf16.mxu0 0
      %1407 = vmatmul.mubr.bf16.gmra.mrb[0].mxu0 %v907
      %v1408 = vpop.f32.mrb[0].mxu0
      %v1409 = vadd.f32 0.0, %v1408
      %v1410 = vpop.f32.mrb[0].mxu0
      %v1411 = vpop.f32.mrb[0].mxu0
      %v1412 = vadd.f32 0.0, %v1411
      %v1413 = vpop.f32.mrb[0].mxu0
      %1414 = vmatprep.mubr.bf16.mxu0 0
      %1415 = vmatmul.mubr.bf16.gmra.mrb[0].mxu0 %v909
      %v1416 = vpop.f32.mrb[0].mxu0
      %v1417 = vadd.f32 0.0, %v1416
      %v1418 = vpop.f32.mrb[0].mxu0
      %v1419 = vpop.f32.mrb[0].mxu0
      %v1420 = vadd.f32 0.0, %v1419
      %v1421 = vpop.f32.mrb[0].mxu0
      %1422 = vmatprep.mubr.bf16.mxu0 0
      %1423 = vmatmul.mubr.bf16.gmra.mrb[0].mxu0 %v911
      %v1424 = vpop.f32.mrb[0].mxu0
      %v1425 = vadd.f32 0.0, %v1424
      %v1426 = vpop.f32.mrb[0].mxu0
      %v1427 = vpop.f32.mrb[0].mxu0
      %v1428 = vadd.f32 0.0, %v1427
      %v1429 = vpop.f32.mrb[0].mxu0
      %1430 = vmatprep.mubr.bf16.mxu0 0
      %1431 = vmatmul.mubr.bf16.gmra.mrb[0].mxu0 %v911
      %v1432 = vpop.f32.mrb[0].mxu0
      %v1433 = vadd.f32 0.0, %v1432
      %v1434 = vpop.f32.mrb[0].mxu0
      %v1435 = vpop.f32.mrb[0].mxu0
      %v1436 = vadd.f32 0.0, %v1435
      %v1437 = vpop.f32.mrb[0].mxu0
      %1438 = vdwg.mxu0
      %v1439 = vadd.f32 %v1127, %v1313
      %v1440 = vadd.f32 %v1130, %v1316
      %v1441 = vadd.f32 %v1135, %v1321
      %v1442 = vadd.f32 %v1138, %v1324
      %v1443 = vadd.f32 %v1143, %v1329
      %v1444 = vadd.f32 %v1146, %v1332
      %v1445 = vadd.f32 %v1151, %v1337
      %v1446 = vadd.f32 %v1154, %v1340
      %v1447 = vadd.f32 %v1159, %v1345
      %v1448 = vadd.f32 %v1162, %v1348
      %v1449 = vadd.f32 %v1167, %v1353
      %v1450 = vadd.f32 %v1170, %v1356
      %v1451 = vadd.f32 %v1175, %v1361
      %v1452 = vadd.f32 %v1178, %v1364
      %v1453 = vadd.f32 %v1183, %v1369
      %v1454 = vadd.f32 %v1186, %v1372
      %v1455 = vadd.f32 %v1191, %v1377
      %v1456 = vadd.f32 %v1194, %v1380
      %v1457 = vadd.f32 %v1199, %v1385
      %v1458 = vadd.f32 %v1202, %v1388
      %v1459 = vadd.f32 %v1207, %v1393
      %v1460 = vadd.f32 %v1210, %v1396
      %v1461 = vadd.f32 %v1215, %v1401
      %v1462 = vadd.f32 %v1218, %v1404
      %v1463 = vadd.f32 %v1223, %v1409
      %v1464 = vadd.f32 %v1226, %v1412
      %v1465 = vadd.f32 %v1231, %v1417
      %v1466 = vadd.f32 %v1234, %v1420
      %v1467 = vadd.f32 %v1239, %v1425
      %v1468 = vadd.f32 %v1242, %v1428
      %v1469 = vadd.f32 %v1247, %v1433
      %v1470 = vadd.f32 %v1250, %v1436
      %v1471 = vld [vmem:[%s2] sm:$0x1]
      %v1473 = vlaneseq
      %v1474 = vshrl.u32 %v1473, 7
      %v1475 = vsub.s32 0, %v1474
      %v1476 = vrot.slane %v1471, %v1475
      %v1478 = vadd.f32 %v1439, %v1476
      %v1479 = vadd.f32 %v1440, %v1476
      %v1480 = vadd.f32 %v1441, %v1476
      %v1481 = vadd.f32 %v1442, %v1476
      %v1482 = vadd.f32 %v1443, %v1476
      %v1483 = vadd.f32 %v1444, %v1476
      %v1484 = vadd.f32 %v1445, %v1476
      %v1485 = vadd.f32 %v1446, %v1476
      %v1486 = vadd.f32 %v1447, %v1476
      %v1487 = vadd.f32 %v1448, %v1476
      %v1488 = vadd.f32 %v1449, %v1476
      %v1489 = vadd.f32 %v1450, %v1476
      %v1490 = vadd.f32 %v1451, %v1476
      %v1491 = vadd.f32 %v1452, %v1476
      %v1492 = vadd.f32 %v1453, %v1476
      %v1493 = vadd.f32 %v1454, %v1476
      %v1494 = vadd.f32 %v1455, %v1476
      %v1495 = vadd.f32 %v1456, %v1476
      %v1496 = vadd.f32 %v1457, %v1476
      %v1497 = vadd.f32 %v1458, %v1476
      %v1498 = vadd.f32 %v1459, %v1476
      %v1499 = vadd.f32 %v1460, %v1476
      %v1500 = vadd.f32 %v1461, %v1476
      %v1501 = vadd.f32 %v1462, %v1476
      %v1502 = vadd.f32 %v1463, %v1476
      %v1503 = vadd.f32 %v1464, %v1476
      %v1504 = vadd.f32 %v1465, %v1476
      %v1505 = vadd.f32 %v1466, %v1476
      %v1506 = vadd.f32 %v1467, %v1476
      %v1507 = vadd.f32 %v1468, %v1476
      %v1508 = vadd.f32 %v1469, %v1476
      %v1509 = vadd.f32 %v1470, %v1476
      %vm1510 = vcmp.gt.f32.partialorder %v1478, 0.0
      %vm1511 = vcmp.gt.f32.partialorder %v1479, 0.0
      %vm1512 = vcmp.gt.f32.partialorder %v1480, 0.0
      %vm1513 = vcmp.gt.f32.partialorder %v1481, 0.0
      %vm1514 = vcmp.gt.f32.partialorder %v1482, 0.0
      %vm1515 = vcmp.gt.f32.partialorder %v1483, 0.0
      %vm1516 = vcmp.gt.f32.partialorder %v1484, 0.0
      %vm1517 = vcmp.gt.f32.partialorder %v1485, 0.0
      %vm1518 = vcmp.gt.f32.partialorder %v1486, 0.0
      %vm1519 = vcmp.gt.f32.partialorder %v1487, 0.0
      %vm1520 = vcmp.gt.f32.partialorder %v1488, 0.0
      %vm1521 = vcmp.gt.f32.partialorder %v1489, 0.0
      %vm1522 = vcmp.gt.f32.partialorder %v1490, 0.0
      %vm1523 = vcmp.gt.f32.partialorder %v1491, 0.0
      %vm1524 = vcmp.gt.f32.partialorder %v1492, 0.0
      %vm1525 = vcmp.gt.f32.partialorder %v1493, 0.0
      %vm1526 = vcmp.gt.f32.partialorder %v1494, 0.0
      %vm1527 = vcmp.gt.f32.partialorder %v1495, 0.0
      %vm1528 = vcmp.gt.f32.partialorder %v1496, 0.0
      %vm1529 = vcmp.gt.f32.partialorder %v1497, 0.0
      %vm1530 = vcmp.gt.f32.partialorder %v1498, 0.0
      %vm1531 = vcmp.gt.f32.partialorder %v1499, 0.0
      %vm1532 = vcmp.gt.f32.partialorder %v1500, 0.0
      %vm1533 = vcmp.gt.f32.partialorder %v1501, 0.0
      %vm1534 = vcmp.gt.f32.partialorder %v1502, 0.0
      %vm1535 = vcmp.gt.f32.partialorder %v1503, 0.0
      %vm1536 = vcmp.gt.f32.partialorder %v1504, 0.0
      %vm1537 = vcmp.gt.f32.partialorder %v1505, 0.0
      %vm1538 = vcmp.gt.f32.partialorder %v1506, 0.0
      %vm1539 = vcmp.gt.f32.partialorder %v1507, 0.0
      %vm1540 = vcmp.gt.f32.partialorder %v1508, 0.0
      %vm1541 = vcmp.gt.f32.partialorder %v1509, 0.0
      %v1542 = vmin.f32 %v1478, 0.0
      %v1543 = vmin.f32 %v1479, 0.0
      %v1544 = vmin.f32 %v1480, 0.0
      %v1545 = vmin.f32 %v1481, 0.0
      %v1546 = vmin.f32 %v1482, 0.0
      %v1547 = vmin.f32 %v1483, 0.0
      %v1548 = vmin.f32 %v1484, 0.0
      %v1549 = vmin.f32 %v1485, 0.0
      %v1550 = vmin.f32 %v1486, 0.0
      %v1551 = vmin.f32 %v1487, 0.0
      %v1552 = vmin.f32 %v1488, 0.0
      %v1553 = vmin.f32 %v1489, 0.0
      %v1554 = vmin.f32 %v1490, 0.0
      %v1555 = vmin.f32 %v1491, 0.0
      %v1556 = vmin.f32 %v1492, 0.0
      %v1557 = vmin.f32 %v1493, 0.0
      %v1558 = vmin.f32 %v1494, 0.0
      %v1559 = vmin.f32 %v1495, 0.0
      %v1560 = vmin.f32 %v1496, 0.0
      %v1561 = vmin.f32 %v1497, 0.0
      %v1562 = vmin.f32 %v1498, 0.0
      %v1563 = vmin.f32 %v1499, 0.0
      %v1564 = vmin.f32 %v1500, 0.0
      %v1565 = vmin.f32 %v1501, 0.0
      %v1566 = vmin.f32 %v1502, 0.0
      %v1567 = vmin.f32 %v1503, 0.0
      %v1568 = vmin.f32 %v1504, 0.0
      %v1569 = vmin.f32 %v1505, 0.0
      %v1570 = vmin.f32 %v1506, 0.0
      %v1571 = vmin.f32 %v1507, 0.0
      %v1572 = vmin.f32 %v1508, 0.0
      %v1573 = vmin.f32 %v1509, 0.0
      %v1574 = vmul.f32 %v1542, 1.442695
      %v1575 = vpow.pop %v1574
      %v1576 = vmul.f32 %v1543, 1.442695
      %v1577 = vpow.pop %v1576
      %v1578 = vmul.f32 %v1544, 1.442695
      %v1579 = vpow.pop %v1578
      %v1580 = vmul.f32 %v1545, 1.442695
      %v1581 = vpow.pop %v1580
      %v1582 = vmul.f32 %v1546, 1.442695
      %v1583 = vpow.pop %v1582
      %v1584 = vmul.f32 %v1547, 1.442695
      %v1585 = vpow.pop %v1584
      %v1586 = vmul.f32 %v1548, 1.442695
      %v1587 = vpow.pop %v1586
      %v1588 = vmul.f32 %v1549, 1.442695
      %v1589 = vpow.pop %v1588
      %v1590 = vmul.f32 %v1550, 1.442695
      %v1591 = vpow.pop %v1590
      %v1592 = vmul.f32 %v1551, 1.442695
      %v1593 = vpow.pop %v1592
      %v1594 = vmul.f32 %v1552, 1.442695
      %v1595 = vpow.pop %v1594
      %v1596 = vmul.f32 %v1553, 1.442695
      %v1597 = vpow.pop %v1596
      %v1598 = vmul.f32 %v1554, 1.442695
      %v1599 = vpow.pop %v1598
      %v1600 = vmul.f32 %v1555, 1.442695
      %v1601 = vpow.pop %v1600
      %v1602 = vmul.f32 %v1556, 1.442695
      %v1603 = vpow.pop %v1602
      %v1604 = vmul.f32 %v1557, 1.442695
      %v1605 = vpow.pop %v1604
      %v1606 = vmul.f32 %v1558, 1.442695
      %v1607 = vpow.pop %v1606
      %v1608 = vmul.f32 %v1559, 1.442695
      %v1609 = vpow.pop %v1608
      %v1610 = vmul.f32 %v1560, 1.442695
      %v1611 = vpow.pop %v1610
      %v1612 = vmul.f32 %v1561, 1.442695
      %v1613 = vpow.pop %v1612
      %v1614 = vmul.f32 %v1562, 1.442695
      %v1615 = vpow.pop %v1614
      %v1616 = vmul.f32 %v1563, 1.442695
      %v1617 = vpow.pop %v1616
      %v1618 = vmul.f32 %v1564, 1.442695
      %v1619 = vpow.pop %v1618
      %v1620 = vmul.f32 %v1565, 1.442695
      %v1621 = vpow.pop %v1620
      %v1622 = vmul.f32 %v1566, 1.442695
      %v1623 = vpow.pop %v1622
      %v1624 = vmul.f32 %v1567, 1.442695
      %v1625 = vpow.pop %v1624
      %v1626 = vmul.f32 %v1568, 1.442695
      %v1627 = vpow.pop %v1626
      %v1628 = vmul.f32 %v1569, 1.442695
      %v1629 = vpow.pop %v1628
      %v1630 = vmul.f32 %v1570, 1.442695
      %v1631 = vpow.pop %v1630
      %v1632 = vmul.f32 %v1571, 1.442695
      %v1633 = vpow.pop %v1632
      %v1634 = vmul.f32 %v1572, 1.442695
      %v1635 = vpow.pop %v1634
      %v1636 = vmul.f32 %v1573, 1.442695
      %v1637 = vpow.pop %v1636
      %v1638 = vsub.f32 %v1575, 1.0
      %v1639 = vsub.f32 %v1577, 1.0
      %v1640 = vsub.f32 %v1579, 1.0
      %v1641 = vsub.f32 %v1581, 1.0
      %v1642 = vsub.f32 %v1583, 1.0
      %v1643 = vsub.f32 %v1585, 1.0
      %v1644 = vsub.f32 %v1587, 1.0
      %v1645 = vsub.f32 %v1589, 1.0
      %v1646 = vsub.f32 %v1591, 1.0
      %v1647 = vsub.f32 %v1593, 1.0
      %v1648 = vsub.f32 %v1595, 1.0
      %v1649 = vsub.f32 %v1597, 1.0
      %v1650 = vsub.f32 %v1599, 1.0
      %v1651 = vsub.f32 %v1601, 1.0
      %v1652 = vsub.f32 %v1603, 1.0
      %v1653 = vsub.f32 %v1605, 1.0
      %v1654 = vsub.f32 %v1607, 1.0
      %v1655 = vsub.f32 %v1609, 1.0
      %v1656 = vsub.f32 %v1611, 1.0
      %v1657 = vsub.f32 %v1613, 1.0
      %v1658 = vsub.f32 %v1615, 1.0
      %v1659 = vsub.f32 %v1617, 1.0
      %v1660 = vsub.f32 %v1619, 1.0
      %v1661 = vsub.f32 %v1621, 1.0
      %v1662 = vsub.f32 %v1623, 1.0
      %v1663 = vsub.f32 %v1625, 1.0
      %v1664 = vsub.f32 %v1627, 1.0
      %v1665 = vsub.f32 %v1629, 1.0
      %v1666 = vsub.f32 %v1631, 1.0
      %v1667 = vsub.f32 %v1633, 1.0
      %v1668 = vsub.f32 %v1635, 1.0
      %v1669 = vsub.f32 %v1637, 1.0
      %v1670 = vsel %vm1510, %v1478, %v1638
      %v1671 = vsel %vm1511, %v1479, %v1639
      %v1672 = vsel %vm1512, %v1480, %v1640
      %v1673 = vsel %vm1513, %v1481, %v1641
      %v1674 = vsel %vm1514, %v1482, %v1642
      %v1675 = vsel %vm1515, %v1483, %v1643
      %v1676 = vsel %vm1516, %v1484, %v1644
      %v1677 = vsel %vm1517, %v1485, %v1645
      %v1678 = vsel %vm1518, %v1486, %v1646
      %v1679 = vsel %vm1519, %v1487, %v1647
      %v1680 = vsel %vm1520, %v1488, %v1648
      %v1681 = vsel %vm1521, %v1489, %v1649
      %v1682 = vsel %vm1522, %v1490, %v1650
      %v1683 = vsel %vm1523, %v1491, %v1651
      %v1684 = vsel %vm1524, %v1492, %v1652
      %v1685 = vsel %vm1525, %v1493, %v1653
      %v1686 = vsel %vm1526, %v1494, %v1654
      %v1687 = vsel %vm1527, %v1495, %v1655
      %v1688 = vsel %vm1528, %v1496, %v1656
      %v1689 = vsel %vm1529, %v1497, %v1657
      %v1690 = vsel %vm1530, %v1498, %v1658
      %v1691 = vsel %vm1531, %v1499, %v1659
      %v1692 = vsel %vm1532, %v1500, %v1660
      %v1693 = vsel %vm1533, %v1501, %v1661
      %v1694 = vsel %vm1534, %v1502, %v1662
      %v1695 = vsel %vm1535, %v1503, %v1663
      %v1696 = vsel %vm1536, %v1504, %v1664
      %v1697 = vsel %vm1537, %v1505, %v1665
      %v1698 = vsel %vm1538, %v1506, %v1666
      %v1699 = vsel %vm1539, %v1507, %v1667
      %v1700 = vsel %vm1540, %v1508, %v1668
      %v1701 = vsel %vm1541, %v1509, %v1669
      %v1702 = vmax.f32 %v1670, %v1672
      %v1703 = vmax.f32 %v1671, %v1673
      %v1704 = vmax.f32 %v1678, %v1680
      %v1705 = vmax.f32 %v1679, %v1681
      %v1706 = vmax.f32 %v1686, %v1688
      %v1707 = vmax.f32 %v1687, %v1689
      %v1708 = vmax.f32 %v1694, %v1696
      %v1709 = vmax.f32 %v1695, %v1697
      %v1710 = vmax.f32 %v1702, %v1674
      %v1711 = vmax.f32 %v1703, %v1675
      %v1712 = vmax.f32 %v1704, %v1682
      %v1713 = vmax.f32 %v1705, %v1683
      %v1714 = vmax.f32 %v1706, %v1690
      %v1715 = vmax.f32 %v1707, %v1691
      %v1716 = vmax.f32 %v1708, %v1698
      %v1717 = vmax.f32 %v1709, %v1699
      %v1718 = vmax.f32 %v1710, %v1676
      %v1719 = vmax.f32 %v1711, %v1677
      %v1720 = vmax.f32 %v1712, %v1684
      %v1721 = vmax.f32 %v1713, %v1685
      %v1722 = vmax.f32 %v1714, %v1692
      %v1723 = vmax.f32 %v1715, %v1693
      %v1724 = vmax.f32 %v1716, %v1700
      %v1725 = vmax.f32 %v1717, %v1701
      %v1734 = vcombine.high %v1718, %v1718
      %v1735 = vcombine.high %v1719, %v1719
      %v1736 = vcombine.high %v1720, %v1720
      %v1737 = vcombine.high %v1721, %v1721
      %v1738 = vcombine.high %v1722, %v1722
      %v1739 = vcombine.high %v1723, %v1723
      %v1740 = vcombine.high %v1724, %v1724
      %v1741 = vcombine.high %v1725, %v1725
      %v1750 = vrot.slane %v1718, 5
      %v1751 = vrot.slane %v1750, 4
      %v1752 = vrot.slane %v1734, 5
      %v1753 = vrot.slane %v1752, 4
      %v1754 = vrot.slane %v1719, 5
      %v1755 = vrot.slane %v1754, 4
      %v1756 = vrot.slane %v1735, 5
      %v1757 = vrot.slane %v1756, 4
      %v1758 = vrot.slane %v1720, 5
      %v1759 = vrot.slane %v1758, 4
      %v1760 = vrot.slane %v1736, 5
      %v1761 = vrot.slane %v1760, 4
      %v1762 = vrot.slane %v1721, 5
      %v1763 = vrot.slane %v1762, 4
      %v1764 = vrot.slane %v1737, 5
      %v1765 = vrot.slane %v1764, 4
      %v1766 = vrot.slane %v1722, 5
      %v1767 = vrot.slane %v1766, 4
      %v1768 = vrot.slane %v1738, 5
      %v1769 = vrot.slane %v1768, 4
      %v1770 = vrot.slane %v1723, 5
      %v1771 = vrot.slane %v1770, 4
      %v1772 = vrot.slane %v1739, 5
      %v1773 = vrot.slane %v1772, 4
      %v1774 = vrot.slane %v1724, 5
      %v1775 = vrot.slane %v1774, 4
      %v1776 = vrot.slane %v1740, 5
      %v1777 = vrot.slane %v1776, 4
      %v1778 = vrot.slane %v1725, 5
      %v1779 = vrot.slane %v1778, 4
      %v1780 = vrot.slane %v1741, 5
      %v1781 = vrot.slane %v1780, 4
      %v1798 = vmax.f32 %v1718, %v1751
      %v1799 = vmax.f32 %v1734, %v1753
      %v1800 = vmax.f32 %v1719, %v1755
      %v1801 = vmax.f32 %v1735, %v1757
      %v1802 = vmax.f32 %v1720, %v1759
      %v1803 = vmax.f32 %v1736, %v1761
      %v1804 = vmax.f32 %v1721, %v1763
      %v1805 = vmax.f32 %v1737, %v1765
      %v1806 = vmax.f32 %v1722, %v1767
      %v1807 = vmax.f32 %v1738, %v1769
      %v1808 = vmax.f32 %v1723, %v1771
      %v1809 = vmax.f32 %v1739, %v1773
      %v1810 = vmax.f32 %v1724, %v1775
      %v1811 = vmax.f32 %v1740, %v1777
      %v1812 = vmax.f32 %v1725, %v1779
      %v1813 = vmax.f32 %v1741, %v1781
      %v1814 = vrot.slane %v1718, 6
      %v1815 = vrot.slane %v1814, 4
      %v1816 = vrot.slane %v1734, 6
      %v1817 = vrot.slane %v1816, 4
      %v1818 = vrot.slane %v1719, 6
      %v1819 = vrot.slane %v1818, 4
      %v1820 = vrot.slane %v1735, 6
      %v1821 = vrot.slane %v1820, 4
      %v1822 = vrot.slane %v1720, 6
      %v1823 = vrot.slane %v1822, 4
      %v1824 = vrot.slane %v1736, 6
      %v1825 = vrot.slane %v1824, 4
      %v1826 = vrot.slane %v1721, 6
      %v1827 = vrot.slane %v1826, 4
      %v1828 = vrot.slane %v1737, 6
      %v1829 = vrot.slane %v1828, 4
      %v1830 = vrot.slane %v1722, 6
      %v1831 = vrot.slane %v1830, 4
      %v1832 = vrot.slane %v1738, 6
      %v1833 = vrot.slane %v1832, 4
      %v1834 = vrot.slane %v1723, 6
      %v1835 = vrot.slane %v1834, 4
      %v1836 = vrot.slane %v1739, 6
      %v1837 = vrot.slane %v1836, 4
      %v1838 = vrot.slane %v1724, 6
      %v1839 = vrot.slane %v1838, 4
      %v1840 = vrot.slane %v1740, 6
      %v1841 = vrot.slane %v1840, 4
      %v1842 = vrot.slane %v1725, 6
      %v1843 = vrot.slane %v1842, 4
      %v1844 = vrot.slane %v1741, 6
      %v1845 = vrot.slane %v1844, 4
      %v1862 = vmax.f32 %v1798, %v1815
      %v1863 = vmax.f32 %v1799, %v1817
      %v1864 = vmax.f32 %v1800, %v1819
      %v1865 = vmax.f32 %v1801, %v1821
      %v1866 = vmax.f32 %v1802, %v1823
      %v1867 = vmax.f32 %v1803, %v1825
      %v1868 = vmax.f32 %v1804, %v1827
      %v1869 = vmax.f32 %v1805, %v1829
      %v1870 = vmax.f32 %v1806, %v1831
      %v1871 = vmax.f32 %v1807, %v1833
      %v1872 = vmax.f32 %v1808, %v1835
      %v1873 = vmax.f32 %v1809, %v1837
      %v1874 = vmax.f32 %v1810, %v1839
      %v1875 = vmax.f32 %v1811, %v1841
      %v1876 = vmax.f32 %v1812, %v1843
      %v1877 = vmax.f32 %v1813, %v1845
      %v1878 = vrot.slane %v1718, 7
      %v1879 = vrot.slane %v1878, 4
      %v1880 = vrot.slane %v1734, 7
      %v1881 = vrot.slane %v1880, 4
      %v1882 = vrot.slane %v1719, 7
      %v1883 = vrot.slane %v1882, 4
      %v1884 = vrot.slane %v1735, 7
      %v1885 = vrot.slane %v1884, 4
      %v1886 = vrot.slane %v1720, 7
      %v1887 = vrot.slane %v1886, 4
      %v1888 = vrot.slane %v1736, 7
      %v1889 = vrot.slane %v1888, 4
      %v1890 = vrot.slane %v1721, 7
      %v1891 = vrot.slane %v1890, 4
      %v1892 = vrot.slane %v1737, 7
      %v1893 = vrot.slane %v1892, 4
      %v1894 = vrot.slane %v1722, 7
      %v1895 = vrot.slane %v1894, 4
      %v1896 = vrot.slane %v1738, 7
      %v1897 = vrot.slane %v1896, 4
      %v1898 = vrot.slane %v1723, 7
      %v1899 = vrot.slane %v1898, 4
      %v1900 = vrot.slane %v1739, 7
      %v1901 = vrot.slane %v1900, 4
      %v1902 = vrot.slane %v1724, 7
      %v1903 = vrot.slane %v1902, 4
      %v1904 = vrot.slane %v1740, 7
      %v1905 = vrot.slane %v1904, 4
      %v1906 = vrot.slane %v1725, 7
      %v1907 = vrot.slane %v1906, 4
      %v1908 = vrot.slane %v1741, 7
      %v1909 = vrot.slane %v1908, 4
      %v1926 = vmax.f32 %v1862, %v1879
      %v1927 = vmax.f32 %v1863, %v1881
      %v1928 = vmax.f32 %v1864, %v1883
      %v1929 = vmax.f32 %v1865, %v1885
      %v1930 = vmax.f32 %v1866, %v1887
      %v1931 = vmax.f32 %v1867, %v1889
      %v1932 = vmax.f32 %v1868, %v1891
      %v1933 = vmax.f32 %v1869, %v1893
      %v1934 = vmax.f32 %v1870, %v1895
      %v1935 = vmax.f32 %v1871, %v1897
      %v1936 = vmax.f32 %v1872, %v1899
      %v1937 = vmax.f32 %v1873, %v1901
      %v1938 = vmax.f32 %v1874, %v1903
      %v1939 = vmax.f32 %v1875, %v1905
      %v1940 = vmax.f32 %v1876, %v1907
      %v1941 = vmax.f32 %v1877, %v1909
      %1958 = vrot.lane.b32.xlu0 %v1926, 120
      %v1959 = vpop.permute.xlu0 %1958
      %1960 = vrot.lane.b32.xlu0 %v1927, 120
      %v1961 = vpop.permute.xlu0 %1960
      %1962 = vrot.lane.b32.xlu0 %v1928, 120
      %v1963 = vpop.permute.xlu0 %1962
      %1964 = vrot.lane.b32.xlu0 %v1929, 120
      %v1965 = vpop.permute.xlu0 %1964
      %1966 = vrot.lane.b32.xlu0 %v1930, 120
      %v1967 = vpop.permute.xlu0 %1966
      %1968 = vrot.lane.b32.xlu0 %v1931, 120
      %v1969 = vpop.permute.xlu0 %1968
      %1970 = vrot.lane.b32.xlu0 %v1932, 120
      %v1971 = vpop.permute.xlu0 %1970
      %1972 = vrot.lane.b32.xlu0 %v1933, 120
      %v1973 = vpop.permute.xlu0 %1972
      %1974 = vrot.lane.b32.xlu0 %v1934, 120
      %v1975 = vpop.permute.xlu0 %1974
      %1976 = vrot.lane.b32.xlu0 %v1935, 120
      %v1977 = vpop.permute.xlu0 %1976
      %1978 = vrot.lane.b32.xlu0 %v1936, 120
      %v1979 = vpop.permute.xlu0 %1978
      %1980 = vrot.lane.b32.xlu0 %v1937, 120
      %v1981 = vpop.permute.xlu0 %1980
      %1982 = vrot.lane.b32.xlu0 %v1938, 120
      %v1983 = vpop.permute.xlu0 %1982
      %1984 = vrot.lane.b32.xlu0 %v1939, 120
      %v1985 = vpop.permute.xlu0 %1984
      %1986 = vrot.lane.b32.xlu0 %v1940, 120
      %v1987 = vpop.permute.xlu0 %1986
      %1988 = vrot.lane.b32.xlu0 %v1941, 120
      %v1989 = vpop.permute.xlu0 %1988
      %1990 = vrot.lane.b32.xlu0 %v1926, 112
      %v1991 = vpop.permute.xlu0 %1990
      %1992 = vrot.lane.b32.xlu0 %v1927, 112
      %v1993 = vpop.permute.xlu0 %1992
      %1994 = vrot.lane.b32.xlu0 %v1928, 112
      %v1995 = vpop.permute.xlu0 %1994
      %1996 = vrot.lane.b32.xlu0 %v1929, 112
      %v1997 = vpop.permute.xlu0 %1996
      %1998 = vrot.lane.b32.xlu0 %v1930, 112
      %v1999 = vpop.permute.xlu0 %1998
      %2000 = vrot.lane.b32.xlu0 %v1931, 112
      %v2001 = vpop.permute.xlu0 %2000
      %2002 = vrot.lane.b32.xlu0 %v1932, 112
      %v2003 = vpop.permute.xlu0 %2002
      %2004 = vrot.lane.b32.xlu0 %v1933, 112
      %v2005 = vpop.permute.xlu0 %2004
      %2006 = vrot.lane.b32.xlu0 %v1934, 112
      %v2007 = vpop.permute.xlu0 %2006
      %2008 = vrot.lane.b32.xlu0 %v1935, 112
      %v2009 = vpop.permute.xlu0 %2008
      %2010 = vrot.lane.b32.xlu0 %v1936, 112
      %v2011 = vpop.permute.xlu0 %2010
      %2012 = vrot.lane.b32.xlu0 %v1937, 112
      %v2013 = vpop.permute.xlu0 %2012
      %2014 = vrot.lane.b32.xlu0 %v1938, 112
      %v2015 = vpop.permute.xlu0 %2014
      %2016 = vrot.lane.b32.xlu0 %v1939, 112
      %v2017 = vpop.permute.xlu0 %2016
      %2018 = vrot.lane.b32.xlu0 %v1940, 112
      %v2019 = vpop.permute.xlu0 %2018
      %2020 = vrot.lane.b32.xlu0 %v1941, 112
      %v2021 = vpop.permute.xlu0 %2020
      %2022 = vrot.lane.b32.xlu0 %v1926, 104
      %v2023 = vpop.permute.xlu0 %2022
      %2024 = vrot.lane.b32.xlu0 %v1927, 104
      %v2025 = vpop.permute.xlu0 %2024
      %2026 = vrot.lane.b32.xlu0 %v1928, 104
      %v2027 = vpop.permute.xlu0 %2026
      %2028 = vrot.lane.b32.xlu0 %v1929, 104
      %v2029 = vpop.permute.xlu0 %2028
      %2030 = vrot.lane.b32.xlu0 %v1930, 104
      %v2031 = vpop.permute.xlu0 %2030
      %2032 = vrot.lane.b32.xlu0 %v1931, 104
      %v2033 = vpop.permute.xlu0 %2032
      %2034 = vrot.lane.b32.xlu0 %v1932, 104
      %v2035 = vpop.permute.xlu0 %2034
      %2036 = vrot.lane.b32.xlu0 %v1933, 104
      %v2037 = vpop.permute.xlu0 %2036
      %2038 = vrot.lane.b32.xlu0 %v1934, 104
      %v2039 = vpop.permute.xlu0 %2038
      %2040 = vrot.lane.b32.xlu0 %v1935, 104
      %v2041 = vpop.permute.xlu0 %2040
      %2042 = vrot.lane.b32.xlu0 %v1936, 104
      %v2043 = vpop.permute.xlu0 %2042
      %2044 = vrot.lane.b32.xlu0 %v1937, 104
      %v2045 = vpop.permute.xlu0 %2044
      %2046 = vrot.lane.b32.xlu0 %v1938, 104
      %v2047 = vpop.permute.xlu0 %2046
      %2048 = vrot.lane.b32.xlu0 %v1939, 104
      %v2049 = vpop.permute.xlu0 %2048
      %2050 = vrot.lane.b32.xlu0 %v1940, 104
      %v2051 = vpop.permute.xlu0 %2050
      %2052 = vrot.lane.b32.xlu0 %v1941, 104
      %v2053 = vpop.permute.xlu0 %2052
      %vm2054 = vcmask 1044484
      %v2055 = vrot.slane %v1927, 7
      %vm2056 = vcmask 1041409
      %v2057 = vsel %vm2056, %v2055, %v1926
      %vm2058 = vcmask 1045509
      %v2059 = vsel %vm2058, %v2055, %v2057
      %v2060 = vrot.slane %v1928, 6
      %vm2061 = vcmask 1042434
      %v2062 = vsel %vm2061, %v2060, %v2059
      %vm2063 = vcmask 1046534
      %v2064 = vsel %vm2063, %v2060, %v2062
      %v2065 = vrot.slane %v1929, 5
      %vm2066 = vcmask 1043459
      %v2067 = vsel %vm2066, %v2065, %v2064
      %vm2068 = vcmask 1047559
      %v2069 = vsel %vm2068, %v2065, %v2067
      %v2070 = vrot.slane %v1961, 7
      %v2071 = vsel %vm2056, %v2070, %v1959
      %v2072 = vsel %vm2058, %v2070, %v2071
      %v2073 = vrot.slane %v1963, 6
      %v2074 = vsel %vm2061, %v2073, %v2072
      %v2075 = vsel %vm2063, %v2073, %v2074
      %v2076 = vrot.slane %v1965, 5
      %v2077 = vsel %vm2066, %v2076, %v2075
      %v2078 = vsel %vm2068, %v2076, %v2077
      %v2079 = vrot.slane %v1993, 7
      %v2080 = vsel %vm2056, %v2079, %v1991
      %v2081 = vsel %vm2058, %v2079, %v2080
      %v2082 = vrot.slane %v1995, 6
      %v2083 = vsel %vm2061, %v2082, %v2081
      %v2084 = vsel %vm2063, %v2082, %v2083
      %v2085 = vrot.slane %v1997, 5
      %v2086 = vsel %vm2066, %v2085, %v2084
      %v2087 = vsel %vm2068, %v2085, %v2086
      %v2088 = vrot.slane %v2025, 7
      %v2089 = vsel %vm2056, %v2088, %v2023
      %v2090 = vsel %vm2058, %v2088, %v2089
      %v2091 = vrot.slane %v2027, 6
      %v2092 = vsel %vm2061, %v2091, %v2090
      %v2093 = vsel %vm2063, %v2091, %v2092
      %v2094 = vrot.slane %v2029, 5
      %v2095 = vsel %vm2066, %v2094, %v2093
      %v2096 = vsel %vm2068, %v2094, %v2095
      %v2097 = vrot.slane %v1931, 7
      %v2098 = vsel %vm2056, %v2097, %v1930
      %v2099 = vsel %vm2058, %v2097, %v2098
      %v2100 = vrot.slane %v1932, 6
      %v2101 = vsel %vm2061, %v2100, %v2099
      %v2102 = vsel %vm2063, %v2100, %v2101
      %v2103 = vrot.slane %v1933, 5
      %v2104 = vsel %vm2066, %v2103, %v2102
      %v2105 = vsel %vm2068, %v2103, %v2104
      %v2106 = vrot.slane %v1969, 7
      %v2107 = vsel %vm2056, %v2106, %v1967
      %v2108 = vsel %vm2058, %v2106, %v2107
      %v2109 = vrot.slane %v1971, 6
      %v2110 = vsel %vm2061, %v2109, %v2108
      %v2111 = vsel %vm2063, %v2109, %v2110
      %v2112 = vrot.slane %v1973, 5
      %v2113 = vsel %vm2066, %v2112, %v2111
      %v2114 = vsel %vm2068, %v2112, %v2113
      %v2115 = vrot.slane %v2001, 7
      %v2116 = vsel %vm2056, %v2115, %v1999
      %v2117 = vsel %vm2058, %v2115, %v2116
      %v2118 = vrot.slane %v2003, 6
      %v2119 = vsel %vm2061, %v2118, %v2117
      %v2120 = vsel %vm2063, %v2118, %v2119
      %v2121 = vrot.slane %v2005, 5
      %v2122 = vsel %vm2066, %v2121, %v2120
      %v2123 = vsel %vm2068, %v2121, %v2122
      %v2124 = vrot.slane %v2033, 7
      %v2125 = vsel %vm2056, %v2124, %v2031
      %v2126 = vsel %vm2058, %v2124, %v2125
      %v2127 = vrot.slane %v2035, 6
      %v2128 = vsel %vm2061, %v2127, %v2126
      %v2129 = vsel %vm2063, %v2127, %v2128
      %v2130 = vrot.slane %v2037, 5
      %v2131 = vsel %vm2066, %v2130, %v2129
      %v2132 = vsel %vm2068, %v2130, %v2131
      %v2133 = vrot.slane %v1935, 7
      %v2134 = vsel %vm2056, %v2133, %v1934
      %v2135 = vsel %vm2058, %v2133, %v2134
      %v2136 = vrot.slane %v1936, 6
      %v2137 = vsel %vm2061, %v2136, %v2135
      %v2138 = vsel %vm2063, %v2136, %v2137
      %v2139 = vrot.slane %v1937, 5
      %v2140 = vsel %vm2066, %v2139, %v2138
      %v2141 = vsel %vm2068, %v2139, %v2140
      %v2142 = vrot.slane %v1977, 7
      %v2143 = vsel %vm2056, %v2142, %v1975
      %v2144 = vsel %vm2058, %v2142, %v2143
      %v2145 = vrot.slane %v1979, 6
      %v2146 = vsel %vm2061, %v2145, %v2144
      %v2147 = vsel %vm2063, %v2145, %v2146
      %v2148 = vrot.slane %v1981, 5
      %v2149 = vsel %vm2066, %v2148, %v2147
      %v2150 = vsel %vm2068, %v2148, %v2149
      %v2151 = vrot.slane %v2009, 7
      %v2152 = vsel %vm2056, %v2151, %v2007
      %v2153 = vsel %vm2058, %v2151, %v2152
      %v2154 = vrot.slane %v2011, 6
      %v2155 = vsel %vm2061, %v2154, %v2153
      %v2156 = vsel %vm2063, %v2154, %v2155
      %v2157 = vrot.slane %v2013, 5
      %v2158 = vsel %vm2066, %v2157, %v2156
      %v2159 = vsel %vm2068, %v2157, %v2158
      %v2160 = vrot.slane %v2041, 7
      %v2161 = vsel %vm2056, %v2160, %v2039
      %v2162 = vsel %vm2058, %v2160, %v2161
      %v2163 = vrot.slane %v2043, 6
      %v2164 = vsel %vm2061, %v2163, %v2162
      %v2165 = vsel %vm2063, %v2163, %v2164
      %v2166 = vrot.slane %v2045, 5
      %v2167 = vsel %vm2066, %v2166, %v2165
      %v2168 = vsel %vm2068, %v2166, %v2167
      %v2169 = vrot.slane %v1939, 7
      %v2170 = vsel %vm2056, %v2169, %v1938
      %v2171 = vsel %vm2058, %v2169, %v2170
      %v2172 = vrot.slane %v1940, 6
      %v2173 = vsel %vm2061, %v2172, %v2171
      %v2174 = vsel %vm2063, %v2172, %v2173
      %v2175 = vrot.slane %v1941, 5
      %v2176 = vsel %vm2066, %v2175, %v2174
      %v2177 = vsel %vm2068, %v2175, %v2176
      %v2178 = vrot.slane %v1985, 7
      %v2179 = vsel %vm2056, %v2178, %v1983
      %v2180 = vsel %vm2058, %v2178, %v2179
      %v2181 = vrot.slane %v1987, 6
      %v2182 = vsel %vm2061, %v2181, %v2180
      %v2183 = vsel %vm2063, %v2181, %v2182
      %v2184 = vrot.slane %v1989, 5
      %v2185 = vsel %vm2066, %v2184, %v2183
      %v2186 = vsel %vm2068, %v2184, %v2185
      %v2187 = vrot.slane %v2017, 7
      %v2188 = vsel %vm2056, %v2187, %v2015
      %v2189 = vsel %vm2058, %v2187, %v2188
      %v2190 = vrot.slane %v2019, 6
      %v2191 = vsel %vm2061, %v2190, %v2189
      %v2192 = vsel %vm2063, %v2190, %v2191
      %v2193 = vrot.slane %v2021, 5
      %v2194 = vsel %vm2066, %v2193, %v2192
      %v2195 = vsel %vm2068, %v2193, %v2194
      %v2196 = vrot.slane %v2049, 7
      %v2197 = vsel %vm2056, %v2196, %v2047
      %v2198 = vsel %vm2058, %v2196, %v2197
      %v2199 = vrot.slane %v2051, 6
      %v2200 = vsel %vm2061, %v2199, %v2198
      %v2201 = vsel %vm2063, %v2199, %v2200
      %v2202 = vrot.slane %v2053, 5
      %v2203 = vsel %vm2066, %v2202, %v2201
      %v2204 = vsel %vm2068, %v2202, %v2203
      %v2221 = vcombine.low %v2069, %v2087
      %v2223 = vunpack.c.l.s4 1983009808
      %v2224 = vunpack.c.0.s8 %v2223
      %v2225 = vlaneseq
      %v2226 = vshrl.u32 %v2225, 7
      %v2227 = vsub.s32 %v2224, %v2226
      %v2228 = vrot.slane %v2221, %v2227
      %v2229 = vcombine.low %v2078, %v2096
      %v2231 = vunpack.c.l.s4 1983009808
      %v2232 = vunpack.c.0.s8 %v2231
      %v2233 = vlaneseq
      %v2234 = vshrl.u32 %v2233, 7
      %v2235 = vsub.s32 %v2232, %v2234
      %v2236 = vrot.slane %v2229, %v2235
      %v2237 = vcombine.low %v2228, %v2236
      %v2238 = vcombine.high %v2228, %v2236
      %v2240 = vunpack.c.l.s4 1934713408
      %v2241 = vunpack.c.0.s8 %v2240
      %v2242 = vlaneseq
      %v2243 = vshrl.u32 %v2242, 7
      %v2244 = vsub.s32 %v2241, %v2243
      %v2245 = vrot.slane %v2237, %v2244
      %v2247 = vunpack.c.l.s4 1934713408
      %v2248 = vunpack.c.0.s8 %v2247
      %v2249 = vlaneseq
      %v2250 = vshrl.u32 %v2249, 7
      %v2251 = vsub.s32 %v2248, %v2250
      %v2252 = vrot.slane %v2238, %v2251
      %v2253 = vcombine.high %v2245, 0.0
      %v2254 = vcombine.high %v2252, 0.0
      %v2255 = vcombine.low %v2105, %v2123
      %v2257 = vunpack.c.l.s4 1983009808
      %v2258 = vunpack.c.0.s8 %v2257
      %v2259 = vlaneseq
      %v2260 = vshrl.u32 %v2259, 7
      %v2261 = vsub.s32 %v2258, %v2260
      %v2262 = vrot.slane %v2255, %v2261
      %v2263 = vcombine.low %v2114, %v2132
      %v2265 = vunpack.c.l.s4 1983009808
      %v2266 = vunpack.c.0.s8 %v2265
      %v2267 = vlaneseq
      %v2268 = vshrl.u32 %v2267, 7
      %v2269 = vsub.s32 %v2266, %v2268
      %v2270 = vrot.slane %v2263, %v2269
      %v2271 = vcombine.low %v2262, %v2270
      %v2272 = vcombine.high %v2262, %v2270
      %v2274 = vunpack.c.l.s4 1934713408
      %v2275 = vunpack.c.0.s8 %v2274
      %v2276 = vlaneseq
      %v2277 = vshrl.u32 %v2276, 7
      %v2278 = vsub.s32 %v2275, %v2277
      %v2279 = vrot.slane %v2271, %v2278
      %v2281 = vunpack.c.l.s4 1934713408
      %v2282 = vunpack.c.0.s8 %v2281
      %v2283 = vlaneseq
      %v2284 = vshrl.u32 %v2283, 7
      %v2285 = vsub.s32 %v2282, %v2284
      %v2286 = vrot.slane %v2272, %v2285
      %v2287 = vcombine.high %v2279, 0.0
      %v2288 = vcombine.high %v2286, 0.0
      %v2289 = vcombine.low %v2141, %v2159
      %v2291 = vunpack.c.l.s4 1983009808
      %v2292 = vunpack.c.0.s8 %v2291
      %v2293 = vlaneseq
      %v2294 = vshrl.u32 %v2293, 7
      %v2295 = vsub.s32 %v2292, %v2294
      %v2296 = vrot.slane %v2289, %v2295
      %v2297 = vcombine.low %v2150, %v2168
      %v2299 = vunpack.c.l.s4 1983009808
      %v2300 = vunpack.c.0.s8 %v2299
      %v2301 = vlaneseq
      %v2302 = vshrl.u32 %v2301, 7
      %v2303 = vsub.s32 %v2300, %v2302
      %v2304 = vrot.slane %v2297, %v2303
      %v2305 = vcombine.low %v2296, %v2304
      %v2306 = vcombine.high %v2296, %v2304
      %v2308 = vunpack.c.l.s4 1934713408
      %v2309 = vunpack.c.0.s8 %v2308
      %v2310 = vlaneseq
      %v2311 = vshrl.u32 %v2310, 7
      %v2312 = vsub.s32 %v2309, %v2311
      %v2313 = vrot.slane %v2305, %v2312
      %v2315 = vunpack.c.l.s4 1934713408
      %v2316 = vunpack.c.0.s8 %v2315
      %v2317 = vlaneseq
      %v2318 = vshrl.u32 %v2317, 7
      %v2319 = vsub.s32 %v2316, %v2318
      %v2320 = vrot.slane %v2306, %v2319
      %v2321 = vcombine.high %v2313, 0.0
      %v2322 = vcombine.high %v2320, 0.0
      %v2323 = vcombine.low %v2177, %v2195
      %v2325 = vunpack.c.l.s4 1983009808
      %v2326 = vunpack.c.0.s8 %v2325
      %v2327 = vlaneseq
      %v2328 = vshrl.u32 %v2327, 7
      %v2329 = vsub.s32 %v2326, %v2328
      %v2330 = vrot.slane %v2323, %v2329
      %v2331 = vcombine.low %v2186, %v2204
      %v2333 = vunpack.c.l.s4 1983009808
      %v2334 = vunpack.c.0.s8 %v2333
      %v2335 = vlaneseq
      %v2336 = vshrl.u32 %v2335, 7
      %v2337 = vsub.s32 %v2334, %v2336
      %v2338 = vrot.slane %v2331, %v2337
      %v2339 = vcombine.low %v2330, %v2338
      %v2340 = vcombine.high %v2330, %v2338
      %v2342 = vunpack.c.l.s4 1934713408
      %v2343 = vunpack.c.0.s8 %v2342
      %v2344 = vlaneseq
      %v2345 = vshrl.u32 %v2344, 7
      %v2346 = vsub.s32 %v2343, %v2345
      %v2347 = vrot.slane %v2339, %v2346
      %v2349 = vunpack.c.l.s4 1934713408
      %v2350 = vunpack.c.0.s8 %v2349
      %v2351 = vlaneseq
      %v2352 = vshrl.u32 %v2351, 7
      %v2353 = vsub.s32 %v2350, %v2352
      %v2354 = vrot.slane %v2340, %v2353
      %v2355 = vcombine.high %v2347, 0.0
      %v2356 = vcombine.high %v2354, 0.0
      %vm2357 = vcmask 60416
      %v2358 = vsel %vm2357, %v2245, -inf
      %2359 = vmax.xlane.f32.xlu0 %v2358
      %v2360 = vpop.xlane.xlu0 %2359
      %v2361 = vsel %vm2357, %v2253, -inf
      %2362 = vmax.xlane.f32.xlu0 %v2361
      %v2363 = vpop.xlane.xlu0 %2362
      %v2364 = vsel %vm2357, %v2252, -inf
      %2365 = vmax.xlane.f32.xlu0 %v2364
      %v2366 = vpop.xlane.xlu0 %2365
      %v2367 = vsel %vm2357, %v2254, -inf
      %2368 = vmax.xlane.f32.xlu0 %v2367
      %v2369 = vpop.xlane.xlu0 %2368
      %v2370 = vsel %vm2357, %v2279, -inf
      %2371 = vmax.xlane.f32.xlu0 %v2370
      %v2372 = vpop.xlane.xlu0 %2371
      %v2373 = vsel %vm2357, %v2287, -inf
      %2374 = vmax.xlane.f32.xlu0 %v2373
      %v2375 = vpop.xlane.xlu0 %2374
      %v2376 = vsel %vm2357, %v2286, -inf
      %2377 = vmax.xlane.f32.xlu0 %v2376
      %v2378 = vpop.xlane.xlu0 %2377
      %v2379 = vsel %vm2357, %v2288, -inf
      %2380 = vmax.xlane.f32.xlu0 %v2379
      %v2381 = vpop.xlane.xlu0 %2380
      %v2382 = vsel %vm2357, %v2313, -inf
      %2383 = vmax.xlane.f32.xlu0 %v2382
      %v2384 = vpop.xlane.xlu0 %2383
      %v2385 = vsel %vm2357, %v2321, -inf
      %2386 = vmax.xlane.f32.xlu0 %v2385
      %v2387 = vpop.xlane.xlu0 %2386
      %v2388 = vsel %vm2357, %v2320, -inf
      %2389 = vmax.xlane.f32.xlu0 %v2388
      %v2390 = vpop.xlane.xlu0 %2389
      %v2391 = vsel %vm2357, %v2322, -inf
      %2392 = vmax.xlane.f32.xlu0 %v2391
      %v2393 = vpop.xlane.xlu0 %2392
      %v2394 = vsel %vm2357, %v2347, -inf
      %2395 = vmax.xlane.f32.xlu0 %v2394
      %v2396 = vpop.xlane.xlu0 %2395
      %v2397 = vsel %vm2357, %v2355, -inf
      %2398 = vmax.xlane.f32.xlu0 %v2397
      %v2399 = vpop.xlane.xlu0 %2398
      %v2400 = vsel %vm2357, %v2354, -inf
      %2401 = vmax.xlane.f32.xlu0 %v2400
      %v2402 = vpop.xlane.xlu0 %2401
      %v2403 = vsel %vm2357, %v2356, -inf
      %2404 = vmax.xlane.f32.xlu0 %v2403
      %v2405 = vpop.xlane.xlu0 %2404
      %v2422 = vlaneseq
      %v2423 = vand.u32 %v2422, 127
      %v2424 = vlaneseq
      %v2425 = vshrl.u32 %v2424, 7
      %v2426 = vsub.s32 %v2423, %v2425
      %v2427 = vrot.slane %v2360, %v2426
      %v2428 = vlaneseq
      %v2429 = vshrl.u32 %v2428, 7
      %v2430 = vsub.s32 %v2423, %v2429
      %v2431 = vrot.slane %v2363, %v2430
      %v2432 = vlaneseq
      %v2433 = vshrl.u32 %v2432, 7
      %v2434 = vsub.s32 %v2423, %v2433
      %v2435 = vrot.slane %v2366, %v2434
      %v2436 = vlaneseq
      %v2437 = vshrl.u32 %v2436, 7
      %v2438 = vsub.s32 %v2423, %v2437
      %v2439 = vrot.slane %v2369, %v2438
      %v2440 = vlaneseq
      %v2441 = vshrl.u32 %v2440, 7
      %v2442 = vsub.s32 %v2423, %v2441
      %v2443 = vrot.slane %v2372, %v2442
      %v2444 = vlaneseq
      %v2445 = vshrl.u32 %v2444, 7
      %v2446 = vsub.s32 %v2423, %v2445
      %v2447 = vrot.slane %v2375, %v2446
      %v2448 = vlaneseq
      %v2449 = vshrl.u32 %v2448, 7
      %v2450 = vsub.s32 %v2423, %v2449
      %v2451 = vrot.slane %v2378, %v2450
      %v2452 = vlaneseq
      %v2453 = vshrl.u32 %v2452, 7
      %v2454 = vsub.s32 %v2423, %v2453
      %v2455 = vrot.slane %v2381, %v2454
      %v2456 = vlaneseq
      %v2457 = vshrl.u32 %v2456, 7
      %v2458 = vsub.s32 %v2423, %v2457
      %v2459 = vrot.slane %v2384, %v2458
      %v2460 = vlaneseq
      %v2461 = vshrl.u32 %v2460, 7
      %v2462 = vsub.s32 %v2423, %v2461
      %v2463 = vrot.slane %v2387, %v2462
      %v2464 = vlaneseq
      %v2465 = vshrl.u32 %v2464, 7
      %v2466 = vsub.s32 %v2423, %v2465
      %v2467 = vrot.slane %v2390, %v2466
      %v2468 = vlaneseq
      %v2469 = vshrl.u32 %v2468, 7
      %v2470 = vsub.s32 %v2423, %v2469
      %v2471 = vrot.slane %v2393, %v2470
      %v2472 = vlaneseq
      %v2473 = vshrl.u32 %v2472, 7
      %v2474 = vsub.s32 %v2423, %v2473
      %v2475 = vrot.slane %v2396, %v2474
      %v2476 = vlaneseq
      %v2477 = vshrl.u32 %v2476, 7
      %v2478 = vsub.s32 %v2423, %v2477
      %v2479 = vrot.slane %v2399, %v2478
      %v2480 = vlaneseq
      %v2481 = vshrl.u32 %v2480, 7
      %v2482 = vsub.s32 %v2423, %v2481
      %v2483 = vrot.slane %v2402, %v2482
      %v2484 = vlaneseq
      %v2485 = vshrl.u32 %v2484, 7
      %v2486 = vsub.s32 %v2423, %v2485
      %v2487 = vrot.slane %v2405, %v2486
      %v2488 = vsel %vm2056, %v2431, %v2427
      %v2489 = vsel %vm2061, %v2435, %v2488
      %v2490 = vsel %vm2066, %v2439, %v2489
      %v2491 = vsel %vm2054, %v2443, %v2490
      %v2492 = vsel %vm2058, %v2447, %v2491
      %v2493 = vsel %vm2063, %v2451, %v2492
      %v2494 = vsel %vm2068, %v2455, %v2493
      %v2495 = vsel %vm2056, %v2463, %v2459
      %v2496 = vsel %vm2061, %v2467, %v2495
      %v2497 = vsel %vm2066, %v2471, %v2496
      %v2498 = vsel %vm2054, %v2475, %v2497
      %v2499 = vsel %vm2058, %v2479, %v2498
      %v2500 = vsel %vm2063, %v2483, %v2499
      %v2501 = vsel %vm2068, %v2487, %v2500
      %2504 = vxpose.xlu0.b32.start [1/16] %v2494, 128
      %2505 = vxpose.xlu0.b32.cont [2/16] %v2501, 128
      %2506 = vxpose.xlu0.b32.cont [3/16] 0.0, 128
      %2507 = vxpose.xlu0.b32.cont [4/16] 0.0, 128
      %2508 = vxpose.xlu0.b32.cont [5/16] 0.0, 128
      %2509 = vxpose.xlu0.b32.cont [6/16] 0.0, 128
      %2510 = vxpose.xlu0.b32.cont [7/16] 0.0, 128
      %2511 = vxpose.xlu0.b32.cont [8/16] 0.0, 128
      %2512 = vxpose.xlu0.b32.cont [9/16] 0.0, 128
      %2513 = vxpose.xlu0.b32.cont [10/16] 0.0, 128
      %2514 = vxpose.xlu0.b32.cont [11/16] 0.0, 128
      %2515 = vxpose.xlu0.b32.cont [12/16] 0.0, 128
      %2516 = vxpose.xlu0.b32.cont [13/16] 0.0, 128
      %2517 = vxpose.xlu0.b32.cont [14/16] 0.0, 128
      %2518 = vxpose.xlu0.b32.cont [15/16] 0.0, 128
      %2519 = vxpose.xlu0.b32.end [16/16] 0.0, 128
      %v2520 = vpop.trf.xlu0
      %v2521 = vpop.trf.xlu0
      %v2522 = vpop.trf.xlu0
      %v2523 = vpop.trf.xlu0
      %v2524 = vpop.trf.xlu0
      %v2525 = vpop.trf.xlu0
      %v2526 = vpop.trf.xlu0
      %v2527 = vpop.trf.xlu0
      %v2528 = vpop.trf.xlu0
      %v2529 = vpop.trf.xlu0
      %v2530 = vpop.trf.xlu0
      %v2531 = vpop.trf.xlu0
      %v2532 = vpop.trf.xlu0
      %v2533 = vpop.trf.xlu0
      %v2534 = vpop.trf.xlu0
      %v2535 = vpop.trf.xlu0
      %vm2536 = vcmask 125952
      %2537 = vst.msk [vmem:[%s168] sm:$0xf] %vm2536, %v2520
      %p2538 = scmp.lt.s32.totalorder %s14, 1
      %s2539 = scalar_select %p2538, %s14, 1
      %s2540 = smul.addr %s2539, 4
      %s2541 = scalar_lea.vmem %s3, %s2540
      // Predicated region
      $region33: #{_lambda_.13} parent=31 // pred_check
        %p2542 = pneg %p100
      $region34: #{_lambda_.13} parent=31 // pred_check_branch
        %2544 = sbr.rel (%p2542) target = $region36
      $region35: #{_lambda_.13} parent=31 // pred_region
        _
      $region36: #{_lambda_.13} parent=31 // pred_fallthru
        _
    $region32: #{_lambda_.13} parent=5 // pred_fallthru
      _
    %p2545 = scmp.le.s32.totalorder 2, %s9
    // Predicated region
    $region37: #{_lambda_.13} parent=5 // pred_check
      %p2546 = pneg %p2545
    $region38: #{_lambda_.13} parent=5 // pred_check_branch
      %2548 = sbr.rel (%p2546) target = $region40
    $region39: #{_lambda_.13} parent=5 // pred_region
      %s2549 = ssub.s32 %s9, 2
      // Predicated region
      $region41: #{_lambda_.13} parent=39 // pred_check
        %p2550 = pneg %p106
      $region42: #{_lambda_.13} parent=39 // pred_check_branch
        %2552 = sbr.rel (%p2550) target = $region44
      $region43: #{_lambda_.13} parent=39 // pred_region
        %p2553 = scmp.lt.s32.totalorder %s15, 1
        %s2554 = scalar_select %p2553, %s15, 1
        %s2555 = smul.addr %s2554, 4
        %s2556 = scalar_lea.vmem %s3, %s2555
      $region44: #{_lambda_.13} parent=39 // pred_fallthru
        _
    $region40: #{_lambda_.13} parent=5 // pred_fallthru
      _
  $region6: #{_lambda_.13} parent=0 // loop_footer
    %s13 = sadd.s32 1, %s9
  $region7: #{_lambda_.13} parent=0 // loop_footer_branch
    %8 = sbr.rel target = $region3
  $region8: #{_lambda_.13} parent=0 // loop_exit
    _

// kernel: _lambda_.14
$region0: #{_lambda_.14}
  #allocation0 [shape = 'u32[]', space=smem, size = 0x4, offset = 0x4, fixed_abs, tag = 'smem constant byte address 0x4 - core index']
  #allocation1 [shape = 'u32[144,128]{1,0:T(1,128)}', space=vmem, size = 0x12000, scoped, tag = 'internal scratch']
  %s0 = inlined_call_operand.vmem [shape: f32[1,128], index: 0, kind: input, shape index: {}]
  %s1 = inlined_call_operand.vmem [shape: bf16[128,256], index: 1, kind: input, shape index: {}]
  %s2 = inlined_call_operand.vmem [shape: f32[1,256], index: 2, kind: input, shape index: {}]
  %s3 = inlined_call_operand.vmem [shape: f32[1,256], index: 3, kind: output, shape index: {}]
  %s4 = sld [smem:[#allocation0]]
  $region30: #{_lambda_.14} parent=0
    _
  %s6 = ssub.s32 1, %s4
  %s7 = scalar_select 0, %s6, %s4
  // Predicated region
  $region2: #{_lambda_.14} parent=0 // pred_check
    _
  $region3: #{_lambda_.14} parent=0 // pred_check_branch
    %9 = sbr.rel (0) target = $region5
  $region4: #{_lambda_.14} parent=0 // pred_region
    _
  $region5: #{_lambda_.14} parent=0 // pred_fallthru
    _
  // Predicated region
  $region6: #{_lambda_.14} parent=0 // pred_check
    _
  $region7: #{_lambda_.14} parent=0 // pred_check_branch
    %11 = sbr.rel (0) target = $region9
  $region8: #{_lambda_.14} parent=0 // pred_region
    _
  $region9: #{_lambda_.14} parent=0 // pred_fallthru
    _
  // Predicated region
  $region10: #{_lambda_.14} parent=0 // pred_check
    _
  $region11: #{_lambda_.14} parent=0 // pred_check_branch
    %13 = sbr.rel (0) target = $region13
  $region12: #{_lambda_.14} parent=0 // pred_region
    _
  $region13: #{_lambda_.14} parent=0 // pred_fallthru
    _
  %p15 = scmp.eq.s32.totalorder 0, 0
  // Predicated region
  $region14: #{_lambda_.14} parent=0 // pred_check
    %p16 = pneg %p15
  $region15: #{_lambda_.14} parent=0 // pred_check_branch
    %18 = sbr.rel (%p16) target = $region17
  $region16: #{_lambda_.14} parent=0 // pred_region
    %v19 = vlaneseq
    %vm20 = vcmp.ge.s32.totalorder %v19, 0
    %vm21 = vcmp.lt.s32.totalorder %v19, 256
    %vm22 = vmand %vm20, %vm21
    %23 = vst.msk [vmem:[%s3] sm:$0x3] %vm22, 0.0
  $region17: #{_lambda_.14} parent=0 // pred_fallthru
    _
  %v24 = vld [vmem:[%s3] sm:$0x3]
  %v25 = vld [vmem:[%s0] sm:$0x1]
  %v26 = vpack.c.bf16 %v25, %v25
  %v27 = vld [vmem:[%s1] sm:$0xff]
  %v28 = vld [vmem:[%s1 + $0x8] sm:$0xff]
  %v29 = vld [vmem:[%s1 + $0x10] sm:$0xff]
  %v30 = vld [vmem:[%s1 + $0x18] sm:$0xff]
  %v31 = vld [vmem:[%s1 + $0x20] sm:$0xff]
  %v32 = vld [vmem:[%s1 + $0x28] sm:$0xff]
  %v33 = vld [vmem:[%s1 + $0x30] sm:$0xff]
  %v34 = vld [vmem:[%s1 + $0x38] sm:$0xff]
  %v35 = vld [vmem:[%s1 + $0x40] sm:$0xff]
  %v36 = vld [vmem:[%s1 + $0x48] sm:$0xff]
  %v37 = vld [vmem:[%s1 + $0x50] sm:$0xff]
  %v38 = vld [vmem:[%s1 + $0x58] sm:$0xff]
  %v39 = vld [vmem:[%s1 + $0x60] sm:$0xff]
  %v40 = vld [vmem:[%s1 + $0x68] sm:$0xff]
  %v41 = vld [vmem:[%s1 + $0x70] sm:$0xff]
  %v42 = vld [vmem:[%s1 + $0x78] sm:$0xff]
  %v59 = vunpack.c.l.b16 %v27
  %v60 = vunpack.c.h.b16 %v27
  %v61 = vunpack.c.l.b16 %v28
  %v62 = vunpack.c.h.b16 %v28
  %v63 = vunpack.c.l.b16 %v29
  %v64 = vunpack.c.h.b16 %v29
  %v65 = vunpack.c.l.b16 %v30
  %v66 = vunpack.c.h.b16 %v30
  %v67 = vunpack.c.l.b16 %v31
  %v68 = vunpack.c.h.b16 %v31
  %v69 = vunpack.c.l.b16 %v32
  %v70 = vunpack.c.h.b16 %v32
  %v71 = vunpack.c.l.b16 %v33
  %v72 = vunpack.c.h.b16 %v33
  %v73 = vunpack.c.l.b16 %v34
  %v74 = vunpack.c.h.b16 %v34
  %v75 = vunpack.c.l.b16 %v35
  %v76 = vunpack.c.h.b16 %v35
  %v77 = vunpack.c.l.b16 %v36
  %v78 = vunpack.c.h.b16 %v36
  %v79 = vunpack.c.l.b16 %v37
  %v80 = vunpack.c.h.b16 %v37
  %v81 = vunpack.c.l.b16 %v38
  %v82 = vunpack.c.h.b16 %v38
  %v83 = vunpack.c.l.b16 %v39
  %v84 = vunpack.c.h.b16 %v39
  %v85 = vunpack.c.l.b16 %v40
  %v86 = vunpack.c.h.b16 %v40
  %v87 = vunpack.c.l.b16 %v41
  %v88 = vunpack.c.h.b16 %v41
  %v89 = vunpack.c.l.b16 %v42
  %v90 = vunpack.c.h.b16 %v42
  %v91 = vpack.c.b16 %v61, %v59
  %v92 = vpack.c.b16 %v62, %v60
  %v93 = vpack.c.b16 %v65, %v63
  %v94 = vpack.c.b16 %v66, %v64
  %v95 = vpack.c.b16 %v69, %v67
  %v96 = vpack.c.b16 %v70, %v68
  %v97 = vpack.c.b16 %v73, %v71
  %v98 = vpack.c.b16 %v74, %v72
  %v99 = vpack.c.b16 %v77, %v75
  %v100 = vpack.c.b16 %v78, %v76
  %v101 = vpack.c.b16 %v81, %v79
  %v102 = vpack.c.b16 %v82, %v80
  %v103 = vpack.c.b16 %v85, %v83
  %v104 = vpack.c.b16 %v86, %v84
  %v105 = vpack.c.b16 %v89, %v87
  %v106 = vpack.c.b16 %v90, %v88
  %123 = vmatprep.subr.bf16.mxu0 %v92
  %124 = vmatpush1.bf16.msra.mxu0 %v91
  %125 = vmatprep.subr.bf16.mxu0 %v94
  %126 = vmatpush1.bf16.msra.mxu0 %v93
  %127 = vmatprep.subr.bf16.mxu0 %v96
  %128 = vmatpush1.bf16.msra.mxu0 %v95
  %129 = vmatprep.subr.bf16.mxu0 %v98
  %130 = vmatpush1.bf16.msra.mxu0 %v97
  %131 = vmatprep.subr.bf16.mxu0 %v100
  %132 = vmatpush1.bf16.msra.mxu0 %v99
  %133 = vmatprep.subr.bf16.mxu0 %v102
  %134 = vmatpush1.bf16.msra.mxu0 %v101
  %135 = vmatprep.subr.bf16.mxu0 %v104
  %136 = vmatpush1.bf16.msra.mxu0 %v103
  %137 = vmatprep.subr.bf16.mxu0 %v106
  %138 = vmatpush1.bf16.msra.mxu0 %v105
  %139 = vmatprep.subr.bf16.mxu0 0
  %140 = vmatpush1.bf16.msra.mxu0 0
  %141 = vmatprep.subr.bf16.mxu0 0
  %142 = vmatpush1.bf16.msra.mxu0 0
  %143 = vmatprep.subr.bf16.mxu0 0
  %144 = vmatpush1.bf16.msra.mxu0 0
  %145 = vmatprep.subr.bf16.mxu0 0
  %146 = vmatpush1.bf16.msra.mxu0 0
  %147 = vmatprep.subr.bf16.mxu0 0
  %148 = vmatpush1.bf16.msra.mxu0 0
  %149 = vmatprep.subr.bf16.mxu0 0
  %150 = vmatpush1.bf16.msra.mxu0 0
  %151 = vmatprep.subr.bf16.mxu0 0
  %152 = vmatpush1.bf16.msra.mxu0 0
  %153 = vmatprep.subr.bf16.mxu0 0
  %154 = vmatpush1.bf16.msra.mxu0 0
  %155 = vmatprep.mubr.bf16.mxu0 0
  %156 = vmatmul.mubr.bf16.gmra.mrb[0].mxu0 %v26
  %v157 = vpop.f32.mrb[0].mxu0
  %v158 = vadd.f32 0.0, %v157
  %v159 = vpop.f32.mrb[0].mxu0
  %v160 = vadd.f32 0.0, %v159
  %v161 = vpop.f32.mrb[0].mxu0
  %v162 = vpop.f32.mrb[0].mxu0
  %163 = vdwg.mxu0
  %v166 = vcombine.low %v158, %v160
  %v168 = vunpack.c.l.s4 1966171168
  %v169 = vunpack.c.0.s8 %v168
  %v170 = vlaneseq
  %v171 = vshrl.u32 %v170, 7
  %v172 = vsub.s32 %v169, %v171
  %v173 = vrot.slane %v166, %v172
  %v175 = vunpack.c.l.s4 1966171168
  %v176 = vunpack.c.0.s8 %v175
  %v177 = vlaneseq
  %v178 = vshrl.u32 %v177, 7
  %v179 = vsub.s32 %v176, %v178
  %v180 = vrot.slane %v173, %v179
  %v182 = vadd.f32 %v24, %v180
  %v183 = vlaneseq
  %vm184 = vcmp.ge.s32.totalorder %v183, 0
  %vm185 = vcmp.lt.s32.totalorder %v183, 256
  %vm186 = vmand %vm184, %vm185
  %187 = vst.msk [vmem:[%s3] sm:$0x3] %vm186, %v182
  // Predicated region
  $region18: #{_lambda_.14} parent=0 // pred_check
    %p188 = pneg %p15
  $region19: #{_lambda_.14} parent=0 // pred_check_branch
    %190 = sbr.rel (%p188) target = $region21
  $region20: #{_lambda_.14} parent=0 // pred_region
    %v191 = vld [vmem:[%s3] sm:$0x3]
    %v192 = vld [vmem:[%s2] sm:$0x3]
    %v193 = vadd.f32 %v191, %v192
    %v194 = vmax.f32 %v193, 0.0
    %195 = vst.msk [vmem:[%s3] sm:$0x3] %vm186, %v194
  $region21: #{_lambda_.14} parent=0 // pred_fallthru
    _
  // Predicated region
  $region22: #{_lambda_.14} parent=0 // pred_check
    _
  $region23: #{_lambda_.14} parent=0 // pred_check_branch
    %197 = sbr.rel (0) target = $region25
  $region24: #{_lambda_.14} parent=0 // pred_region
    _
  $region25: #{_lambda_.14} parent=0 // pred_fallthru
    _
  // Predicated region
  $region26: #{_lambda_.14} parent=0 // pred_check
    _
  $region27: #{_lambda_.14} parent=0 // pred_check_branch
    %199 = sbr.rel (0) target = $region29
  $region28: #{_lambda_.14} parent=0 // pred_region
    _
  $region29: #{_lambda_.14} parent=0 // pred_fallthru
    _

// kernel: _lambda_.15
$region0: #{_lambda_.15}
  #allocation0 [shape = 'u32[]', space=smem, size = 0x4, offset = 0x4, fixed_abs, tag = 'smem constant byte address 0x4 - core index']
  #allocation1 [shape = 'u32[144,128]{1,0:T(1,128)}', space=vmem, size = 0x12000, scoped, tag = 'internal scratch']
  %s0 = inlined_call_operand.vmem [shape: f32[1,256], index: 0, kind: input, shape index: {}]
  %s1 = inlined_call_operand.vmem [shape: bf16[256,256], index: 1, kind: input, shape index: {}]
  %s2 = inlined_call_operand.vmem [shape: f32[1,256], index: 2, kind: input, shape index: {}]
  %s3 = inlined_call_operand.vmem [shape: f32[1,256], index: 3, kind: output, shape index: {}]
  %s4 = sld [smem:[#allocation0]]
  $region30: #{_lambda_.15} parent=0
    _
  %s6 = ssub.s32 1, %s4
  %s7 = scalar_select 0, %s6, %s4
  // Predicated region
  $region2: #{_lambda_.15} parent=0 // pred_check
    _
  $region3: #{_lambda_.15} parent=0 // pred_check_branch
    %9 = sbr.rel (0) target = $region5
  $region4: #{_lambda_.15} parent=0 // pred_region
    _
  $region5: #{_lambda_.15} parent=0 // pred_fallthru
    _
  // Predicated region
  $region6: #{_lambda_.15} parent=0 // pred_check
    _
  $region7: #{_lambda_.15} parent=0 // pred_check_branch
    %11 = sbr.rel (0) target = $region9
  $region8: #{_lambda_.15} parent=0 // pred_region
    _
  $region9: #{_lambda_.15} parent=0 // pred_fallthru
    _
  // Predicated region
  $region10: #{_lambda_.15} parent=0 // pred_check
    _
  $region11: #{_lambda_.15} parent=0 // pred_check_branch
    %13 = sbr.rel (0) target = $region13
  $region12: #{_lambda_.15} parent=0 // pred_region
    _
  $region13: #{_lambda_.15} parent=0 // pred_fallthru
    _
  %p14 = scmp.eq.s32.totalorder 0, 0
  // Predicated region
  $region14: #{_lambda_.15} parent=0 // pred_check
    %p15 = pneg %p14
  $region15: #{_lambda_.15} parent=0 // pred_check_branch
    %17 = sbr.rel (%p15) target = $region17
  $region16: #{_lambda_.15} parent=0 // pred_region
    %v18 = vlaneseq
    %vm19 = vcmp.ge.s32.totalorder %v18, 0
    %vm20 = vcmp.lt.s32.totalorder %v18, 256
    %vm21 = vmand %vm19, %vm20
    %22 = vst.msk [vmem:[%s3] sm:$0x3] %vm21, 0.0
  $region17: #{_lambda_.15} parent=0 // pred_fallthru
    _
  %v23 = vld [vmem:[%s3] sm:$0x3]
  %v24 = vld [vmem:[%s0] sm:$0x3]
  %v26 = vlaneseq
  %v27 = vshrl.u32 %v26, 7
  %v28 = vsub.s32 0, %v27
  %v29 = vrot.slane %v24, %v28
  %v30 = vlaneseq
  %v31 = vshrl.u32 %v30, 7
  %v32 = vsub.s32 1, %v31
  %v33 = vrot.slane %v24, %v32
  %v36 = vpack.c.bf16 %v29, %v29
  %v37 = vpack.c.bf16 %v33, %v33
  %v38 = vld [vmem:[%s1] sm:$0xff]
  %v39 = vld [vmem:[%s1 + $0x8] sm:$0xff]
  %v40 = vld [vmem:[%s1 + $0x10] sm:$0xff]
  %v41 = vld [vmem:[%s1 + $0x18] sm:$0xff]
  %v42 = vld [vmem:[%s1 + $0x20] sm:$0xff]
  %v43 = vld [vmem:[%s1 + $0x28] sm:$0xff]
  %v44 = vld [vmem:[%s1 + $0x30] sm:$0xff]
  %v45 = vld [vmem:[%s1 + $0x38] sm:$0xff]
  %v46 = vld [vmem:[%s1 + $0x40] sm:$0xff]
  %v47 = vld [vmem:[%s1 + $0x48] sm:$0xff]
  %v48 = vld [vmem:[%s1 + $0x50] sm:$0xff]
  %v49 = vld [vmem:[%s1 + $0x58] sm:$0xff]
  %v50 = vld [vmem:[%s1 + $0x60] sm:$0xff]
  %v51 = vld [vmem:[%s1 + $0x68] sm:$0xff]
  %v52 = vld [vmem:[%s1 + $0x70] sm:$0xff]
  %v53 = vld [vmem:[%s1 + $0x78] sm:$0xff]
  %v54 = vld [vmem:[%s1 + $0x80] sm:$0xff]
  %v55 = vld [vmem:[%s1 + $0x88] sm:$0xff]
  %v56 = vld [vmem:[%s1 + $0x90] sm:$0xff]
  %v57 = vld [vmem:[%s1 + $0x98] sm:$0xff]
  %v58 = vld [vmem:[%s1 + $0xa0] sm:$0xff]
  %v59 = vld [vmem:[%s1 + $0xa8] sm:$0xff]
  %v60 = vld [vmem:[%s1 + $0xb0] sm:$0xff]
  %v61 = vld [vmem:[%s1 + $0xb8] sm:$0xff]
  %v62 = vld [vmem:[%s1 + $0xc0] sm:$0xff]
  %v63 = vld [vmem:[%s1 + $0xc8] sm:$0xff]
  %v64 = vld [vmem:[%s1 + $0xd0] sm:$0xff]
  %v65 = vld [vmem:[%s1 + $0xd8] sm:$0xff]
  %v66 = vld [vmem:[%s1 + $0xe0] sm:$0xff]
  %v67 = vld [vmem:[%s1 + $0xe8] sm:$0xff]
  %v68 = vld [vmem:[%s1 + $0xf0] sm:$0xff]
  %v69 = vld [vmem:[%s1 + $0xf8] sm:$0xff]
  %v102 = vunpack.c.l.b16 %v38
  %v103 = vunpack.c.h.b16 %v38
  %v104 = vunpack.c.l.b16 %v39
  %v105 = vunpack.c.h.b16 %v39
  %v106 = vunpack.c.l.b16 %v40
  %v107 = vunpack.c.h.b16 %v40
  %v108 = vunpack.c.l.b16 %v41
  %v109 = vunpack.c.h.b16 %v41
  %v110 = vunpack.c.l.b16 %v42
  %v111 = vunpack.c.h.b16 %v42
  %v112 = vunpack.c.l.b16 %v43
  %v113 = vunpack.c.h.b16 %v43
  %v114 = vunpack.c.l.b16 %v44
  %v115 = vunpack.c.h.b16 %v44
  %v116 = vunpack.c.l.b16 %v45
  %v117 = vunpack.c.h.b16 %v45
  %v118 = vunpack.c.l.b16 %v46
  %v119 = vunpack.c.h.b16 %v46
  %v120 = vunpack.c.l.b16 %v47
  %v121 = vunpack.c.h.b16 %v47
  %v122 = vunpack.c.l.b16 %v48
  %v123 = vunpack.c.h.b16 %v48
  %v124 = vunpack.c.l.b16 %v49
  %v125 = vunpack.c.h.b16 %v49
  %v126 = vunpack.c.l.b16 %v50
  %v127 = vunpack.c.h.b16 %v50
  %v128 = vunpack.c.l.b16 %v51
  %v129 = vunpack.c.h.b16 %v51
  %v130 = vunpack.c.l.b16 %v52
  %v131 = vunpack.c.h.b16 %v52
  %v132 = vunpack.c.l.b16 %v53
  %v133 = vunpack.c.h.b16 %v53
  %v134 = vunpack.c.l.b16 %v54
  %v135 = vunpack.c.h.b16 %v54
  %v136 = vunpack.c.l.b16 %v55
  %v137 = vunpack.c.h.b16 %v55
  %v138 = vunpack.c.l.b16 %v56
  %v139 = vunpack.c.h.b16 %v56
  %v140 = vunpack.c.l.b16 %v57
  %v141 = vunpack.c.h.b16 %v57
  %v142 = vunpack.c.l.b16 %v58
  %v143 = vunpack.c.h.b16 %v58
  %v144 = vunpack.c.l.b16 %v59
  %v145 = vunpack.c.h.b16 %v59
  %v146 = vunpack.c.l.b16 %v60
  %v147 = vunpack.c.h.b16 %v60
  %v148 = vunpack.c.l.b16 %v61
  %v149 = vunpack.c.h.b16 %v61
  %v150 = vunpack.c.l.b16 %v62
  %v151 = vunpack.c.h.b16 %v62
  %v152 = vunpack.c.l.b16 %v63
  %v153 = vunpack.c.h.b16 %v63
  %v154 = vunpack.c.l.b16 %v64
  %v155 = vunpack.c.h.b16 %v64
  %v156 = vunpack.c.l.b16 %v65
  %v157 = vunpack.c.h.b16 %v65
  %v158 = vunpack.c.l.b16 %v66
  %v159 = vunpack.c.h.b16 %v66
  %v160 = vunpack.c.l.b16 %v67
  %v161 = vunpack.c.h.b16 %v67
  %v162 = vunpack.c.l.b16 %v68
  %v163 = vunpack.c.h.b16 %v68
  %v164 = vunpack.c.l.b16 %v69
  %v165 = vunpack.c.h.b16 %v69
  %v166 = vpack.c.b16 %v104, %v102
  %v167 = vpack.c.b16 %v105, %v103
  %v168 = vpack.c.b16 %v108, %v106
  %v169 = vpack.c.b16 %v109, %v107
  %v170 = vpack.c.b16 %v112, %v110
  %v171 = vpack.c.b16 %v113, %v111
  %v172 = vpack.c.b16 %v116, %v114
  %v173 = vpack.c.b16 %v117, %v115
  %v174 = vpack.c.b16 %v120, %v118
  %v175 = vpack.c.b16 %v121, %v119
  %v176 = vpack.c.b16 %v124, %v122
  %v177 = vpack.c.b16 %v125, %v123
  %v178 = vpack.c.b16 %v128, %v126
  %v179 = vpack.c.b16 %v129, %v127
  %v180 = vpack.c.b16 %v132, %v130
  %v181 = vpack.c.b16 %v133, %v131
  %v182 = vpack.c.b16 %v136, %v134
  %v183 = vpack.c.b16 %v137, %v135
  %v184 = vpack.c.b16 %v140, %v138
  %v185 = vpack.c.b16 %v141, %v139
  %v186 = vpack.c.b16 %v144, %v142
  %v187 = vpack.c.b16 %v145, %v143
  %v188 = vpack.c.b16 %v148, %v146
  %v189 = vpack.c.b16 %v149, %v147
  %v190 = vpack.c.b16 %v152, %v150
  %v191 = vpack.c.b16 %v153, %v151
  %v192 = vpack.c.b16 %v156, %v154
  %v193 = vpack.c.b16 %v157, %v155
  %v194 = vpack.c.b16 %v160, %v158
  %v195 = vpack.c.b16 %v161, %v159
  %v196 = vpack.c.b16 %v164, %v162
  %v197 = vpack.c.b16 %v165, %v163
  %230 = vmatprep.subr.bf16.mxu0 %v167
  %231 = vmatpush1.bf16.msra.mxu0 %v166
  %232 = vmatprep.subr.bf16.mxu0 %v169
  %233 = vmatpush1.bf16.msra.mxu0 %v168
  %234 = vmatprep.subr.bf16.mxu0 %v171
  %235 = vmatpush1.bf16.msra.mxu0 %v170
  %236 = vmatprep.subr.bf16.mxu0 %v173
  %237 = vmatpush1.bf16.msra.mxu0 %v172
  %238 = vmatprep.subr.bf16.mxu0 %v175
  %239 = vmatpush1.bf16.msra.mxu0 %v174
  %240 = vmatprep.subr.bf16.mxu0 %v177
  %241 = vmatpush1.bf16.msra.mxu0 %v176
  %242 = vmatprep.subr.bf16.mxu0 %v179
  %243 = vmatpush1.bf16.msra.mxu0 %v178
  %244 = vmatprep.subr.bf16.mxu0 %v181
  %245 = vmatpush1.bf16.msra.mxu0 %v180
  %246 = vmatprep.subr.bf16.mxu0 %v183
  %247 = vmatpush1.bf16.msra.mxu0 %v182
  %248 = vmatprep.subr.bf16.mxu0 %v185
  %249 = vmatpush1.bf16.msra.mxu0 %v184
  %250 = vmatprep.subr.bf16.mxu0 %v187
  %251 = vmatpush1.bf16.msra.mxu0 %v186
  %252 = vmatprep.subr.bf16.mxu0 %v189
  %253 = vmatpush1.bf16.msra.mxu0 %v188
  %254 = vmatprep.subr.bf16.mxu0 %v191
  %255 = vmatpush1.bf16.msra.mxu0 %v190
  %256 = vmatprep.subr.bf16.mxu0 %v193
  %257 = vmatpush1.bf16.msra.mxu0 %v192
  %258 = vmatprep.subr.bf16.mxu0 %v195
  %259 = vmatpush1.bf16.msra.mxu0 %v194
  %260 = vmatprep.subr.bf16.mxu0 %v197
  %261 = vmatpush1.bf16.msra.mxu0 %v196
  %262 = vmatprep.mubr.bf16.mxu0 %v37
  %263 = vmatmul.mubr.bf16.gmra.mrb[0].mxu0 %v36
  %v264 = vpop.f32.mrb[0].mxu0
  %v265 = vadd.f32 0.0, %v264
  %v266 = vpop.f32.mrb[0].mxu0
  %v267 = vadd.f32 0.0, %v266
  %v268 = vpop.f32.mrb[0].mxu0
  %v269 = vpop.f32.mrb[0].mxu0
  %270 = vdwg.mxu0
  %v273 = vcombine.low %v265, %v267
  %v275 = vunpack.c.l.s4 1966171168
  %v276 = vunpack.c.0.s8 %v275
  %v277 = vlaneseq
  %v278 = vshrl.u32 %v277, 7
  %v279 = vsub.s32 %v276, %v278
  %v280 = vrot.slane %v273, %v279
  %v282 = vunpack.c.l.s4 1966171168
  %v283 = vunpack.c.0.s8 %v282
  %v284 = vlaneseq
  %v285 = vshrl.u32 %v284, 7
  %v286 = vsub.s32 %v283, %v285
  %v287 = vrot.slane %v280, %v286
  %v289 = vadd.f32 %v23, %v287
  %v290 = vlaneseq
  %vm291 = vcmp.ge.s32.totalorder %v290, 0
  %vm292 = vcmp.lt.s32.totalorder %v290, 256
  %vm293 = vmand %vm291, %vm292
  %294 = vst.msk [vmem:[%s3] sm:$0x3] %vm293, %v289
  // Predicated region
  $region18: #{_lambda_.15} parent=0 // pred_check
    %p295 = pneg %p14
  $region19: #{_lambda_.15} parent=0 // pred_check_branch
    %297 = sbr.rel (%p295) target = $region21
  $region20: #{_lambda_.15} parent=0 // pred_region
    %v298 = vld [vmem:[%s3] sm:$0x3]
    %v299 = vld [vmem:[%s2] sm:$0x3]
    %v300 = vadd.f32 %v298, %v299
    %v301 = vmax.f32 %v300, 0.0
    %302 = vst.msk [vmem:[%s3] sm:$0x3] %vm293, %v301
  $region21: #{_lambda_.15} parent=0 // pred_fallthru
    _
  // Predicated region
  $region22: #{_lambda_.15} parent=0 // pred_check
    _
  $region23: #{_lambda_.15} parent=0 // pred_check_branch
    %304 = sbr.rel (0) target = $region25
  $region24: #{_lambda_.15} parent=0 // pred_region
    _
  $region25: #{_lambda_.15} parent=0 // pred_fallthru
    _
  // Predicated region
  $region26: #{_lambda_.15} parent=0 // pred_check
    _
  $region27: #{_lambda_.15} parent=0 // pred_check_branch
    %306 = sbr.rel (0) target = $region29
  $region28: #{_lambda_.15} parent=0 // pred_region
    _
  $region29: #{_lambda_.15} parent=0 // pred_fallthru
    _

// kernel: _lambda_.16
$region0: #{_lambda_.16}
  #allocation0 [shape = 'u32[]', space=smem, size = 0x4, offset = 0x4, fixed_abs, tag = 'smem constant byte address 0x4 - core index']
  #allocation1 [shape = 'u32[144,128]{1,0:T(1,128)}', space=vmem, size = 0x12000, scoped, tag = 'internal scratch']
  %s0 = inlined_call_operand.vmem [shape: f32[1,256], index: 0, kind: input, shape index: {}]
  %s1 = inlined_call_operand.vmem [shape: bf16[256,128], index: 1, kind: input, shape index: {}]
  %s2 = inlined_call_operand.vmem [shape: f32[1,128], index: 2, kind: input, shape index: {}]
  %s3 = inlined_call_operand.vmem [shape: f32[1,128], index: 3, kind: output, shape index: {}]
  %s4 = sld [smem:[#allocation0]]
  $region30: #{_lambda_.16} parent=0
    _
  %s6 = ssub.s32 1, %s4
  %s7 = scalar_select 0, %s6, %s4
  // Predicated region
  $region2: #{_lambda_.16} parent=0 // pred_check
    _
  $region3: #{_lambda_.16} parent=0 // pred_check_branch
    %9 = sbr.rel (0) target = $region5
  $region4: #{_lambda_.16} parent=0 // pred_region
    _
  $region5: #{_lambda_.16} parent=0 // pred_fallthru
    _
  // Predicated region
  $region6: #{_lambda_.16} parent=0 // pred_check
    _
  $region7: #{_lambda_.16} parent=0 // pred_check_branch
    %11 = sbr.rel (0) target = $region9
  $region8: #{_lambda_.16} parent=0 // pred_region
    _
  $region9: #{_lambda_.16} parent=0 // pred_fallthru
    _
  // Predicated region
  $region10: #{_lambda_.16} parent=0 // pred_check
    _
  $region11: #{_lambda_.16} parent=0 // pred_check_branch
    %13 = sbr.rel (0) target = $region13
  $region12: #{_lambda_.16} parent=0 // pred_region
    _
  $region13: #{_lambda_.16} parent=0 // pred_fallthru
    _
  %p15 = scmp.eq.s32.totalorder 0, 0
  // Predicated region
  $region14: #{_lambda_.16} parent=0 // pred_check
    %p16 = pneg %p15
  $region15: #{_lambda_.16} parent=0 // pred_check_branch
    %18 = sbr.rel (%p16) target = $region17
  $region16: #{_lambda_.16} parent=0 // pred_region
    %19 = vst [vmem:[%s3] sm:$0x1] 0.0
  $region17: #{_lambda_.16} parent=0 // pred_fallthru
    _
  %v20 = vld [vmem:[%s3] sm:$0x1]
  %v21 = vld [vmem:[%s0] sm:$0x3]
  %v23 = vlaneseq
  %v24 = vshrl.u32 %v23, 7
  %v25 = vsub.s32 0, %v24
  %v26 = vrot.slane %v21, %v25
  %v27 = vlaneseq
  %v28 = vshrl.u32 %v27, 7
  %v29 = vsub.s32 1, %v28
  %v30 = vrot.slane %v21, %v29
  %v33 = vpack.c.bf16 %v26, %v26
  %v34 = vpack.c.bf16 %v30, %v30
  %v35 = vld [vmem:[%s1] sm:$0xf]
  %v36 = vld [vmem:[%s1 + $0x4] sm:$0xf]
  %v37 = vld [vmem:[%s1 + $0x8] sm:$0xf]
  %v38 = vld [vmem:[%s1 + $0xc] sm:$0xf]
  %v39 = vld [vmem:[%s1 + $0x10] sm:$0xf]
  %v40 = vld [vmem:[%s1 + $0x14] sm:$0xf]
  %v41 = vld [vmem:[%s1 + $0x18] sm:$0xf]
  %v42 = vld [vmem:[%s1 + $0x1c] sm:$0xf]
  %v43 = vld [vmem:[%s1 + $0x20] sm:$0xf]
  %v44 = vld [vmem:[%s1 + $0x24] sm:$0xf]
  %v45 = vld [vmem:[%s1 + $0x28] sm:$0xf]
  %v46 = vld [vmem:[%s1 + $0x2c] sm:$0xf]
  %v47 = vld [vmem:[%s1 + $0x30] sm:$0xf]
  %v48 = vld [vmem:[%s1 + $0x34] sm:$0xf]
  %v49 = vld [vmem:[%s1 + $0x38] sm:$0xf]
  %v50 = vld [vmem:[%s1 + $0x3c] sm:$0xf]
  %v51 = vld [vmem:[%s1 + $0x40] sm:$0xf]
  %v52 = vld [vmem:[%s1 + $0x44] sm:$0xf]
  %v53 = vld [vmem:[%s1 + $0x48] sm:$0xf]
  %v54 = vld [vmem:[%s1 + $0x4c] sm:$0xf]
  %v55 = vld [vmem:[%s1 + $0x50] sm:$0xf]
  %v56 = vld [vmem:[%s1 + $0x54] sm:$0xf]
  %v57 = vld [vmem:[%s1 + $0x58] sm:$0xf]
  %v58 = vld [vmem:[%s1 + $0x5c] sm:$0xf]
  %v59 = vld [vmem:[%s1 + $0x60] sm:$0xf]
  %v60 = vld [vmem:[%s1 + $0x64] sm:$0xf]
  %v61 = vld [vmem:[%s1 + $0x68] sm:$0xf]
  %v62 = vld [vmem:[%s1 + $0x6c] sm:$0xf]
  %v63 = vld [vmem:[%s1 + $0x70] sm:$0xf]
  %v64 = vld [vmem:[%s1 + $0x74] sm:$0xf]
  %v65 = vld [vmem:[%s1 + $0x78] sm:$0xf]
  %v66 = vld [vmem:[%s1 + $0x7c] sm:$0xf]
  %v99 = vunpack.c.l.b16 %v35
  %v100 = vunpack.c.l.b16 %v36
  %v101 = vunpack.c.l.b16 %v37
  %v102 = vunpack.c.l.b16 %v38
  %v103 = vunpack.c.l.b16 %v39
  %v104 = vunpack.c.l.b16 %v40
  %v105 = vunpack.c.l.b16 %v41
  %v106 = vunpack.c.l.b16 %v42
  %v107 = vunpack.c.l.b16 %v43
  %v108 = vunpack.c.l.b16 %v44
  %v109 = vunpack.c.l.b16 %v45
  %v110 = vunpack.c.l.b16 %v46
  %v111 = vunpack.c.l.b16 %v47
  %v112 = vunpack.c.l.b16 %v48
  %v113 = vunpack.c.l.b16 %v49
  %v114 = vunpack.c.l.b16 %v50
  %v115 = vunpack.c.l.b16 %v51
  %v116 = vunpack.c.l.b16 %v52
  %v117 = vunpack.c.l.b16 %v53
  %v118 = vunpack.c.l.b16 %v54
  %v119 = vunpack.c.l.b16 %v55
  %v120 = vunpack.c.l.b16 %v56
  %v121 = vunpack.c.l.b16 %v57
  %v122 = vunpack.c.l.b16 %v58
  %v123 = vunpack.c.l.b16 %v59
  %v124 = vunpack.c.l.b16 %v60
  %v125 = vunpack.c.l.b16 %v61
  %v126 = vunpack.c.l.b16 %v62
  %v127 = vunpack.c.l.b16 %v63
  %v128 = vunpack.c.l.b16 %v64
  %v129 = vunpack.c.l.b16 %v65
  %v130 = vunpack.c.l.b16 %v66
  %v131 = vpack.c.b16 %v100, %v99
  %v132 = vpack.c.b16 %v102, %v101
  %v133 = vpack.c.b16 %v104, %v103
  %v134 = vpack.c.b16 %v106, %v105
  %v135 = vpack.c.b16 %v108, %v107
  %v136 = vpack.c.b16 %v110, %v109
  %v137 = vpack.c.b16 %v112, %v111
  %v138 = vpack.c.b16 %v114, %v113
  %v139 = vpack.c.b16 %v116, %v115
  %v140 = vpack.c.b16 %v118, %v117
  %v141 = vpack.c.b16 %v120, %v119
  %v142 = vpack.c.b16 %v122, %v121
  %v143 = vpack.c.b16 %v124, %v123
  %v144 = vpack.c.b16 %v126, %v125
  %v145 = vpack.c.b16 %v128, %v127
  %v146 = vpack.c.b16 %v130, %v129
  %163 = vmatprep.subr.bf16.mxu0 0
  %164 = vmatpush1.bf16.msra.mxu0 %v131
  %165 = vmatprep.subr.bf16.mxu0 0
  %166 = vmatpush1.bf16.msra.mxu0 %v132
  %167 = vmatprep.subr.bf16.mxu0 0
  %168 = vmatpush1.bf16.msra.mxu0 %v133
  %169 = vmatprep.subr.bf16.mxu0 0
  %170 = vmatpush1.bf16.msra.mxu0 %v134
  %171 = vmatprep.subr.bf16.mxu0 0
  %172 = vmatpush1.bf16.msra.mxu0 %v135
  %173 = vmatprep.subr.bf16.mxu0 0
  %174 = vmatpush1.bf16.msra.mxu0 %v136
  %175 = vmatprep.subr.bf16.mxu0 0
  %176 = vmatpush1.bf16.msra.mxu0 %v137
  %177 = vmatprep.subr.bf16.mxu0 0
  %178 = vmatpush1.bf16.msra.mxu0 %v138
  %179 = vmatprep.subr.bf16.mxu0 0
  %180 = vmatpush1.bf16.msra.mxu0 %v139
  %181 = vmatprep.subr.bf16.mxu0 0
  %182 = vmatpush1.bf16.msra.mxu0 %v140
  %183 = vmatprep.subr.bf16.mxu0 0
  %184 = vmatpush1.bf16.msra.mxu0 %v141
  %185 = vmatprep.subr.bf16.mxu0 0
  %186 = vmatpush1.bf16.msra.mxu0 %v142
  %187 = vmatprep.subr.bf16.mxu0 0
  %188 = vmatpush1.bf16.msra.mxu0 %v143
  %189 = vmatprep.subr.bf16.mxu0 0
  %190 = vmatpush1.bf16.msra.mxu0 %v144
  %191 = vmatprep.subr.bf16.mxu0 0
  %192 = vmatpush1.bf16.msra.mxu0 %v145
  %193 = vmatprep.subr.bf16.mxu0 0
  %194 = vmatpush1.bf16.msra.mxu0 %v146
  %195 = vmatprep.mubr.bf16.mxu0 %v34
  %196 = vmatmul.mubr.bf16.gmra.mrb[0].mxu0 %v33
  %v197 = vpop.f32.mrb[0].mxu0
  %v198 = vadd.f32 0.0, %v197
  %v199 = vpop.f32.mrb[0].mxu0
  %v200 = vpop.f32.mrb[0].mxu0
  %v201 = vpop.f32.mrb[0].mxu0
  %202 = vdwg.mxu0
  %v203 = vadd.f32 %v20, %v198
  %204 = vst [vmem:[%s3] sm:$0x1] %v203
  // Predicated region
  $region18: #{_lambda_.16} parent=0 // pred_check
    %p205 = pneg %p15
  $region19: #{_lambda_.16} parent=0 // pred_check_branch
    %207 = sbr.rel (%p205) target = $region21
  $region20: #{_lambda_.16} parent=0 // pred_region
    %v208 = vld [vmem:[%s3] sm:$0x1]
    %v209 = vld [vmem:[%s2] sm:$0x1]
    %v210 = vadd.f32 %v208, %v209
    %v211 = vmax.f32 %v210, 0.0
    %212 = vst [vmem:[%s3] sm:$0x1] %v211
  $region21: #{_lambda_.16} parent=0 // pred_fallthru
    _
  // Predicated region
  $region22: #{_lambda_.16} parent=0 // pred_check
    _
  $region23: #{_lambda_.16} parent=0 // pred_check_branch
    %214 = sbr.rel (0) target = $region25
  $region24: #{_lambda_.16} parent=0 // pred_region
    _
  $region25: #{_lambda_.16} parent=0 // pred_fallthru
    _
  // Predicated region
  $region26: #{_lambda_.16} parent=0 // pred_check
    _
  $region27: #{_lambda_.16} parent=0 // pred_check_branch
    %216 = sbr.rel (0) target = $region29
  $region28: #{_lambda_.16} parent=0 // pred_region
    _
  $region29: #{_lambda_.16} parent=0 // pred_fallthru
    _

// kernel: _lambda_.17
$region0: #{_lambda_.17}
  #allocation0 [shape = 'u32[]', space=smem, size = 0x4, offset = 0x4, fixed_abs, tag = 'smem constant byte address 0x4 - core index']
  #allocation1 [shape = 'u32[144,128]{1,0:T(1,128)}', space=vmem, size = 0x12000, scoped, tag = 'internal scratch']
  %s0 = inlined_call_operand.vmem [shape: f32[1,128], index: 0, kind: input, shape index: {}]
  %s1 = inlined_call_operand.vmem [shape: bf16[128,128], index: 1, kind: input, shape index: {}]
  %s2 = inlined_call_operand.vmem [shape: f32[1,128], index: 2, kind: input, shape index: {}]
  %s3 = inlined_call_operand.vmem [shape: f32[1,128], index: 3, kind: output, shape index: {}]
  %s4 = sld [smem:[#allocation0]]
  $region30: #{_lambda_.17} parent=0
    _
  %s6 = ssub.s32 1, %s4
  %s7 = scalar_select 0, %s6, %s4
  // Predicated region
  $region2: #{_lambda_.17} parent=0 // pred_check
    _
  $region3: #{_lambda_.17} parent=0 // pred_check_branch
    %9 = sbr.rel (0) target = $region5
  $region4: #{_lambda_.17} parent=0 // pred_region
    _
  $region5: #{_lambda_.17} parent=0 // pred_fallthru
    _
  // Predicated region
  $region6: #{_lambda_.17} parent=0 // pred_check
    _
  $region7: #{_lambda_.17} parent=0 // pred_check_branch
    %11 = sbr.rel (0) target = $region9
  $region8: #{_lambda_.17} parent=0 // pred_region
    _
  $region9: #{_lambda_.17} parent=0 // pred_fallthru
    _
  // Predicated region
  $region10: #{_lambda_.17} parent=0 // pred_check
    _
  $region11: #{_lambda_.17} parent=0 // pred_check_branch
    %13 = sbr.rel (0) target = $region13
  $region12: #{_lambda_.17} parent=0 // pred_region
    _
  $region13: #{_lambda_.17} parent=0 // pred_fallthru
    _
  %p15 = scmp.eq.s32.totalorder 0, 0
  // Predicated region
  $region14: #{_lambda_.17} parent=0 // pred_check
    %p16 = pneg %p15
  $region15: #{_lambda_.17} parent=0 // pred_check_branch
    %18 = sbr.rel (%p16) target = $region17
  $region16: #{_lambda_.17} parent=0 // pred_region
    %19 = vst [vmem:[%s3] sm:$0x1] 0.0
  $region17: #{_lambda_.17} parent=0 // pred_fallthru
    _
  %v20 = vld [vmem:[%s3] sm:$0x1]
  %v21 = vld [vmem:[%s0] sm:$0x1]
  %v22 = vpack.c.bf16 %v21, %v21
  %v23 = vld [vmem:[%s1] sm:$0xf]
  %v24 = vld [vmem:[%s1 + $0x4] sm:$0xf]
  %v25 = vld [vmem:[%s1 + $0x8] sm:$0xf]
  %v26 = vld [vmem:[%s1 + $0xc] sm:$0xf]
  %v27 = vld [vmem:[%s1 + $0x10] sm:$0xf]
  %v28 = vld [vmem:[%s1 + $0x14] sm:$0xf]
  %v29 = vld [vmem:[%s1 + $0x18] sm:$0xf]
  %v30 = vld [vmem:[%s1 + $0x1c] sm:$0xf]
  %v31 = vld [vmem:[%s1 + $0x20] sm:$0xf]
  %v32 = vld [vmem:[%s1 + $0x24] sm:$0xf]
  %v33 = vld [vmem:[%s1 + $0x28] sm:$0xf]
  %v34 = vld [vmem:[%s1 + $0x2c] sm:$0xf]
  %v35 = vld [vmem:[%s1 + $0x30] sm:$0xf]
  %v36 = vld [vmem:[%s1 + $0x34] sm:$0xf]
  %v37 = vld [vmem:[%s1 + $0x38] sm:$0xf]
  %v38 = vld [vmem:[%s1 + $0x3c] sm:$0xf]
  %v55 = vunpack.c.l.b16 %v23
  %v56 = vunpack.c.l.b16 %v24
  %v57 = vunpack.c.l.b16 %v25
  %v58 = vunpack.c.l.b16 %v26
  %v59 = vunpack.c.l.b16 %v27
  %v60 = vunpack.c.l.b16 %v28
  %v61 = vunpack.c.l.b16 %v29
  %v62 = vunpack.c.l.b16 %v30
  %v63 = vunpack.c.l.b16 %v31
  %v64 = vunpack.c.l.b16 %v32
  %v65 = vunpack.c.l.b16 %v33
  %v66 = vunpack.c.l.b16 %v34
  %v67 = vunpack.c.l.b16 %v35
  %v68 = vunpack.c.l.b16 %v36
  %v69 = vunpack.c.l.b16 %v37
  %v70 = vunpack.c.l.b16 %v38
  %v71 = vpack.c.b16 %v56, %v55
  %v72 = vpack.c.b16 %v58, %v57
  %v73 = vpack.c.b16 %v60, %v59
  %v74 = vpack.c.b16 %v62, %v61
  %v75 = vpack.c.b16 %v64, %v63
  %v76 = vpack.c.b16 %v66, %v65
  %v77 = vpack.c.b16 %v68, %v67
  %v78 = vpack.c.b16 %v70, %v69
  %87 = vmatprep.subr.bf16.mxu0 0
  %88 = vmatpush1.bf16.msra.mxu0 %v71
  %89 = vmatprep.subr.bf16.mxu0 0
  %90 = vmatpush1.bf16.msra.mxu0 %v72
  %91 = vmatprep.subr.bf16.mxu0 0
  %92 = vmatpush1.bf16.msra.mxu0 %v73
  %93 = vmatprep.subr.bf16.mxu0 0
  %94 = vmatpush1.bf16.msra.mxu0 %v74
  %95 = vmatprep.subr.bf16.mxu0 0
  %96 = vmatpush1.bf16.msra.mxu0 %v75
  %97 = vmatprep.subr.bf16.mxu0 0
  %98 = vmatpush1.bf16.msra.mxu0 %v76
  %99 = vmatprep.subr.bf16.mxu0 0
  %100 = vmatpush1.bf16.msra.mxu0 %v77
  %101 = vmatprep.subr.bf16.mxu0 0
  %102 = vmatpush1.bf16.msra.mxu0 %v78
  %103 = vmatprep.subr.bf16.mxu0 0
  %104 = vmatpush1.bf16.msra.mxu0 0
  %105 = vmatprep.subr.bf16.mxu0 0
  %106 = vmatpush1.bf16.msra.mxu0 0
  %107 = vmatprep.subr.bf16.mxu0 0
  %108 = vmatpush1.bf16.msra.mxu0 0
  %109 = vmatprep.subr.bf16.mxu0 0
  %110 = vmatpush1.bf16.msra.mxu0 0
  %111 = vmatprep.subr.bf16.mxu0 0
  %112 = vmatpush1.bf16.msra.mxu0 0
  %113 = vmatprep.subr.bf16.mxu0 0
  %114 = vmatpush1.bf16.msra.mxu0 0
  %115 = vmatprep.subr.bf16.mxu0 0
  %116 = vmatpush1.bf16.msra.mxu0 0
  %117 = vmatprep.subr.bf16.mxu0 0
  %118 = vmatpush1.bf16.msra.mxu0 0
  %119 = vmatprep.mubr.bf16.mxu0 0
  %120 = vmatmul.mubr.bf16.gmra.mrb[0].mxu0 %v22
  %v121 = vpop.f32.mrb[0].mxu0
  %v122 = vadd.f32 0.0, %v121
  %v123 = vpop.f32.mrb[0].mxu0
  %v124 = vpop.f32.mrb[0].mxu0
  %v125 = vpop.f32.mrb[0].mxu0
  %126 = vdwg.mxu0
  %v127 = vadd.f32 %v20, %v122
  %128 = vst [vmem:[%s3] sm:$0x1] %v127
  // Predicated region
  $region18: #{_lambda_.17} parent=0 // pred_check
    %p129 = pneg %p15
  $region19: #{_lambda_.17} parent=0 // pred_check_branch
    %131 = sbr.rel (%p129) target = $region21
  $region20: #{_lambda_.17} parent=0 // pred_region
    %v132 = vld [vmem:[%s3] sm:$0x1]
    %v133 = vld [vmem:[%s2] sm:$0x1]
    %v134 = vadd.f32 %v132, %v133
    %135 = vst [vmem:[%s3] sm:$0x1] %v134
  $region21: #{_lambda_.17} parent=0 // pred_fallthru
    _
  // Predicated region
  $region22: #{_lambda_.17} parent=0 // pred_check
    _
  $region23: #{_lambda_.17} parent=0 // pred_check_branch
    %137 = sbr.rel (0) target = $region25
  $region24: #{_lambda_.17} parent=0 // pred_region
    _
  $region25: #{_lambda_.17} parent=0 // pred_fallthru
    _
  // Predicated region
  $region26: #{_lambda_.17} parent=0 // pred_check
    _
  $region27: #{_lambda_.17} parent=0 // pred_check_branch
    %139 = sbr.rel (0) target = $region29
  $region28: #{_lambda_.17} parent=0 // pred_region
    _
  $region29: #{_lambda_.17} parent=0 // pred_fallthru
    _

</llo_original>
